<compile_context>
chip_gen: v7x
topology: tpu7x:2x2x1
jax: 0.10.0
libtpu: 0.0.40
codegen_flags: <defaults>
</compile_context>

<pallas_src>
import functools

import numpy as np
import jax
import jax.numpy as jnp
from jax import lax
from jax.experimental import pallas as pl
from jax.experimental.pallas import tpu as pltpu

NEG_SLOPE = 0.01   # nn.LeakyReLU default
EPS = 1e-5         # nn.InstanceNorm3d default
LANE = 128


def _round_up(x, m):
    return (x + m - 1) // m * m


def _chip_budget():
    """(S-tile cap, scoped-VMEM limit) gated on the chip generation."""
    try:
        info = pltpu.get_tpu_info()
        vmem = int(getattr(info, "vmem_capacity_bytes", 128 << 20))
    except Exception:
        vmem = 128 << 20
    if vmem >= (100 << 20):        # v5e / v6e: 128 MiB VMEM -> bigger tiles
        return 1024, 64 << 20
    return 512, 40 << 20           # v7x: 64 MiB per TensorCore -> stay under budget


_TS_CAP, _VMEM_LIMIT = _chip_budget()


def _pick_s(S):
    # S-tile: multiple of 16 (bf16 sublane packing), capped per generation.
    ts = min(_TS_CAP, _round_up(S, 16))
    return _round_up(S, ts), ts


def _pick_k(K):
    Kp = _round_up(K, LANE)
    if Kp <= 2048:
        return Kp, Kp
    for tk in range(2048, 0, -LANE):
        if Kp % tk == 0:
            return Kp, tk
    return Kp, LANE


# ---------------------------------------------------------------------------
# Pallas kernels
# ---------------------------------------------------------------------------
def _conv1_stats_kernel(p_ref, w_ref, b_ref, y_ref, mean_ref, rstd_ref,
                        acc_ref, sum_ref, sq_ref, *, s_real, ts, mask_rows):
    """Tiled matmul (im2col conv1) + bias fused with per-(n,c) InstanceNorm stats.

    Grid = (N, S_tiles, K_tiles); K is the reduction axis (innermost)."""
    s = pl.program_id(1)
    k = pl.program_id(2)
    ns = pl.num_programs(1)
    nk = pl.num_programs(2)

    @pl.when(k == 0)
    def _init_acc():
        acc_ref[...] = jnp.zeros_like(acc_ref)

    @pl.when((s == 0) & (k == 0))
    def _init_stats():
        sum_ref[...] = jnp.zeros_like(sum_ref)
        sq_ref[...] = jnp.zeros_like(sq_ref)

    acc_ref[...] += jnp.dot(p_ref[...], w_ref[...],
                            preferred_element_type=jnp.float32)

    @pl.when(k == nk - 1)
    def _epilogue():
        yb = (acc_ref[...] + b_ref[...]).astype(y_ref.dtype)   # bf16 store
        y_ref[...] = yb
        yf = yb.astype(jnp.float32)                            # stats from stored values
        if mask_rows:   # static: only when S does not divide the S-tile
            row = s * ts + lax.broadcasted_iota(jnp.int32, (ts, 1), 0)
            yf = yf * (row < s_real).astype(jnp.float32)
        sum_ref[...] += jnp.sum(yf, axis=0, keepdims=True)
        sq_ref[...] += jnp.sum(yf * yf, axis=0, keepdims=True)

        @pl.when(s == ns - 1)
        def _finalize():
            inv = 1.0 / s_real
            mean = sum_ref[...] * inv
            var = jnp.maximum(sq_ref[...] * inv - mean * mean, 0.0)
            mean_ref[...] = mean
            rstd_ref[...] = lax.rsqrt(var + EPS)


def _conv2_stats_kernel(x0_ref, x1_ref, x2_ref, w_ref, b_ref, mask_ref,
                        y_ref, mean_ref, rstd_ref,
                        acc_ref, sum_ref, sq_ref, *, wp, l_out, s_real):
    """Per-tap 3x3x3 stride-1 conv: three halo'd padded D-slices arrive per grid step,
    the 9 (kh,kw) taps are static in-VMEM slices of the HW-flattened slice.
    Grid = (N, Do); D-axis carries the InstanceNorm stats scratch ("arbitrary")."""
    d = pl.program_id(1)
    nd = pl.num_programs(1)

    @pl.when(d == 0)
    def _init_stats():
        sum_ref[...] = jnp.zeros_like(sum_ref)
        sq_ref[...] = jnp.zeros_like(sq_ref)

    acc_ref[...] = jnp.zeros_like(acc_ref)
    for kd, x_ref in enumerate((x0_ref, x1_ref, x2_ref)):
        for kh in range(3):
            for kw in range(3):
                off = kh * wp + kw                              # static shift
                lhs = x_ref[pl.ds(off, l_out), :]               # (L2, C2) bf16
                acc_ref[...] += jnp.dot(lhs, w_ref[kd * 9 + kh * 3 + kw],
                                        preferred_element_type=jnp.float32)

    yb = (acc_ref[...] + b_ref[...]).astype(y_ref.dtype)        # bf16 store
    y_ref[...] = yb
    ym = yb.astype(jnp.float32) * mask_ref[...]                 # mask garbage rows
    sum_ref[...] += jnp.sum(ym, axis=0, keepdims=True)
    sq_ref[...] += jnp.sum(ym * ym, axis=0, keepdims=True)

    @pl.when(d == nd - 1)
    def _finalize():
        inv = 1.0 / s_real
        mean = sum_ref[...] * inv
        var = jnp.maximum(sq_ref[...] * inv - mean * mean, 0.0)
        mean_ref[...] = mean
        rstd_ref[...] = lax.rsqrt(var + EPS)


def _norm_act_kernel(y_ref, mean_ref, rstd_ref, g_ref, b_ref, o_ref):
    # normalize + affine + LeakyReLU; bf16 in, bf16 out, f32 math.
    y = y_ref[...].astype(jnp.float32)
    out = g_ref[...] * ((y - mean_ref[...]) * rstd_ref[...]) + b_ref[...]
    o_ref[...] = jnp.where(out >= 0, out, NEG_SLOPE * out).astype(o_ref.dtype)


def _tail_kernel(y_ref, mean_ref, rstd_ref, g_ref, b_ref,
                 xr_ref, w3_ref, b3_ref, o_ref):
    # norm2 + fused 1x1x1 stride-2 residual conv + add + LeakyReLU.
    res = jnp.dot(xr_ref[...], w3_ref[...],
                  preferred_element_type=jnp.float32) + b3_ref[...]
    yhat = (y_ref[...].astype(jnp.float32) - mean_ref[...]) * rstd_ref[...]
    out = g_ref[...] * yhat + b_ref[...] + res
    o_ref[...] = jnp.where(out >= 0, out, NEG_SLOPE * out)


# ---------------------------------------------------------------------------
# Pallas wrappers
# ---------------------------------------------------------------------------
def conv_matmul_stats(patches, w2d, bias):
    """conv1: patches (N,S,K) bf16, w2d (K,Cout) f32, bias (Cout,) f32.
    Returns bf16 y (N,Sp,Cpad), f32 mean/rstd (N,1,Cpad), and the padded layout."""
    N, S, K = patches.shape
    Cout = w2d.shape[1]
    Cpad = _round_up(Cout, LANE)
    Sp, TS = _pick_s(S)
    Kp, TK = _pick_k(K)

    p = jnp.pad(patches, ((0, 0), (0, Sp - S), (0, Kp - K)))
    w = jnp.pad(w2d, ((0, Kp - K), (0, Cpad - Cout))).astype(jnp.bfloat16)
    b = jnp.pad(bias, (0, Cpad - Cout)).reshape(1, Cpad).astype(jnp.float32)

    kernel = functools.partial(_conv1_stats_kernel, s_real=S, ts=TS,
                               mask_rows=(S % TS != 0))
    y, mean, rstd = pl.pallas_call(
        kernel,
        out_shape=(jax.ShapeDtypeStruct((N, Sp, Cpad), jnp.bfloat16),
                   jax.ShapeDtypeStruct((N, 1, Cpad), jnp.float32),
                   jax.ShapeDtypeStruct((N, 1, Cpad), jnp.float32)),
        grid=(N, Sp // TS, Kp // TK),
        in_specs=[
            pl.BlockSpec((None, TS, TK), lambda n, s, k: (n, s, k)),
            pl.BlockSpec((TK, Cpad), lambda n, s, k: (k, 0)),
            pl.BlockSpec((1, Cpad), lambda n, s, k: (0, 0)),
        ],
        out_specs=(
            pl.BlockSpec((None, TS, Cpad), lambda n, s, k: (n, s, 0)),
            pl.BlockSpec((None, 1, Cpad), lambda n, s, k: (n, 0, 0)),
            pl.BlockSpec((None, 1, Cpad), lambda n, s, k: (n, 0, 0)),
        ),
        scratch_shapes=[
            pltpu.VMEM((TS, Cpad), jnp.float32),
            pltpu.VMEM((1, Cpad), jnp.float32),
            pltpu.VMEM((1, Cpad), jnp.float32),
        ],
        compiler_params=pltpu.CompilerParams(
            dimension_semantics=("parallel", "arbitrary", "arbitrary"),
            vmem_limit_bytes=_VMEM_LIMIT),
    )(p, w, b)
    return y, mean, rstd, (S, Cout, Sp, TS, Cpad)


def norm_act(y, mean, rstd, gamma, beta, layout):
    S, Cout, Sp, TS, Cpad = layout
    N = y.shape[0]
    g = jnp.pad(gamma, (0, Cpad - Cout)).reshape(1, Cpad).astype(jnp.float32)
    b = jnp.pad(beta, (0, Cpad - Cout)).reshape(1, Cpad).astype(jnp.float32)
    return pl.pallas_call(
        _norm_act_kernel,
        out_shape=jax.ShapeDtypeStruct((N, Sp, Cpad), jnp.bfloat16),
        grid=(N, Sp // TS),
        in_specs=[
            pl.BlockSpec((None, TS, Cpad), lambda n, s: (n, s, 0)),
            pl.BlockSpec((None, 1, Cpad), lambda n, s: (n, 0, 0)),
            pl.BlockSpec((None, 1, Cpad), lambda n, s: (n, 0, 0)),
            pl.BlockSpec((1, Cpad), lambda n, s: (0, 0)),
            pl.BlockSpec((1, Cpad), lambda n, s: (0, 0)),
        ],
        out_specs=pl.BlockSpec((None, TS, Cpad), lambda n, s: (n, s, 0)),
        compiler_params=pltpu.CompilerParams(
            dimension_semantics=("parallel", "parallel"),
            vmem_limit_bytes=_VMEM_LIMIT),
    )(y, mean, rstd, g, b)


def _dslice_flatten(v):
    """(N,Do,Ho,Wo,C) -> spatially zero-padded, per-D-slice HW-flattened (N,Do+2,R2,C) bf16
    plus the geometry tuple (Do, Ho, Wo, Wp, L2, R2)."""
    N, Do, Ho, Wo, C = v.shape
    Dp, Hp, Wp = Do + 2, Ho + 2, Wo + 2
    L2 = _round_up(Ho * Wp, 16)                 # output rows per D-slice (incl. garbage cols)
    R2 = _round_up(L2 + 2 * Wp + 2, 16)         # enough slack for the largest tap shift
    vp = jnp.pad(v, ((0, 0), (1, 1), (1, 1), (1, 1), (0, 0))).astype(jnp.bfloat16)
    flat = vp.reshape(N, Dp, Hp * Wp, C)
    flat = jnp.pad(flat, ((0, 0), (0, 0), (0, R2 - Hp * Wp), (0, 0)))
    return flat, (Do, Ho, Wo, Wp, L2, R2)


def conv2_pertap_stats(xflat, w_tap, bias, geom, Cpad):
    """xflat (N,Dp,R2,C2) bf16; w_tap (27,C2,Cpad) bf16; bias (Cout,) f32."""
    N, Dp, R2, C2 = xflat.shape
    Do, Ho, Wo, Wp, L2, _ = geom
    Cout = bias.shape[0]
    b = jnp.pad(bias, (0, Cpad - Cout)).reshape(1, Cpad).astype(jnp.float32)

    j = np.arange(L2)
    mask = ((j < Ho * Wp) & ((j % Wp) < Wo)).astype(np.float32).reshape(L2, 1)
    mask = jnp.asarray(mask)

    kernel = functools.partial(_conv2_stats_kernel, wp=Wp, l_out=L2,
                               s_real=Do * Ho * Wo)
    # TODO(synk): for v7x also split the Cpad axis as a second "parallel" grid dim once
    #             Cout exceeds one lane tile (stats are per-channel, so it splits cleanly).
    y2, m2, r2 = pl.pallas_call(
        kernel,
        out_shape=(jax.ShapeDtypeStruct((N, Do * L2, Cpad), jnp.bfloat16),
                   jax.ShapeDtypeStruct((N, 1, Cpad), jnp.float32),
                   jax.ShapeDtypeStruct((N, 1, Cpad), jnp.float32)),
        grid=(N, Do),
        in_specs=[
            pl.BlockSpec((None, None, R2, C2), lambda n, d: (n, d, 0, 0)),
            pl.BlockSpec((None, None, R2, C2), lambda n, d: (n, d + 1, 0, 0)),
            pl.BlockSpec((None, None, R2, C2), lambda n, d: (n, d + 2, 0, 0)),
            pl.BlockSpec((27, C2, Cpad), lambda n, d: (0, 0, 0)),
            pl.BlockSpec((1, Cpad), lambda n, d: (0, 0)),
            pl.BlockSpec((L2, 1), lambda n, d: (0, 0)),
        ],
        out_specs=(
            pl.BlockSpec((None, L2, Cpad), lambda n, d: (n, d, 0)),
            pl.BlockSpec((None, 1, Cpad), lambda n, d: (n, 0, 0)),
            pl.BlockSpec((None, 1, Cpad), lambda n, d: (n, 0, 0)),
        ),
        scratch_shapes=[
            pltpu.VMEM((L2, Cpad), jnp.float32),
            pltpu.VMEM((1, Cpad), jnp.float32),
            pltpu.VMEM((1, Cpad), jnp.float32),
        ],
        compiler_params=pltpu.CompilerParams(
            dimension_semantics=("parallel", "arbitrary"),
            vmem_limit_bytes=_VMEM_LIMIT),
    )(xflat, xflat, xflat, w_tap, b, mask)
    return y2, m2, r2


def norm_residual_act(y2, m2, r2, gamma, beta, xr, w3_2d, b3, geom, Cout, Cpad):
    N = y2.shape[0]
    Do, Ho, Wo, Wp, L2, _ = geom
    Cin = xr.shape[-1]
    g = jnp.pad(gamma, (0, Cpad - Cout)).reshape(1, Cpad).astype(jnp.float32)
    b = jnp.pad(beta, (0, Cpad - Cout)).reshape(1, Cpad).astype(jnp.float32)
    w3 = jnp.pad(w3_2d, ((0, 0), (0, Cpad - Cout))).astype(jnp.bfloat16)
    b3p = jnp.pad(b3, (0, Cpad - Cout)).reshape(1, Cpad).astype(jnp.float32)
    return pl.pallas_call(
        _tail_kernel,
        out_shape=jax.ShapeDtypeStruct((N, Do * L2, Cpad), jnp.float32),
        grid=(N, Do),
        in_specs=[
            pl.BlockSpec((None, L2, Cpad), lambda n, d: (n, d, 0)),
            pl.BlockSpec((None, 1, Cpad), lambda n, d: (n, 0, 0)),
            pl.BlockSpec((None, 1, Cpad), lambda n, d: (n, 0, 0)),
            pl.BlockSpec((1, Cpad), lambda n, d: (0, 0)),
            pl.BlockSpec((1, Cpad), lambda n, d: (0, 0)),
            pl.BlockSpec((None, L2, Cin), lambda n, d: (n, d, 0)),
            pl.BlockSpec((Cin, Cpad), lambda n, d: (0, 0)),
            pl.BlockSpec((1, Cpad), lambda n, d: (0, 0)),
        ],
        out_specs=pl.BlockSpec((None, L2, Cpad), lambda n, d: (n, d, 0)),
        compiler_params=pltpu.CompilerParams(
            dimension_semantics=("parallel", "parallel"),
            vmem_limit_bytes=_VMEM_LIMIT),
    )(y2, m2, r2, g, b, xr, w3, b3p)


# ---------------------------------------------------------------------------
# Glue: im2col (conv1 only) in plain JAX
# ---------------------------------------------------------------------------
def _im2col_3d(x, k, stride, padding):
    # x: (N, D, H, W, C) channels-last, bf16
    N, D, H, W, C = x.shape
    xp = jnp.pad(x, ((0, 0), (padding, padding), (padding, padding),
                     (padding, padding), (0, 0)))
    Do = (D + 2 * padding - k) // stride + 1
    Ho = (H + 2 * padding - k) // stride + 1
    Wo = (W + 2 * padding - k) // stride + 1
    cols = []
    for kd in range(k):
        for kh in range(k):
            for kw in range(k):
                cols.append(xp[:, kd:kd + Do * stride:stride,
                               kh:kh + Ho * stride:stride,
                               kw:kw + Wo * stride:stride, :])
    patches = jnp.stack(cols, axis=-2)                    # (N, Do, Ho, Wo, k^3, C)
    return patches.reshape(N, Do * Ho * Wo, k * k * k * C), (Do, Ho, Wo)


# ---------------------------------------------------------------------------
# Full block forward (PyTorch semantics)
# ---------------------------------------------------------------------------
def downsampling_block(x_ncdhw, params):
    x = jnp.transpose(x_ncdhw, (0, 2, 3, 4, 1)).astype(jnp.float32)   # -> NDHWC
    N, D, H, W, Cin = x.shape
    Cout = params["w1"].shape[0]

    # conv1 (k=3, s=2, p=1) + fused InstanceNorm stats.
    # TODO(synk): replace the XLA im2col with a stride-2 phase-slab per-tap kernel
    #             (like conv2) so the raw input is read ~1x instead of 27*Cin patches.
    patches, (Do, Ho, Wo) = _im2col_3d(x.astype(jnp.bfloat16), 3, stride=2, padding=1)
    w1_2d = jnp.transpose(params["w1"], (2, 3, 4, 1, 0)).reshape(27 * Cin, Cout)
    y1, m1, r1, lay1 = conv_matmul_stats(patches, w1_2d, params["b1"])
    S = Do * Ho * Wo
    Cpad = lay1[4]

    # norm1 + LeakyReLU (bf16, lane-dense padded channels)
    h1 = norm_act(y1, m1, r1, params["g1"], params["be1"], lay1)       # (N,Sp1,Cpad) bf16

    # conv2 (k=3, s=1, p=1): per-tap accumulation from halo'd padded D-slices.
    h1 = h1[:, :S, :Cout].reshape(N, Do, Ho, Wo, Cout)                 # small bf16 copy
    x2, geom = _dslice_flatten(h1)                                     # (N,Dp2,R2,Cout) bf16
    w2_tap = jnp.transpose(params["w2"], (2, 3, 4, 1, 0)).reshape(27, Cout, Cout)
    w2_tap = jnp.pad(w2_tap, ((0, 0), (0, 0), (0, Cpad - Cout))).astype(jnp.bfloat16)
    y2, m2, r2 = conv2_pertap_stats(x2, w2_tap, params["b2"], geom, Cpad)

    # residual path inputs in the same (Do*L2) row layout as y2
    # TODO(synk): fold this stride-2 gather into the future conv1 per-tap kernel.
    Do_, Ho_, Wo_, Wp2, L2, _ = geom
    xr = x[:, ::2, ::2, ::2, :]                                        # (N,Do,Ho,Wo,Cin)
    xr = jnp.pad(xr, ((0, 0), (0, 0), (0, 0), (0, Wp2 - Wo), (0, 0)))
    xr = xr.reshape(N, Do, Ho * Wp2, Cin)
    xr = jnp.pad(xr, ((0, 0), (0, 0), (0, L2 - Ho * Wp2), (0, 0)))
    xr = xr.reshape(N, Do * L2, Cin).astype(jnp.bfloat16)
    w3_2d = params["w3"].reshape(Cout, Cin).T                          # (Cin, Cout)

    # norm2 + fused residual 1x1x1 conv + add + LeakyReLU
    out = norm_residual_act(y2, m2, r2, params["g2"], params["be2"],
                            xr, w3_2d, params["b3"], geom, Cout, Cpad)

    out = out.reshape(N, Do, L2, Cpad)[:, :, :Ho * Wp2, :]
    out = out.reshape(N, Do, Ho, Wp2, Cpad)[:, :, :, :Wo, :Cout]
    return jnp.transpose(out, (0, 4, 1, 2, 3))                         # -> NCDHW


# ---------------------------------------------------------------------------
# Pure-JAX reference (same bf16-inputs / f32-accumulation conv math)
# ---------------------------------------------------------------------------
def ref_forward(x, params):
    x = x.astype(jnp.float32)

    def conv(v, w, b, stride, padding):
        out = lax.conv_general_dilated(
            v.astype(jnp.bfloat16), w.astype(jnp.bfloat16),
            window_strides=(stride,) * 3,
            padding=[(padding, padding)] * 3,
            dimension_numbers=("NCDHW", "OIDHW", "NCDHW"),
            preferred_element_type=jnp.float32)
        return out + b.reshape(1, -1, 1, 1, 1)

    def inorm(v, g, be):
        mean = jnp.mean(v, axis=(2, 3, 4), keepdims=True)
        var = jnp.mean(jnp.square(v - mean), axis=(2, 3, 4), keepdims=True)
        vhat = (v - mean) * lax.rsqrt(var + EPS)
        return g.reshape(1, -1, 1, 1, 1) * vhat + be.reshape(1, -1, 1, 1, 1)

    def lrelu(v):
        return jnp.where(v >= 0, v, NEG_SLOPE * v)

    y = lrelu(inorm(conv(x, params["w1"], params["b1"], 2, 1),
                    params["g1"], params["be1"]))
    y = inorm(conv(y, params["w2"], params["b2"], 1, 1),
              params["g2"], params["be2"])
    xr = conv(x, params["w3"], params["b3"], 2, 0)
    return lrelu(y + xr)


# ---------------------------------------------------------------------------
if __name__ == "__main__":
    key = jax.random.PRNGKey(0)
    N, Cin, Cout, D = 2, 4, 8, 8
    ks = jax.random.split(key, 7)

    params = dict(
        w1=0.1 * jax.random.normal(ks[0], (Cout, Cin, 3, 3, 3), jnp.float32),
        b1=0.1 * jax.random.normal(ks[1], (Cout,), jnp.float32),
        w2=0.1 * jax.random.normal(ks[2], (Cout, Cout, 3, 3, 3), jnp.float32),
        b2=0.1 * jax.random.normal(ks[3], (Cout,), jnp.float32),
        w3=0.1 * jax.random.normal(ks[4], (Cout, Cin, 1, 1, 1), jnp.float32),
        b3=0.1 * jax.random.normal(ks[5], (Cout,), jnp.float32),
        g1=jnp.ones((Cout,), jnp.float32),
        be1=jnp.zeros((Cout,), jnp.float32),
        g2=jnp.ones((Cout,), jnp.float32),
        be2=jnp.zeros((Cout,), jnp.float32),
    )

    x = jax.random.normal(ks[6], (N, Cin, D, D, D), jnp.float32)   # NCDHW like PyTorch

    fwd = jax.jit(downsampling_block)
    out = jax.block_until_ready(fwd(x, params))
    assert out.shape == (N, Cout, D // 2, D // 2, D // 2)

    ref = jax.block_until_ready(jax.jit(ref_forward)(x, params))
    np.testing.assert_allclose(np.asarray(out), np.asarray(ref), atol=3e-2, rtol=3e-2)

    print("KERNEL_OK")
</pallas_src>

<mosaic_0001>
module attributes {stable_mosaic.version = 11 : i64} {
  func.func @_norm_act_kernel(%arg0: i32, %arg1: i32, %arg2: memref<1x64x128xbf16, #tpu.memory_space<vmem>>, %arg3: memref<1x1x128xf32, #tpu.memory_space<vmem>>, %arg4: memref<1x1x128xf32, #tpu.memory_space<vmem>>, %arg5: memref<1x128xf32, #tpu.memory_space<vmem>>, %arg6: memref<1x128xf32, #tpu.memory_space<vmem>>, %arg7: memref<1x64x128xbf16, #tpu.memory_space<vmem>>) attributes {dimension_semantics = [#tpu.dimension_semantics<parallel>, #tpu.dimension_semantics<parallel>], iteration_bounds = array<i64: 2, 1>, scalar_prefetch = 0 : i64, scratch_operands = 0 : i64, tpu.core_type = #tpu.core_type<tc>, window_params = [{transform_indices = @transform_0, window_bounds = array<i64: 1, 64, 128>}, {transform_indices = @transform_1, window_bounds = array<i64: 1, 1, 128>}, {transform_indices = @transform_2, window_bounds = array<i64: 1, 1, 128>}, {pipeline_mode = #tpu.pipeline_mode<synchronous>, transform_indices = @transform_3, window_bounds = array<i64: 1, 128>}, {pipeline_mode = #tpu.pipeline_mode<synchronous>, transform_indices = @transform_4, window_bounds = array<i64: 1, 128>}, {transform_indices = @transform_5, window_bounds = array<i64: 1, 64, 128>}]} {
    %c0 = arith.constant 0 : index
    %c0_0 = arith.constant 0 : index
    %c0_1 = arith.constant 0 : index
    %0 = vector.load %arg2[%c0, %c0_0, %c0_1] : memref<1x64x128xbf16, #tpu.memory_space<vmem>>, vector<1x64x128xbf16>
    %1 = vector.shape_cast %0 : vector<1x64x128xbf16> to vector<64x128xbf16>
    %2 = arith.extf %1 : vector<64x128xbf16> to vector<64x128xf32>
    %c0_2 = arith.constant 0 : index
    %c0_3 = arith.constant 0 : index
    %3 = vector.load %arg5[%c0_2, %c0_3] : memref<1x128xf32, #tpu.memory_space<vmem>>, vector<1x128xf32>
    %c0_4 = arith.constant 0 : index
    %c0_5 = arith.constant 0 : index
    %c0_6 = arith.constant 0 : index
    %4 = vector.load %arg3[%c0_4, %c0_5, %c0_6] : memref<1x1x128xf32, #tpu.memory_space<vmem>>, vector<1x1x128xf32>
    %5 = vector.shape_cast %4 : vector<1x1x128xf32> to vector<1x128xf32>
    %6 = vector.broadcast %5 : vector<1x128xf32> to vector<64x128xf32>
    %7 = arith.subf %2, %6 : vector<64x128xf32>
    %c0_7 = arith.constant 0 : index
    %c0_8 = arith.constant 0 : index
    %c0_9 = arith.constant 0 : index
    %8 = vector.load %arg4[%c0_7, %c0_8, %c0_9] : memref<1x1x128xf32, #tpu.memory_space<vmem>>, vector<1x1x128xf32>
    %9 = vector.shape_cast %8 : vector<1x1x128xf32> to vector<1x128xf32>
    %10 = vector.broadcast %9 : vector<1x128xf32> to vector<64x128xf32>
    %11 = arith.mulf %7, %10 : vector<64x128xf32>
    %12 = vector.broadcast %3 : vector<1x128xf32> to vector<64x128xf32>
    %13 = arith.mulf %12, %11 : vector<64x128xf32>
    %c0_10 = arith.constant 0 : index
    %c0_11 = arith.constant 0 : index
    %14 = vector.load %arg6[%c0_10, %c0_11] : memref<1x128xf32, #tpu.memory_space<vmem>>, vector<1x128xf32>
    %15 = vector.broadcast %14 : vector<1x128xf32> to vector<64x128xf32>
    %16 = arith.addf %13, %15 : vector<64x128xf32>
    %cst = arith.constant 0.000000e+00 : f32
    %17 = vector.broadcast %cst : f32 to vector<64x128xf32>
    %18 = arith.cmpf oge, %16, %17 : vector<64x128xf32>
    %cst_12 = arith.constant 0.00999999977 : f32
    %19 = vector.broadcast %cst_12 : f32 to vector<64x128xf32>
    %20 = arith.mulf %19, %16 : vector<64x128xf32>
    %21 = arith.select %18, %16, %20 : vector<64x128xi1>, vector<64x128xf32>
    %22 = arith.truncf %21 : vector<64x128xf32> to vector<64x128xbf16>
    %c0_13 = arith.constant 0 : index
    %c0_14 = arith.constant 0 : index
    %c0_15 = arith.constant 0 : index
    %23 = vector.load %arg7[%c0_13, %c0_14, %c0_15] : memref<1x64x128xbf16, #tpu.memory_space<vmem>>, vector<1x64x128xbf16>
    %24 = vector.shape_cast %23 : vector<1x64x128xbf16> to vector<64x128xbf16>
    %25 = vector.shape_cast %22 : vector<64x128xbf16> to vector<1x64x128xbf16>
    tpu.vector_store %arg7[%c0_13, %c0_14, %c0_15], %25 {strides = array<i32>} : memref<1x64x128xbf16, #tpu.memory_space<vmem>>, vector<1x64x128xbf16>,
    return
  }
  func.func @transform_0(%arg0: i32, %arg1: i32) -> (i32, i32, i32) {
    %c0_i32 = arith.constant 0 : i32
    %c0_i32_0 = arith.constant 0 : i32
    return %arg0, %arg1, %c0_i32 : i32, i32, i32
  }
  func.func @transform_1(%arg0: i32, %arg1: i32) -> (i32, i32, i32) {
    %c0_i32 = arith.constant 0 : i32
    %c0_i32_0 = arith.constant 0 : i32
    %c0_i32_1 = arith.constant 0 : i32
    return %arg0, %c0_i32, %c0_i32_0 : i32, i32, i32
  }
  func.func @transform_2(%arg0: i32, %arg1: i32) -> (i32, i32, i32) {
    %c0_i32 = arith.constant 0 : i32
    %c0_i32_0 = arith.constant 0 : i32
    %c0_i32_1 = arith.constant 0 : i32
    return %arg0, %c0_i32, %c0_i32_0 : i32, i32, i32
  }
  func.func @transform_3(%arg0: i32, %arg1: i32) -> (i32, i32) {
    %c0_i32 = arith.constant 0 : i32
    %c0_i32_0 = arith.constant 0 : i32
    %c0_i32_1 = arith.constant 0 : i32
    return %c0_i32, %c0_i32_0 : i32, i32
  }
  func.func @transform_4(%arg0: i32, %arg1: i32) -> (i32, i32) {
    %c0_i32 = arith.constant 0 : i32
    %c0_i32_0 = arith.constant 0 : i32
    %c0_i32_1 = arith.constant 0 : i32
    return %c0_i32, %c0_i32_0 : i32, i32
  }
  func.func @transform_5(%arg0: i32, %arg1: i32) -> (i32, i32, i32) {
    %c0_i32 = arith.constant 0 : i32
    %c0_i32_0 = arith.constant 0 : i32
    return %arg0, %arg1, %c0_i32 : i32, i32, i32
  }
}

module attributes {stable_mosaic.version = 11 : i64} {
  func.func @_conv1_stats_kernel(%arg0: i32, %arg1: i32, %arg2: i32, %arg3: memref<1x64x128xbf16, #tpu.memory_space<vmem>>, %arg4: memref<128x128xbf16, #tpu.memory_space<vmem>>, %arg5: memref<1x128xf32, #tpu.memory_space<vmem>>, %arg6: memref<1x64x128xbf16, #tpu.memory_space<vmem>>, %arg7: memref<1x1x128xf32, #tpu.memory_space<vmem>>, %arg8: memref<1x1x128xf32, #tpu.memory_space<vmem>>, %arg9: memref<64x128xf32, #tpu.memory_space<vmem>>, %arg10: memref<1x128xf32, #tpu.memory_space<vmem>>, %arg11: memref<1x128xf32, #tpu.memory_space<vmem>>) attributes {dimension_semantics = [#tpu.dimension_semantics<parallel>, #tpu.dimension_semantics<arbitrary>, #tpu.dimension_semantics<arbitrary>], iteration_bounds = array<i64: 2, 1, 1>, scalar_prefetch = 0 : i64, scratch_operands = 3 : i64, tpu.core_type = #tpu.core_type<tc>, window_params = [{transform_indices = @transform_0, window_bounds = array<i64: 1, 64, 128>}, {transform_indices = @transform_1, window_bounds = array<i64: 128, 128>}, {pipeline_mode = #tpu.pipeline_mode<synchronous>, transform_indices = @transform_2, window_bounds = array<i64: 1, 128>}, {transform_indices = @transform_3, window_bounds = array<i64: 1, 64, 128>}, {transform_indices = @transform_4, window_bounds = array<i64: 1, 1, 128>}, {transform_indices = @transform_5, window_bounds = array<i64: 1, 1, 128>}]} {
    %c0_i32 = arith.constant 0 : i32
    %0 = arith.cmpi eq, %arg2, %c0_i32 : i32
    %1 = arith.extui %0 : i1 to i32
    %c0_i32_0 = arith.constant 0 : i32
    %2 = arith.cmpi ne, %1, %c0_i32_0 : i32
    scf.if %2 {
      %cst_14 = arith.constant 0.000000e+00 : f32
      %18 = vector.broadcast %cst_14 : f32 to vector<64x128xf32>
      %c0_15 = arith.constant 0 : index
      %c0_16 = arith.constant 0 : index
      %19 = vector.load %arg9[%c0_15, %c0_16] : memref<64x128xf32, #tpu.memory_space<vmem>>, vector<64x128xf32>
      tpu.vector_store %arg9[%c0_15, %c0_16], %18 {strides = array<i32>} : memref<64x128xf32, #tpu.memory_space<vmem>>, vector<64x128xf32>,
    } else {
    }
    %c0_i32_1 = arith.constant 0 : i32
    %3 = arith.cmpi eq, %arg1, %c0_i32_1 : i32
    %c0_i32_2 = arith.constant 0 : i32
    %4 = arith.cmpi eq, %arg2, %c0_i32_2 : i32
    %5 = arith.andi %3, %4 : i1
    %6 = arith.extui %5 : i1 to i32
    %c0_i32_3 = arith.constant 0 : i32
    %7 = arith.cmpi ne, %6, %c0_i32_3 : i32
    scf.if %7 {
      %cst_14 = arith.constant 0.000000e+00 : f32
      %18 = vector.broadcast %cst_14 : f32 to vector<1x128xf32>
      %c0_15 = arith.constant 0 : index
      %c0_16 = arith.constant 0 : index
      %19 = vector.load %arg10[%c0_15, %c0_16] : memref<1x128xf32, #tpu.memory_space<vmem>>, vector<1x128xf32>
      tpu.vector_store %arg10[%c0_15, %c0_16], %18 {strides = array<i32>} : memref<1x128xf32, #tpu.memory_space<vmem>>, vector<1x128xf32>,
      %cst_17 = arith.constant 0.000000e+00 : f32
      %20 = vector.broadcast %cst_17 : f32 to vector<1x128xf32>
      %c0_18 = arith.constant 0 : index
      %c0_19 = arith.constant 0 : index
      %21 = vector.load %arg11[%c0_18, %c0_19] : memref<1x128xf32, #tpu.memory_space<vmem>>, vector<1x128xf32>
      tpu.vector_store %arg11[%c0_18, %c0_19], %20 {strides = array<i32>} : memref<1x128xf32, #tpu.memory_space<vmem>>, vector<1x128xf32>,
    } else {
    }
    %c0 = arith.constant 0 : index
    %c0_4 = arith.constant 0 : index
    %8 = vector.load %arg9[%c0, %c0_4] : memref<64x128xf32, #tpu.memory_space<vmem>>, vector<64x128xf32>
    %c0_5 = arith.constant 0 : index
    %c0_6 = arith.constant 0 : index
    %c0_7 = arith.constant 0 : index
    %9 = vector.load %arg3[%c0_5, %c0_6, %c0_7] : memref<1x64x128xbf16, #tpu.memory_space<vmem>>, vector<1x64x128xbf16>
    %10 = vector.shape_cast %9 : vector<1x64x128xbf16> to vector<64x128xbf16>
    %c0_8 = arith.constant 0 : index
    %c0_9 = arith.constant 0 : index
    %11 = vector.load %arg4[%c0_8, %c0_9] : memref<128x128xbf16, #tpu.memory_space<vmem>>, vector<128x128xbf16>
    %cst = arith.constant dense<0.000000e+00> : vector<64x128xf32>
    %12 = tpu.matmul %10, %11, %cst {dimension_numbers = #tpu.dot_dimension_numbers<[1], [0], [0], [1], [0, 0, 1, 1], [], []>} : vector<64x128xbf16>, vector<128x128xbf16>, vector<64x128xf32> -> vector<64x128xf32>
    %13 = arith.addf %8, %12 : vector<64x128xf32>
    %c0_10 = arith.constant 0 : index
    %c0_11 = arith.constant 0 : index
    %14 = vector.load %arg9[%c0_10, %c0_11] : memref<64x128xf32, #tpu.memory_space<vmem>>, vector<64x128xf32>
    tpu.vector_store %arg9[%c0_10, %c0_11], %13 {strides = array<i32>} : memref<64x128xf32, #tpu.memory_space<vmem>>, vector<64x128xf32>,
    %c0_i32_12 = arith.constant 0 : i32
    %15 = arith.cmpi eq, %arg2, %c0_i32_12 : i32
    %16 = arith.extui %15 : i1 to i32
    %c0_i32_13 = arith.constant 0 : i32
    %17 = arith.cmpi ne, %16, %c0_i32_13 : i32
    scf.if %17 {
      %c0_14 = arith.constant 0 : index
      %c0_15 = arith.constant 0 : index
      %18 = vector.load %arg9[%c0_14, %c0_15] : memref<64x128xf32, #tpu.memory_space<vmem>>, vector<64x128xf32>
      %c0_16 = arith.constant 0 : index
      %c0_17 = arith.constant 0 : index
      %19 = vector.load %arg5[%c0_16, %c0_17] : memref<1x128xf32, #tpu.memory_space<vmem>>, vector<1x128xf32>
      %20 = vector.broadcast %19 : vector<1x128xf32> to vector<64x128xf32>
      %21 = arith.addf %18, %20 : vector<64x128xf32>
      %22 = arith.truncf %21 : vector<64x128xf32> to vector<64x128xbf16>
      %c0_18 = arith.constant 0 : index
      %c0_19 = arith.constant 0 : index
      %c0_20 = arith.constant 0 : index
      %23 = vector.load %arg6[%c0_18, %c0_19, %c0_20] : memref<1x64x128xbf16, #tpu.memory_space<vmem>>, vector<1x64x128xbf16>
      %24 = vector.shape_cast %23 : vector<1x64x128xbf16> to vector<64x128xbf16>
      %25 = vector.shape_cast %22 : vector<64x128xbf16> to vector<1x64x128xbf16>
      tpu.vector_store %arg6[%c0_18, %c0_19, %c0_20], %25 {strides = array<i32>} : memref<1x64x128xbf16, #tpu.memory_space<vmem>>, vector<1x64x128xbf16>,
      %26 = arith.extf %22 : vector<64x128xbf16> to vector<64x128xf32>
      %c0_21 = arith.constant 0 : index
      %c0_22 = arith.constant 0 : index
      %27 = vector.load %arg10[%c0_21, %c0_22] : memref<1x128xf32, #tpu.memory_space<vmem>>, vector<1x128xf32>
      %cst_23 = arith.constant dense<0.000000e+00> : vector<128xf32>
      %28 = vector.multi_reduction <add>, %26, %cst_23 [0] : vector<64x128xf32> to vector<128xf32>
      %29 = vector.shape_cast %28 : vector<128xf32> to vector<1x128xf32>
      %30 = arith.addf %27, %29 : vector<1x128xf32>
      %c0_24 = arith.constant 0 : index
      %c0_25 = arith.constant 0 : index
      %31 = vector.load %arg10[%c0_24, %c0_25] : memref<1x128xf32, #tpu.memory_space<vmem>>, vector<1x128xf32>
      tpu.vector_store %arg10[%c0_24, %c0_25], %30 {strides = array<i32>} : memref<1x128xf32, #tpu.memory_space<vmem>>, vector<1x128xf32>,
      %c0_26 = arith.constant 0 : index
      %c0_27 = arith.constant 0 : index
      %32 = vector.load %arg11[%c0_26, %c0_27] : memref<1x128xf32, #tpu.memory_space<vmem>>, vector<1x128xf32>
      %33 = arith.mulf %26, %26 : vector<64x128xf32>
      %cst_28 = arith.constant dense<0.000000e+00> : vector<128xf32>
      %34 = vector.multi_reduction <add>, %33, %cst_28 [0] : vector<64x128xf32> to vector<128xf32>
      %35 = vector.shape_cast %34 : vector<128xf32> to vector<1x128xf32>
      %36 = arith.addf %32, %35 : vector<1x128xf32>
      %c0_29 = arith.constant 0 : index
      %c0_30 = arith.constant 0 : index
      %37 = vector.load %arg11[%c0_29, %c0_30] : memref<1x128xf32, #tpu.memory_space<vmem>>, vector<1x128xf32>
      tpu.vector_store %arg11[%c0_29, %c0_30], %36 {strides = array<i32>} : memref<1x128xf32, #tpu.memory_space<vmem>>, vector<1x128xf32>,
      %c0_i32_31 = arith.constant 0 : i32
      %38 = arith.cmpi eq, %arg1, %c0_i32_31 : i32
      %39 = arith.extui %38 : i1 to i32
      %c0_i32_32 = arith.constant 0 : i32
      %40 = arith.cmpi ne, %39, %c0_i32_32 : i32
      scf.if %40 {
        %c0_33 = arith.constant 0 : index
        %c0_34 = arith.constant 0 : index
        %41 = vector.load %arg10[%c0_33, %c0_34] : memref<1x128xf32, #tpu.memory_space<vmem>>, vector<1x128xf32>
        %cst_35 = arith.constant 1.562500e-02 : f32
        %42 = vector.broadcast %cst_35 : f32 to vector<1x128xf32>
        %43 = arith.mulf %41, %42 : vector<1x128xf32>
        %c0_36 = arith.constant 0 : index
        %c0_37 = arith.constant 0 : index
        %44 = vector.load %arg11[%c0_36, %c0_37] : memref<1x128xf32, #tpu.memory_space<vmem>>, vector<1x128xf32>
        %cst_38 = arith.constant 1.562500e-02 : f32
        %45 = vector.broadcast %cst_38 : f32 to vector<1x128xf32>
        %46 = arith.mulf %44, %45 : vector<1x128xf32>
        %47 = arith.mulf %43, %43 : vector<1x128xf32>
        %48 = arith.subf %46, %47 : vector<1x128xf32>
        %cst_39 = arith.constant 0.000000e+00 : f32
        %49 = vector.broadcast %cst_39 : f32 to vector<1x128xf32>
        %50 = arith.maximumf %48, %49 : vector<1x128xf32>
        %c0_40 = arith.constant 0 : index
        %c0_41 = arith.constant 0 : index
        %c0_42 = arith.constant 0 : index
        %51 = vector.load %arg7[%c0_40, %c0_41, %c0_42] : memref<1x1x128xf32, #tpu.memory_space<vmem>>, vector<1x1x128xf32>
        %52 = vector.shape_cast %51 : vector<1x1x128xf32> to vector<1x128xf32>
        %53 = vector.shape_cast %43 : vector<1x128xf32> to vector<1x1x128xf32>
        tpu.vector_store %arg7[%c0_40, %c0_41, %c0_42], %53 {strides = array<i32>} : memref<1x1x128xf32, #tpu.memory_space<vmem>>, vector<1x1x128xf32>,
        %cst_43 = arith.constant 9.99999974E-6 : f32
        %54 = vector.broadcast %cst_43 : f32 to vector<1x128xf32>
        %55 = arith.addf %50, %54 : vector<1x128xf32>
        %56 = math.rsqrt %55 : vector<1x128xf32>
        %c0_44 = arith.constant 0 : index
        %c0_45 = arith.constant 0 : index
        %c0_46 = arith.constant 0 : index
        %57 = vector.load %arg8[%c0_44, %c0_45, %c0_46] : memref<1x1x128xf32, #tpu.memory_space<vmem>>, vector<1x1x128xf32>
        %58 = vector.shape_cast %57 : vector<1x1x128xf32> to vector<1x128xf32>
        %59 = vector.shape_cast %56 : vector<1x128xf32> to vector<1x1x128xf32>
        tpu.vector_store %arg8[%c0_44, %c0_45, %c0_46], %59 {strides = array<i32>} : memref<1x1x128xf32, #tpu.memory_space<vmem>>, vector<1x1x128xf32>,
      } else {
      }
    } else {
    }
    return
  }
  func.func @transform_0(%arg0: i32, %arg1: i32, %arg2: i32) -> (i32, i32, i32) {
    %c0_i32 = arith.constant 0 : i32
    return %arg0, %arg1, %arg2 : i32, i32, i32
  }
  func.func @transform_1(%arg0: i32, %arg1: i32, %arg2: i32) -> (i32, i32) {
    %c0_i32 = arith.constant 0 : i32
    %c0_i32_0 = arith.constant 0 : i32
    return %arg2, %c0_i32 : i32, i32
  }
  func.func @transform_2(%arg0: i32, %arg1: i32, %arg2: i32) -> (i32, i32) {
    %c0_i32 = arith.constant 0 : i32
    %c0_i32_0 = arith.constant 0 : i32
    %c0_i32_1 = arith.constant 0 : i32
    return %c0_i32, %c0_i32_0 : i32, i32
  }
  func.func @transform_3(%arg0: i32, %arg1: i32, %arg2: i32) -> (i32, i32, i32) {
    %c0_i32 = arith.constant 0 : i32
    %c0_i32_0 = arith.constant 0 : i32
    return %arg0, %arg1, %c0_i32 : i32, i32, i32
  }
  func.func @transform_4(%arg0: i32, %arg1: i32, %arg2: i32) -> (i32, i32, i32) {
    %c0_i32 = arith.constant 0 : i32
    %c0_i32_0 = arith.constant 0 : i32
    %c0_i32_1 = arith.constant 0 : i32
    return %arg0, %c0_i32, %c0_i32_0 : i32, i32, i32
  }
  func.func @transform_5(%arg0: i32, %arg1: i32, %arg2: i32) -> (i32, i32, i32) {
    %c0_i32 = arith.constant 0 : i32
    %c0_i32_0 = arith.constant 0 : i32
    %c0_i32_1 = arith.constant 0 : i32
    return %arg0, %c0_i32, %c0_i32_0 : i32, i32, i32
  }
}

module attributes {stable_mosaic.version = 11 : i64} {
  func.func @_conv2_stats_kernel(%arg0: i32, %arg1: i32, %arg2: memref<1x1x48x8xbf16, #tpu.memory_space<vmem>>, %arg3: memref<1x1x48x8xbf16, #tpu.memory_space<vmem>>, %arg4: memref<1x1x48x8xbf16, #tpu.memory_space<vmem>>, %arg5: memref<27x8x128xbf16, #tpu.memory_space<vmem>>, %arg6: memref<1x128xf32, #tpu.memory_space<vmem>>, %arg7: memref<32x1xf32, #tpu.memory_space<vmem>>, %arg8: memref<1x32x128xbf16, #tpu.memory_space<vmem>>, %arg9: memref<1x1x128xf32, #tpu.memory_space<vmem>>, %arg10: memref<1x1x128xf32, #tpu.memory_space<vmem>>, %arg11: memref<32x128xf32, #tpu.memory_space<vmem>>, %arg12: memref<1x128xf32, #tpu.memory_space<vmem>>, %arg13: memref<1x128xf32, #tpu.memory_space<vmem>>) attributes {dimension_semantics = [#tpu.dimension_semantics<parallel>, #tpu.dimension_semantics<arbitrary>], iteration_bounds = array<i64: 2, 4>, scalar_prefetch = 0 : i64, scratch_operands = 3 : i64, tpu.core_type = #tpu.core_type<tc>, window_params = [{transform_indices = @transform_0, window_bounds = array<i64: 1, 1, 48, 8>}, {transform_indices = @transform_1, window_bounds = array<i64: 1, 1, 48, 8>}, {transform_indices = @transform_2, window_bounds = array<i64: 1, 1, 48, 8>}, {pipeline_mode = #tpu.pipeline_mode<synchronous>, transform_indices = @transform_3, window_bounds = array<i64: 27, 8, 128>}, {pipeline_mode = #tpu.pipeline_mode<synchronous>, transform_indices = @transform_4, window_bounds = array<i64: 1, 128>}, {pipeline_mode = #tpu.pipeline_mode<synchronous>, transform_indices = @transform_5, window_bounds = array<i64: 32, 1>}, {transform_indices = @transform_6, window_bounds = array<i64: 1, 32, 128>}, {transform_indices = @transform_7, window_bounds = array<i64: 1, 1, 128>}, {transform_indices = @transform_8, window_bounds = array<i64: 1, 1, 128>}]} {
    %c0_i32 = arith.constant 0 : i32
    %0 = arith.cmpi eq, %arg1, %c0_i32 : i32
    %1 = arith.extui %0 : i1 to i32
    %c0_i32_0 = arith.constant 0 : i32
    %2 = arith.cmpi ne, %1, %c0_i32_0 : i32
    scf.if %2 {
      %cst_320 = arith.constant 0.000000e+00 : f32
      %247 = vector.broadcast %cst_320 : f32 to vector<1x128xf32>
      %c0_321 = arith.constant 0 : index
      %c0_322 = arith.constant 0 : index
      %248 = vector.load %arg12[%c0_321, %c0_322] : memref<1x128xf32, #tpu.memory_space<vmem>>, vector<1x128xf32>
      tpu.vector_store %arg12[%c0_321, %c0_322], %247 {strides = array<i32>} : memref<1x128xf32, #tpu.memory_space<vmem>>, vector<1x128xf32>,
      %cst_323 = arith.constant 0.000000e+00 : f32
      %249 = vector.broadcast %cst_323 : f32 to vector<1x128xf32>
      %c0_324 = arith.constant 0 : index
      %c0_325 = arith.constant 0 : index
      %250 = vector.load %arg13[%c0_324, %c0_325] : memref<1x128xf32, #tpu.memory_space<vmem>>, vector<1x128xf32>
      tpu.vector_store %arg13[%c0_324, %c0_325], %249 {strides = array<i32>} : memref<1x128xf32, #tpu.memory_space<vmem>>, vector<1x128xf32>,
    } else {
    }
    %cst = arith.constant 0.000000e+00 : f32
    %3 = vector.broadcast %cst : f32 to vector<32x128xf32>
    %c0 = arith.constant 0 : index
    %c0_1 = arith.constant 0 : index
    %4 = vector.load %arg11[%c0, %c0_1] : memref<32x128xf32, #tpu.memory_space<vmem>>, vector<32x128xf32>
    tpu.vector_store %arg11[%c0, %c0_1], %3 {strides = array<i32>} : memref<32x128xf32, #tpu.memory_space<vmem>>, vector<32x128xf32>,
    %c0_2 = arith.constant 0 : index
    %c0_3 = arith.constant 0 : index
    %c0_4 = arith.constant 0 : index
    %c0_5 = arith.constant 0 : index
    %5 = vector.load %arg2[%c0_2, %c0_3, %c0_4, %c0_5] : memref<1x1x48x8xbf16, #tpu.memory_space<vmem>>, vector<1x1x32x8xbf16>
    %6 = vector.shape_cast %5 : vector<1x1x32x8xbf16> to vector<32x8xbf16>
    %c0_6 = arith.constant 0 : index
    %c0_7 = arith.constant 0 : index
    %7 = vector.load %arg11[%c0_6, %c0_7] : memref<32x128xf32, #tpu.memory_space<vmem>>, vector<32x128xf32>
    %c0_8 = arith.constant 0 : index
    %c0_9 = arith.constant 0 : index
    %c0_10 = arith.constant 0 : index
    %8 = vector.load %arg5[%c0_8, %c0_9, %c0_10] : memref<27x8x128xbf16, #tpu.memory_space<vmem>>, vector<1x8x128xbf16>
    %9 = vector.shape_cast %8 : vector<1x8x128xbf16> to vector<8x128xbf16>
    %cst_11 = arith.constant dense<0.000000e+00> : vector<32x128xf32>
    %10 = tpu.matmul %6, %9, %cst_11 {dimension_numbers = #tpu.dot_dimension_numbers<[1], [0], [0], [1], [0, 0, 1, 1], [], []>} : vector<32x8xbf16>, vector<8x128xbf16>, vector<32x128xf32> -> vector<32x128xf32>
    %11 = arith.addf %7, %10 : vector<32x128xf32>
    %c0_12 = arith.constant 0 : index
    %c0_13 = arith.constant 0 : index
    %12 = vector.load %arg11[%c0_12, %c0_13] : memref<32x128xf32, #tpu.memory_space<vmem>>, vector<32x128xf32>
    tpu.vector_store %arg11[%c0_12, %c0_13], %11 {strides = array<i32>} : memref<32x128xf32, #tpu.memory_space<vmem>>, vector<32x128xf32>,
    %c0_14 = arith.constant 0 : index
    %c0_15 = arith.constant 0 : index
    %c1 = arith.constant 1 : index
    %c0_16 = arith.constant 0 : index
    %13 = vector.load %arg2[%c0_14, %c0_15, %c1, %c0_16] : memref<1x1x48x8xbf16, #tpu.memory_space<vmem>>, vector<1x1x32x8xbf16>
    %14 = vector.shape_cast %13 : vector<1x1x32x8xbf16> to vector<32x8xbf16>
    %c0_17 = arith.constant 0 : index
    %c0_18 = arith.constant 0 : index
    %15 = vector.load %arg11[%c0_17, %c0_18] : memref<32x128xf32, #tpu.memory_space<vmem>>, vector<32x128xf32>
    %c1_19 = arith.constant 1 : index
    %c0_20 = arith.constant 0 : index
    %c0_21 = arith.constant 0 : index
    %16 = vector.load %arg5[%c1_19, %c0_20, %c0_21] : memref<27x8x128xbf16, #tpu.memory_space<vmem>>, vector<1x8x128xbf16>
    %17 = vector.shape_cast %16 : vector<1x8x128xbf16> to vector<8x128xbf16>
    %cst_22 = arith.constant dense<0.000000e+00> : vector<32x128xf32>
    %18 = tpu.matmul %14, %17, %cst_22 {dimension_numbers = #tpu.dot_dimension_numbers<[1], [0], [0], [1], [0, 0, 1, 1], [], []>} : vector<32x8xbf16>, vector<8x128xbf16>, vector<32x128xf32> -> vector<32x128xf32>
    %19 = arith.addf %15, %18 : vector<32x128xf32>
    %c0_23 = arith.constant 0 : index
    %c0_24 = arith.constant 0 : index
    %20 = vector.load %arg11[%c0_23, %c0_24] : memref<32x128xf32, #tpu.memory_space<vmem>>, vector<32x128xf32>
    tpu.vector_store %arg11[%c0_23, %c0_24], %19 {strides = array<i32>} : memref<32x128xf32, #tpu.memory_space<vmem>>, vector<32x128xf32>,
    %c0_25 = arith.constant 0 : index
    %c0_26 = arith.constant 0 : index
    %c2 = arith.constant 2 : index
    %c0_27 = arith.constant 0 : index
    %21 = vector.load %arg2[%c0_25, %c0_26, %c2, %c0_27] : memref<1x1x48x8xbf16, #tpu.memory_space<vmem>>, vector<1x1x32x8xbf16>
    %22 = vector.shape_cast %21 : vector<1x1x32x8xbf16> to vector<32x8xbf16>
    %c0_28 = arith.constant 0 : index
    %c0_29 = arith.constant 0 : index
    %23 = vector.load %arg11[%c0_28, %c0_29] : memref<32x128xf32, #tpu.memory_space<vmem>>, vector<32x128xf32>
    %c2_30 = arith.constant 2 : index
    %c0_31 = arith.constant 0 : index
    %c0_32 = arith.constant 0 : index
    %24 = vector.load %arg5[%c2_30, %c0_31, %c0_32] : memref<27x8x128xbf16, #tpu.memory_space<vmem>>, vector<1x8x128xbf16>
    %25 = vector.shape_cast %24 : vector<1x8x128xbf16> to vector<8x128xbf16>
    %cst_33 = arith.constant dense<0.000000e+00> : vector<32x128xf32>
    %26 = tpu.matmul %22, %25, %cst_33 {dimension_numbers = #tpu.dot_dimension_numbers<[1], [0], [0], [1], [0, 0, 1, 1], [], []>} : vector<32x8xbf16>, vector<8x128xbf16>, vector<32x128xf32> -> vector<32x128xf32>
    %27 = arith.addf %23, %26 : vector<32x128xf32>
    %c0_34 = arith.constant 0 : index
    %c0_35 = arith.constant 0 : index
    %28 = vector.load %arg11[%c0_34, %c0_35] : memref<32x128xf32, #tpu.memory_space<vmem>>, vector<32x128xf32>
    tpu.vector_store %arg11[%c0_34, %c0_35], %27 {strides = array<i32>} : memref<32x128xf32, #tpu.memory_space<vmem>>, vector<32x128xf32>,
    %c0_36 = arith.constant 0 : index
    %c0_37 = arith.constant 0 : index
    %c6 = arith.constant 6 : index
    %c0_38 = arith.constant 0 : index
    %29 = vector.load %arg2[%c0_36, %c0_37, %c6, %c0_38] : memref<1x1x48x8xbf16, #tpu.memory_space<vmem>>, vector<1x1x32x8xbf16>
    %30 = vector.shape_cast %29 : vector<1x1x32x8xbf16> to vector<32x8xbf16>
    %c0_39 = arith.constant 0 : index
    %c0_40 = arith.constant 0 : index
    %31 = vector.load %arg11[%c0_39, %c0_40] : memref<32x128xf32, #tpu.memory_space<vmem>>, vector<32x128xf32>
    %c3 = arith.constant 3 : index
    %c0_41 = arith.constant 0 : index
    %c0_42 = arith.constant 0 : index
    %32 = vector.load %arg5[%c3, %c0_41, %c0_42] : memref<27x8x128xbf16, #tpu.memory_space<vmem>>, vector<1x8x128xbf16>
    %33 = vector.shape_cast %32 : vector<1x8x128xbf16> to vector<8x128xbf16>
    %cst_43 = arith.constant dense<0.000000e+00> : vector<32x128xf32>
    %34 = tpu.matmul %30, %33, %cst_43 {dimension_numbers = #tpu.dot_dimension_numbers<[1], [0], [0], [1], [0, 0, 1, 1], [], []>} : vector<32x8xbf16>, vector<8x128xbf16>, vector<32x128xf32> -> vector<32x128xf32>
    %35 = arith.addf %31, %34 : vector<32x128xf32>
    %c0_44 = arith.constant 0 : index
    %c0_45 = arith.constant 0 : index
    %36 = vector.load %arg11[%c0_44, %c0_45] : memref<32x128xf32, #tpu.memory_space<vmem>>, vector<32x128xf32>
    tpu.vector_store %arg11[%c0_44, %c0_45], %35 {strides = array<i32>} : memref<32x128xf32, #tpu.memory_space<vmem>>, vector<32x128xf32>,
    %c0_46 = arith.constant 0 : index
    %c0_47 = arith.constant 0 : index
    %c7 = arith.constant 7 : index
    %c0_48 = arith.constant 0 : index
    %37 = vector.load %arg2[%c0_46, %c0_47, %c7, %c0_48] : memref<1x1x48x8xbf16, #tpu.memory_space<vmem>>, vector<1x1x32x8xbf16>
    %38 = vector.shape_cast %37 : vector<1x1x32x8xbf16> to vector<32x8xbf16>
    %c0_49 = arith.constant 0 : index
    %c0_50 = arith.constant 0 : index
    %39 = vector.load %arg11[%c0_49, %c0_50] : memref<32x128xf32, #tpu.memory_space<vmem>>, vector<32x128xf32>
    %c4 = arith.constant 4 : index
    %c0_51 = arith.constant 0 : index
    %c0_52 = arith.constant 0 : index
    %40 = vector.load %arg5[%c4, %c0_51, %c0_52] : memref<27x8x128xbf16, #tpu.memory_space<vmem>>, vector<1x8x128xbf16>
    %41 = vector.shape_cast %40 : vector<1x8x128xbf16> to vector<8x128xbf16>
    %cst_53 = arith.constant dense<0.000000e+00> : vector<32x128xf32>
    %42 = tpu.matmul %38, %41, %cst_53 {dimension_numbers = #tpu.dot_dimension_numbers<[1], [0], [0], [1], [0, 0, 1, 1], [], []>} : vector<32x8xbf16>, vector<8x128xbf16>, vector<32x128xf32> -> vector<32x128xf32>
    %43 = arith.addf %39, %42 : vector<32x128xf32>
    %c0_54 = arith.constant 0 : index
    %c0_55 = arith.constant 0 : index
    %44 = vector.load %arg11[%c0_54, %c0_55] : memref<32x128xf32, #tpu.memory_space<vmem>>, vector<32x128xf32>
    tpu.vector_store %arg11[%c0_54, %c0_55], %43 {strides = array<i32>} : memref<32x128xf32, #tpu.memory_space<vmem>>, vector<32x128xf32>,
    %c0_56 = arith.constant 0 : index
    %c0_57 = arith.constant 0 : index
    %c8 = arith.constant 8 : index
    %c0_58 = arith.constant 0 : index
    %45 = vector.load %arg2[%c0_56, %c0_57, %c8, %c0_58] : memref<1x1x48x8xbf16, #tpu.memory_space<vmem>>, vector<1x1x32x8xbf16>
    %46 = vector.shape_cast %45 : vector<1x1x32x8xbf16> to vector<32x8xbf16>
    %c0_59 = arith.constant 0 : index
    %c0_60 = arith.constant 0 : index
    %47 = vector.load %arg11[%c0_59, %c0_60] : memref<32x128xf32, #tpu.memory_space<vmem>>, vector<32x128xf32>
    %c5 = arith.constant 5 : index
    %c0_61 = arith.constant 0 : index
    %c0_62 = arith.constant 0 : index
    %48 = vector.load %arg5[%c5, %c0_61, %c0_62] : memref<27x8x128xbf16, #tpu.memory_space<vmem>>, vector<1x8x128xbf16>
    %49 = vector.shape_cast %48 : vector<1x8x128xbf16> to vector<8x128xbf16>
    %cst_63 = arith.constant dense<0.000000e+00> : vector<32x128xf32>
    %50 = tpu.matmul %46, %49, %cst_63 {dimension_numbers = #tpu.dot_dimension_numbers<[1], [0], [0], [1], [0, 0, 1, 1], [], []>} : vector<32x8xbf16>, vector<8x128xbf16>, vector<32x128xf32> -> vector<32x128xf32>
    %51 = arith.addf %47, %50 : vector<32x128xf32>
    %c0_64 = arith.constant 0 : index
    %c0_65 = arith.constant 0 : index
    %52 = vector.load %arg11[%c0_64, %c0_65] : memref<32x128xf32, #tpu.memory_space<vmem>>, vector<32x128xf32>
    tpu.vector_store %arg11[%c0_64, %c0_65], %51 {strides = array<i32>} : memref<32x128xf32, #tpu.memory_space<vmem>>, vector<32x128xf32>,
    %c0_66 = arith.constant 0 : index
    %c0_67 = arith.constant 0 : index
    %c12 = arith.constant 12 : index
    %c0_68 = arith.constant 0 : index
    %53 = vector.load %arg2[%c0_66, %c0_67, %c12, %c0_68] : memref<1x1x48x8xbf16, #tpu.memory_space<vmem>>, vector<1x1x32x8xbf16>
    %54 = vector.shape_cast %53 : vector<1x1x32x8xbf16> to vector<32x8xbf16>
    %c0_69 = arith.constant 0 : index
    %c0_70 = arith.constant 0 : index
    %55 = vector.load %arg11[%c0_69, %c0_70] : memref<32x128xf32, #tpu.memory_space<vmem>>, vector<32x128xf32>
    %c6_71 = arith.constant 6 : index
    %c0_72 = arith.constant 0 : index
    %c0_73 = arith.constant 0 : index
    %56 = vector.load %arg5[%c6_71, %c0_72, %c0_73] : memref<27x8x128xbf16, #tpu.memory_space<vmem>>, vector<1x8x128xbf16>
    %57 = vector.shape_cast %56 : vector<1x8x128xbf16> to vector<8x128xbf16>
    %cst_74 = arith.constant dense<0.000000e+00> : vector<32x128xf32>
    %58 = tpu.matmul %54, %57, %cst_74 {dimension_numbers = #tpu.dot_dimension_numbers<[1], [0], [0], [1], [0, 0, 1, 1], [], []>} : vector<32x8xbf16>, vector<8x128xbf16>, vector<32x128xf32> -> vector<32x128xf32>
    %59 = arith.addf %55, %58 : vector<32x128xf32>
    %c0_75 = arith.constant 0 : index
    %c0_76 = arith.constant 0 : index
    %60 = vector.load %arg11[%c0_75, %c0_76] : memref<32x128xf32, #tpu.memory_space<vmem>>, vector<32x128xf32>
    tpu.vector_store %arg11[%c0_75, %c0_76], %59 {strides = array<i32>} : memref<32x128xf32, #tpu.memory_space<vmem>>, vector<32x128xf32>,
    %c0_77 = arith.constant 0 : index
    %c0_78 = arith.constant 0 : index
    %c13 = arith.constant 13 : index
    %c0_79 = arith.constant 0 : index
    %61 = vector.load %arg2[%c0_77, %c0_78, %c13, %c0_79] : memref<1x1x48x8xbf16, #tpu.memory_space<vmem>>, vector<1x1x32x8xbf16>
    %62 = vector.shape_cast %61 : vector<1x1x32x8xbf16> to vector<32x8xbf16>
    %c0_80 = arith.constant 0 : index
    %c0_81 = arith.constant 0 : index
    %63 = vector.load %arg11[%c0_80, %c0_81] : memref<32x128xf32, #tpu.memory_space<vmem>>, vector<32x128xf32>
    %c7_82 = arith.constant 7 : index
    %c0_83 = arith.constant 0 : index
    %c0_84 = arith.constant 0 : index
    %64 = vector.load %arg5[%c7_82, %c0_83, %c0_84] : memref<27x8x128xbf16, #tpu.memory_space<vmem>>, vector<1x8x128xbf16>
    %65 = vector.shape_cast %64 : vector<1x8x128xbf16> to vector<8x128xbf16>
    %cst_85 = arith.constant dense<0.000000e+00> : vector<32x128xf32>
    %66 = tpu.matmul %62, %65, %cst_85 {dimension_numbers = #tpu.dot_dimension_numbers<[1], [0], [0], [1], [0, 0, 1, 1], [], []>} : vector<32x8xbf16>, vector<8x128xbf16>, vector<32x128xf32> -> vector<32x128xf32>
    %67 = arith.addf %63, %66 : vector<32x128xf32>
    %c0_86 = arith.constant 0 : index
    %c0_87 = arith.constant 0 : index
    %68 = vector.load %arg11[%c0_86, %c0_87] : memref<32x128xf32, #tpu.memory_space<vmem>>, vector<32x128xf32>
    tpu.vector_store %arg11[%c0_86, %c0_87], %67 {strides = array<i32>} : memref<32x128xf32, #tpu.memory_space<vmem>>, vector<32x128xf32>,
    %c0_88 = arith.constant 0 : index
    %c0_89 = arith.constant 0 : index
    %c14 = arith.constant 14 : index
    %c0_90 = arith.constant 0 : index
    %69 = vector.load %arg2[%c0_88, %c0_89, %c14, %c0_90] : memref<1x1x48x8xbf16, #tpu.memory_space<vmem>>, vector<1x1x32x8xbf16>
    %70 = vector.shape_cast %69 : vector<1x1x32x8xbf16> to vector<32x8xbf16>
    %c0_91 = arith.constant 0 : index
    %c0_92 = arith.constant 0 : index
    %71 = vector.load %arg11[%c0_91, %c0_92] : memref<32x128xf32, #tpu.memory_space<vmem>>, vector<32x128xf32>
    %c8_93 = arith.constant 8 : index
    %c0_94 = arith.constant 0 : index
    %c0_95 = arith.constant 0 : index
    %72 = vector.load %arg5[%c8_93, %c0_94, %c0_95] : memref<27x8x128xbf16, #tpu.memory_space<vmem>>, vector<1x8x128xbf16>
    %73 = vector.shape_cast %72 : vector<1x8x128xbf16> to vector<8x128xbf16>
    %cst_96 = arith.constant dense<0.000000e+00> : vector<32x128xf32>
    %74 = tpu.matmul %70, %73, %cst_96 {dimension_numbers = #tpu.dot_dimension_numbers<[1], [0], [0], [1], [0, 0, 1, 1], [], []>} : vector<32x8xbf16>, vector<8x128xbf16>, vector<32x128xf32> -> vector<32x128xf32>
    %75 = arith.addf %71, %74 : vector<32x128xf32>
    %c0_97 = arith.constant 0 : index
    %c0_98 = arith.constant 0 : index
    %76 = vector.load %arg11[%c0_97, %c0_98] : memref<32x128xf32, #tpu.memory_space<vmem>>, vector<32x128xf32>
    tpu.vector_store %arg11[%c0_97, %c0_98], %75 {strides = array<i32>} : memref<32x128xf32, #tpu.memory_space<vmem>>, vector<32x128xf32>,
    %c0_99 = arith.constant 0 : index
    %c0_100 = arith.constant 0 : index
    %c0_101 = arith.constant 0 : index
    %c0_102 = arith.constant 0 : index
    %77 = vector.load %arg3[%c0_99, %c0_100, %c0_101, %c0_102] : memref<1x1x48x8xbf16, #tpu.memory_space<vmem>>, vector<1x1x32x8xbf16>
    %78 = vector.shape_cast %77 : vector<1x1x32x8xbf16> to vector<32x8xbf16>
    %c0_103 = arith.constant 0 : index
    %c0_104 = arith.constant 0 : index
    %79 = vector.load %arg11[%c0_103, %c0_104] : memref<32x128xf32, #tpu.memory_space<vmem>>, vector<32x128xf32>
    %c9 = arith.constant 9 : index
    %c0_105 = arith.constant 0 : index
    %c0_106 = arith.constant 0 : index
    %80 = vector.load %arg5[%c9, %c0_105, %c0_106] : memref<27x8x128xbf16, #tpu.memory_space<vmem>>, vector<1x8x128xbf16>
    %81 = vector.shape_cast %80 : vector<1x8x128xbf16> to vector<8x128xbf16>
    %cst_107 = arith.constant dense<0.000000e+00> : vector<32x128xf32>
    %82 = tpu.matmul %78, %81, %cst_107 {dimension_numbers = #tpu.dot_dimension_numbers<[1], [0], [0], [1], [0, 0, 1, 1], [], []>} : vector<32x8xbf16>, vector<8x128xbf16>, vector<32x128xf32> -> vector<32x128xf32>
    %83 = arith.addf %79, %82 : vector<32x128xf32>
    %c0_108 = arith.constant 0 : index
    %c0_109 = arith.constant 0 : index
    %84 = vector.load %arg11[%c0_108, %c0_109] : memref<32x128xf32, #tpu.memory_space<vmem>>, vector<32x128xf32>
    tpu.vector_store %arg11[%c0_108, %c0_109], %83 {strides = array<i32>} : memref<32x128xf32, #tpu.memory_space<vmem>>, vector<32x128xf32>,
    %c0_110 = arith.constant 0 : index
    %c0_111 = arith.constant 0 : index
    %c1_112 = arith.constant 1 : index
    %c0_113 = arith.constant 0 : index
    %85 = vector.load %arg3[%c0_110, %c0_111, %c1_112, %c0_113] : memref<1x1x48x8xbf16, #tpu.memory_space<vmem>>, vector<1x1x32x8xbf16>
    %86 = vector.shape_cast %85 : vector<1x1x32x8xbf16> to vector<32x8xbf16>
    %c0_114 = arith.constant 0 : index
    %c0_115 = arith.constant 0 : index
    %87 = vector.load %arg11[%c0_114, %c0_115] : memref<32x128xf32, #tpu.memory_space<vmem>>, vector<32x128xf32>
    %c10 = arith.constant 10 : index
    %c0_116 = arith.constant 0 : index
    %c0_117 = arith.constant 0 : index
    %88 = vector.load %arg5[%c10, %c0_116, %c0_117] : memref<27x8x128xbf16, #tpu.memory_space<vmem>>, vector<1x8x128xbf16>
    %89 = vector.shape_cast %88 : vector<1x8x128xbf16> to vector<8x128xbf16>
    %cst_118 = arith.constant dense<0.000000e+00> : vector<32x128xf32>
    %90 = tpu.matmul %86, %89, %cst_118 {dimension_numbers = #tpu.dot_dimension_numbers<[1], [0], [0], [1], [0, 0, 1, 1], [], []>} : vector<32x8xbf16>, vector<8x128xbf16>, vector<32x128xf32> -> vector<32x128xf32>
    %91 = arith.addf %87, %90 : vector<32x128xf32>
    %c0_119 = arith.constant 0 : index
    %c0_120 = arith.constant 0 : index
    %92 = vector.load %arg11[%c0_119, %c0_120] : memref<32x128xf32, #tpu.memory_space<vmem>>, vector<32x128xf32>
    tpu.vector_store %arg11[%c0_119, %c0_120], %91 {strides = array<i32>} : memref<32x128xf32, #tpu.memory_space<vmem>>, vector<32x128xf32>,
    %c0_121 = arith.constant 0 : index
    %c0_122 = arith.constant 0 : index
    %c2_123 = arith.constant 2 : index
    %c0_124 = arith.constant 0 : index
    %93 = vector.load %arg3[%c0_121, %c0_122, %c2_123, %c0_124] : memref<1x1x48x8xbf16, #tpu.memory_space<vmem>>, vector<1x1x32x8xbf16>
    %94 = vector.shape_cast %93 : vector<1x1x32x8xbf16> to vector<32x8xbf16>
    %c0_125 = arith.constant 0 : index
    %c0_126 = arith.constant 0 : index
    %95 = vector.load %arg11[%c0_125, %c0_126] : memref<32x128xf32, #tpu.memory_space<vmem>>, vector<32x128xf32>
    %c11 = arith.constant 11 : index
    %c0_127 = arith.constant 0 : index
    %c0_128 = arith.constant 0 : index
    %96 = vector.load %arg5[%c11, %c0_127, %c0_128] : memref<27x8x128xbf16, #tpu.memory_space<vmem>>, vector<1x8x128xbf16>
    %97 = vector.shape_cast %96 : vector<1x8x128xbf16> to vector<8x128xbf16>
    %cst_129 = arith.constant dense<0.000000e+00> : vector<32x128xf32>
    %98 = tpu.matmul %94, %97, %cst_129 {dimension_numbers = #tpu.dot_dimension_numbers<[1], [0], [0], [1], [0, 0, 1, 1], [], []>} : vector<32x8xbf16>, vector<8x128xbf16>, vector<32x128xf32> -> vector<32x128xf32>
    %99 = arith.addf %95, %98 : vector<32x128xf32>
    %c0_130 = arith.constant 0 : index
    %c0_131 = arith.constant 0 : index
    %100 = vector.load %arg11[%c0_130, %c0_131] : memref<32x128xf32, #tpu.memory_space<vmem>>, vector<32x128xf32>
    tpu.vector_store %arg11[%c0_130, %c0_131], %99 {strides = array<i32>} : memref<32x128xf32, #tpu.memory_space<vmem>>, vector<32x128xf32>,
    %c0_132 = arith.constant 0 : index
    %c0_133 = arith.constant 0 : index
    %c6_134 = arith.constant 6 : index
    %c0_135 = arith.constant 0 : index
    %101 = vector.load %arg3[%c0_132, %c0_133, %c6_134, %c0_135] : memref<1x1x48x8xbf16, #tpu.memory_space<vmem>>, vector<1x1x32x8xbf16>
    %102 = vector.shape_cast %101 : vector<1x1x32x8xbf16> to vector<32x8xbf16>
    %c0_136 = arith.constant 0 : index
    %c0_137 = arith.constant 0 : index
    %103 = vector.load %arg11[%c0_136, %c0_137] : memref<32x128xf32, #tpu.memory_space<vmem>>, vector<32x128xf32>
    %c12_138 = arith.constant 12 : index
    %c0_139 = arith.constant 0 : index
    %c0_140 = arith.constant 0 : index
    %104 = vector.load %arg5[%c12_138, %c0_139, %c0_140] : memref<27x8x128xbf16, #tpu.memory_space<vmem>>, vector<1x8x128xbf16>
    %105 = vector.shape_cast %104 : vector<1x8x128xbf16> to vector<8x128xbf16>
    %cst_141 = arith.constant dense<0.000000e+00> : vector<32x128xf32>
    %106 = tpu.matmul %102, %105, %cst_141 {dimension_numbers = #tpu.dot_dimension_numbers<[1], [0], [0], [1], [0, 0, 1, 1], [], []>} : vector<32x8xbf16>, vector<8x128xbf16>, vector<32x128xf32> -> vector<32x128xf32>
    %107 = arith.addf %103, %106 : vector<32x128xf32>
    %c0_142 = arith.constant 0 : index
    %c0_143 = arith.constant 0 : index
    %108 = vector.load %arg11[%c0_142, %c0_143] : memref<32x128xf32, #tpu.memory_space<vmem>>, vector<32x128xf32>
    tpu.vector_store %arg11[%c0_142, %c0_143], %107 {strides = array<i32>} : memref<32x128xf32, #tpu.memory_space<vmem>>, vector<32x128xf32>,
    %c0_144 = arith.constant 0 : index
    %c0_145 = arith.constant 0 : index
    %c7_146 = arith.constant 7 : index
    %c0_147 = arith.constant 0 : index
    %109 = vector.load %arg3[%c0_144, %c0_145, %c7_146, %c0_147] : memref<1x1x48x8xbf16, #tpu.memory_space<vmem>>, vector<1x1x32x8xbf16>
    %110 = vector.shape_cast %109 : vector<1x1x32x8xbf16> to vector<32x8xbf16>
    %c0_148 = arith.constant 0 : index
    %c0_149 = arith.constant 0 : index
    %111 = vector.load %arg11[%c0_148, %c0_149] : memref<32x128xf32, #tpu.memory_space<vmem>>, vector<32x128xf32>
    %c13_150 = arith.constant 13 : index
    %c0_151 = arith.constant 0 : index
    %c0_152 = arith.constant 0 : index
    %112 = vector.load %arg5[%c13_150, %c0_151, %c0_152] : memref<27x8x128xbf16, #tpu.memory_space<vmem>>, vector<1x8x128xbf16>
    %113 = vector.shape_cast %112 : vector<1x8x128xbf16> to vector<8x128xbf16>
    %cst_153 = arith.constant dense<0.000000e+00> : vector<32x128xf32>
    %114 = tpu.matmul %110, %113, %cst_153 {dimension_numbers = #tpu.dot_dimension_numbers<[1], [0], [0], [1], [0, 0, 1, 1], [], []>} : vector<32x8xbf16>, vector<8x128xbf16>, vector<32x128xf32> -> vector<32x128xf32>
    %115 = arith.addf %111, %114 : vector<32x128xf32>
    %c0_154 = arith.constant 0 : index
    %c0_155 = arith.constant 0 : index
    %116 = vector.load %arg11[%c0_154, %c0_155] : memref<32x128xf32, #tpu.memory_space<vmem>>, vector<32x128xf32>
    tpu.vector_store %arg11[%c0_154, %c0_155], %115 {strides = array<i32>} : memref<32x128xf32, #tpu.memory_space<vmem>>, vector<32x128xf32>,
    %c0_156 = arith.constant 0 : index
    %c0_157 = arith.constant 0 : index
    %c8_158 = arith.constant 8 : index
    %c0_159 = arith.constant 0 : index
    %117 = vector.load %arg3[%c0_156, %c0_157, %c8_158, %c0_159] : memref<1x1x48x8xbf16, #tpu.memory_space<vmem>>, vector<1x1x32x8xbf16>
    %118 = vector.shape_cast %117 : vector<1x1x32x8xbf16> to vector<32x8xbf16>
    %c0_160 = arith.constant 0 : index
    %c0_161 = arith.constant 0 : index
    %119 = vector.load %arg11[%c0_160, %c0_161] : memref<32x128xf32, #tpu.memory_space<vmem>>, vector<32x128xf32>
    %c14_162 = arith.constant 14 : index
    %c0_163 = arith.constant 0 : index
    %c0_164 = arith.constant 0 : index
    %120 = vector.load %arg5[%c14_162, %c0_163, %c0_164] : memref<27x8x128xbf16, #tpu.memory_space<vmem>>, vector<1x8x128xbf16>
    %121 = vector.shape_cast %120 : vector<1x8x128xbf16> to vector<8x128xbf16>
    %cst_165 = arith.constant dense<0.000000e+00> : vector<32x128xf32>
    %122 = tpu.matmul %118, %121, %cst_165 {dimension_numbers = #tpu.dot_dimension_numbers<[1], [0], [0], [1], [0, 0, 1, 1], [], []>} : vector<32x8xbf16>, vector<8x128xbf16>, vector<32x128xf32> -> vector<32x128xf32>
    %123 = arith.addf %119, %122 : vector<32x128xf32>
    %c0_166 = arith.constant 0 : index
    %c0_167 = arith.constant 0 : index
    %124 = vector.load %arg11[%c0_166, %c0_167] : memref<32x128xf32, #tpu.memory_space<vmem>>, vector<32x128xf32>
    tpu.vector_store %arg11[%c0_166, %c0_167], %123 {strides = array<i32>} : memref<32x128xf32, #tpu.memory_space<vmem>>, vector<32x128xf32>,
    %c0_168 = arith.constant 0 : index
    %c0_169 = arith.constant 0 : index
    %c12_170 = arith.constant 12 : index
    %c0_171 = arith.constant 0 : index
    %125 = vector.load %arg3[%c0_168, %c0_169, %c12_170, %c0_171] : memref<1x1x48x8xbf16, #tpu.memory_space<vmem>>, vector<1x1x32x8xbf16>
    %126 = vector.shape_cast %125 : vector<1x1x32x8xbf16> to vector<32x8xbf16>
    %c0_172 = arith.constant 0 : index
    %c0_173 = arith.constant 0 : index
    %127 = vector.load %arg11[%c0_172, %c0_173] : memref<32x128xf32, #tpu.memory_space<vmem>>, vector<32x128xf32>
    %c15 = arith.constant 15 : index
    %c0_174 = arith.constant 0 : index
    %c0_175 = arith.constant 0 : index
    %128 = vector.load %arg5[%c15, %c0_174, %c0_175] : memref<27x8x128xbf16, #tpu.memory_space<vmem>>, vector<1x8x128xbf16>
    %129 = vector.shape_cast %128 : vector<1x8x128xbf16> to vector<8x128xbf16>
    %cst_176 = arith.constant dense<0.000000e+00> : vector<32x128xf32>
    %130 = tpu.matmul %126, %129, %cst_176 {dimension_numbers = #tpu.dot_dimension_numbers<[1], [0], [0], [1], [0, 0, 1, 1], [], []>} : vector<32x8xbf16>, vector<8x128xbf16>, vector<32x128xf32> -> vector<32x128xf32>
    %131 = arith.addf %127, %130 : vector<32x128xf32>
    %c0_177 = arith.constant 0 : index
    %c0_178 = arith.constant 0 : index
    %132 = vector.load %arg11[%c0_177, %c0_178] : memref<32x128xf32, #tpu.memory_space<vmem>>, vector<32x128xf32>
    tpu.vector_store %arg11[%c0_177, %c0_178], %131 {strides = array<i32>} : memref<32x128xf32, #tpu.memory_space<vmem>>, vector<32x128xf32>,
    %c0_179 = arith.constant 0 : index
    %c0_180 = arith.constant 0 : index
    %c13_181 = arith.constant 13 : index
    %c0_182 = arith.constant 0 : index
    %133 = vector.load %arg3[%c0_179, %c0_180, %c13_181, %c0_182] : memref<1x1x48x8xbf16, #tpu.memory_space<vmem>>, vector<1x1x32x8xbf16>
    %134 = vector.shape_cast %133 : vector<1x1x32x8xbf16> to vector<32x8xbf16>
    %c0_183 = arith.constant 0 : index
    %c0_184 = arith.constant 0 : index
    %135 = vector.load %arg11[%c0_183, %c0_184] : memref<32x128xf32, #tpu.memory_space<vmem>>, vector<32x128xf32>
    %c16 = arith.constant 16 : index
    %c0_185 = arith.constant 0 : index
    %c0_186 = arith.constant 0 : index
    %136 = vector.load %arg5[%c16, %c0_185, %c0_186] : memref<27x8x128xbf16, #tpu.memory_space<vmem>>, vector<1x8x128xbf16>
    %137 = vector.shape_cast %136 : vector<1x8x128xbf16> to vector<8x128xbf16>
    %cst_187 = arith.constant dense<0.000000e+00> : vector<32x128xf32>
    %138 = tpu.matmul %134, %137, %cst_187 {dimension_numbers = #tpu.dot_dimension_numbers<[1], [0], [0], [1], [0, 0, 1, 1], [], []>} : vector<32x8xbf16>, vector<8x128xbf16>, vector<32x128xf32> -> vector<32x128xf32>
    %139 = arith.addf %135, %138 : vector<32x128xf32>
    %c0_188 = arith.constant 0 : index
    %c0_189 = arith.constant 0 : index
    %140 = vector.load %arg11[%c0_188, %c0_189] : memref<32x128xf32, #tpu.memory_space<vmem>>, vector<32x128xf32>
    tpu.vector_store %arg11[%c0_188, %c0_189], %139 {strides = array<i32>} : memref<32x128xf32, #tpu.memory_space<vmem>>, vector<32x128xf32>,
    %c0_190 = arith.constant 0 : index
    %c0_191 = arith.constant 0 : index
    %c14_192 = arith.constant 14 : index
    %c0_193 = arith.constant 0 : index
    %141 = vector.load %arg3[%c0_190, %c0_191, %c14_192, %c0_193] : memref<1x1x48x8xbf16, #tpu.memory_space<vmem>>, vector<1x1x32x8xbf16>
    %142 = vector.shape_cast %141 : vector<1x1x32x8xbf16> to vector<32x8xbf16>
    %c0_194 = arith.constant 0 : index
    %c0_195 = arith.constant 0 : index
    %143 = vector.load %arg11[%c0_194, %c0_195] : memref<32x128xf32, #tpu.memory_space<vmem>>, vector<32x128xf32>
    %c17 = arith.constant 17 : index
    %c0_196 = arith.constant 0 : index
    %c0_197 = arith.constant 0 : index
    %144 = vector.load %arg5[%c17, %c0_196, %c0_197] : memref<27x8x128xbf16, #tpu.memory_space<vmem>>, vector<1x8x128xbf16>
    %145 = vector.shape_cast %144 : vector<1x8x128xbf16> to vector<8x128xbf16>
    %cst_198 = arith.constant dense<0.000000e+00> : vector<32x128xf32>
    %146 = tpu.matmul %142, %145, %cst_198 {dimension_numbers = #tpu.dot_dimension_numbers<[1], [0], [0], [1], [0, 0, 1, 1], [], []>} : vector<32x8xbf16>, vector<8x128xbf16>, vector<32x128xf32> -> vector<32x128xf32>
    %147 = arith.addf %143, %146 : vector<32x128xf32>
    %c0_199 = arith.constant 0 : index
    %c0_200 = arith.constant 0 : index
    %148 = vector.load %arg11[%c0_199, %c0_200] : memref<32x128xf32, #tpu.memory_space<vmem>>, vector<32x128xf32>
    tpu.vector_store %arg11[%c0_199, %c0_200], %147 {strides = array<i32>} : memref<32x128xf32, #tpu.memory_space<vmem>>, vector<32x128xf32>,
    %c0_201 = arith.constant 0 : index
    %c0_202 = arith.constant 0 : index
    %c0_203 = arith.constant 0 : index
    %c0_204 = arith.constant 0 : index
    %149 = vector.load %arg4[%c0_201, %c0_202, %c0_203, %c0_204] : memref<1x1x48x8xbf16, #tpu.memory_space<vmem>>, vector<1x1x32x8xbf16>
    %150 = vector.shape_cast %149 : vector<1x1x32x8xbf16> to vector<32x8xbf16>
    %c0_205 = arith.constant 0 : index
    %c0_206 = arith.constant 0 : index
    %151 = vector.load %arg11[%c0_205, %c0_206] : memref<32x128xf32, #tpu.memory_space<vmem>>, vector<32x128xf32>
    %c18 = arith.constant 18 : index
    %c0_207 = arith.constant 0 : index
    %c0_208 = arith.constant 0 : index
    %152 = vector.load %arg5[%c18, %c0_207, %c0_208] : memref<27x8x128xbf16, #tpu.memory_space<vmem>>, vector<1x8x128xbf16>
    %153 = vector.shape_cast %152 : vector<1x8x128xbf16> to vector<8x128xbf16>
    %cst_209 = arith.constant dense<0.000000e+00> : vector<32x128xf32>
    %154 = tpu.matmul %150, %153, %cst_209 {dimension_numbers = #tpu.dot_dimension_numbers<[1], [0], [0], [1], [0, 0, 1, 1], [], []>} : vector<32x8xbf16>, vector<8x128xbf16>, vector<32x128xf32> -> vector<32x128xf32>
    %155 = arith.addf %151, %154 : vector<32x128xf32>
    %c0_210 = arith.constant 0 : index
    %c0_211 = arith.constant 0 : index
    %156 = vector.load %arg11[%c0_210, %c0_211] : memref<32x128xf32, #tpu.memory_space<vmem>>, vector<32x128xf32>
    tpu.vector_store %arg11[%c0_210, %c0_211], %155 {strides = array<i32>} : memref<32x128xf32, #tpu.memory_space<vmem>>, vector<32x128xf32>,
    %c0_212 = arith.constant 0 : index
    %c0_213 = arith.constant 0 : index
    %c1_214 = arith.constant 1 : index
    %c0_215 = arith.constant 0 : index
    %157 = vector.load %arg4[%c0_212, %c0_213, %c1_214, %c0_215] : memref<1x1x48x8xbf16, #tpu.memory_space<vmem>>, vector<1x1x32x8xbf16>
    %158 = vector.shape_cast %157 : vector<1x1x32x8xbf16> to vector<32x8xbf16>
    %c0_216 = arith.constant 0 : index
    %c0_217 = arith.constant 0 : index
    %159 = vector.load %arg11[%c0_216, %c0_217] : memref<32x128xf32, #tpu.memory_space<vmem>>, vector<32x128xf32>
    %c19 = arith.constant 19 : index
    %c0_218 = arith.constant 0 : index
    %c0_219 = arith.constant 0 : index
    %160 = vector.load %arg5[%c19, %c0_218, %c0_219] : memref<27x8x128xbf16, #tpu.memory_space<vmem>>, vector<1x8x128xbf16>
    %161 = vector.shape_cast %160 : vector<1x8x128xbf16> to vector<8x128xbf16>
    %cst_220 = arith.constant dense<0.000000e+00> : vector<32x128xf32>
    %162 = tpu.matmul %158, %161, %cst_220 {dimension_numbers = #tpu.dot_dimension_numbers<[1], [0], [0], [1], [0, 0, 1, 1], [], []>} : vector<32x8xbf16>, vector<8x128xbf16>, vector<32x128xf32> -> vector<32x128xf32>
    %163 = arith.addf %159, %162 : vector<32x128xf32>
    %c0_221 = arith.constant 0 : index
    %c0_222 = arith.constant 0 : index
    %164 = vector.load %arg11[%c0_221, %c0_222] : memref<32x128xf32, #tpu.memory_space<vmem>>, vector<32x128xf32>
    tpu.vector_store %arg11[%c0_221, %c0_222], %163 {strides = array<i32>} : memref<32x128xf32, #tpu.memory_space<vmem>>, vector<32x128xf32>,
    %c0_223 = arith.constant 0 : index
    %c0_224 = arith.constant 0 : index
    %c2_225 = arith.constant 2 : index
    %c0_226 = arith.constant 0 : index
    %165 = vector.load %arg4[%c0_223, %c0_224, %c2_225, %c0_226] : memref<1x1x48x8xbf16, #tpu.memory_space<vmem>>, vector<1x1x32x8xbf16>
    %166 = vector.shape_cast %165 : vector<1x1x32x8xbf16> to vector<32x8xbf16>
    %c0_227 = arith.constant 0 : index
    %c0_228 = arith.constant 0 : index
    %167 = vector.load %arg11[%c0_227, %c0_228] : memref<32x128xf32, #tpu.memory_space<vmem>>, vector<32x128xf32>
    %c20 = arith.constant 20 : index
    %c0_229 = arith.constant 0 : index
    %c0_230 = arith.constant 0 : index
    %168 = vector.load %arg5[%c20, %c0_229, %c0_230] : memref<27x8x128xbf16, #tpu.memory_space<vmem>>, vector<1x8x128xbf16>
    %169 = vector.shape_cast %168 : vector<1x8x128xbf16> to vector<8x128xbf16>
    %cst_231 = arith.constant dense<0.000000e+00> : vector<32x128xf32>
    %170 = tpu.matmul %166, %169, %cst_231 {dimension_numbers = #tpu.dot_dimension_numbers<[1], [0], [0], [1], [0, 0, 1, 1], [], []>} : vector<32x8xbf16>, vector<8x128xbf16>, vector<32x128xf32> -> vector<32x128xf32>
    %171 = arith.addf %167, %170 : vector<32x128xf32>
    %c0_232 = arith.constant 0 : index
    %c0_233 = arith.constant 0 : index
    %172 = vector.load %arg11[%c0_232, %c0_233] : memref<32x128xf32, #tpu.memory_space<vmem>>, vector<32x128xf32>
    tpu.vector_store %arg11[%c0_232, %c0_233], %171 {strides = array<i32>} : memref<32x128xf32, #tpu.memory_space<vmem>>, vector<32x128xf32>,
    %c0_234 = arith.constant 0 : index
    %c0_235 = arith.constant 0 : index
    %c6_236 = arith.constant 6 : index
    %c0_237 = arith.constant 0 : index
    %173 = vector.load %arg4[%c0_234, %c0_235, %c6_236, %c0_237] : memref<1x1x48x8xbf16, #tpu.memory_space<vmem>>, vector<1x1x32x8xbf16>
    %174 = vector.shape_cast %173 : vector<1x1x32x8xbf16> to vector<32x8xbf16>
    %c0_238 = arith.constant 0 : index
    %c0_239 = arith.constant 0 : index
    %175 = vector.load %arg11[%c0_238, %c0_239] : memref<32x128xf32, #tpu.memory_space<vmem>>, vector<32x128xf32>
    %c21 = arith.constant 21 : index
    %c0_240 = arith.constant 0 : index
    %c0_241 = arith.constant 0 : index
    %176 = vector.load %arg5[%c21, %c0_240, %c0_241] : memref<27x8x128xbf16, #tpu.memory_space<vmem>>, vector<1x8x128xbf16>
    %177 = vector.shape_cast %176 : vector<1x8x128xbf16> to vector<8x128xbf16>
    %cst_242 = arith.constant dense<0.000000e+00> : vector<32x128xf32>
    %178 = tpu.matmul %174, %177, %cst_242 {dimension_numbers = #tpu.dot_dimension_numbers<[1], [0], [0], [1], [0, 0, 1, 1], [], []>} : vector<32x8xbf16>, vector<8x128xbf16>, vector<32x128xf32> -> vector<32x128xf32>
    %179 = arith.addf %175, %178 : vector<32x128xf32>
    %c0_243 = arith.constant 0 : index
    %c0_244 = arith.constant 0 : index
    %180 = vector.load %arg11[%c0_243, %c0_244] : memref<32x128xf32, #tpu.memory_space<vmem>>, vector<32x128xf32>
    tpu.vector_store %arg11[%c0_243, %c0_244], %179 {strides = array<i32>} : memref<32x128xf32, #tpu.memory_space<vmem>>, vector<32x128xf32>,
    %c0_245 = arith.constant 0 : index
    %c0_246 = arith.constant 0 : index
    %c7_247 = arith.constant 7 : index
    %c0_248 = arith.constant 0 : index
    %181 = vector.load %arg4[%c0_245, %c0_246, %c7_247, %c0_248] : memref<1x1x48x8xbf16, #tpu.memory_space<vmem>>, vector<1x1x32x8xbf16>
    %182 = vector.shape_cast %181 : vector<1x1x32x8xbf16> to vector<32x8xbf16>
    %c0_249 = arith.constant 0 : index
    %c0_250 = arith.constant 0 : index
    %183 = vector.load %arg11[%c0_249, %c0_250] : memref<32x128xf32, #tpu.memory_space<vmem>>, vector<32x128xf32>
    %c22 = arith.constant 22 : index
    %c0_251 = arith.constant 0 : index
    %c0_252 = arith.constant 0 : index
    %184 = vector.load %arg5[%c22, %c0_251, %c0_252] : memref<27x8x128xbf16, #tpu.memory_space<vmem>>, vector<1x8x128xbf16>
    %185 = vector.shape_cast %184 : vector<1x8x128xbf16> to vector<8x128xbf16>
    %cst_253 = arith.constant dense<0.000000e+00> : vector<32x128xf32>
    %186 = tpu.matmul %182, %185, %cst_253 {dimension_numbers = #tpu.dot_dimension_numbers<[1], [0], [0], [1], [0, 0, 1, 1], [], []>} : vector<32x8xbf16>, vector<8x128xbf16>, vector<32x128xf32> -> vector<32x128xf32>
    %187 = arith.addf %183, %186 : vector<32x128xf32>
    %c0_254 = arith.constant 0 : index
    %c0_255 = arith.constant 0 : index
    %188 = vector.load %arg11[%c0_254, %c0_255] : memref<32x128xf32, #tpu.memory_space<vmem>>, vector<32x128xf32>
    tpu.vector_store %arg11[%c0_254, %c0_255], %187 {strides = array<i32>} : memref<32x128xf32, #tpu.memory_space<vmem>>, vector<32x128xf32>,
    %c0_256 = arith.constant 0 : index
    %c0_257 = arith.constant 0 : index
    %c8_258 = arith.constant 8 : index
    %c0_259 = arith.constant 0 : index
    %189 = vector.load %arg4[%c0_256, %c0_257, %c8_258, %c0_259] : memref<1x1x48x8xbf16, #tpu.memory_space<vmem>>, vector<1x1x32x8xbf16>
    %190 = vector.shape_cast %189 : vector<1x1x32x8xbf16> to vector<32x8xbf16>
    %c0_260 = arith.constant 0 : index
    %c0_261 = arith.constant 0 : index
    %191 = vector.load %arg11[%c0_260, %c0_261] : memref<32x128xf32, #tpu.memory_space<vmem>>, vector<32x128xf32>
    %c23 = arith.constant 23 : index
    %c0_262 = arith.constant 0 : index
    %c0_263 = arith.constant 0 : index
    %192 = vector.load %arg5[%c23, %c0_262, %c0_263] : memref<27x8x128xbf16, #tpu.memory_space<vmem>>, vector<1x8x128xbf16>
    %193 = vector.shape_cast %192 : vector<1x8x128xbf16> to vector<8x128xbf16>
    %cst_264 = arith.constant dense<0.000000e+00> : vector<32x128xf32>
    %194 = tpu.matmul %190, %193, %cst_264 {dimension_numbers = #tpu.dot_dimension_numbers<[1], [0], [0], [1], [0, 0, 1, 1], [], []>} : vector<32x8xbf16>, vector<8x128xbf16>, vector<32x128xf32> -> vector<32x128xf32>
    %195 = arith.addf %191, %194 : vector<32x128xf32>
    %c0_265 = arith.constant 0 : index
    %c0_266 = arith.constant 0 : index
    %196 = vector.load %arg11[%c0_265, %c0_266] : memref<32x128xf32, #tpu.memory_space<vmem>>, vector<32x128xf32>
    tpu.vector_store %arg11[%c0_265, %c0_266], %195 {strides = array<i32>} : memref<32x128xf32, #tpu.memory_space<vmem>>, vector<32x128xf32>,
    %c0_267 = arith.constant 0 : index
    %c0_268 = arith.constant 0 : index
    %c12_269 = arith.constant 12 : index
    %c0_270 = arith.constant 0 : index
    %197 = vector.load %arg4[%c0_267, %c0_268, %c12_269, %c0_270] : memref<1x1x48x8xbf16, #tpu.memory_space<vmem>>, vector<1x1x32x8xbf16>
    %198 = vector.shape_cast %197 : vector<1x1x32x8xbf16> to vector<32x8xbf16>
    %c0_271 = arith.constant 0 : index
    %c0_272 = arith.constant 0 : index
    %199 = vector.load %arg11[%c0_271, %c0_272] : memref<32x128xf32, #tpu.memory_space<vmem>>, vector<32x128xf32>
    %c24 = arith.constant 24 : index
    %c0_273 = arith.constant 0 : index
    %c0_274 = arith.constant 0 : index
    %200 = vector.load %arg5[%c24, %c0_273, %c0_274] : memref<27x8x128xbf16, #tpu.memory_space<vmem>>, vector<1x8x128xbf16>
    %201 = vector.shape_cast %200 : vector<1x8x128xbf16> to vector<8x128xbf16>
    %cst_275 = arith.constant dense<0.000000e+00> : vector<32x128xf32>
    %202 = tpu.matmul %198, %201, %cst_275 {dimension_numbers = #tpu.dot_dimension_numbers<[1], [0], [0], [1], [0, 0, 1, 1], [], []>} : vector<32x8xbf16>, vector<8x128xbf16>, vector<32x128xf32> -> vector<32x128xf32>
    %203 = arith.addf %199, %202 : vector<32x128xf32>
    %c0_276 = arith.constant 0 : index
    %c0_277 = arith.constant 0 : index
    %204 = vector.load %arg11[%c0_276, %c0_277] : memref<32x128xf32, #tpu.memory_space<vmem>>, vector<32x128xf32>
    tpu.vector_store %arg11[%c0_276, %c0_277], %203 {strides = array<i32>} : memref<32x128xf32, #tpu.memory_space<vmem>>, vector<32x128xf32>,
    %c0_278 = arith.constant 0 : index
    %c0_279 = arith.constant 0 : index
    %c13_280 = arith.constant 13 : index
    %c0_281 = arith.constant 0 : index
    %205 = vector.load %arg4[%c0_278, %c0_279, %c13_280, %c0_281] : memref<1x1x48x8xbf16, #tpu.memory_space<vmem>>, vector<1x1x32x8xbf16>
    %206 = vector.shape_cast %205 : vector<1x1x32x8xbf16> to vector<32x8xbf16>
    %c0_282 = arith.constant 0 : index
    %c0_283 = arith.constant 0 : index
    %207 = vector.load %arg11[%c0_282, %c0_283] : memref<32x128xf32, #tpu.memory_space<vmem>>, vector<32x128xf32>
    %c25 = arith.constant 25 : index
    %c0_284 = arith.constant 0 : index
    %c0_285 = arith.constant 0 : index
    %208 = vector.load %arg5[%c25, %c0_284, %c0_285] : memref<27x8x128xbf16, #tpu.memory_space<vmem>>, vector<1x8x128xbf16>
    %209 = vector.shape_cast %208 : vector<1x8x128xbf16> to vector<8x128xbf16>
    %cst_286 = arith.constant dense<0.000000e+00> : vector<32x128xf32>
    %210 = tpu.matmul %206, %209, %cst_286 {dimension_numbers = #tpu.dot_dimension_numbers<[1], [0], [0], [1], [0, 0, 1, 1], [], []>} : vector<32x8xbf16>, vector<8x128xbf16>, vector<32x128xf32> -> vector<32x128xf32>
    %211 = arith.addf %207, %210 : vector<32x128xf32>
    %c0_287 = arith.constant 0 : index
    %c0_288 = arith.constant 0 : index
    %212 = vector.load %arg11[%c0_287, %c0_288] : memref<32x128xf32, #tpu.memory_space<vmem>>, vector<32x128xf32>
    tpu.vector_store %arg11[%c0_287, %c0_288], %211 {strides = array<i32>} : memref<32x128xf32, #tpu.memory_space<vmem>>, vector<32x128xf32>,
    %c0_289 = arith.constant 0 : index
    %c0_290 = arith.constant 0 : index
    %c14_291 = arith.constant 14 : index
    %c0_292 = arith.constant 0 : index
    %213 = vector.load %arg4[%c0_289, %c0_290, %c14_291, %c0_292] : memref<1x1x48x8xbf16, #tpu.memory_space<vmem>>, vector<1x1x32x8xbf16>
    %214 = vector.shape_cast %213 : vector<1x1x32x8xbf16> to vector<32x8xbf16>
    %c0_293 = arith.constant 0 : index
    %c0_294 = arith.constant 0 : index
    %215 = vector.load %arg11[%c0_293, %c0_294] : memref<32x128xf32, #tpu.memory_space<vmem>>, vector<32x128xf32>
    %c26 = arith.constant 26 : index
    %c0_295 = arith.constant 0 : index
    %c0_296 = arith.constant 0 : index
    %216 = vector.load %arg5[%c26, %c0_295, %c0_296] : memref<27x8x128xbf16, #tpu.memory_space<vmem>>, vector<1x8x128xbf16>
    %217 = vector.shape_cast %216 : vector<1x8x128xbf16> to vector<8x128xbf16>
    %cst_297 = arith.constant dense<0.000000e+00> : vector<32x128xf32>
    %218 = tpu.matmul %214, %217, %cst_297 {dimension_numbers = #tpu.dot_dimension_numbers<[1], [0], [0], [1], [0, 0, 1, 1], [], []>} : vector<32x8xbf16>, vector<8x128xbf16>, vector<32x128xf32> -> vector<32x128xf32>
    %219 = arith.addf %215, %218 : vector<32x128xf32>
    %c0_298 = arith.constant 0 : index
    %c0_299 = arith.constant 0 : index
    %220 = vector.load %arg11[%c0_298, %c0_299] : memref<32x128xf32, #tpu.memory_space<vmem>>, vector<32x128xf32>
    tpu.vector_store %arg11[%c0_298, %c0_299], %219 {strides = array<i32>} : memref<32x128xf32, #tpu.memory_space<vmem>>, vector<32x128xf32>,
    %c0_300 = arith.constant 0 : index
    %c0_301 = arith.constant 0 : index
    %221 = vector.load %arg11[%c0_300, %c0_301] : memref<32x128xf32, #tpu.memory_space<vmem>>, vector<32x128xf32>
    %c0_302 = arith.constant 0 : index
    %c0_303 = arith.constant 0 : index
    %222 = vector.load %arg6[%c0_302, %c0_303] : memref<1x128xf32, #tpu.memory_space<vmem>>, vector<1x128xf32>
    %223 = vector.broadcast %222 : vector<1x128xf32> to vector<32x128xf32>
    %224 = arith.addf %221, %223 : vector<32x128xf32>
    %225 = arith.truncf %224 : vector<32x128xf32> to vector<32x128xbf16>
    %c0_304 = arith.constant 0 : index
    %c0_305 = arith.constant 0 : index
    %c0_306 = arith.constant 0 : index
    %226 = vector.load %arg8[%c0_304, %c0_305, %c0_306] : memref<1x32x128xbf16, #tpu.memory_space<vmem>>, vector<1x32x128xbf16>
    %227 = vector.shape_cast %226 : vector<1x32x128xbf16> to vector<32x128xbf16>
    %228 = vector.shape_cast %225 : vector<32x128xbf16> to vector<1x32x128xbf16>
    tpu.vector_store %arg8[%c0_304, %c0_305, %c0_306], %228 {strides = array<i32>} : memref<1x32x128xbf16, #tpu.memory_space<vmem>>, vector<1x32x128xbf16>,
    %229 = arith.extf %225 : vector<32x128xbf16> to vector<32x128xf32>
    %c0_307 = arith.constant 0 : index
    %c0_308 = arith.constant 0 : index
    %230 = vector.load %arg7[%c0_307, %c0_308] : memref<32x1xf32, #tpu.memory_space<vmem>>, vector<32x1xf32>
    %231 = vector.broadcast %230 : vector<32x1xf32> to vector<32x128xf32>
    %232 = arith.mulf %229, %231 : vector<32x128xf32>
    %c0_309 = arith.constant 0 : index
    %c0_310 = arith.constant 0 : index
    %233 = vector.load %arg12[%c0_309, %c0_310] : memref<1x128xf32, #tpu.memory_space<vmem>>, vector<1x128xf32>
    %cst_311 = arith.constant dense<0.000000e+00> : vector<128xf32>
    %234 = vector.multi_reduction <add>, %232, %cst_311 [0] : vector<32x128xf32> to vector<128xf32>
    %235 = vector.shape_cast %234 : vector<128xf32> to vector<1x128xf32>
    %236 = arith.addf %233, %235 : vector<1x128xf32>
    %c0_312 = arith.constant 0 : index
    %c0_313 = arith.constant 0 : index
    %237 = vector.load %arg12[%c0_312, %c0_313] : memref<1x128xf32, #tpu.memory_space<vmem>>, vector<1x128xf32>
    tpu.vector_store %arg12[%c0_312, %c0_313], %236 {strides = array<i32>} : memref<1x128xf32, #tpu.memory_space<vmem>>, vector<1x128xf32>,
    %c0_314 = arith.constant 0 : index
    %c0_315 = arith.constant 0 : index
    %238 = vector.load %arg13[%c0_314, %c0_315] : memref<1x128xf32, #tpu.memory_space<vmem>>, vector<1x128xf32>
    %239 = arith.mulf %232, %232 : vector<32x128xf32>
    %cst_316 = arith.constant dense<0.000000e+00> : vector<128xf32>
    %240 = vector.multi_reduction <add>, %239, %cst_316 [0] : vector<32x128xf32> to vector<128xf32>
    %241 = vector.shape_cast %240 : vector<128xf32> to vector<1x128xf32>
    %242 = arith.addf %238, %241 : vector<1x128xf32>
    %c0_317 = arith.constant 0 : index
    %c0_318 = arith.constant 0 : index
    %243 = vector.load %arg13[%c0_317, %c0_318] : memref<1x128xf32, #tpu.memory_space<vmem>>, vector<1x128xf32>
    tpu.vector_store %arg13[%c0_317, %c0_318], %242 {strides = array<i32>} : memref<1x128xf32, #tpu.memory_space<vmem>>, vector<1x128xf32>,
    %c3_i32 = arith.constant 3 : i32
    %244 = arith.cmpi eq, %arg1, %c3_i32 : i32
    %245 = arith.extui %244 : i1 to i32
    %c0_i32_319 = arith.constant 0 : i32
    %246 = arith.cmpi ne, %245, %c0_i32_319 : i32
    scf.if %246 {
      %c0_320 = arith.constant 0 : index
      %c0_321 = arith.constant 0 : index
      %247 = vector.load %arg12[%c0_320, %c0_321] : memref<1x128xf32, #tpu.memory_space<vmem>>, vector<1x128xf32>
      %cst_322 = arith.constant 1.562500e-02 : f32
      %248 = vector.broadcast %cst_322 : f32 to vector<1x128xf32>
      %249 = arith.mulf %247, %248 : vector<1x128xf32>
      %c0_323 = arith.constant 0 : index
      %c0_324 = arith.constant 0 : index
      %250 = vector.load %arg13[%c0_323, %c0_324] : memref<1x128xf32, #tpu.memory_space<vmem>>, vector<1x128xf32>
      %cst_325 = arith.constant 1.562500e-02 : f32
      %251 = vector.broadcast %cst_325 : f32 to vector<1x128xf32>
      %252 = arith.mulf %250, %251 : vector<1x128xf32>
      %253 = arith.mulf %249, %249 : vector<1x128xf32>
      %254 = arith.subf %252, %253 : vector<1x128xf32>
      %cst_326 = arith.constant 0.000000e+00 : f32
      %255 = vector.broadcast %cst_326 : f32 to vector<1x128xf32>
      %256 = arith.maximumf %254, %255 : vector<1x128xf32>
      %c0_327 = arith.constant 0 : index
      %c0_328 = arith.constant 0 : index
      %c0_329 = arith.constant 0 : index
      %257 = vector.load %arg9[%c0_327, %c0_328, %c0_329] : memref<1x1x128xf32, #tpu.memory_space<vmem>>, vector<1x1x128xf32>
      %258 = vector.shape_cast %257 : vector<1x1x128xf32> to vector<1x128xf32>
      %259 = vector.shape_cast %249 : vector<1x128xf32> to vector<1x1x128xf32>
      tpu.vector_store %arg9[%c0_327, %c0_328, %c0_329], %259 {strides = array<i32>} : memref<1x1x128xf32, #tpu.memory_space<vmem>>, vector<1x1x128xf32>,
      %cst_330 = arith.constant 9.99999974E-6 : f32
      %260 = vector.broadcast %cst_330 : f32 to vector<1x128xf32>
      %261 = arith.addf %256, %260 : vector<1x128xf32>
      %262 = math.rsqrt %261 : vector<1x128xf32>
      %c0_331 = arith.constant 0 : index
      %c0_332 = arith.constant 0 : index
      %c0_333 = arith.constant 0 : index
      %263 = vector.load %arg10[%c0_331, %c0_332, %c0_333] : memref<1x1x128xf32, #tpu.memory_space<vmem>>, vector<1x1x128xf32>
      %264 = vector.shape_cast %263 : vector<1x1x128xf32> to vector<1x128xf32>
      %265 = vector.shape_cast %262 : vector<1x128xf32> to vector<1x1x128xf32>
      tpu.vector_store %arg10[%c0_331, %c0_332, %c0_333], %265 {strides = array<i32>} : memref<1x1x128xf32, #tpu.memory_space<vmem>>, vector<1x1x128xf32>,
    } else {
    }
    return
  }
  func.func @transform_0(%arg0: i32, %arg1: i32) -> (i32, i32, i32, i32) {
    %c0_i32 = arith.constant 0 : i32
    %c0_i32_0 = arith.constant 0 : i32
    %c0_i32_1 = arith.constant 0 : i32
    return %arg0, %arg1, %c0_i32, %c0_i32_0 : i32, i32, i32, i32
  }
  func.func @transform_1(%arg0: i32, %arg1: i32) -> (i32, i32, i32, i32) {
    %c1_i32 = arith.constant 1 : i32
    %0 = arith.addi %arg1, %c1_i32 : i32
    %c0_i32 = arith.constant 0 : i32
    %c0_i32_0 = arith.constant 0 : i32
    %c0_i32_1 = arith.constant 0 : i32
    return %arg0, %0, %c0_i32, %c0_i32_0 : i32, i32, i32, i32
  }
  func.func @transform_2(%arg0: i32, %arg1: i32) -> (i32, i32, i32, i32) {
    %c2_i32 = arith.constant 2 : i32
    %0 = arith.addi %arg1, %c2_i32 : i32
    %c0_i32 = arith.constant 0 : i32
    %c0_i32_0 = arith.constant 0 : i32
    %c0_i32_1 = arith.constant 0 : i32
    return %arg0, %0, %c0_i32, %c0_i32_0 : i32, i32, i32, i32
  }
  func.func @transform_3(%arg0: i32, %arg1: i32) -> (i32, i32, i32) {
    %c0_i32 = arith.constant 0 : i32
    %c0_i32_0 = arith.constant 0 : i32
    %c0_i32_1 = arith.constant 0 : i32
    %c0_i32_2 = arith.constant 0 : i32
    return %c0_i32, %c0_i32_0, %c0_i32_1 : i32, i32, i32
  }
  func.func @transform_4(%arg0: i32, %arg1: i32) -> (i32, i32) {
    %c0_i32 = arith.constant 0 : i32
    %c0_i32_0 = arith.constant 0 : i32
    %c0_i32_1 = arith.constant 0 : i32
    return %c0_i32, %c0_i32_0 : i32, i32
  }
  func.func @transform_5(%arg0: i32, %arg1: i32) -> (i32, i32) {
    %c0_i32 = arith.constant 0 : i32
    %c0_i32_0 = arith.constant 0 : i32
    %c0_i32_1 = arith.constant 0 : i32
    return %c0_i32, %c0_i32_0 : i32, i32
  }
  func.func @transform_6(%arg0: i32, %arg1: i32) -> (i32, i32, i32) {
    %c0_i32 = arith.constant 0 : i32
    %c0_i32_0 = arith.constant 0 : i32
    return %arg0, %arg1, %c0_i32 : i32, i32, i32
  }
  func.func @transform_7(%arg0: i32, %arg1: i32) -> (i32, i32, i32) {
    %c0_i32 = arith.constant 0 : i32
    %c0_i32_0 = arith.constant 0 : i32
    %c0_i32_1 = arith.constant 0 : i32
    return %arg0, %c0_i32, %c0_i32_0 : i32, i32, i32
  }
  func.func @transform_8(%arg0: i32, %arg1: i32) -> (i32, i32, i32) {
    %c0_i32 = arith.constant 0 : i32
    %c0_i32_0 = arith.constant 0 : i32
    %c0_i32_1 = arith.constant 0 : i32
    return %arg0, %c0_i32, %c0_i32_0 : i32, i32, i32
  }
}

module attributes {stable_mosaic.version = 11 : i64} {
  func.func @_tail_kernel(%arg0: i32, %arg1: i32, %arg2: memref<1x32x128xbf16, #tpu.memory_space<vmem>>, %arg3: memref<1x1x128xf32, #tpu.memory_space<vmem>>, %arg4: memref<1x1x128xf32, #tpu.memory_space<vmem>>, %arg5: memref<1x128xf32, #tpu.memory_space<vmem>>, %arg6: memref<1x128xf32, #tpu.memory_space<vmem>>, %arg7: memref<1x32x4xbf16, #tpu.memory_space<vmem>>, %arg8: memref<4x128xbf16, #tpu.memory_space<vmem>>, %arg9: memref<1x128xf32, #tpu.memory_space<vmem>>, %arg10: memref<1x32x128xf32, #tpu.memory_space<vmem>>) attributes {dimension_semantics = [#tpu.dimension_semantics<parallel>, #tpu.dimension_semantics<parallel>], iteration_bounds = array<i64: 2, 4>, scalar_prefetch = 0 : i64, scratch_operands = 0 : i64, tpu.core_type = #tpu.core_type<tc>, window_params = [{transform_indices = @transform_0, window_bounds = array<i64: 1, 32, 128>}, {transform_indices = @transform_1, window_bounds = array<i64: 1, 1, 128>}, {transform_indices = @transform_2, window_bounds = array<i64: 1, 1, 128>}, {pipeline_mode = #tpu.pipeline_mode<synchronous>, transform_indices = @transform_3, window_bounds = array<i64: 1, 128>}, {pipeline_mode = #tpu.pipeline_mode<synchronous>, transform_indices = @transform_4, window_bounds = array<i64: 1, 128>}, {transform_indices = @transform_5, window_bounds = array<i64: 1, 32, 4>}, {pipeline_mode = #tpu.pipeline_mode<synchronous>, transform_indices = @transform_6, window_bounds = array<i64: 4, 128>}, {pipeline_mode = #tpu.pipeline_mode<synchronous>, transform_indices = @transform_7, window_bounds = array<i64: 1, 128>}, {transform_indices = @transform_8, window_bounds = array<i64: 1, 32, 128>}]} {
    %c0 = arith.constant 0 : index
    %c0_0 = arith.constant 0 : index
    %c0_1 = arith.constant 0 : index
    %0 = vector.load %arg7[%c0, %c0_0, %c0_1] : memref<1x32x4xbf16, #tpu.memory_space<vmem>>, vector<1x32x4xbf16>
    %1 = vector.shape_cast %0 : vector<1x32x4xbf16> to vector<32x4xbf16>
    %c0_2 = arith.constant 0 : index
    %c0_3 = arith.constant 0 : index
    %2 = vector.load %arg8[%c0_2, %c0_3] : memref<4x128xbf16, #tpu.memory_space<vmem>>, vector<4x128xbf16>
    %cst = arith.constant dense<0.000000e+00> : vector<32x128xf32>
    %3 = tpu.matmul %1, %2, %cst {dimension_numbers = #tpu.dot_dimension_numbers<[1], [0], [0], [1], [0, 0, 1, 1], [], []>} : vector<32x4xbf16>, vector<4x128xbf16>, vector<32x128xf32> -> vector<32x128xf32>
    %c0_4 = arith.constant 0 : index
    %c0_5 = arith.constant 0 : index
    %4 = vector.load %arg9[%c0_4, %c0_5] : memref<1x128xf32, #tpu.memory_space<vmem>>, vector<1x128xf32>
    %5 = vector.broadcast %4 : vector<1x128xf32> to vector<32x128xf32>
    %6 = arith.addf %3, %5 : vector<32x128xf32>
    %c0_6 = arith.constant 0 : index
    %c0_7 = arith.constant 0 : index
    %c0_8 = arith.constant 0 : index
    %7 = vector.load %arg2[%c0_6, %c0_7, %c0_8] : memref<1x32x128xbf16, #tpu.memory_space<vmem>>, vector<1x32x128xbf16>
    %8 = vector.shape_cast %7 : vector<1x32x128xbf16> to vector<32x128xbf16>
    %9 = arith.extf %8 : vector<32x128xbf16> to vector<32x128xf32>
    %c0_9 = arith.constant 0 : index
    %c0_10 = arith.constant 0 : index
    %c0_11 = arith.constant 0 : index
    %10 = vector.load %arg3[%c0_9, %c0_10, %c0_11] : memref<1x1x128xf32, #tpu.memory_space<vmem>>, vector<1x1x128xf32>
    %11 = vector.shape_cast %10 : vector<1x1x128xf32> to vector<1x128xf32>
    %12 = vector.broadcast %11 : vector<1x128xf32> to vector<32x128xf32>
    %13 = arith.subf %9, %12 : vector<32x128xf32>
    %c0_12 = arith.constant 0 : index
    %c0_13 = arith.constant 0 : index
    %c0_14 = arith.constant 0 : index
    %14 = vector.load %arg4[%c0_12, %c0_13, %c0_14] : memref<1x1x128xf32, #tpu.memory_space<vmem>>, vector<1x1x128xf32>
    %15 = vector.shape_cast %14 : vector<1x1x128xf32> to vector<1x128xf32>
    %16 = vector.broadcast %15 : vector<1x128xf32> to vector<32x128xf32>
    %17 = arith.mulf %13, %16 : vector<32x128xf32>
    %c0_15 = arith.constant 0 : index
    %c0_16 = arith.constant 0 : index
    %18 = vector.load %arg5[%c0_15, %c0_16] : memref<1x128xf32, #tpu.memory_space<vmem>>, vector<1x128xf32>
    %19 = vector.broadcast %18 : vector<1x128xf32> to vector<32x128xf32>
    %20 = arith.mulf %19, %17 : vector<32x128xf32>
    %c0_17 = arith.constant 0 : index
    %c0_18 = arith.constant 0 : index
    %21 = vector.load %arg6[%c0_17, %c0_18] : memref<1x128xf32, #tpu.memory_space<vmem>>, vector<1x128xf32>
    %22 = vector.broadcast %21 : vector<1x128xf32> to vector<32x128xf32>
    %23 = arith.addf %20, %22 : vector<32x128xf32>
    %24 = arith.addf %23, %6 : vector<32x128xf32>
    %cst_19 = arith.constant 0.000000e+00 : f32
    %25 = vector.broadcast %cst_19 : f32 to vector<32x128xf32>
    %26 = arith.cmpf oge, %24, %25 : vector<32x128xf32>
    %cst_20 = arith.constant 0.00999999977 : f32
    %27 = vector.broadcast %cst_20 : f32 to vector<32x128xf32>
    %28 = arith.mulf %27, %24 : vector<32x128xf32>
    %29 = arith.select %26, %24, %28 : vector<32x128xi1>, vector<32x128xf32>
    %c0_21 = arith.constant 0 : index
    %c0_22 = arith.constant 0 : index
    %c0_23 = arith.constant 0 : index
    %30 = vector.load %arg10[%c0_21, %c0_22, %c0_23] : memref<1x32x128xf32, #tpu.memory_space<vmem>>, vector<1x32x128xf32>
    %31 = vector.shape_cast %30 : vector<1x32x128xf32> to vector<32x128xf32>
    %32 = vector.shape_cast %29 : vector<32x128xf32> to vector<1x32x128xf32>
    tpu.vector_store %arg10[%c0_21, %c0_22, %c0_23], %32 {strides = array<i32>} : memref<1x32x128xf32, #tpu.memory_space<vmem>>, vector<1x32x128xf32>,
    return
  }
  func.func @transform_0(%arg0: i32, %arg1: i32) -> (i32, i32, i32) {
    %c0_i32 = arith.constant 0 : i32
    %c0_i32_0 = arith.constant 0 : i32
    return %arg0, %arg1, %c0_i32 : i32, i32, i32
  }
  func.func @transform_1(%arg0: i32, %arg1: i32) -> (i32, i32, i32) {
    %c0_i32 = arith.constant 0 : i32
    %c0_i32_0 = arith.constant 0 : i32
    %c0_i32_1 = arith.constant 0 : i32
    return %arg0, %c0_i32, %c0_i32_0 : i32, i32, i32
  }
  func.func @transform_2(%arg0: i32, %arg1: i32) -> (i32, i32, i32) {
    %c0_i32 = arith.constant 0 : i32
    %c0_i32_0 = arith.constant 0 : i32
    %c0_i32_1 = arith.constant 0 : i32
    return %arg0, %c0_i32, %c0_i32_0 : i32, i32, i32
  }
  func.func @transform_3(%arg0: i32, %arg1: i32) -> (i32, i32) {
    %c0_i32 = arith.constant 0 : i32
    %c0_i32_0 = arith.constant 0 : i32
    %c0_i32_1 = arith.constant 0 : i32
    return %c0_i32, %c0_i32_0 : i32, i32
  }
  func.func @transform_4(%arg0: i32, %arg1: i32) -> (i32, i32) {
    %c0_i32 = arith.constant 0 : i32
    %c0_i32_0 = arith.constant 0 : i32
    %c0_i32_1 = arith.constant 0 : i32
    return %c0_i32, %c0_i32_0 : i32, i32
  }
  func.func @transform_5(%arg0: i32, %arg1: i32) -> (i32, i32, i32) {
    %c0_i32 = arith.constant 0 : i32
    %c0_i32_0 = arith.constant 0 : i32
    return %arg0, %arg1, %c0_i32 : i32, i32, i32
  }
  func.func @transform_6(%arg0: i32, %arg1: i32) -> (i32, i32) {
    %c0_i32 = arith.constant 0 : i32
    %c0_i32_0 = arith.constant 0 : i32
    %c0_i32_1 = arith.constant 0 : i32
    return %c0_i32, %c0_i32_0 : i32, i32
  }
  func.func @transform_7(%arg0: i32, %arg1: i32) -> (i32, i32) {
    %c0_i32 = arith.constant 0 : i32
    %c0_i32_0 = arith.constant 0 : i32
    %c0_i32_1 = arith.constant 0 : i32
    return %c0_i32, %c0_i32_0 : i32, i32
  }
  func.func @transform_8(%arg0: i32, %arg1: i32) -> (i32, i32, i32) {
    %c0_i32 = arith.constant 0 : i32
    %c0_i32_0 = arith.constant 0 : i32
    return %arg0, %arg1, %c0_i32 : i32, i32, i32
  }
}

</mosaic_0001>

<llo_original>
// kernel: downsampling_block.5
$region0: #{downsampling_block.5}
  #allocation0 [shape = 'u32[]', space=smem, size = 0x4, offset = 0x4, fixed_abs, tag = 'smem constant byte address 0x4 - core index']
  #allocation1 [shape = 'u32[144,128]{1,0:T(1,128)}', space=vmem, size = 0x12000, scoped, tag = 'internal scratch']
  %s0 = inlined_call_operand.hbm [shape: bf16[2,64,128], index: 0, kind: input, shape index: {}]
  %s1 = inlined_call_operand.hbm [shape: f32[2,1,128], index: 1, kind: input, shape index: {}]
  %s2 = inlined_call_operand.hbm [shape: f32[2,1,128], index: 2, kind: input, shape index: {}]
  %s3 = inlined_call_operand.hbm [shape: f32[1,128], index: 3, kind: input, shape index: {}]
  %s4 = inlined_call_operand.hbm [shape: f32[1,128], index: 4, kind: input, shape index: {}]
  %s5 = inlined_call_operand.hbm [shape: bf16[2,64,128], index: 5, kind: output, shape index: {}]
  %s6 = sld [smem:[#allocation0]]
  $region73: #{downsampling_block.5} parent=0
    _
  %s8 = ssub.s32 1, %s6
  %s9 = scalar_select 0, %s8, %s6
  $region1: #{downsampling_block.5} parent=0
    #allocation2 [shape = 'u8[32768]{0}', space=vmem, size = 0x8000, scoped, tag = 'input window, operand 0']
    #allocation3 [shape = 's32[2]{0}', space=sflag, size = 0x8, scoped, tag = 'scoped memory for downsampling_block.5']
    #allocation4 [shape = 's32[2]{0}', space=sflag, size = 0x8, scoped, tag = 'scoped memory for downsampling_block.5']
    #allocation5 [shape = 'u8[1024]{0}', space=vmem, size = 0x400, scoped, tag = 'input window, operand 1']
    #allocation6 [shape = 's32[2]{0}', space=sflag, size = 0x8, scoped, tag = 'scoped memory for downsampling_block.5']
    #allocation7 [shape = 'u8[1024]{0}', space=vmem, size = 0x400, scoped, tag = 'input window, operand 2']
    #allocation8 [shape = 'u8[512]{0}', space=vmem, size = 0x400, scoped, tag = 'input window, operand 3, single buffered']
    #allocation9 [shape = 's32[1]{0}', space=sflag, size = 0x4, scoped, tag = 'scoped memory for downsampling_block.5']
    #allocation10 [shape = 'u8[512]{0}', space=vmem, size = 0x400, scoped, tag = 'input window, operand 4, single buffered']
    #allocation11 [shape = 'u8[32768]{0}', space=vmem, size = 0x8000, scoped, tag = 'output window, operand 0']
    %10 = vsyncpa [#allocation3], 0
    %s11 = scalar_lea.sflag [#allocation3], 1
    %12 = vsyncpa %s11, 0
    %13 = vsyncpa [#allocation6], 0
    %s14 = scalar_lea.sflag [#allocation6], 1
    %15 = vsyncpa %s14, 0
    %16 = vsyncpa [#allocation9], 0
    %17 = vsyncpa [#allocation4], 0
    %s18 = scalar_lea.sflag [#allocation4], 1
    %19 = vsyncpa %s18, 0
    loop: start=0, step=1, limit=4
    $region2: #{downsampling_block.5} parent=1 // loop_pre_header
      _
    $region3: #{downsampling_block.5} parent=1 // loop_header
      %s21 = sphi 0, %s25
      %p22 = scmp.ge.s32.totalorder %s21, 4
      %s28 = sphi 0, %s40
      %s29 = sphi 0, %s36
      %s30 = sphi 0, %s28
      %s31 = sphi 0, %s29
      %s32 = sphi 0, %s30
      %s33 = sphi 0, %s31
      %s45 = sphi 0, %s47
      %s48 = sphi 0, %s45
      %s49 = sphi 0, %s48
      %s65 = sphi 0, %s49
      %s71 = sphi 0, %s73
      %s74 = sphi 0, %s71
      %s75 = sphi 0, %s74
      %s91 = sphi 0, %s75
      %s97 = sphi 0, %s99
      %s100 = sphi 0, %s97
      %s101 = sphi 0, %s100
      %s117 = sphi 0, %s101
      %s121 = sphi 0, %s121
      %s123 = sphi 0, %s121
      %s124 = sphi 0, %s123
      %s138 = sphi 0, %s124
      %s142 = sphi 0, %s142
      %s144 = sphi 0, %s142
      %s145 = sphi 0, %s144
      %s159 = sphi 0, %s145
      %s167 = sphi 0, %s169
      %s170 = sphi 0, %s167
      %s171 = sphi 0, %s170
      %s187 = sphi 0, %s171
    $region4: #{downsampling_block.5} parent=1 // loop_header_branch
      %24 = sbr.rel (%p22) target = $region8
    $region5: #{downsampling_block.5} parent=1 // loop_body
      %s26 = ssub.s32 %s21, 1
      %s27 = ssub.s32 %s21, 2
      %s34 = sadd.s32 1, %s29
      %p35 = scmp.ge.s32.totalorder %s34, 1
      %s36 = scalar_select %p35, 0, %s34
      %s37 = sadd.s32 1, %s28
      %s38 = scalar_select %p35, %s37, %s28
      %p39 = scmp.ge.s32.totalorder %s38, 2
      %s40 = scalar_select %p39, 0, %s38
      %s41 = ssub.s32 %s28, %s40
      %s42 = ssub.s32 %s29, %s36
      %s43 = sor.u32 %s41, %s42
      %p44 = scmp.eq.s32.totalorder %s43, 0
      %s46 = sadd.s32 %s45, 1
      %s47 = scalar_select %p44, %s45, %s46
      %p50 = pneg %p44
      %p51 = scmp.eq.s32.totalorder %s21, 1
      %p52 = por %p50, %p51
      %p53 = scmp.ne.s32.totalorder %s45, %s48
      %p54 = scmp.eq.s32.totalorder %s21, 0
      %p55 = por %p53, %p54
      %p56 = scmp.ne.s32.totalorder %s45, %s48
      %p57 = scmp.eq.s32.totalorder %s26, 1
      %p58 = por %p56, %p57
      %p59 = scmp.ne.s32.totalorder %s48, %s49
      %p60 = scmp.eq.s32.totalorder %s26, 0
      %p61 = por %p59, %p60
      %p62 = scmp.ne.s32.totalorder %s48, %s49
      %p63 = scmp.eq.s32.totalorder %s27, 1
      %p64 = por %p62, %p63
      %p66 = scmp.ne.s32.totalorder %s49, %s65
      %p67 = scmp.eq.s32.totalorder %s27, 0
      %p68 = por %p66, %p67
      %s69 = ssub.s32 %s28, %s40
      %p70 = scmp.eq.s32.totalorder %s69, 0
      %s72 = sadd.s32 %s71, 1
      %s73 = scalar_select %p70, %s71, %s72
      %p76 = pneg %p70
      %p77 = scmp.eq.s32.totalorder %s21, 1
      %p78 = por %p76, %p77
      %p79 = scmp.ne.s32.totalorder %s71, %s74
      %p80 = scmp.eq.s32.totalorder %s21, 0
      %p81 = por %p79, %p80
      %p82 = scmp.ne.s32.totalorder %s71, %s74
      %p83 = scmp.eq.s32.totalorder %s26, 1
      %p84 = por %p82, %p83
      %p85 = scmp.ne.s32.totalorder %s74, %s75
      %p86 = scmp.eq.s32.totalorder %s26, 0
      %p87 = por %p85, %p86
      %p88 = scmp.ne.s32.totalorder %s74, %s75
      %p89 = scmp.eq.s32.totalorder %s27, 1
      %p90 = por %p88, %p89
      %p92 = scmp.ne.s32.totalorder %s75, %s91
      %p93 = scmp.eq.s32.totalorder %s27, 0
      %p94 = por %p92, %p93
      %s95 = ssub.s32 %s28, %s40
      %p96 = scmp.eq.s32.totalorder %s95, 0
      %s98 = sadd.s32 %s97, 1
      %s99 = scalar_select %p96, %s97, %s98
      %p102 = pneg %p96
      %p103 = scmp.eq.s32.totalorder %s21, 1
      %p104 = por %p102, %p103
      %p105 = scmp.ne.s32.totalorder %s97, %s100
      %p106 = scmp.eq.s32.totalorder %s21, 0
      %p107 = por %p105, %p106
      %p108 = scmp.ne.s32.totalorder %s97, %s100
      %p109 = scmp.eq.s32.totalorder %s26, 1
      %p110 = por %p108, %p109
      %p111 = scmp.ne.s32.totalorder %s100, %s101
      %p112 = scmp.eq.s32.totalorder %s26, 0
      %p113 = por %p111, %p112
      %p114 = scmp.ne.s32.totalorder %s100, %s101
      %p115 = scmp.eq.s32.totalorder %s27, 1
      %p116 = por %p114, %p115
      %p118 = scmp.ne.s32.totalorder %s101, %s117
      %p119 = scmp.eq.s32.totalorder %s27, 0
      %p120 = por %p118, %p119
      %s122 = sadd.s32 %s121, 1
      %p125 = scmp.eq.s32.totalorder %s21, 1
      %p126 = scmp.ne.s32.totalorder %s121, %s123
      %p127 = scmp.eq.s32.totalorder %s21, 0
      %p128 = por %p126, %p127
      %p129 = scmp.ne.s32.totalorder %s121, %s123
      %p130 = scmp.eq.s32.totalorder %s26, 1
      %p131 = por %p129, %p130
      %p132 = scmp.ne.s32.totalorder %s123, %s124
      %p133 = scmp.eq.s32.totalorder %s26, 0
      %p134 = por %p132, %p133
      %p135 = scmp.ne.s32.totalorder %s123, %s124
      %p136 = scmp.eq.s32.totalorder %s27, 1
      %p137 = por %p135, %p136
      %p139 = scmp.ne.s32.totalorder %s124, %s138
      %p140 = scmp.eq.s32.totalorder %s27, 0
      %p141 = por %p139, %p140
      %s143 = sadd.s32 %s142, 1
      %p146 = scmp.eq.s32.totalorder %s21, 1
      %p147 = scmp.ne.s32.totalorder %s142, %s144
      %p148 = scmp.eq.s32.totalorder %s21, 0
      %p149 = por %p147, %p148
      %p150 = scmp.ne.s32.totalorder %s142, %s144
      %p151 = scmp.eq.s32.totalorder %s26, 1
      %p152 = por %p150, %p151
      %p153 = scmp.ne.s32.totalorder %s144, %s145
      %p154 = scmp.eq.s32.totalorder %s26, 0
      %p155 = por %p153, %p154
      %p156 = scmp.ne.s32.totalorder %s144, %s145
      %p157 = scmp.eq.s32.totalorder %s27, 1
      %p158 = por %p156, %p157
      %p160 = scmp.ne.s32.totalorder %s145, %s159
      %p161 = scmp.eq.s32.totalorder %s27, 0
      %p162 = por %p160, %p161
      %s163 = ssub.s32 %s28, %s40
      %s164 = ssub.s32 %s29, %s36
      %s165 = sor.u32 %s163, %s164
      %p166 = scmp.eq.s32.totalorder %s165, 0
      %s168 = sadd.s32 %s167, 1
      %s169 = scalar_select %p166, %s167, %s168
      %p172 = pneg %p166
      %p173 = scmp.eq.s32.totalorder %s21, 1
      %p174 = por %p172, %p173
      %p175 = scmp.ne.s32.totalorder %s167, %s170
      %p176 = scmp.eq.s32.totalorder %s21, 0
      %p177 = por %p175, %p176
      %p178 = scmp.ne.s32.totalorder %s167, %s170
      %p179 = scmp.eq.s32.totalorder %s26, 1
      %p180 = por %p178, %p179
      %p181 = scmp.ne.s32.totalorder %s170, %s171
      %p182 = scmp.eq.s32.totalorder %s26, 0
      %p183 = por %p181, %p182
      %p184 = scmp.ne.s32.totalorder %s170, %s171
      %p185 = scmp.eq.s32.totalorder %s27, 1
      %p186 = por %p184, %p185
      %p188 = scmp.ne.s32.totalorder %s171, %s187
      %p189 = scmp.eq.s32.totalorder %s27, 0
      %p190 = por %p188, %p189
      %p191 = scmp.le.s32.totalorder 1, %s21
      %p192 = scmp.lt.s32.totalorder %s21, 3
      %p193 = pnand %p191, %p192
      %p194 = pneg %p193
      // Predicated region
      $region9: #{downsampling_block.5} parent=5 // pred_check
        _
      $region10: #{downsampling_block.5} parent=5 // pred_check_branch
        %196 = sbr.rel (%p193) target = $region12
      $region11: #{downsampling_block.5} parent=5 // pred_region
        %s197 = ssub.s32 %s21, 1
        // Predicated region
        $region13: #{downsampling_block.5} parent=11 // pred_check
          %p198 = pneg %p134
        $region14: #{downsampling_block.5} parent=11 // pred_check_branch
          %200 = sbr.rel (%p198) target = $region16
        $region15: #{downsampling_block.5} parent=11 // pred_region
          %s202 = ssub.s32 16, 16
          %203 = vsyncadd [#allocation9], %s202
          %s205 = sshll.u32 [#allocation8], 4
          %s206 = int_to_ptr.vmem [resolvable:$true] %s205
          %208 = dma.hbm_to_vmem [thread:$0]  %s3, 16, %s206, [#allocation9]
        $region16: #{downsampling_block.5} parent=11 // pred_fallthru
          _
        // Predicated region
        $region17: #{downsampling_block.5} parent=11 // pred_check
          %p209 = pneg %p155
        $region18: #{downsampling_block.5} parent=11 // pred_check_branch
          %211 = sbr.rel (%p209) target = $region20
        $region19: #{downsampling_block.5} parent=11 // pred_region
          %s213 = ssub.s32 16, 16
          %214 = vsyncadd [#allocation9], %s213
          %s216 = sshll.u32 [#allocation10], 4
          %s217 = int_to_ptr.vmem [resolvable:$true] %s216
          %219 = dma.hbm_to_vmem [thread:$0]  %s4, 16, %s217, [#allocation9]
        $region20: #{downsampling_block.5} parent=11 // pred_fallthru
          _
      $region12: #{downsampling_block.5} parent=5 // pred_fallthru
        _
      %p220 = scmp.lt.s32.totalorder %s21, 2
      // Predicated region
      $region21: #{downsampling_block.5} parent=5 // pred_check
        %p221 = pneg %p220
      $region22: #{downsampling_block.5} parent=5 // pred_check_branch
        %223 = sbr.rel (%p221) target = $region24
      $region23: #{downsampling_block.5} parent=5 // pred_region
        // Predicated region
        $region25: #{downsampling_block.5} parent=23 // pred_check
          %p224 = pneg %p55
        $region26: #{downsampling_block.5} parent=23 // pred_check_branch
          %226 = sbr.rel (%p224) target = $region28
        $region27: #{downsampling_block.5} parent=23 // pred_region
          %s227 = sand.u32 %s45, 1
          %s228 = scalar_lea.sflag [#allocation3], %s227
          %s229 = sand.u32 %s45, 1
          %s230 = smul.addr %s229, 32
          %s231 = scalar_lea.vmem [#allocation2], %s230
          %s232 = smul.u32 8, %s29
          %s234 = ssub.s32 512, 512
          %235 = vsyncadd %s228, %s234
          %s236 = smul.addr %s28, 8
          %s237 = sadd.s32 %s232, %s236
          %s238 = smul.addr %s237, 64
          %s239 = scalar_lea.hbm %s0, %s238
          %s240 = sshll.u32 %s231, 4
          %s241 = int_to_ptr.vmem [resolvable:$true] %s240
          %246 = dma.hbm_to_vmem [thread:$0]  %s239, 512, %s241, %s228, 64, 64, 4
        $region28: #{downsampling_block.5} parent=23 // pred_fallthru
          _
        // Predicated region
        $region29: #{downsampling_block.5} parent=23 // pred_check
          %p247 = pneg %p81
        $region30: #{downsampling_block.5} parent=23 // pred_check_branch
          %249 = sbr.rel (%p247) target = $region32
        $region31: #{downsampling_block.5} parent=23 // pred_region
          %s250 = sand.u32 %s21, 1
          %s251 = scalar_lea.sflag [#allocation6], %s250
          %s252 = sand.u32 %s71, 1
          %s253 = scalar_lea.vmem [#allocation5], %s252
          %s255 = ssub.s32 16, 16
          %256 = vsyncadd %s251, %s255
          %s257 = smul.addr %s28, 16
          %s258 = scalar_lea.hbm %s1, %s257
          %s260 = sshll.u32 %s253, 4
          %s261 = int_to_ptr.vmem [resolvable:$true] %s260
          %263 = dma.hbm_to_vmem [thread:$0]  %s258, 16, %s261, %s251
        $region32: #{downsampling_block.5} parent=23 // pred_fallthru
          _
        // Predicated region
        $region33: #{downsampling_block.5} parent=23 // pred_check
          %p264 = pneg %p107
        $region34: #{downsampling_block.5} parent=23 // pred_check_branch
          %266 = sbr.rel (%p264) target = $region36
        $region35: #{downsampling_block.5} parent=23 // pred_region
          %s267 = sand.u32 %s21, 1
          %s268 = scalar_lea.sflag [#allocation6], %s267
          %s269 = sand.u32 %s97, 1
          %s270 = scalar_lea.vmem [#allocation7], %s269
          %s272 = ssub.s32 16, 16
          %273 = vsyncadd %s268, %s272
          %s274 = smul.addr %s28, 16
          %s275 = scalar_lea.hbm %s2, %s274
          %s277 = sshll.u32 %s270, 4
          %s278 = int_to_ptr.vmem [resolvable:$true] %s277
          %280 = dma.hbm_to_vmem [thread:$0]  %s275, 16, %s278, %s268
        $region36: #{downsampling_block.5} parent=23 // pred_fallthru
          _
      $region24: #{downsampling_block.5} parent=5 // pred_fallthru
        _
      %p281 = scmp.le.s32.totalorder 1, %s21
      %p282 = scmp.lt.s32.totalorder %s21, 3
      %p283 = pnand %p281, %p282
      %p284 = pneg %p283
      // Predicated region
      $region37: #{downsampling_block.5} parent=5 // pred_check
        _
      $region38: #{downsampling_block.5} parent=5 // pred_check_branch
        %286 = sbr.rel (%p283) target = $region40
      $region39: #{downsampling_block.5} parent=5 // pred_region
        %s287 = ssub.s32 %s21, 1
        %s288 = sand.u32 %s48, 1
        %s289 = scalar_lea.sflag [#allocation3], %s288
        %s290 = sand.u32 %s48, 1
        %s291 = smul.addr %s290, 32
        %s292 = scalar_lea.vmem [#allocation2], %s291
        // Predicated region
        $region41: #{downsampling_block.5} parent=39 // pred_check
          %p293 = pneg %p61
        $region42: #{downsampling_block.5} parent=39 // pred_check_branch
          %295 = sbr.rel (%p293) target = $region44
        $region43: #{downsampling_block.5} parent=39 // pred_region
          %296 = dma.done %s289, 512
        $region44: #{downsampling_block.5} parent=39 // pred_fallthru
          _
        %s297 = sand.u32 %s26, 1
        %s298 = scalar_lea.sflag [#allocation6], %s297
        %s299 = sand.u32 %s74, 1
        %s300 = scalar_lea.vmem [#allocation5], %s299
        // Predicated region
        $region45: #{downsampling_block.5} parent=39 // pred_check
          %p301 = pneg %p87
        $region46: #{downsampling_block.5} parent=39 // pred_check_branch
          %303 = sbr.rel (%p301) target = $region48
        $region47: #{downsampling_block.5} parent=39 // pred_region
          %304 = dma.done %s298, 16
        $region48: #{downsampling_block.5} parent=39 // pred_fallthru
          _
        %s305 = sand.u32 %s26, 1
        %s306 = scalar_lea.sflag [#allocation6], %s305
        %s307 = sand.u32 %s100, 1
        %s308 = scalar_lea.vmem [#allocation7], %s307
        // Predicated region
        $region49: #{downsampling_block.5} parent=39 // pred_check
          %p309 = pneg %p113
        $region50: #{downsampling_block.5} parent=39 // pred_check_branch
          %311 = sbr.rel (%p309) target = $region52
        $region51: #{downsampling_block.5} parent=39 // pred_region
          %312 = dma.done %s306, 16
        $region52: #{downsampling_block.5} parent=39 // pred_fallthru
          _
        // Predicated region
        $region53: #{downsampling_block.5} parent=39 // pred_check
          %p313 = pneg %p134
        $region54: #{downsampling_block.5} parent=39 // pred_check_branch
          %315 = sbr.rel (%p313) target = $region56
        $region55: #{downsampling_block.5} parent=39 // pred_region
          %316 = dma.done [#allocation9], 16
        $region56: #{downsampling_block.5} parent=39 // pred_fallthru
          _
        // Predicated region
        $region57: #{downsampling_block.5} parent=39 // pred_check
          %p317 = pneg %p155
        $region58: #{downsampling_block.5} parent=39 // pred_check_branch
          %319 = sbr.rel (%p317) target = $region60
        $region59: #{downsampling_block.5} parent=39 // pred_region
          %320 = dma.done [#allocation9], 16
        $region60: #{downsampling_block.5} parent=39 // pred_fallthru
          _
        %s321 = sand.u32 %s48, 1
        %s322 = scalar_lea.sflag [#allocation3], %s321
        %s323 = sand.u32 %s48, 1
        %s324 = smul.addr %s323, 32
        %s325 = scalar_lea.vmem [#allocation2], %s324
        %p326 = pneg %p61
        %p327 = pneg %p58
        %s328 = sand.u32 %s26, 1
        %s329 = scalar_lea.sflag [#allocation6], %s328
        %s330 = sand.u32 %s74, 1
        %s331 = scalar_lea.vmem [#allocation5], %s330
        %p332 = pneg %p87
        %p333 = pneg %p84
        %s334 = sand.u32 %s26, 1
        %s335 = scalar_lea.sflag [#allocation6], %s334
        %s336 = sand.u32 %s100, 1
        %s337 = scalar_lea.vmem [#allocation7], %s336
        %p338 = pneg %p113
        %p339 = pneg %p110
        %p340 = pneg %p134
        %p341 = pneg %p131
        %p342 = pneg %p155
        %p343 = pneg %p152
        %p344 = pneg %p183
        %p345 = pneg %p180
        %s346 = sand.u32 %s170, 1
        %s347 = scalar_lea.sflag [#allocation4], %s346
        %s348 = sand.u32 %s170, 1
        %s349 = smul.addr %s348, 32
        %s350 = scalar_lea.vmem [#allocation11], %s349
        %s351 = smul.u32 8, %s31
        %s352 = smul.u32 8, %s31
        %v353 = vld [vmem:[%s292] sm:$0xf]
        %v354 = vld [vmem:[%s292 + $0x4] sm:$0xf]
        %v355 = vld [vmem:[%s292 + $0x8] sm:$0xf]
        %v356 = vld [vmem:[%s292 + $0xc] sm:$0xf]
        %v357 = vld [vmem:[%s292 + $0x10] sm:$0xf]
        %v358 = vld [vmem:[%s292 + $0x14] sm:$0xf]
        %v359 = vld [vmem:[%s292 + $0x18] sm:$0xf]
        %v360 = vld [vmem:[%s292 + $0x1c] sm:$0xf]
        %v361 = vunpack.c.l.bf16 %v353
        %v362 = vunpack.c.l.bf16 %v354
        %v363 = vunpack.c.l.bf16 %v355
        %v364 = vunpack.c.l.bf16 %v356
        %v365 = vunpack.c.l.bf16 %v357
        %v366 = vunpack.c.l.bf16 %v358
        %v367 = vunpack.c.l.bf16 %v359
        %v368 = vunpack.c.l.bf16 %v360
        %v369 = vld [vmem:[#allocation8] sm:$0x1]
        %v370 = vld [vmem:[%s300] sm:$0x1]
        %v372 = vlaneseq
        %v373 = vshrl.u32 %v372, 7
        %v374 = vsub.s32 0, %v373
        %v375 = vrot.slane %v370, %v374
        %v377 = vsub.f32 %v361, %v375
        %v378 = vsub.f32 %v362, %v375
        %v379 = vsub.f32 %v363, %v375
        %v380 = vsub.f32 %v364, %v375
        %v381 = vsub.f32 %v365, %v375
        %v382 = vsub.f32 %v366, %v375
        %v383 = vsub.f32 %v367, %v375
        %v384 = vsub.f32 %v368, %v375
        %v385 = vld [vmem:[%s308] sm:$0x1]
        %v387 = vlaneseq
        %v388 = vshrl.u32 %v387, 7
        %v389 = vsub.s32 0, %v388
        %v390 = vrot.slane %v385, %v389
        %v392 = vmul.f32 %v377, %v390
        %v393 = vmul.f32 %v378, %v390
        %v394 = vmul.f32 %v379, %v390
        %v395 = vmul.f32 %v380, %v390
        %v396 = vmul.f32 %v381, %v390
        %v397 = vmul.f32 %v382, %v390
        %v398 = vmul.f32 %v383, %v390
        %v399 = vmul.f32 %v384, %v390
        %v401 = vlaneseq
        %v402 = vshrl.u32 %v401, 7
        %v403 = vsub.s32 0, %v402
        %v404 = vrot.slane %v369, %v403
        %v406 = vmul.f32 %v404, %v392
        %v407 = vmul.f32 %v404, %v393
        %v408 = vmul.f32 %v404, %v394
        %v409 = vmul.f32 %v404, %v395
        %v410 = vmul.f32 %v404, %v396
        %v411 = vmul.f32 %v404, %v397
        %v412 = vmul.f32 %v404, %v398
        %v413 = vmul.f32 %v404, %v399
        %v414 = vld [vmem:[#allocation10] sm:$0x1]
        %v416 = vlaneseq
        %v417 = vshrl.u32 %v416, 7
        %v418 = vsub.s32 0, %v417
        %v419 = vrot.slane %v414, %v418
        %v421 = vadd.f32 %v406, %v419
        %v422 = vadd.f32 %v407, %v419
        %v423 = vadd.f32 %v408, %v419
        %v424 = vadd.f32 %v409, %v419
        %v425 = vadd.f32 %v410, %v419
        %v426 = vadd.f32 %v411, %v419
        %v427 = vadd.f32 %v412, %v419
        %v428 = vadd.f32 %v413, %v419
        %vm429 = vcmp.ge.f32.partialorder %v421, 0.0
        %vm430 = vcmp.ge.f32.partialorder %v422, 0.0
        %vm431 = vcmp.ge.f32.partialorder %v423, 0.0
        %vm432 = vcmp.ge.f32.partialorder %v424, 0.0
        %vm433 = vcmp.ge.f32.partialorder %v425, 0.0
        %vm434 = vcmp.ge.f32.partialorder %v426, 0.0
        %vm435 = vcmp.ge.f32.partialorder %v427, 0.0
        %vm436 = vcmp.ge.f32.partialorder %v428, 0.0
        %v437 = vmul.f32 %v421, 0.01
        %v438 = vmul.f32 %v422, 0.01
        %v439 = vmul.f32 %v423, 0.01
        %v440 = vmul.f32 %v424, 0.01
        %v441 = vmul.f32 %v425, 0.01
        %v442 = vmul.f32 %v426, 0.01
        %v443 = vmul.f32 %v427, 0.01
        %v444 = vmul.f32 %v428, 0.01
        %v445 = vsel %vm429, %v421, %v437
        %v446 = vsel %vm430, %v422, %v438
        %v447 = vsel %vm431, %v423, %v439
        %v448 = vsel %vm432, %v424, %v440
        %v449 = vsel %vm433, %v425, %v441
        %v450 = vsel %vm434, %v426, %v442
        %v451 = vsel %vm435, %v427, %v443
        %v452 = vsel %vm436, %v428, %v444
        %v453 = vpack.c.bf16 %v446, %v445
        %v454 = vpack.c.bf16 %v448, %v447
        %v455 = vpack.c.bf16 %v450, %v449
        %v456 = vpack.c.bf16 %v452, %v451
        %v461 = vunpack.c.l.b16 %v453
        %v462 = vunpack.c.h.b16 %v453
        %v463 = vunpack.c.l.b16 %v454
        %v464 = vunpack.c.h.b16 %v454
        %v465 = vunpack.c.l.b16 %v455
        %v466 = vunpack.c.h.b16 %v455
        %v467 = vunpack.c.l.b16 %v456
        %v468 = vunpack.c.h.b16 %v456
        %v469 = vpack.c.b16 %v461, %v461
        %v470 = vpack.c.b16 %v462, %v462
        %v471 = vpack.c.b16 %v463, %v463
        %v472 = vpack.c.b16 %v464, %v464
        %v473 = vpack.c.b16 %v465, %v465
        %v474 = vpack.c.b16 %v466, %v466
        %v475 = vpack.c.b16 %v467, %v467
        %v476 = vpack.c.b16 %v468, %v468
        %485 = vst [vmem:[%s350] sm:$0xf] %v469
        %486 = vst [vmem:[%s350 + $0x4] sm:$0xf] %v470
        %487 = vst [vmem:[%s350 + $0x8] sm:$0xf] %v471
        %488 = vst [vmem:[%s350 + $0xc] sm:$0xf] %v472
        %489 = vst [vmem:[%s350 + $0x10] sm:$0xf] %v473
        %490 = vst [vmem:[%s350 + $0x14] sm:$0xf] %v474
        %491 = vst [vmem:[%s350 + $0x18] sm:$0xf] %v475
        %492 = vst [vmem:[%s350 + $0x1c] sm:$0xf] %v476
        %s493 = sand.u32 %s170, 1
        %s494 = scalar_lea.sflag [#allocation4], %s493
        %s495 = sand.u32 %s170, 1
        %s496 = smul.addr %s495, 32
        %s497 = scalar_lea.vmem [#allocation11], %s496
        // Predicated region
        $region61: #{downsampling_block.5} parent=39 // pred_check
          %p498 = pneg %p180
        $region62: #{downsampling_block.5} parent=39 // pred_check_branch
          %500 = sbr.rel (%p498) target = $region64
        $region63: #{downsampling_block.5} parent=39 // pred_region
          %s501 = smul.u32 8, %s31
          %s503 = ssub.s32 512, 512
          %504 = vsyncadd %s494, %s503
          %s505 = smul.addr %s30, 8
          %s506 = sadd.s32 %s501, %s505
          %s507 = smul.addr %s506, 64
          %s508 = scalar_lea.hbm %s5, %s507
          %s509 = sshll.u32 %s497, 4
          %s510 = int_to_ptr.vmem [resolvable:$true] %s509
          %515 = dma.vmem_to_hbm [thread:$0]  %s510, 512, %s508, %s494, 64, 64, 4
        $region64: #{downsampling_block.5} parent=39 // pred_fallthru
          _
      $region40: #{downsampling_block.5} parent=5 // pred_fallthru
        _
      %p516 = scmp.le.s32.totalorder 2, %s21
      // Predicated region
      $region65: #{downsampling_block.5} parent=5 // pred_check
        %p517 = pneg %p516
      $region66: #{downsampling_block.5} parent=5 // pred_check_branch
        %519 = sbr.rel (%p517) target = $region68
      $region67: #{downsampling_block.5} parent=5 // pred_region
        %s520 = ssub.s32 %s21, 2
        // Predicated region
        $region69: #{downsampling_block.5} parent=67 // pred_check
          %p521 = pneg %p186
        $region70: #{downsampling_block.5} parent=67 // pred_check_branch
          %523 = sbr.rel (%p521) target = $region72
        $region71: #{downsampling_block.5} parent=67 // pred_region
          %s524 = sand.u32 %s171, 1
          %s525 = scalar_lea.sflag [#allocation4], %s524
          %s526 = sand.u32 %s171, 1
          %s527 = smul.addr %s526, 32
          %s528 = scalar_lea.vmem [#allocation11], %s527
          %529 = dma.done %s525, 512
        $region72: #{downsampling_block.5} parent=67 // pred_fallthru
          _
      $region68: #{downsampling_block.5} parent=5 // pred_fallthru
        _
    $region6: #{downsampling_block.5} parent=1 // loop_footer
      %s25 = sadd.s32 1, %s21
    $region7: #{downsampling_block.5} parent=1 // loop_footer_branch
      %20 = sbr.rel target = $region3
    $region8: #{downsampling_block.5} parent=1 // loop_exit
      _
    %530 = vsyncpa [#allocation3], 1
    %s531 = scalar_lea.sflag [#allocation3], 1
    %532 = vsyncpa %s531, 1
    %533 = vsyncpa [#allocation6], 1
    %s534 = scalar_lea.sflag [#allocation6], 1
    %535 = vsyncpa %s534, 1
    %536 = vsyncpa [#allocation9], 1
    %537 = vsyncpa [#allocation4], 1
    %s538 = scalar_lea.sflag [#allocation4], 1
    %539 = vsyncpa %s538, 1

// kernel: downsampling_block.4
$region0: #{downsampling_block.4}
  #allocation0 [shape = 'u32[]', space=smem, size = 0x4, offset = 0x4, fixed_abs, tag = 'smem constant byte address 0x4 - core index']
  #allocation1 [shape = 'u32[144,128]{1,0:T(1,128)}', space=vmem, size = 0x12000, scoped, tag = 'internal scratch']
  #allocation2 [shape = 'f32[64,128]{1,0:T(8,128)}', space=vmem, size = 0x8000, scoped, tag = 'scratch operand']
  #allocation3 [shape = 'f32[1,128]{1,0:T(1,128)}', space=vmem, size = 0x200, scoped, tag = 'scratch operand']
  #allocation4 [shape = 'f32[1,128]{1,0:T(1,128)}', space=vmem, size = 0x200, scoped, tag = 'scratch operand']
  %s0 = inlined_call_operand.hbm [shape: bf16[2,64,128], index: 0, kind: input, shape index: {}]
  %s1 = inlined_call_operand.hbm [shape: bf16[128,128], index: 1, kind: input, shape index: {}]
  %s2 = inlined_call_operand.hbm [shape: f32[1,128], index: 2, kind: input, shape index: {}]
  %s3 = inlined_call_operand.hbm [shape: bf16[2,64,128], index: 3, kind: output, shape index: {0}]
  %s4 = inlined_call_operand.hbm [shape: f32[2,1,128], index: 4, kind: output, shape index: {1}]
  %s5 = inlined_call_operand.hbm [shape: f32[2,1,128], index: 5, kind: output, shape index: {2}]
  %6 = xla_tuple %s3, %s4, %s5
  %s7 = sld [smem:[#allocation0]]
  $region89: #{downsampling_block.4} parent=0
    _
  %s9 = ssub.s32 1, %s7
  %s10 = scalar_select 0, %s9, %s7
  $region1: #{downsampling_block.4} parent=0
    #allocation5 [shape = 'u8[32768]{0}', space=vmem, size = 0x8000, scoped, tag = 'input window, operand 0']
    #allocation6 [shape = 's32[2]{0}', space=sflag, size = 0x8, scoped, tag = 'scoped memory for downsampling_block.4']
    #allocation7 [shape = 's32[2]{0}', space=sflag, size = 0x8, scoped, tag = 'scoped memory for downsampling_block.4']
    #allocation8 [shape = 'u8[32768]{0}', space=vmem, size = 0x8000, scoped, tag = 'input window, operand 1, single buffered']
    #allocation9 [shape = 's32[1]{0}', space=sflag, size = 0x4, scoped, tag = 'scoped memory for downsampling_block.4']
    #allocation10 [shape = 'u8[512]{0}', space=vmem, size = 0x400, scoped, tag = 'input window, operand 2, single buffered']
    #allocation11 [shape = 'u8[32768]{0}', space=vmem, size = 0x8000, scoped, tag = 'output window, operand 0']
    #allocation12 [shape = 'u8[1024]{0}', space=vmem, size = 0x400, scoped, tag = 'output window, operand 1']
    #allocation13 [shape = 's32[2]{0}', space=sflag, size = 0x8, scoped, tag = 'scoped memory for downsampling_block.4']
    #allocation14 [shape = 'u8[1024]{0}', space=vmem, size = 0x400, scoped, tag = 'output window, operand 2']
    %11 = vsyncpa [#allocation6], 0
    %s12 = scalar_lea.sflag [#allocation6], 1
    %13 = vsyncpa %s12, 0
    %14 = vsyncpa [#allocation9], 0
    %15 = vsyncpa [#allocation7], 0
    %s16 = scalar_lea.sflag [#allocation7], 1
    %17 = vsyncpa %s16, 0
    %18 = vsyncpa [#allocation13], 0
    %s19 = scalar_lea.sflag [#allocation13], 1
    %20 = vsyncpa %s19, 0
    loop: start=0, step=1, limit=4
    $region2: #{downsampling_block.4} parent=1 // loop_pre_header
      _
    $region3: #{downsampling_block.4} parent=1 // loop_header
      %s22 = sphi 0, %s26
      %p23 = scmp.ge.s32.totalorder %s22, 4
      %s29 = sphi 0, %s48
      %s30 = sphi 0, %s44
      %s31 = sphi 0, %s40
      %s32 = sphi 0, %s29
      %s33 = sphi 0, %s30
      %s34 = sphi 0, %s31
      %s35 = sphi 0, %s32
      %s36 = sphi 0, %s33
      %s37 = sphi 0, %s34
      %s55 = sphi 0, %s57
      %s58 = sphi 0, %s55
      %s59 = sphi 0, %s58
      %s75 = sphi 0, %s59
      %s81 = sphi 0, %s83
      %s84 = sphi 0, %s81
      %s85 = sphi 0, %s84
      %s101 = sphi 0, %s85
      %s105 = sphi 0, %s105
      %s107 = sphi 0, %s105
      %s108 = sphi 0, %s107
      %s122 = sphi 0, %s108
      %s130 = sphi 0, %s132
      %s133 = sphi 0, %s130
      %s134 = sphi 0, %s133
      %s150 = sphi 0, %s134
      %s156 = sphi 0, %s158
      %s159 = sphi 0, %s156
      %s160 = sphi 0, %s159
      %s176 = sphi 0, %s160
      %s182 = sphi 0, %s184
      %s185 = sphi 0, %s182
      %s186 = sphi 0, %s185
      %s202 = sphi 0, %s186
    $region4: #{downsampling_block.4} parent=1 // loop_header_branch
      %25 = sbr.rel (%p23) target = $region8
    $region5: #{downsampling_block.4} parent=1 // loop_body
      %s27 = ssub.s32 %s22, 1
      %s28 = ssub.s32 %s22, 2
      %s38 = sadd.s32 1, %s31
      %p39 = scmp.ge.s32.totalorder %s38, 1
      %s40 = scalar_select %p39, 0, %s38
      %s41 = sadd.s32 1, %s30
      %s42 = scalar_select %p39, %s41, %s30
      %p43 = scmp.ge.s32.totalorder %s42, 1
      %s44 = scalar_select %p43, 0, %s42
      %s45 = sadd.s32 1, %s29
      %s46 = scalar_select %p43, %s45, %s29
      %p47 = scmp.ge.s32.totalorder %s46, 2
      %s48 = scalar_select %p47, 0, %s46
      %s49 = ssub.s32 %s29, %s48
      %s50 = ssub.s32 %s30, %s44
      %s51 = sor.u32 %s49, %s50
      %s52 = ssub.s32 %s31, %s40
      %s53 = sor.u32 %s51, %s52
      %p54 = scmp.eq.s32.totalorder %s53, 0
      %s56 = sadd.s32 %s55, 1
      %s57 = scalar_select %p54, %s55, %s56
      %p60 = pneg %p54
      %p61 = scmp.eq.s32.totalorder %s22, 1
      %p62 = por %p60, %p61
      %p63 = scmp.ne.s32.totalorder %s55, %s58
      %p64 = scmp.eq.s32.totalorder %s22, 0
      %p65 = por %p63, %p64
      %p66 = scmp.ne.s32.totalorder %s55, %s58
      %p67 = scmp.eq.s32.totalorder %s27, 1
      %p68 = por %p66, %p67
      %p69 = scmp.ne.s32.totalorder %s58, %s59
      %p70 = scmp.eq.s32.totalorder %s27, 0
      %p71 = por %p69, %p70
      %p72 = scmp.ne.s32.totalorder %s58, %s59
      %p73 = scmp.eq.s32.totalorder %s28, 1
      %p74 = por %p72, %p73
      %p76 = scmp.ne.s32.totalorder %s59, %s75
      %p77 = scmp.eq.s32.totalorder %s28, 0
      %p78 = por %p76, %p77
      %s79 = ssub.s32 %s31, %s40
      %p80 = scmp.eq.s32.totalorder %s79, 0
      %s82 = sadd.s32 %s81, 1
      %s83 = scalar_select %p80, %s81, %s82
      %p86 = pneg %p80
      %p87 = scmp.eq.s32.totalorder %s22, 1
      %p88 = por %p86, %p87
      %p89 = scmp.ne.s32.totalorder %s81, %s84
      %p90 = scmp.eq.s32.totalorder %s22, 0
      %p91 = por %p89, %p90
      %p92 = scmp.ne.s32.totalorder %s81, %s84
      %p93 = scmp.eq.s32.totalorder %s27, 1
      %p94 = por %p92, %p93
      %p95 = scmp.ne.s32.totalorder %s84, %s85
      %p96 = scmp.eq.s32.totalorder %s27, 0
      %p97 = por %p95, %p96
      %p98 = scmp.ne.s32.totalorder %s84, %s85
      %p99 = scmp.eq.s32.totalorder %s28, 1
      %p100 = por %p98, %p99
      %p102 = scmp.ne.s32.totalorder %s85, %s101
      %p103 = scmp.eq.s32.totalorder %s28, 0
      %p104 = por %p102, %p103
      %s106 = sadd.s32 %s105, 1
      %p109 = scmp.eq.s32.totalorder %s22, 1
      %p110 = scmp.ne.s32.totalorder %s105, %s107
      %p111 = scmp.eq.s32.totalorder %s22, 0
      %p112 = por %p110, %p111
      %p113 = scmp.ne.s32.totalorder %s105, %s107
      %p114 = scmp.eq.s32.totalorder %s27, 1
      %p115 = por %p113, %p114
      %p116 = scmp.ne.s32.totalorder %s107, %s108
      %p117 = scmp.eq.s32.totalorder %s27, 0
      %p118 = por %p116, %p117
      %p119 = scmp.ne.s32.totalorder %s107, %s108
      %p120 = scmp.eq.s32.totalorder %s28, 1
      %p121 = por %p119, %p120
      %p123 = scmp.ne.s32.totalorder %s108, %s122
      %p124 = scmp.eq.s32.totalorder %s28, 0
      %p125 = por %p123, %p124
      %s126 = ssub.s32 %s29, %s48
      %s127 = ssub.s32 %s30, %s44
      %s128 = sor.u32 %s126, %s127
      %p129 = scmp.eq.s32.totalorder %s128, 0
      %s131 = sadd.s32 %s130, 1
      %s132 = scalar_select %p129, %s130, %s131
      %p135 = pneg %p129
      %p136 = scmp.eq.s32.totalorder %s22, 1
      %p137 = por %p135, %p136
      %p138 = scmp.ne.s32.totalorder %s130, %s133
      %p139 = scmp.eq.s32.totalorder %s22, 0
      %p140 = por %p138, %p139
      %p141 = scmp.ne.s32.totalorder %s130, %s133
      %p142 = scmp.eq.s32.totalorder %s27, 1
      %p143 = por %p141, %p142
      %p144 = scmp.ne.s32.totalorder %s133, %s134
      %p145 = scmp.eq.s32.totalorder %s27, 0
      %p146 = por %p144, %p145
      %p147 = scmp.ne.s32.totalorder %s133, %s134
      %p148 = scmp.eq.s32.totalorder %s28, 1
      %p149 = por %p147, %p148
      %p151 = scmp.ne.s32.totalorder %s134, %s150
      %p152 = scmp.eq.s32.totalorder %s28, 0
      %p153 = por %p151, %p152
      %s154 = ssub.s32 %s29, %s48
      %p155 = scmp.eq.s32.totalorder %s154, 0
      %s157 = sadd.s32 %s156, 1
      %s158 = scalar_select %p155, %s156, %s157
      %p161 = pneg %p155
      %p162 = scmp.eq.s32.totalorder %s22, 1
      %p163 = por %p161, %p162
      %p164 = scmp.ne.s32.totalorder %s156, %s159
      %p165 = scmp.eq.s32.totalorder %s22, 0
      %p166 = por %p164, %p165
      %p167 = scmp.ne.s32.totalorder %s156, %s159
      %p168 = scmp.eq.s32.totalorder %s27, 1
      %p169 = por %p167, %p168
      %p170 = scmp.ne.s32.totalorder %s159, %s160
      %p171 = scmp.eq.s32.totalorder %s27, 0
      %p172 = por %p170, %p171
      %p173 = scmp.ne.s32.totalorder %s159, %s160
      %p174 = scmp.eq.s32.totalorder %s28, 1
      %p175 = por %p173, %p174
      %p177 = scmp.ne.s32.totalorder %s160, %s176
      %p178 = scmp.eq.s32.totalorder %s28, 0
      %p179 = por %p177, %p178
      %s180 = ssub.s32 %s29, %s48
      %p181 = scmp.eq.s32.totalorder %s180, 0
      %s183 = sadd.s32 %s182, 1
      %s184 = scalar_select %p181, %s182, %s183
      %p187 = pneg %p181
      %p188 = scmp.eq.s32.totalorder %s22, 1
      %p189 = por %p187, %p188
      %p190 = scmp.ne.s32.totalorder %s182, %s185
      %p191 = scmp.eq.s32.totalorder %s22, 0
      %p192 = por %p190, %p191
      %p193 = scmp.ne.s32.totalorder %s182, %s185
      %p194 = scmp.eq.s32.totalorder %s27, 1
      %p195 = por %p193, %p194
      %p196 = scmp.ne.s32.totalorder %s185, %s186
      %p197 = scmp.eq.s32.totalorder %s27, 0
      %p198 = por %p196, %p197
      %p199 = scmp.ne.s32.totalorder %s185, %s186
      %p200 = scmp.eq.s32.totalorder %s28, 1
      %p201 = por %p199, %p200
      %p203 = scmp.ne.s32.totalorder %s186, %s202
      %p204 = scmp.eq.s32.totalorder %s28, 0
      %p205 = por %p203, %p204
      %p206 = scmp.le.s32.totalorder 1, %s22
      %p207 = scmp.lt.s32.totalorder %s22, 3
      %p208 = pnand %p206, %p207
      %p209 = pneg %p208
      // Predicated region
      $region9: #{downsampling_block.4} parent=5 // pred_check
        _
      $region10: #{downsampling_block.4} parent=5 // pred_check_branch
        %211 = sbr.rel (%p208) target = $region12
      $region11: #{downsampling_block.4} parent=5 // pred_region
        %s212 = ssub.s32 %s22, 1
        // Predicated region
        $region13: #{downsampling_block.4} parent=11 // pred_check
          %p213 = pneg %p97
        $region14: #{downsampling_block.4} parent=11 // pred_check_branch
          %215 = sbr.rel (%p213) target = $region16
        $region15: #{downsampling_block.4} parent=11 // pred_region
          %s216 = smul.u32 16, %s34
          %s218 = ssub.s32 1024, 1024
          %219 = vsyncadd [#allocation9], %s218
          %s220 = smul.addr %s216, 64
          %s221 = scalar_lea.hbm %s1, %s220
          %s222 = sshll.u32 [#allocation8], 4
          %s223 = int_to_ptr.vmem [resolvable:$true] %s222
          %228 = dma.hbm_to_vmem [thread:$0]  %s221, 1024, %s223, [#allocation9], 64, 64, 4
        $region16: #{downsampling_block.4} parent=11 // pred_fallthru
          _
        // Predicated region
        $region17: #{downsampling_block.4} parent=11 // pred_check
          %p229 = pneg %p118
        $region18: #{downsampling_block.4} parent=11 // pred_check_branch
          %231 = sbr.rel (%p229) target = $region20
        $region19: #{downsampling_block.4} parent=11 // pred_region
          %s233 = ssub.s32 16, 16
          %234 = vsyncadd [#allocation9], %s233
          %s236 = sshll.u32 [#allocation10], 4
          %s237 = int_to_ptr.vmem [resolvable:$true] %s236
          %239 = dma.hbm_to_vmem [thread:$0]  %s2, 16, %s237, [#allocation9]
        $region20: #{downsampling_block.4} parent=11 // pred_fallthru
          _
      $region12: #{downsampling_block.4} parent=5 // pred_fallthru
        _
      %p240 = scmp.lt.s32.totalorder %s22, 2
      // Predicated region
      $region21: #{downsampling_block.4} parent=5 // pred_check
        %p241 = pneg %p240
      $region22: #{downsampling_block.4} parent=5 // pred_check_branch
        %243 = sbr.rel (%p241) target = $region24
      $region23: #{downsampling_block.4} parent=5 // pred_region
        // Predicated region
        $region25: #{downsampling_block.4} parent=23 // pred_check
          %p244 = pneg %p65
        $region26: #{downsampling_block.4} parent=23 // pred_check_branch
          %246 = sbr.rel (%p244) target = $region28
        $region27: #{downsampling_block.4} parent=23 // pred_region
          %s247 = sand.u32 %s55, 1
          %s248 = scalar_lea.sflag [#allocation6], %s247
          %s249 = sand.u32 %s55, 1
          %s250 = smul.addr %s249, 32
          %s251 = scalar_lea.vmem [#allocation5], %s250
          %s252 = smul.u32 8, %s30
          %s254 = ssub.s32 512, 512
          %255 = vsyncadd %s248, %s254
          %s256 = sadd.s32 %s31, %s252
          %s257 = smul.addr %s29, 8
          %s258 = sadd.s32 %s256, %s257
          %s259 = smul.addr %s258, 64
          %s260 = scalar_lea.hbm %s0, %s259
          %s261 = sshll.u32 %s251, 4
          %s262 = int_to_ptr.vmem [resolvable:$true] %s261
          %267 = dma.hbm_to_vmem [thread:$0]  %s260, 512, %s262, %s248, 64, 64, 4
        $region28: #{downsampling_block.4} parent=23 // pred_fallthru
          _
      $region24: #{downsampling_block.4} parent=5 // pred_fallthru
        _
      %p268 = scmp.le.s32.totalorder 1, %s22
      %p269 = scmp.lt.s32.totalorder %s22, 3
      %p270 = pnand %p268, %p269
      %p271 = pneg %p270
      // Predicated region
      $region29: #{downsampling_block.4} parent=5 // pred_check
        _
      $region30: #{downsampling_block.4} parent=5 // pred_check_branch
        %273 = sbr.rel (%p270) target = $region32
      $region31: #{downsampling_block.4} parent=5 // pred_region
        %s274 = ssub.s32 %s22, 1
        %s275 = sand.u32 %s58, 1
        %s276 = scalar_lea.sflag [#allocation6], %s275
        %s277 = sand.u32 %s58, 1
        %s278 = smul.addr %s277, 32
        %s279 = scalar_lea.vmem [#allocation5], %s278
        // Predicated region
        $region33: #{downsampling_block.4} parent=31 // pred_check
          %p280 = pneg %p71
        $region34: #{downsampling_block.4} parent=31 // pred_check_branch
          %282 = sbr.rel (%p280) target = $region36
        $region35: #{downsampling_block.4} parent=31 // pred_region
          %283 = dma.done %s276, 512
        $region36: #{downsampling_block.4} parent=31 // pred_fallthru
          _
        // Predicated region
        $region37: #{downsampling_block.4} parent=31 // pred_check
          %p284 = pneg %p97
        $region38: #{downsampling_block.4} parent=31 // pred_check_branch
          %286 = sbr.rel (%p284) target = $region40
        $region39: #{downsampling_block.4} parent=31 // pred_region
          %287 = dma.done [#allocation9], 1024
        $region40: #{downsampling_block.4} parent=31 // pred_fallthru
          _
        // Predicated region
        $region41: #{downsampling_block.4} parent=31 // pred_check
          %p288 = pneg %p118
        $region42: #{downsampling_block.4} parent=31 // pred_check_branch
          %290 = sbr.rel (%p288) target = $region44
        $region43: #{downsampling_block.4} parent=31 // pred_region
          %291 = dma.done [#allocation9], 16
        $region44: #{downsampling_block.4} parent=31 // pred_fallthru
          _
        %s292 = sand.u32 %s58, 1
        %s293 = scalar_lea.sflag [#allocation6], %s292
        %s294 = sand.u32 %s58, 1
        %s295 = smul.addr %s294, 32
        %s296 = scalar_lea.vmem [#allocation5], %s295
        %p297 = pneg %p71
        %p298 = pneg %p68
        %p299 = pneg %p97
        %p300 = pneg %p94
        %p301 = pneg %p118
        %p302 = pneg %p115
        %p303 = pneg %p146
        %p304 = pneg %p143
        %s305 = sand.u32 %s133, 1
        %s306 = scalar_lea.sflag [#allocation7], %s305
        %s307 = sand.u32 %s133, 1
        %s308 = smul.addr %s307, 32
        %s309 = scalar_lea.vmem [#allocation11], %s308
        %p310 = pneg %p172
        %p311 = pneg %p169
        %s312 = sand.u32 %s27, 1
        %s313 = scalar_lea.sflag [#allocation13], %s312
        %s314 = sand.u32 %s159, 1
        %s315 = scalar_lea.vmem [#allocation12], %s314
        %p316 = pneg %p198
        %p317 = pneg %p195
        %s318 = sand.u32 %s27, 1
        %s319 = scalar_lea.sflag [#allocation13], %s318
        %s320 = sand.u32 %s185, 1
        %s321 = scalar_lea.vmem [#allocation14], %s320
        %s322 = smul.u32 8, %s33
        %s323 = smul.u32 16, %s34
        %s324 = smul.u32 8, %s33
        %p326 = scmp.eq.s32.totalorder %s34, 0
        // Predicated region
        $region45: #{downsampling_block.4} parent=31 // pred_check
          %p327 = pneg %p326
        $region46: #{downsampling_block.4} parent=31 // pred_check_branch
          %329 = sbr.rel (%p327) target = $region48
        $region47: #{downsampling_block.4} parent=31 // pred_region
          %330 = vst [vmem:[#allocation2] sm:$0xff] 0.0
          %331 = vst [vmem:[#allocation2 + $0x8] sm:$0xff] 0.0
          %332 = vst [vmem:[#allocation2 + $0x10] sm:$0xff] 0.0
          %333 = vst [vmem:[#allocation2 + $0x18] sm:$0xff] 0.0
          %334 = vst [vmem:[#allocation2 + $0x20] sm:$0xff] 0.0
          %335 = vst [vmem:[#allocation2 + $0x28] sm:$0xff] 0.0
          %336 = vst [vmem:[#allocation2 + $0x30] sm:$0xff] 0.0
          %337 = vst [vmem:[#allocation2 + $0x38] sm:$0xff] 0.0
        $region48: #{downsampling_block.4} parent=31 // pred_fallthru
          _
        %p338 = scmp.eq.s32.totalorder %s33, 0
        %p339 = pnand %p338, %p326
        %p340 = pneg %p339
        // Predicated region
        $region49: #{downsampling_block.4} parent=31 // pred_check
          _
        $region50: #{downsampling_block.4} parent=31 // pred_check_branch
          %342 = sbr.rel (%p339) target = $region52
        $region51: #{downsampling_block.4} parent=31 // pred_region
          %343 = vst [vmem:[#allocation3] sm:$0x1] 0.0
          %344 = vst [vmem:[#allocation4] sm:$0x1] 0.0
        $region52: #{downsampling_block.4} parent=31 // pred_fallthru
          _
        %v345 = vld [vmem:[#allocation2] sm:$0xff]
        %v346 = vld [vmem:[#allocation2 + $0x8] sm:$0xff]
        %v347 = vld [vmem:[#allocation2 + $0x10] sm:$0xff]
        %v348 = vld [vmem:[#allocation2 + $0x18] sm:$0xff]
        %v349 = vld [vmem:[#allocation2 + $0x20] sm:$0xff]
        %v350 = vld [vmem:[#allocation2 + $0x28] sm:$0xff]
        %v351 = vld [vmem:[#allocation2 + $0x30] sm:$0xff]
        %v352 = vld [vmem:[#allocation2 + $0x38] sm:$0xff]
        %v353 = vld [vmem:[%s279] sm:$0xf]
        %v354 = vld [vmem:[%s279 + $0x4] sm:$0xf]
        %v355 = vld [vmem:[%s279 + $0x8] sm:$0xf]
        %v356 = vld [vmem:[%s279 + $0xc] sm:$0xf]
        %v357 = vld [vmem:[%s279 + $0x10] sm:$0xf]
        %v358 = vld [vmem:[%s279 + $0x14] sm:$0xf]
        %v359 = vld [vmem:[%s279 + $0x18] sm:$0xf]
        %v360 = vld [vmem:[%s279 + $0x1c] sm:$0xf]
        %v361 = vld [vmem:[#allocation8] sm:$0xf]
        %v362 = vld [vmem:[#allocation8 + $0x4] sm:$0xf]
        %v363 = vld [vmem:[#allocation8 + $0x8] sm:$0xf]
        %v364 = vld [vmem:[#allocation8 + $0xc] sm:$0xf]
        %v365 = vld [vmem:[#allocation8 + $0x10] sm:$0xf]
        %v366 = vld [vmem:[#allocation8 + $0x14] sm:$0xf]
        %v367 = vld [vmem:[#allocation8 + $0x18] sm:$0xf]
        %v368 = vld [vmem:[#allocation8 + $0x1c] sm:$0xf]
        %v369 = vld [vmem:[#allocation8 + $0x20] sm:$0xf]
        %v370 = vld [vmem:[#allocation8 + $0x24] sm:$0xf]
        %v371 = vld [vmem:[#allocation8 + $0x28] sm:$0xf]
        %v372 = vld [vmem:[#allocation8 + $0x2c] sm:$0xf]
        %v373 = vld [vmem:[#allocation8 + $0x30] sm:$0xf]
        %v374 = vld [vmem:[#allocation8 + $0x34] sm:$0xf]
        %v375 = vld [vmem:[#allocation8 + $0x38] sm:$0xf]
        %v376 = vld [vmem:[#allocation8 + $0x3c] sm:$0xf]
        %v385 = vunpack.c.l.b16 %v353
        %v386 = vunpack.c.l.b16 %v354
        %v387 = vunpack.c.l.b16 %v355
        %v388 = vunpack.c.l.b16 %v356
        %v389 = vunpack.c.l.b16 %v357
        %v390 = vunpack.c.l.b16 %v358
        %v391 = vunpack.c.l.b16 %v359
        %v392 = vunpack.c.l.b16 %v360
        %v393 = vpack.c.b16 %v386, %v385
        %v394 = vpack.c.b16 %v388, %v387
        %v395 = vpack.c.b16 %v390, %v389
        %v396 = vpack.c.b16 %v392, %v391
        %v417 = vunpack.c.l.b16 %v361
        %v418 = vunpack.c.l.b16 %v362
        %v419 = vunpack.c.l.b16 %v363
        %v420 = vunpack.c.l.b16 %v364
        %v421 = vunpack.c.l.b16 %v365
        %v422 = vunpack.c.l.b16 %v366
        %v423 = vunpack.c.l.b16 %v367
        %v424 = vunpack.c.l.b16 %v368
        %v425 = vunpack.c.l.b16 %v369
        %v426 = vunpack.c.l.b16 %v370
        %v427 = vunpack.c.l.b16 %v371
        %v428 = vunpack.c.l.b16 %v372
        %v429 = vunpack.c.l.b16 %v373
        %v430 = vunpack.c.l.b16 %v374
        %v431 = vunpack.c.l.b16 %v375
        %v432 = vunpack.c.l.b16 %v376
        %v433 = vpack.c.b16 %v418, %v417
        %v434 = vpack.c.b16 %v420, %v419
        %v435 = vpack.c.b16 %v422, %v421
        %v436 = vpack.c.b16 %v424, %v423
        %v437 = vpack.c.b16 %v426, %v425
        %v438 = vpack.c.b16 %v428, %v427
        %v439 = vpack.c.b16 %v430, %v429
        %v440 = vpack.c.b16 %v432, %v431
        %449 = vmatprep.subr.bf16.mxu0 0
        %450 = vmatpush1.bf16.msra.mxu0 %v433
        %451 = vmatprep.subr.bf16.mxu0 0
        %452 = vmatpush1.bf16.msra.mxu0 %v434
        %453 = vmatprep.subr.bf16.mxu0 0
        %454 = vmatpush1.bf16.msra.mxu0 %v435
        %455 = vmatprep.subr.bf16.mxu0 0
        %456 = vmatpush1.bf16.msra.mxu0 %v436
        %457 = vmatprep.subr.bf16.mxu0 0
        %458 = vmatpush1.bf16.msra.mxu0 %v437
        %459 = vmatprep.subr.bf16.mxu0 0
        %460 = vmatpush1.bf16.msra.mxu0 %v438
        %461 = vmatprep.subr.bf16.mxu0 0
        %462 = vmatpush1.bf16.msra.mxu0 %v439
        %463 = vmatprep.subr.bf16.mxu0 0
        %464 = vmatpush1.bf16.msra.mxu0 %v440
        %465 = vmatprep.subr.bf16.mxu0 0
        %466 = vmatpush1.bf16.msra.mxu0 0
        %467 = vmatprep.subr.bf16.mxu0 0
        %468 = vmatpush1.bf16.msra.mxu0 0
        %469 = vmatprep.subr.bf16.mxu0 0
        %470 = vmatpush1.bf16.msra.mxu0 0
        %471 = vmatprep.subr.bf16.mxu0 0
        %472 = vmatpush1.bf16.msra.mxu0 0
        %473 = vmatprep.subr.bf16.mxu0 0
        %474 = vmatpush1.bf16.msra.mxu0 0
        %475 = vmatprep.subr.bf16.mxu0 0
        %476 = vmatpush1.bf16.msra.mxu0 0
        %477 = vmatprep.subr.bf16.mxu0 0
        %478 = vmatpush1.bf16.msra.mxu0 0
        %479 = vmatprep.subr.bf16.mxu0 0
        %480 = vmatpush1.bf16.msra.mxu0 0
        %481 = vmatprep.mubr.bf16.mxu0 0
        %482 = vmatmul.mubr.bf16.gmra.mrb[0].mxu0 %v393
        %v483 = vpop.f32.mrb[0].mxu0
        %v484 = vadd.f32 0.0, %v483
        %v485 = vpop.f32.mrb[0].mxu0
        %v486 = vpop.f32.mrb[0].mxu0
        %v487 = vadd.f32 0.0, %v486
        %v488 = vpop.f32.mrb[0].mxu0
        %489 = vmatprep.mubr.bf16.mxu0 0
        %490 = vmatmul.mubr.bf16.gmra.mrb[0].mxu0 %v394
        %v491 = vpop.f32.mrb[0].mxu0
        %v492 = vadd.f32 0.0, %v491
        %v493 = vpop.f32.mrb[0].mxu0
        %v494 = vpop.f32.mrb[0].mxu0
        %v495 = vadd.f32 0.0, %v494
        %v496 = vpop.f32.mrb[0].mxu0
        %497 = vmatprep.mubr.bf16.mxu0 0
        %498 = vmatmul.mubr.bf16.gmra.mrb[0].mxu0 %v395
        %v499 = vpop.f32.mrb[0].mxu0
        %v500 = vadd.f32 0.0, %v499
        %v501 = vpop.f32.mrb[0].mxu0
        %v502 = vpop.f32.mrb[0].mxu0
        %v503 = vadd.f32 0.0, %v502
        %v504 = vpop.f32.mrb[0].mxu0
        %505 = vmatprep.mubr.bf16.mxu0 0
        %506 = vmatmul.mubr.bf16.gmra.mrb[0].mxu0 %v396
        %v507 = vpop.f32.mrb[0].mxu0
        %v508 = vadd.f32 0.0, %v507
        %v509 = vpop.f32.mrb[0].mxu0
        %v510 = vpop.f32.mrb[0].mxu0
        %v511 = vadd.f32 0.0, %v510
        %v512 = vpop.f32.mrb[0].mxu0
        %513 = vdwg.mxu0
        %v514 = vadd.f32 %v345, %v484
        %v515 = vadd.f32 %v346, %v487
        %v516 = vadd.f32 %v347, %v492
        %v517 = vadd.f32 %v348, %v495
        %v518 = vadd.f32 %v349, %v500
        %v519 = vadd.f32 %v350, %v503
        %v520 = vadd.f32 %v351, %v508
        %v521 = vadd.f32 %v352, %v511
        %522 = vst [vmem:[#allocation2] sm:$0xff] %v514
        %523 = vst [vmem:[#allocation2 + $0x8] sm:$0xff] %v515
        %524 = vst [vmem:[#allocation2 + $0x10] sm:$0xff] %v516
        %525 = vst [vmem:[#allocation2 + $0x18] sm:$0xff] %v517
        %526 = vst [vmem:[#allocation2 + $0x20] sm:$0xff] %v518
        %527 = vst [vmem:[#allocation2 + $0x28] sm:$0xff] %v519
        %528 = vst [vmem:[#allocation2 + $0x30] sm:$0xff] %v520
        %529 = vst [vmem:[#allocation2 + $0x38] sm:$0xff] %v521
        // Predicated region
        $region53: #{downsampling_block.4} parent=31 // pred_check
          %p530 = pneg %p326
        $region54: #{downsampling_block.4} parent=31 // pred_check_branch
          %532 = sbr.rel (%p530) target = $region56
        $region55: #{downsampling_block.4} parent=31 // pred_region
          %v533 = vld [vmem:[#allocation2] sm:$0xff]
          %v534 = vld [vmem:[#allocation2 + $0x8] sm:$0xff]
          %v535 = vld [vmem:[#allocation2 + $0x10] sm:$0xff]
          %v536 = vld [vmem:[#allocation2 + $0x18] sm:$0xff]
          %v537 = vld [vmem:[#allocation2 + $0x20] sm:$0xff]
          %v538 = vld [vmem:[#allocation2 + $0x28] sm:$0xff]
          %v539 = vld [vmem:[#allocation2 + $0x30] sm:$0xff]
          %v540 = vld [vmem:[#allocation2 + $0x38] sm:$0xff]
          %v541 = vld [vmem:[#allocation10] sm:$0x1]
          %v543 = vlaneseq
          %v544 = vshrl.u32 %v543, 7
          %v545 = vsub.s32 0, %v544
          %v546 = vrot.slane %v541, %v545
          %v548 = vadd.f32 %v533, %v546
          %v549 = vadd.f32 %v534, %v546
          %v550 = vadd.f32 %v535, %v546
          %v551 = vadd.f32 %v536, %v546
          %v552 = vadd.f32 %v537, %v546
          %v553 = vadd.f32 %v538, %v546
          %v554 = vadd.f32 %v539, %v546
          %v555 = vadd.f32 %v540, %v546
          %v556 = vpack.c.bf16 %v549, %v548
          %v557 = vpack.c.bf16 %v551, %v550
          %v558 = vpack.c.bf16 %v553, %v552
          %v559 = vpack.c.bf16 %v555, %v554
          %v564 = vunpack.c.l.b16 %v556
          %v565 = vunpack.c.h.b16 %v556
          %v566 = vunpack.c.l.b16 %v557
          %v567 = vunpack.c.h.b16 %v557
          %v568 = vunpack.c.l.b16 %v558
          %v569 = vunpack.c.h.b16 %v558
          %v570 = vunpack.c.l.b16 %v559
          %v571 = vunpack.c.h.b16 %v559
          %v572 = vpack.c.b16 %v564, %v564
          %v573 = vpack.c.b16 %v565, %v565
          %v574 = vpack.c.b16 %v566, %v566
          %v575 = vpack.c.b16 %v567, %v567
          %v576 = vpack.c.b16 %v568, %v568
          %v577 = vpack.c.b16 %v569, %v569
          %v578 = vpack.c.b16 %v570, %v570
          %v579 = vpack.c.b16 %v571, %v571
          %588 = vst [vmem:[%s309] sm:$0xf] %v572
          %589 = vst [vmem:[%s309 + $0x4] sm:$0xf] %v573
          %590 = vst [vmem:[%s309 + $0x8] sm:$0xf] %v574
          %591 = vst [vmem:[%s309 + $0xc] sm:$0xf] %v575
          %592 = vst [vmem:[%s309 + $0x10] sm:$0xf] %v576
          %593 = vst [vmem:[%s309 + $0x14] sm:$0xf] %v577
          %594 = vst [vmem:[%s309 + $0x18] sm:$0xf] %v578
          %595 = vst [vmem:[%s309 + $0x1c] sm:$0xf] %v579
          %v596 = vunpack.c.l.bf16 %v556
          %v597 = vunpack.c.h.bf16 %v556
          %v598 = vunpack.c.l.bf16 %v557
          %v599 = vunpack.c.h.bf16 %v557
          %v600 = vunpack.c.l.bf16 %v558
          %v601 = vunpack.c.h.bf16 %v558
          %v602 = vunpack.c.l.bf16 %v559
          %v603 = vunpack.c.h.bf16 %v559
          %v604 = vld [vmem:[#allocation3] sm:$0x1]
          %v605 = vadd.f32 %v596, %v597
          %v606 = vadd.f32 %v605, %v598
          %v607 = vadd.f32 %v606, %v599
          %v608 = vadd.f32 %v607, %v600
          %v609 = vadd.f32 %v608, %v601
          %v610 = vadd.f32 %v609, %v602
          %v611 = vadd.f32 %v610, %v603
          %v612 = vrot.slane %v611, 4
          %v613 = vadd.f32 %v611, %v612
          %v614 = vrot.slane %v613, 2
          %v615 = vadd.f32 %v613, %v614
          %v616 = vrot.slane %v615, 1
          %v617 = vadd.f32 %v615, %v616
          %v618 = vadd.f32 %v604, %v617
          %619 = vst [vmem:[#allocation3] sm:$0x1] %v618
          %v620 = vld [vmem:[#allocation4] sm:$0x1]
          %v621 = vmul.f32 %v596, %v596
          %v622 = vmul.f32 %v597, %v597
          %v623 = vmul.f32 %v598, %v598
          %v624 = vmul.f32 %v599, %v599
          %v625 = vmul.f32 %v600, %v600
          %v626 = vmul.f32 %v601, %v601
          %v627 = vmul.f32 %v602, %v602
          %v628 = vmul.f32 %v603, %v603
          %v629 = vadd.f32 %v621, %v622
          %v630 = vadd.f32 %v629, %v623
          %v631 = vadd.f32 %v630, %v624
          %v632 = vadd.f32 %v631, %v625
          %v633 = vadd.f32 %v632, %v626
          %v634 = vadd.f32 %v633, %v627
          %v635 = vadd.f32 %v634, %v628
          %v636 = vrot.slane %v635, 4
          %v637 = vadd.f32 %v635, %v636
          %v638 = vrot.slane %v637, 2
          %v639 = vadd.f32 %v637, %v638
          %v640 = vrot.slane %v639, 1
          %v641 = vadd.f32 %v639, %v640
          %v642 = vadd.f32 %v620, %v641
          %643 = vst [vmem:[#allocation4] sm:$0x1] %v642
          // Predicated region
          $region57: #{downsampling_block.4} parent=55 // pred_check
            %p644 = pneg %p338
          $region58: #{downsampling_block.4} parent=55 // pred_check_branch
            %646 = sbr.rel (%p644) target = $region60
          $region59: #{downsampling_block.4} parent=55 // pred_region
            %v647 = vld [vmem:[#allocation3] sm:$0x1]
            %v648 = vmul.f32 %v647, 0.015625
            %v649 = vld [vmem:[#allocation4] sm:$0x1]
            %v650 = vmul.f32 %v649, 0.015625
            %v651 = vmul.f32 %v648, %v648
            %v652 = vsub.f32 %v650, %v651
            %v653 = vmax.f32 %v652, 0.0
            %654 = vst [vmem:[%s315] sm:$0x1] %v648
            %v655 = vadd.f32 %v653, 1e-05
            %v656 = vrsqrt.pop %v655
            %657 = vst [vmem:[%s321] sm:$0x1] %v656
          $region60: #{downsampling_block.4} parent=55 // pred_fallthru
            _
        $region56: #{downsampling_block.4} parent=31 // pred_fallthru
          _
        %s658 = sand.u32 %s133, 1
        %s659 = scalar_lea.sflag [#allocation7], %s658
        %s660 = sand.u32 %s133, 1
        %s661 = smul.addr %s660, 32
        %s662 = scalar_lea.vmem [#allocation11], %s661
        %s663 = sand.u32 %s27, 1
        %s664 = scalar_lea.sflag [#allocation13], %s663
        %s665 = sand.u32 %s159, 1
        %s666 = scalar_lea.vmem [#allocation12], %s665
        %s667 = sand.u32 %s27, 1
        %s668 = scalar_lea.sflag [#allocation13], %s667
        %s669 = sand.u32 %s185, 1
        %s670 = scalar_lea.vmem [#allocation14], %s669
        // Predicated region
        $region61: #{downsampling_block.4} parent=31 // pred_check
          %p671 = pneg %p143
        $region62: #{downsampling_block.4} parent=31 // pred_check_branch
          %673 = sbr.rel (%p671) target = $region64
        $region63: #{downsampling_block.4} parent=31 // pred_region
          %s674 = smul.u32 8, %s33
          %s676 = ssub.s32 512, 512
          %677 = vsyncadd %s659, %s676
          %s678 = smul.addr %s32, 8
          %s679 = sadd.s32 %s674, %s678
          %s680 = smul.addr %s679, 64
          %s681 = scalar_lea.hbm %s3, %s680
          %s682 = sshll.u32 %s662, 4
          %s683 = int_to_ptr.vmem [resolvable:$true] %s682
          %688 = dma.vmem_to_hbm [thread:$0]  %s683, 512, %s681, %s659, 64, 64, 4
        $region64: #{downsampling_block.4} parent=31 // pred_fallthru
          _
        // Predicated region
        $region65: #{downsampling_block.4} parent=31 // pred_check
          %p689 = pneg %p169
        $region66: #{downsampling_block.4} parent=31 // pred_check_branch
          %691 = sbr.rel (%p689) target = $region68
        $region67: #{downsampling_block.4} parent=31 // pred_region
          %s693 = ssub.s32 16, 16
          %694 = vsyncadd %s664, %s693
          %s695 = smul.addr %s32, 16
          %s696 = scalar_lea.hbm %s4, %s695
          %s698 = sshll.u32 %s666, 4
          %s699 = int_to_ptr.vmem [resolvable:$true] %s698
          %701 = dma.vmem_to_hbm [thread:$0]  %s699, 16, %s696, %s664
        $region68: #{downsampling_block.4} parent=31 // pred_fallthru
          _
        // Predicated region
        $region69: #{downsampling_block.4} parent=31 // pred_check
          %p702 = pneg %p195
        $region70: #{downsampling_block.4} parent=31 // pred_check_branch
          %704 = sbr.rel (%p702) target = $region72
        $region71: #{downsampling_block.4} parent=31 // pred_region
          %s706 = ssub.s32 16, 16
          %707 = vsyncadd %s668, %s706
          %s708 = smul.addr %s32, 16
          %s709 = scalar_lea.hbm %s5, %s708
          %s711 = sshll.u32 %s670, 4
          %s712 = int_to_ptr.vmem [resolvable:$true] %s711
          %714 = dma.vmem_to_hbm [thread:$0]  %s712, 16, %s709, %s668
        $region72: #{downsampling_block.4} parent=31 // pred_fallthru
          _
      $region32: #{downsampling_block.4} parent=5 // pred_fallthru
        _
      %p715 = scmp.le.s32.totalorder 2, %s22
      // Predicated region
      $region73: #{downsampling_block.4} parent=5 // pred_check
        %p716 = pneg %p715
      $region74: #{downsampling_block.4} parent=5 // pred_check_branch
        %718 = sbr.rel (%p716) target = $region76
      $region75: #{downsampling_block.4} parent=5 // pred_region
        %s719 = ssub.s32 %s22, 2
        // Predicated region
        $region77: #{downsampling_block.4} parent=75 // pred_check
          %p720 = pneg %p149
        $region78: #{downsampling_block.4} parent=75 // pred_check_branch
          %722 = sbr.rel (%p720) target = $region80
        $region79: #{downsampling_block.4} parent=75 // pred_region
          %s723 = sand.u32 %s134, 1
          %s724 = scalar_lea.sflag [#allocation7], %s723
          %s725 = sand.u32 %s134, 1
          %s726 = smul.addr %s725, 32
          %s727 = scalar_lea.vmem [#allocation11], %s726
          %728 = dma.done %s724, 512
        $region80: #{downsampling_block.4} parent=75 // pred_fallthru
          _
        // Predicated region
        $region81: #{downsampling_block.4} parent=75 // pred_check
          %p729 = pneg %p175
        $region82: #{downsampling_block.4} parent=75 // pred_check_branch
          %731 = sbr.rel (%p729) target = $region84
        $region83: #{downsampling_block.4} parent=75 // pred_region
          %s732 = sand.u32 %s28, 1
          %s733 = scalar_lea.sflag [#allocation13], %s732
          %s734 = sand.u32 %s160, 1
          %s735 = scalar_lea.vmem [#allocation12], %s734
          %736 = dma.done %s733, 16
        $region84: #{downsampling_block.4} parent=75 // pred_fallthru
          _
        // Predicated region
        $region85: #{downsampling_block.4} parent=75 // pred_check
          %p737 = pneg %p201
        $region86: #{downsampling_block.4} parent=75 // pred_check_branch
          %739 = sbr.rel (%p737) target = $region88
        $region87: #{downsampling_block.4} parent=75 // pred_region
          %s740 = sand.u32 %s28, 1
          %s741 = scalar_lea.sflag [#allocation13], %s740
          %s742 = sand.u32 %s186, 1
          %s743 = scalar_lea.vmem [#allocation14], %s742
          %744 = dma.done %s741, 16
        $region88: #{downsampling_block.4} parent=75 // pred_fallthru
          _
      $region76: #{downsampling_block.4} parent=5 // pred_fallthru
        _
    $region6: #{downsampling_block.4} parent=1 // loop_footer
      %s26 = sadd.s32 1, %s22
    $region7: #{downsampling_block.4} parent=1 // loop_footer_branch
      %21 = sbr.rel target = $region3
    $region8: #{downsampling_block.4} parent=1 // loop_exit
      _
    %745 = vsyncpa [#allocation6], 1
    %s746 = scalar_lea.sflag [#allocation6], 1
    %747 = vsyncpa %s746, 1
    %748 = vsyncpa [#allocation9], 1
    %749 = vsyncpa [#allocation7], 1
    %s750 = scalar_lea.sflag [#allocation7], 1
    %751 = vsyncpa %s750, 1
    %752 = vsyncpa [#allocation13], 1
    %s753 = scalar_lea.sflag [#allocation13], 1
    %754 = vsyncpa %s753, 1

// kernel: downsampling_block.7
$region0: #{downsampling_block.7}
  #allocation0 [shape = 'u32[]', space=smem, size = 0x4, offset = 0x4, fixed_abs, tag = 'smem constant byte address 0x4 - core index']
  #allocation1 [shape = 'u32[144,128]{1,0:T(1,128)}', space=vmem, size = 0x12000, scoped, tag = 'internal scratch']
  %s0 = inlined_call_operand.hbm [shape: bf16[2,128,128], index: 0, kind: input, shape index: {}]
  %s1 = inlined_call_operand.hbm [shape: f32[2,1,128], index: 1, kind: input, shape index: {}]
  %s2 = inlined_call_operand.hbm [shape: f32[2,1,128], index: 2, kind: input, shape index: {}]
  %s3 = inlined_call_operand.hbm [shape: f32[1,128], index: 3, kind: input, shape index: {}]
  %s4 = inlined_call_operand.hbm [shape: f32[1,128], index: 4, kind: input, shape index: {}]
  %s5 = inlined_call_operand.hbm [shape: bf16[2,128,4], index: 5, kind: input, shape index: {}]
  %s6 = inlined_call_operand.hbm [shape: bf16[4,128], index: 6, kind: input, shape index: {}]
  %s7 = inlined_call_operand.hbm [shape: f32[1,128], index: 7, kind: input, shape index: {}]
  %s8 = inlined_call_operand.hbm [shape: f32[2,128,128], index: 8, kind: output, shape index: {}]
  %s9 = sld [smem:[#allocation0]]
  $region97: #{downsampling_block.7} parent=0
    _
  %s11 = ssub.s32 1, %s9
  %s12 = scalar_select 0, %s11, %s9
  $region1: #{downsampling_block.7} parent=0
    #allocation2 [shape = 'u8[16384]{0}', space=vmem, size = 0x4000, scoped, tag = 'input window, operand 0']
    #allocation3 [shape = 's32[2]{0}', space=sflag, size = 0x8, scoped, tag = 'scoped memory for downsampling_block.7']
    #allocation4 [shape = 's32[2]{0}', space=sflag, size = 0x8, scoped, tag = 'scoped memory for downsampling_block.7']
    #allocation5 [shape = 'u8[1024]{0}', space=vmem, size = 0x400, scoped, tag = 'input window, operand 1']
    #allocation6 [shape = 's32[2]{0}', space=sflag, size = 0x8, scoped, tag = 'scoped memory for downsampling_block.7']
    #allocation7 [shape = 'u8[1024]{0}', space=vmem, size = 0x400, scoped, tag = 'input window, operand 2']
    #allocation8 [shape = 'u8[512]{0}', space=vmem, size = 0x400, scoped, tag = 'input window, operand 3, single buffered']
    #allocation9 [shape = 's32[1]{0}', space=sflag, size = 0x4, scoped, tag = 'scoped memory for downsampling_block.7']
    #allocation10 [shape = 'u8[512]{0}', space=vmem, size = 0x400, scoped, tag = 'input window, operand 4, single buffered']
    #allocation11 [shape = 'u8[16384]{0}', space=vmem, size = 0x4000, scoped, tag = 'input window, operand 5']
    #allocation12 [shape = 's32[2]{0}', space=sflag, size = 0x8, scoped, tag = 'scoped memory for downsampling_block.7']
    #allocation13 [shape = 'u8[1024]{0}', space=vmem, size = 0x400, scoped, tag = 'input window, operand 6, single buffered']
    #allocation14 [shape = 'u8[512]{0}', space=vmem, size = 0x400, scoped, tag = 'input window, operand 7, single buffered']
    #allocation15 [shape = 's32[1]{0}', space=sflag, size = 0x4, scoped, tag = 'scoped memory for downsampling_block.7']
    #allocation16 [shape = 'u8[32768]{0}', space=vmem, size = 0x8000, scoped, tag = 'output window, operand 0']
    %13 = vsyncpa [#allocation3], 0
    %s14 = scalar_lea.sflag [#allocation3], 1
    %15 = vsyncpa %s14, 0
    %16 = vsyncpa [#allocation6], 0
    %s17 = scalar_lea.sflag [#allocation6], 1
    %18 = vsyncpa %s17, 0
    %19 = vsyncpa [#allocation9], 0
    %20 = vsyncpa [#allocation12], 0
    %s21 = scalar_lea.sflag [#allocation12], 1
    %22 = vsyncpa %s21, 0
    %23 = vsyncpa [#allocation15], 0
    %24 = vsyncpa [#allocation4], 0
    %s25 = scalar_lea.sflag [#allocation4], 1
    %26 = vsyncpa %s25, 0
    loop: start=0, step=1, limit=10
    $region2: #{downsampling_block.7} parent=1 // loop_pre_header
      _
    $region3: #{downsampling_block.7} parent=1 // loop_header
      %s28 = sphi 0, %s32
      %p29 = scmp.ge.s32.totalorder %s28, 10
      %s35 = sphi 0, %s47
      %s36 = sphi 0, %s43
      %s37 = sphi 0, %s35
      %s38 = sphi 0, %s36
      %s39 = sphi 0, %s37
      %s40 = sphi 0, %s38
      %s52 = sphi 0, %s54
      %s55 = sphi 0, %s52
      %s56 = sphi 0, %s55
      %s72 = sphi 0, %s56
      %s78 = sphi 0, %s80
      %s81 = sphi 0, %s78
      %s82 = sphi 0, %s81
      %s98 = sphi 0, %s82
      %s104 = sphi 0, %s106
      %s107 = sphi 0, %s104
      %s108 = sphi 0, %s107
      %s124 = sphi 0, %s108
      %s128 = sphi 0, %s128
      %s130 = sphi 0, %s128
      %s131 = sphi 0, %s130
      %s145 = sphi 0, %s131
      %s149 = sphi 0, %s149
      %s151 = sphi 0, %s149
      %s152 = sphi 0, %s151
      %s166 = sphi 0, %s152
      %s174 = sphi 0, %s176
      %s177 = sphi 0, %s174
      %s178 = sphi 0, %s177
      %s194 = sphi 0, %s178
      %s198 = sphi 0, %s198
      %s200 = sphi 0, %s198
      %s201 = sphi 0, %s200
      %s215 = sphi 0, %s201
      %s219 = sphi 0, %s219
      %s221 = sphi 0, %s219
      %s222 = sphi 0, %s221
      %s236 = sphi 0, %s222
      %s244 = sphi 0, %s246
      %s247 = sphi 0, %s244
      %s248 = sphi 0, %s247
      %s264 = sphi 0, %s248
    $region4: #{downsampling_block.7} parent=1 // loop_header_branch
      %31 = sbr.rel (%p29) target = $region8
    $region5: #{downsampling_block.7} parent=1 // loop_body
      %s33 = ssub.s32 %s28, 1
      %s34 = ssub.s32 %s28, 2
      %s41 = sadd.s32 1, %s36
      %p42 = scmp.ge.s32.totalorder %s41, 4
      %s43 = scalar_select %p42, 0, %s41
      %s44 = sadd.s32 1, %s35
      %s45 = scalar_select %p42, %s44, %s35
      %p46 = scmp.ge.s32.totalorder %s45, 2
      %s47 = scalar_select %p46, 0, %s45
      %s48 = ssub.s32 %s35, %s47
      %s49 = ssub.s32 %s36, %s43
      %s50 = sor.u32 %s48, %s49
      %p51 = scmp.eq.s32.totalorder %s50, 0
      %s53 = sadd.s32 %s52, 1
      %s54 = scalar_select %p51, %s52, %s53
      %p57 = pneg %p51
      %p58 = scmp.eq.s32.totalorder %s28, 7
      %p59 = por %p57, %p58
      %p60 = scmp.ne.s32.totalorder %s52, %s55
      %p61 = scmp.eq.s32.totalorder %s28, 0
      %p62 = por %p60, %p61
      %p63 = scmp.ne.s32.totalorder %s52, %s55
      %p64 = scmp.eq.s32.totalorder %s33, 7
      %p65 = por %p63, %p64
      %p66 = scmp.ne.s32.totalorder %s55, %s56
      %p67 = scmp.eq.s32.totalorder %s33, 0
      %p68 = por %p66, %p67
      %p69 = scmp.ne.s32.totalorder %s55, %s56
      %p70 = scmp.eq.s32.totalorder %s34, 7
      %p71 = por %p69, %p70
      %p73 = scmp.ne.s32.totalorder %s56, %s72
      %p74 = scmp.eq.s32.totalorder %s34, 0
      %p75 = por %p73, %p74
      %s76 = ssub.s32 %s35, %s47
      %p77 = scmp.eq.s32.totalorder %s76, 0
      %s79 = sadd.s32 %s78, 1
      %s80 = scalar_select %p77, %s78, %s79
      %p83 = pneg %p77
      %p84 = scmp.eq.s32.totalorder %s28, 7
      %p85 = por %p83, %p84
      %p86 = scmp.ne.s32.totalorder %s78, %s81
      %p87 = scmp.eq.s32.totalorder %s28, 0
      %p88 = por %p86, %p87
      %p89 = scmp.ne.s32.totalorder %s78, %s81
      %p90 = scmp.eq.s32.totalorder %s33, 7
      %p91 = por %p89, %p90
      %p92 = scmp.ne.s32.totalorder %s81, %s82
      %p93 = scmp.eq.s32.totalorder %s33, 0
      %p94 = por %p92, %p93
      %p95 = scmp.ne.s32.totalorder %s81, %s82
      %p96 = scmp.eq.s32.totalorder %s34, 7
      %p97 = por %p95, %p96
      %p99 = scmp.ne.s32.totalorder %s82, %s98
      %p100 = scmp.eq.s32.totalorder %s34, 0
      %p101 = por %p99, %p100
      %s102 = ssub.s32 %s35, %s47
      %p103 = scmp.eq.s32.totalorder %s102, 0
      %s105 = sadd.s32 %s104, 1
      %s106 = scalar_select %p103, %s104, %s105
      %p109 = pneg %p103
      %p110 = scmp.eq.s32.totalorder %s28, 7
      %p111 = por %p109, %p110
      %p112 = scmp.ne.s32.totalorder %s104, %s107
      %p113 = scmp.eq.s32.totalorder %s28, 0
      %p114 = por %p112, %p113
      %p115 = scmp.ne.s32.totalorder %s104, %s107
      %p116 = scmp.eq.s32.totalorder %s33, 7
      %p117 = por %p115, %p116
      %p118 = scmp.ne.s32.totalorder %s107, %s108
      %p119 = scmp.eq.s32.totalorder %s33, 0
      %p120 = por %p118, %p119
      %p121 = scmp.ne.s32.totalorder %s107, %s108
      %p122 = scmp.eq.s32.totalorder %s34, 7
      %p123 = por %p121, %p122
      %p125 = scmp.ne.s32.totalorder %s108, %s124
      %p126 = scmp.eq.s32.totalorder %s34, 0
      %p127 = por %p125, %p126
      %s129 = sadd.s32 %s128, 1
      %p132 = scmp.eq.s32.totalorder %s28, 7
      %p133 = scmp.ne.s32.totalorder %s128, %s130
      %p134 = scmp.eq.s32.totalorder %s28, 0
      %p135 = por %p133, %p134
      %p136 = scmp.ne.s32.totalorder %s128, %s130
      %p137 = scmp.eq.s32.totalorder %s33, 7
      %p138 = por %p136, %p137
      %p139 = scmp.ne.s32.totalorder %s130, %s131
      %p140 = scmp.eq.s32.totalorder %s33, 0
      %p141 = por %p139, %p140
      %p142 = scmp.ne.s32.totalorder %s130, %s131
      %p143 = scmp.eq.s32.totalorder %s34, 7
      %p144 = por %p142, %p143
      %p146 = scmp.ne.s32.totalorder %s131, %s145
      %p147 = scmp.eq.s32.totalorder %s34, 0
      %p148 = por %p146, %p147
      %s150 = sadd.s32 %s149, 1
      %p153 = scmp.eq.s32.totalorder %s28, 7
      %p154 = scmp.ne.s32.totalorder %s149, %s151
      %p155 = scmp.eq.s32.totalorder %s28, 0
      %p156 = por %p154, %p155
      %p157 = scmp.ne.s32.totalorder %s149, %s151
      %p158 = scmp.eq.s32.totalorder %s33, 7
      %p159 = por %p157, %p158
      %p160 = scmp.ne.s32.totalorder %s151, %s152
      %p161 = scmp.eq.s32.totalorder %s33, 0
      %p162 = por %p160, %p161
      %p163 = scmp.ne.s32.totalorder %s151, %s152
      %p164 = scmp.eq.s32.totalorder %s34, 7
      %p165 = por %p163, %p164
      %p167 = scmp.ne.s32.totalorder %s152, %s166
      %p168 = scmp.eq.s32.totalorder %s34, 0
      %p169 = por %p167, %p168
      %s170 = ssub.s32 %s35, %s47
      %s171 = ssub.s32 %s36, %s43
      %s172 = sor.u32 %s170, %s171
      %p173 = scmp.eq.s32.totalorder %s172, 0
      %s175 = sadd.s32 %s174, 1
      %s176 = scalar_select %p173, %s174, %s175
      %p179 = pneg %p173
      %p180 = scmp.eq.s32.totalorder %s28, 7
      %p181 = por %p179, %p180
      %p182 = scmp.ne.s32.totalorder %s174, %s177
      %p183 = scmp.eq.s32.totalorder %s28, 0
      %p184 = por %p182, %p183
      %p185 = scmp.ne.s32.totalorder %s174, %s177
      %p186 = scmp.eq.s32.totalorder %s33, 7
      %p187 = por %p185, %p186
      %p188 = scmp.ne.s32.totalorder %s177, %s178
      %p189 = scmp.eq.s32.totalorder %s33, 0
      %p190 = por %p188, %p189
      %p191 = scmp.ne.s32.totalorder %s177, %s178
      %p192 = scmp.eq.s32.totalorder %s34, 7
      %p193 = por %p191, %p192
      %p195 = scmp.ne.s32.totalorder %s178, %s194
      %p196 = scmp.eq.s32.totalorder %s34, 0
      %p197 = por %p195, %p196
      %s199 = sadd.s32 %s198, 1
      %p202 = scmp.eq.s32.totalorder %s28, 7
      %p203 = scmp.ne.s32.totalorder %s198, %s200
      %p204 = scmp.eq.s32.totalorder %s28, 0
      %p205 = por %p203, %p204
      %p206 = scmp.ne.s32.totalorder %s198, %s200
      %p207 = scmp.eq.s32.totalorder %s33, 7
      %p208 = por %p206, %p207
      %p209 = scmp.ne.s32.totalorder %s200, %s201
      %p210 = scmp.eq.s32.totalorder %s33, 0
      %p211 = por %p209, %p210
      %p212 = scmp.ne.s32.totalorder %s200, %s201
      %p213 = scmp.eq.s32.totalorder %s34, 7
      %p214 = por %p212, %p213
      %p216 = scmp.ne.s32.totalorder %s201, %s215
      %p217 = scmp.eq.s32.totalorder %s34, 0
      %p218 = por %p216, %p217
      %s220 = sadd.s32 %s219, 1
      %p223 = scmp.eq.s32.totalorder %s28, 7
      %p224 = scmp.ne.s32.totalorder %s219, %s221
      %p225 = scmp.eq.s32.totalorder %s28, 0
      %p226 = por %p224, %p225
      %p227 = scmp.ne.s32.totalorder %s219, %s221
      %p228 = scmp.eq.s32.totalorder %s33, 7
      %p229 = por %p227, %p228
      %p230 = scmp.ne.s32.totalorder %s221, %s222
      %p231 = scmp.eq.s32.totalorder %s33, 0
      %p232 = por %p230, %p231
      %p233 = scmp.ne.s32.totalorder %s221, %s222
      %p234 = scmp.eq.s32.totalorder %s34, 7
      %p235 = por %p233, %p234
      %p237 = scmp.ne.s32.totalorder %s222, %s236
      %p238 = scmp.eq.s32.totalorder %s34, 0
      %p239 = por %p237, %p238
      %s240 = ssub.s32 %s35, %s47
      %s241 = ssub.s32 %s36, %s43
      %s242 = sor.u32 %s240, %s241
      %p243 = scmp.eq.s32.totalorder %s242, 0
      %s245 = sadd.s32 %s244, 1
      %s246 = scalar_select %p243, %s244, %s245
      %p249 = pneg %p243
      %p250 = scmp.eq.s32.totalorder %s28, 7
      %p251 = por %p249, %p250
      %p252 = scmp.ne.s32.totalorder %s244, %s247
      %p253 = scmp.eq.s32.totalorder %s28, 0
      %p254 = por %p252, %p253
      %p255 = scmp.ne.s32.totalorder %s244, %s247
      %p256 = scmp.eq.s32.totalorder %s33, 7
      %p257 = por %p255, %p256
      %p258 = scmp.ne.s32.totalorder %s247, %s248
      %p259 = scmp.eq.s32.totalorder %s33, 0
      %p260 = por %p258, %p259
      %p261 = scmp.ne.s32.totalorder %s247, %s248
      %p262 = scmp.eq.s32.totalorder %s34, 7
      %p263 = por %p261, %p262
      %p265 = scmp.ne.s32.totalorder %s248, %s264
      %p266 = scmp.eq.s32.totalorder %s34, 0
      %p267 = por %p265, %p266
      %p268 = scmp.le.s32.totalorder 1, %s28
      %p269 = scmp.lt.s32.totalorder %s28, 9
      %p270 = pnand %p268, %p269
      %p271 = pneg %p270
      // Predicated region
      $region9: #{downsampling_block.7} parent=5 // pred_check
        _
      $region10: #{downsampling_block.7} parent=5 // pred_check_branch
        %273 = sbr.rel (%p270) target = $region12
      $region11: #{downsampling_block.7} parent=5 // pred_region
        %s274 = ssub.s32 %s28, 1
        // Predicated region
        $region13: #{downsampling_block.7} parent=11 // pred_check
          %p275 = pneg %p141
        $region14: #{downsampling_block.7} parent=11 // pred_check_branch
          %277 = sbr.rel (%p275) target = $region16
        $region15: #{downsampling_block.7} parent=11 // pred_region
          %s279 = ssub.s32 16, 16
          %280 = vsyncadd [#allocation9], %s279
          %s282 = sshll.u32 [#allocation8], 4
          %s283 = int_to_ptr.vmem [resolvable:$true] %s282
          %285 = dma.hbm_to_vmem [thread:$0]  %s3, 16, %s283, [#allocation9]
        $region16: #{downsampling_block.7} parent=11 // pred_fallthru
          _
        // Predicated region
        $region17: #{downsampling_block.7} parent=11 // pred_check
          %p286 = pneg %p162
        $region18: #{downsampling_block.7} parent=11 // pred_check_branch
          %288 = sbr.rel (%p286) target = $region20
        $region19: #{downsampling_block.7} parent=11 // pred_region
          %s290 = ssub.s32 16, 16
          %291 = vsyncadd [#allocation9], %s290
          %s293 = sshll.u32 [#allocation10], 4
          %s294 = int_to_ptr.vmem [resolvable:$true] %s293
          %296 = dma.hbm_to_vmem [thread:$0]  %s4, 16, %s294, [#allocation9]
        $region20: #{downsampling_block.7} parent=11 // pred_fallthru
          _
        // Predicated region
        $region21: #{downsampling_block.7} parent=11 // pred_check
          %p297 = pneg %p211
        $region22: #{downsampling_block.7} parent=11 // pred_check_branch
          %299 = sbr.rel (%p297) target = $region24
        $region23: #{downsampling_block.7} parent=11 // pred_region
          %s301 = ssub.s32 32, 32
          %302 = vsyncadd [#allocation12], %s301
          %s304 = sshll.u32 [#allocation13], 4
          %s305 = int_to_ptr.vmem [resolvable:$true] %s304
          %307 = dma.hbm_to_vmem [thread:$0]  %s6, 32, %s305, [#allocation12]
        $region24: #{downsampling_block.7} parent=11 // pred_fallthru
          _
        // Predicated region
        $region25: #{downsampling_block.7} parent=11 // pred_check
          %p308 = pneg %p232
        $region26: #{downsampling_block.7} parent=11 // pred_check_branch
          %310 = sbr.rel (%p308) target = $region28
        $region27: #{downsampling_block.7} parent=11 // pred_region
          %s312 = ssub.s32 16, 16
          %313 = vsyncadd [#allocation15], %s312
          %s315 = sshll.u32 [#allocation14], 4
          %s316 = int_to_ptr.vmem [resolvable:$true] %s315
          %318 = dma.hbm_to_vmem [thread:$0]  %s7, 16, %s316, [#allocation15]
        $region28: #{downsampling_block.7} parent=11 // pred_fallthru
          _
      $region12: #{downsampling_block.7} parent=5 // pred_fallthru
        _
      %p319 = scmp.lt.s32.totalorder %s28, 8
      // Predicated region
      $region29: #{downsampling_block.7} parent=5 // pred_check
        %p320 = pneg %p319
      $region30: #{downsampling_block.7} parent=5 // pred_check_branch
        %322 = sbr.rel (%p320) target = $region32
      $region31: #{downsampling_block.7} parent=5 // pred_region
        // Predicated region
        $region33: #{downsampling_block.7} parent=31 // pred_check
          %p323 = pneg %p62
        $region34: #{downsampling_block.7} parent=31 // pred_check_branch
          %325 = sbr.rel (%p323) target = $region36
        $region35: #{downsampling_block.7} parent=31 // pred_region
          %s326 = sand.u32 %s52, 1
          %s327 = scalar_lea.sflag [#allocation3], %s326
          %s328 = sand.u32 %s52, 1
          %s329 = smul.addr %s328, 16
          %s330 = scalar_lea.vmem [#allocation2], %s329
          %s331 = smul.u32 4, %s36
          %s333 = ssub.s32 256, 256
          %334 = vsyncadd %s327, %s333
          %s335 = smul.addr %s35, 16
          %s336 = sadd.s32 %s331, %s335
          %s337 = smul.addr %s336, 64
          %s338 = scalar_lea.hbm %s0, %s337
          %s339 = sshll.u32 %s330, 4
          %s340 = int_to_ptr.vmem [resolvable:$true] %s339
          %345 = dma.hbm_to_vmem [thread:$0]  %s338, 256, %s340, %s327, 64, 64, 4
        $region36: #{downsampling_block.7} parent=31 // pred_fallthru
          _
        // Predicated region
        $region37: #{downsampling_block.7} parent=31 // pred_check
          %p346 = pneg %p88
        $region38: #{downsampling_block.7} parent=31 // pred_check_branch
          %348 = sbr.rel (%p346) target = $region40
        $region39: #{downsampling_block.7} parent=31 // pred_region
          %s349 = sand.u32 %s28, 1
          %s350 = scalar_lea.sflag [#allocation6], %s349
          %s351 = sand.u32 %s78, 1
          %s352 = scalar_lea.vmem [#allocation5], %s351
          %s354 = ssub.s32 16, 16
          %355 = vsyncadd %s350, %s354
          %s356 = smul.addr %s35, 16
          %s357 = scalar_lea.hbm %s1, %s356
          %s359 = sshll.u32 %s352, 4
          %s360 = int_to_ptr.vmem [resolvable:$true] %s359
          %362 = dma.hbm_to_vmem [thread:$0]  %s357, 16, %s360, %s350
        $region40: #{downsampling_block.7} parent=31 // pred_fallthru
          _
        // Predicated region
        $region41: #{downsampling_block.7} parent=31 // pred_check
          %p363 = pneg %p114
        $region42: #{downsampling_block.7} parent=31 // pred_check_branch
          %365 = sbr.rel (%p363) target = $region44
        $region43: #{downsampling_block.7} parent=31 // pred_region
          %s366 = sand.u32 %s28, 1
          %s367 = scalar_lea.sflag [#allocation6], %s366
          %s368 = sand.u32 %s104, 1
          %s369 = scalar_lea.vmem [#allocation7], %s368
          %s371 = ssub.s32 16, 16
          %372 = vsyncadd %s367, %s371
          %s373 = smul.addr %s35, 16
          %s374 = scalar_lea.hbm %s2, %s373
          %s376 = sshll.u32 %s369, 4
          %s377 = int_to_ptr.vmem [resolvable:$true] %s376
          %379 = dma.hbm_to_vmem [thread:$0]  %s374, 16, %s377, %s367
        $region44: #{downsampling_block.7} parent=31 // pred_fallthru
          _
        // Predicated region
        $region45: #{downsampling_block.7} parent=31 // pred_check
          %p380 = pneg %p184
        $region46: #{downsampling_block.7} parent=31 // pred_check_branch
          %382 = sbr.rel (%p380) target = $region48
        $region47: #{downsampling_block.7} parent=31 // pred_region
          %s383 = sand.u32 %s28, 1
          %s384 = scalar_lea.sflag [#allocation12], %s383
          %s385 = sand.u32 %s174, 1
          %s386 = smul.addr %s385, 16
          %s387 = scalar_lea.vmem [#allocation11], %s386
          %s388 = smul.u32 4, %s36
          %s390 = ssub.s32 256, 256
          %391 = vsyncadd %s384, %s390
          %s392 = smul.addr %s35, 16
          %s393 = sadd.s32 %s388, %s392
          %s394 = smul.addr %s393, 64
          %s395 = scalar_lea.hbm %s5, %s394
          %s396 = sshll.u32 %s387, 4
          %s397 = int_to_ptr.vmem [resolvable:$true] %s396
          %402 = dma.hbm_to_vmem [thread:$0]  %s395, 256, %s397, %s384, 64, 64, 4
        $region48: #{downsampling_block.7} parent=31 // pred_fallthru
          _
      $region32: #{downsampling_block.7} parent=5 // pred_fallthru
        _
      %p403 = scmp.le.s32.totalorder 1, %s28
      %p404 = scmp.lt.s32.totalorder %s28, 9
      %p405 = pnand %p403, %p404
      %p406 = pneg %p405
      // Predicated region
      $region49: #{downsampling_block.7} parent=5 // pred_check
        _
      $region50: #{downsampling_block.7} parent=5 // pred_check_branch
        %408 = sbr.rel (%p405) target = $region52
      $region51: #{downsampling_block.7} parent=5 // pred_region
        %s409 = ssub.s32 %s28, 1
        %s410 = sand.u32 %s55, 1
        %s411 = scalar_lea.sflag [#allocation3], %s410
        %s412 = sand.u32 %s55, 1
        %s413 = smul.addr %s412, 16
        %s414 = scalar_lea.vmem [#allocation2], %s413
        // Predicated region
        $region53: #{downsampling_block.7} parent=51 // pred_check
          %p415 = pneg %p68
        $region54: #{downsampling_block.7} parent=51 // pred_check_branch
          %417 = sbr.rel (%p415) target = $region56
        $region55: #{downsampling_block.7} parent=51 // pred_region
          %418 = dma.done %s411, 256
        $region56: #{downsampling_block.7} parent=51 // pred_fallthru
          _
        %s419 = sand.u32 %s33, 1
        %s420 = scalar_lea.sflag [#allocation6], %s419
        %s421 = sand.u32 %s81, 1
        %s422 = scalar_lea.vmem [#allocation5], %s421
        // Predicated region
        $region57: #{downsampling_block.7} parent=51 // pred_check
          %p423 = pneg %p94
        $region58: #{downsampling_block.7} parent=51 // pred_check_branch
          %425 = sbr.rel (%p423) target = $region60
        $region59: #{downsampling_block.7} parent=51 // pred_region
          %426 = dma.done %s420, 16
        $region60: #{downsampling_block.7} parent=51 // pred_fallthru
          _
        %s427 = sand.u32 %s33, 1
        %s428 = scalar_lea.sflag [#allocation6], %s427
        %s429 = sand.u32 %s107, 1
        %s430 = scalar_lea.vmem [#allocation7], %s429
        // Predicated region
        $region61: #{downsampling_block.7} parent=51 // pred_check
          %p431 = pneg %p120
        $region62: #{downsampling_block.7} parent=51 // pred_check_branch
          %433 = sbr.rel (%p431) target = $region64
        $region63: #{downsampling_block.7} parent=51 // pred_region
          %434 = dma.done %s428, 16
        $region64: #{downsampling_block.7} parent=51 // pred_fallthru
          _
        // Predicated region
        $region65: #{downsampling_block.7} parent=51 // pred_check
          %p435 = pneg %p141
        $region66: #{downsampling_block.7} parent=51 // pred_check_branch
          %437 = sbr.rel (%p435) target = $region68
        $region67: #{downsampling_block.7} parent=51 // pred_region
          %438 = dma.done [#allocation9], 16
        $region68: #{downsampling_block.7} parent=51 // pred_fallthru
          _
        // Predicated region
        $region69: #{downsampling_block.7} parent=51 // pred_check
          %p439 = pneg %p162
        $region70: #{downsampling_block.7} parent=51 // pred_check_branch
          %441 = sbr.rel (%p439) target = $region72
        $region71: #{downsampling_block.7} parent=51 // pred_region
          %442 = dma.done [#allocation9], 16
        $region72: #{downsampling_block.7} parent=51 // pred_fallthru
          _
        %s443 = sand.u32 %s33, 1
        %s444 = scalar_lea.sflag [#allocation12], %s443
        %s445 = sand.u32 %s177, 1
        %s446 = smul.addr %s445, 16
        %s447 = scalar_lea.vmem [#allocation11], %s446
        // Predicated region
        $region73: #{downsampling_block.7} parent=51 // pred_check
          %p448 = pneg %p190
        $region74: #{downsampling_block.7} parent=51 // pred_check_branch
          %450 = sbr.rel (%p448) target = $region76
        $region75: #{downsampling_block.7} parent=51 // pred_region
          %451 = dma.done %s444, 256
        $region76: #{downsampling_block.7} parent=51 // pred_fallthru
          _
        // Predicated region
        $region77: #{downsampling_block.7} parent=51 // pred_check
          %p452 = pneg %p211
        $region78: #{downsampling_block.7} parent=51 // pred_check_branch
          %454 = sbr.rel (%p452) target = $region80
        $region79: #{downsampling_block.7} parent=51 // pred_region
          %455 = dma.done [#allocation12], 32
        $region80: #{downsampling_block.7} parent=51 // pred_fallthru
          _
        // Predicated region
        $region81: #{downsampling_block.7} parent=51 // pred_check
          %p456 = pneg %p232
        $region82: #{downsampling_block.7} parent=51 // pred_check_branch
          %458 = sbr.rel (%p456) target = $region84
        $region83: #{downsampling_block.7} parent=51 // pred_region
          %459 = dma.done [#allocation15], 16
        $region84: #{downsampling_block.7} parent=51 // pred_fallthru
          _
        %s460 = sand.u32 %s55, 1
        %s461 = scalar_lea.sflag [#allocation3], %s460
        %s462 = sand.u32 %s55, 1
        %s463 = smul.addr %s462, 16
        %s464 = scalar_lea.vmem [#allocation2], %s463
        %p465 = pneg %p68
        %p466 = pneg %p65
        %s467 = sand.u32 %s33, 1
        %s468 = scalar_lea.sflag [#allocation6], %s467
        %s469 = sand.u32 %s81, 1
        %s470 = scalar_lea.vmem [#allocation5], %s469
        %p471 = pneg %p94
        %p472 = pneg %p91
        %s473 = sand.u32 %s33, 1
        %s474 = scalar_lea.sflag [#allocation6], %s473
        %s475 = sand.u32 %s107, 1
        %s476 = scalar_lea.vmem [#allocation7], %s475
        %p477 = pneg %p120
        %p478 = pneg %p117
        %p479 = pneg %p141
        %p480 = pneg %p138
        %p481 = pneg %p162
        %p482 = pneg %p159
        %s483 = sand.u32 %s33, 1
        %s484 = scalar_lea.sflag [#allocation12], %s483
        %s485 = sand.u32 %s177, 1
        %s486 = smul.addr %s485, 16
        %s487 = scalar_lea.vmem [#allocation11], %s486
        %p488 = pneg %p190
        %p489 = pneg %p187
        %p490 = pneg %p211
        %p491 = pneg %p208
        %p492 = pneg %p232
        %p493 = pneg %p229
        %p494 = pneg %p260
        %p495 = pneg %p257
        %s496 = sand.u32 %s247, 1
        %s497 = scalar_lea.sflag [#allocation4], %s496
        %s498 = sand.u32 %s247, 1
        %s499 = smul.addr %s498, 32
        %s500 = scalar_lea.vmem [#allocation16], %s499
        %s501 = smul.u32 4, %s38
        %s502 = smul.u32 4, %s38
        %s503 = smul.u32 4, %s38
        %v505 = vld [vmem:[%s447] sm:$0xf]
        %v506 = vld [vmem:[%s447 + $0x4] sm:$0xf]
        %v507 = vld [vmem:[%s447 + $0x8] sm:$0xf]
        %v508 = vld [vmem:[%s447 + $0xc] sm:$0xf]
        %v509 = vld [vmem:[#allocation13] sm:$0x3]
        %v510 = vld [vmem:[#allocation14] sm:$0x1]
        %v512 = vlaneseq
        %v513 = vshrl.u32 %v512, 7
        %v514 = vsub.s32 0, %v513
        %v515 = vrot.slane %v510, %v514
        %v521 = vunpack.c.l.b16 %v505
        %v522 = vunpack.c.l.b16 %v506
        %v523 = vunpack.c.l.b16 %v507
        %v524 = vunpack.c.l.b16 %v508
        %v525 = vpack.c.b16 %v522, %v521
        %v526 = vpack.c.b16 %v524, %v523
        %vm527 = vcmask 31744
        %v529 = vsel %vm527, %v525, 0
        %v532 = vsel %vm527, %v526, 0
        %vm534 = vcmask 1041408
        %v536 = vsel %vm534, %v509, 0
        %538 = vmatprep.subr.bf16.mxu0 0
        %539 = vmatpush1.bf16.msra.mxu0 %v536
        %540 = vmatprep.subr.bf16.mxu0 0
        %541 = vmatpush1.bf16.msra.mxu0 0
        %542 = vmatprep.subr.bf16.mxu0 0
        %543 = vmatpush1.bf16.msra.mxu0 0
        %544 = vmatprep.subr.bf16.mxu0 0
        %545 = vmatpush1.bf16.msra.mxu0 0
        %546 = vmatprep.subr.bf16.mxu0 0
        %547 = vmatpush1.bf16.msra.mxu0 0
        %548 = vmatprep.subr.bf16.mxu0 0
        %549 = vmatpush1.bf16.msra.mxu0 0
        %550 = vmatprep.subr.bf16.mxu0 0
        %551 = vmatpush1.bf16.msra.mxu0 0
        %552 = vmatprep.subr.bf16.mxu0 0
        %553 = vmatpush1.bf16.msra.mxu0 0
        %554 = vmatprep.subr.bf16.mxu0 0
        %555 = vmatpush1.bf16.msra.mxu0 0
        %556 = vmatprep.subr.bf16.mxu0 0
        %557 = vmatpush1.bf16.msra.mxu0 0
        %558 = vmatprep.subr.bf16.mxu0 0
        %559 = vmatpush1.bf16.msra.mxu0 0
        %560 = vmatprep.subr.bf16.mxu0 0
        %561 = vmatpush1.bf16.msra.mxu0 0
        %562 = vmatprep.subr.bf16.mxu0 0
        %563 = vmatpush1.bf16.msra.mxu0 0
        %564 = vmatprep.subr.bf16.mxu0 0
        %565 = vmatpush1.bf16.msra.mxu0 0
        %566 = vmatprep.subr.bf16.mxu0 0
        %567 = vmatpush1.bf16.msra.mxu0 0
        %568 = vmatprep.subr.bf16.mxu0 0
        %569 = vmatpush1.bf16.msra.mxu0 0
        %570 = vmatprep.mubr.bf16.mxu0 0
        %571 = vmatmul.mubr.bf16.gmra.mrb[0].mxu0 %v529
        %v572 = vpop.f32.mrb[0].mxu0
        %v573 = vadd.f32 %v515, %v572
        %v574 = vpop.f32.mrb[0].mxu0
        %v575 = vpop.f32.mrb[0].mxu0
        %v576 = vadd.f32 %v515, %v575
        %v577 = vpop.f32.mrb[0].mxu0
        %578 = vmatprep.mubr.bf16.mxu0 0
        %579 = vmatmul.mubr.bf16.gmra.mrb[0].mxu0 %v532
        %v580 = vpop.f32.mrb[0].mxu0
        %v581 = vadd.f32 %v515, %v580
        %v582 = vpop.f32.mrb[0].mxu0
        %v583 = vpop.f32.mrb[0].mxu0
        %v584 = vadd.f32 %v515, %v583
        %v585 = vpop.f32.mrb[0].mxu0
        %586 = vdwg.mxu0
        %v587 = vld [vmem:[%s414] sm:$0xf]
        %v588 = vld [vmem:[%s414 + $0x4] sm:$0xf]
        %v589 = vld [vmem:[%s414 + $0x8] sm:$0xf]
        %v590 = vld [vmem:[%s414 + $0xc] sm:$0xf]
        %v591 = vunpack.c.l.bf16 %v587
        %v592 = vunpack.c.l.bf16 %v588
        %v593 = vunpack.c.l.bf16 %v589
        %v594 = vunpack.c.l.bf16 %v590
        %v595 = vld [vmem:[%s422] sm:$0x1]
        %v597 = vlaneseq
        %v598 = vshrl.u32 %v597, 7
        %v599 = vsub.s32 0, %v598
        %v600 = vrot.slane %v595, %v599
        %v602 = vsub.f32 %v591, %v600
        %v603 = vsub.f32 %v592, %v600
        %v604 = vsub.f32 %v593, %v600
        %v605 = vsub.f32 %v594, %v600
        %v606 = vld [vmem:[%s430] sm:$0x1]
        %v608 = vlaneseq
        %v609 = vshrl.u32 %v608, 7
        %v610 = vsub.s32 0, %v609
        %v611 = vrot.slane %v606, %v610
        %v613 = vmul.f32 %v602, %v611
        %v614 = vmul.f32 %v603, %v611
        %v615 = vmul.f32 %v604, %v611
        %v616 = vmul.f32 %v605, %v611
        %v617 = vld [vmem:[#allocation8] sm:$0x1]
        %v619 = vlaneseq
        %v620 = vshrl.u32 %v619, 7
        %v621 = vsub.s32 0, %v620
        %v622 = vrot.slane %v617, %v621
        %v624 = vmul.f32 %v622, %v613
        %v625 = vmul.f32 %v622, %v614
        %v626 = vmul.f32 %v622, %v615
        %v627 = vmul.f32 %v622, %v616
        %v628 = vld [vmem:[#allocation10] sm:$0x1]
        %v630 = vlaneseq
        %v631 = vshrl.u32 %v630, 7
        %v632 = vsub.s32 0, %v631
        %v633 = vrot.slane %v628, %v632
        %v635 = vadd.f32 %v624, %v633
        %v636 = vadd.f32 %v625, %v633
        %v637 = vadd.f32 %v626, %v633
        %v638 = vadd.f32 %v627, %v633
        %v639 = vadd.f32 %v635, %v573
        %v640 = vadd.f32 %v636, %v576
        %v641 = vadd.f32 %v637, %v581
        %v642 = vadd.f32 %v638, %v584
        %vm643 = vcmp.ge.f32.partialorder %v639, 0.0
        %vm644 = vcmp.ge.f32.partialorder %v640, 0.0
        %vm645 = vcmp.ge.f32.partialorder %v641, 0.0
        %vm646 = vcmp.ge.f32.partialorder %v642, 0.0
        %v647 = vmul.f32 %v639, 0.01
        %v648 = vmul.f32 %v640, 0.01
        %v649 = vmul.f32 %v641, 0.01
        %v650 = vmul.f32 %v642, 0.01
        %v651 = vsel %vm643, %v639, %v647
        %v652 = vsel %vm644, %v640, %v648
        %v653 = vsel %vm645, %v641, %v649
        %v654 = vsel %vm646, %v642, %v650
        %655 = vst [vmem:[%s500] sm:$0xff] %v651
        %656 = vst [vmem:[%s500 + $0x8] sm:$0xff] %v652
        %657 = vst [vmem:[%s500 + $0x10] sm:$0xff] %v653
        %658 = vst [vmem:[%s500 + $0x18] sm:$0xff] %v654
        %s659 = sand.u32 %s247, 1
        %s660 = scalar_lea.sflag [#allocation4], %s659
        %s661 = sand.u32 %s247, 1
        %s662 = smul.addr %s661, 32
        %s663 = scalar_lea.vmem [#allocation16], %s662
        // Predicated region
        $region85: #{downsampling_block.7} parent=51 // pred_check
          %p664 = pneg %p257
        $region86: #{downsampling_block.7} parent=51 // pred_check_branch
          %666 = sbr.rel (%p664) target = $region88
        $region87: #{downsampling_block.7} parent=51 // pred_region
          %s667 = smul.u32 4, %s38
          %s669 = ssub.s32 512, 512
          %670 = vsyncadd %s660, %s669
          %s671 = smul.addr %s37, 16
          %s672 = sadd.s32 %s667, %s671
          %s673 = smul.addr %s672, 128
          %s674 = scalar_lea.hbm %s8, %s673
          %s675 = sshll.u32 %s663, 4
          %s676 = int_to_ptr.vmem [resolvable:$true] %s675
          %681 = dma.vmem_to_hbm [thread:$0]  %s676, 512, %s674, %s660, 128, 128, 8
        $region88: #{downsampling_block.7} parent=51 // pred_fallthru
          _
      $region52: #{downsampling_block.7} parent=5 // pred_fallthru
        _
      %p682 = scmp.le.s32.totalorder 2, %s28
      // Predicated region
      $region89: #{downsampling_block.7} parent=5 // pred_check
        %p683 = pneg %p682
      $region90: #{downsampling_block.7} parent=5 // pred_check_branch
        %685 = sbr.rel (%p683) target = $region92
      $region91: #{downsampling_block.7} parent=5 // pred_region
        %s686 = ssub.s32 %s28, 2
        // Predicated region
        $region93: #{downsampling_block.7} parent=91 // pred_check
          %p687 = pneg %p263
        $region94: #{downsampling_block.7} parent=91 // pred_check_branch
          %689 = sbr.rel (%p687) target = $region96
        $region95: #{downsampling_block.7} parent=91 // pred_region
          %s690 = sand.u32 %s248, 1
          %s691 = scalar_lea.sflag [#allocation4], %s690
          %s692 = sand.u32 %s248, 1
          %s693 = smul.addr %s692, 32
          %s694 = scalar_lea.vmem [#allocation16], %s693
          %695 = dma.done %s691, 512
        $region96: #{downsampling_block.7} parent=91 // pred_fallthru
          _
      $region92: #{downsampling_block.7} parent=5 // pred_fallthru
        _
    $region6: #{downsampling_block.7} parent=1 // loop_footer
      %s32 = sadd.s32 1, %s28
    $region7: #{downsampling_block.7} parent=1 // loop_footer_branch
      %27 = sbr.rel target = $region3
    $region8: #{downsampling_block.7} parent=1 // loop_exit
      _
    %696 = vsyncpa [#allocation3], 1
    %s697 = scalar_lea.sflag [#allocation3], 1
    %698 = vsyncpa %s697, 1
    %699 = vsyncpa [#allocation6], 1
    %s700 = scalar_lea.sflag [#allocation6], 1
    %701 = vsyncpa %s700, 1
    %702 = vsyncpa [#allocation9], 1
    %703 = vsyncpa [#allocation12], 1
    %s704 = scalar_lea.sflag [#allocation12], 1
    %705 = vsyncpa %s704, 1
    %706 = vsyncpa [#allocation15], 1
    %707 = vsyncpa [#allocation4], 1
    %s708 = scalar_lea.sflag [#allocation4], 1
    %709 = vsyncpa %s708, 1

// kernel: downsampling_block.6
$region0: #{downsampling_block.6}
  #allocation0 [shape = 'u32[]', space=smem, size = 0x4, offset = 0x4, fixed_abs, tag = 'smem constant byte address 0x4 - core index']
  #allocation1 [shape = 'u32[144,128]{1,0:T(1,128)}', space=vmem, size = 0x12000, scoped, tag = 'internal scratch']
  #allocation2 [shape = 'f32[32,128]{1,0:T(8,128)}', space=vmem, size = 0x4000, scoped, tag = 'scratch operand']
  #allocation3 [shape = 'f32[1,128]{1,0:T(1,128)}', space=vmem, size = 0x200, scoped, tag = 'scratch operand']
  #allocation4 [shape = 'f32[1,128]{1,0:T(1,128)}', space=vmem, size = 0x200, scoped, tag = 'scratch operand']
  %s0 = inlined_call_operand.hbm [shape: bf16[2,6,48,8], index: 0, kind: input, shape index: {}, may-alias: {0,1,2}]
  %s1 = inlined_call_operand.hbm [shape: bf16[2,6,48,8], index: 1, kind: input, shape index: {}, may-alias: {0,1,2}]
  %s2 = inlined_call_operand.hbm [shape: bf16[2,6,48,8], index: 2, kind: input, shape index: {}, may-alias: {0,1,2}]
  %s3 = inlined_call_operand.hbm [shape: bf16[27,8,128], index: 3, kind: input, shape index: {}]
  %s4 = inlined_call_operand.hbm [shape: f32[1,128], index: 4, kind: input, shape index: {}]
  %s5 = inlined_call_operand.hbm [shape: f32[32,1], index: 5, kind: input, shape index: {}]
  %s6 = inlined_call_operand.hbm [shape: bf16[2,128,128], index: 6, kind: output, shape index: {0}]
  %s7 = inlined_call_operand.hbm [shape: f32[2,1,128], index: 7, kind: output, shape index: {1}]
  %s8 = inlined_call_operand.hbm [shape: f32[2,1,128], index: 8, kind: output, shape index: {2}]
  %9 = xla_tuple %s6, %s7, %s8
  %s10 = sld [smem:[#allocation0]]
  $region105: #{downsampling_block.6} parent=0
    _
  %s12 = ssub.s32 1, %s10
  %s13 = scalar_select 0, %s12, %s10
  $region1: #{downsampling_block.6} parent=0
    #allocation5 [shape = 'u8[24576]{0}', space=vmem, size = 0x6000, scoped, tag = 'input window, operand 0']
    #allocation6 [shape = 's32[2]{0}', space=sflag, size = 0x8, scoped, tag = 'scoped memory for downsampling_block.6']
    #allocation7 [shape = 's32[2]{0}', space=sflag, size = 0x8, scoped, tag = 'scoped memory for downsampling_block.6']
    #allocation8 [shape = 'u8[24576]{0}', space=vmem, size = 0x6000, scoped, tag = 'input window, operand 1']
    #allocation9 [shape = 's32[2]{0}', space=sflag, size = 0x8, scoped, tag = 'scoped memory for downsampling_block.6']
    #allocation10 [shape = 'u8[24576]{0}', space=vmem, size = 0x6000, scoped, tag = 'input window, operand 2']
    #allocation11 [shape = 'u8[55296]{0}', space=vmem, size = 0xd800, scoped, tag = 'input window, operand 3, single buffered']
    #allocation12 [shape = 's32[1]{0}', space=sflag, size = 0x4, scoped, tag = 'scoped memory for downsampling_block.6']
    #allocation13 [shape = 'u8[512]{0}', space=vmem, size = 0x400, scoped, tag = 'input window, operand 4, single buffered']
    #allocation14 [shape = 'u8[16384]{0}', space=vmem, size = 0x4000, scoped, tag = 'input window, operand 5, single buffered']
    #allocation15 [shape = 's32[1]{0}', space=sflag, size = 0x4, scoped, tag = 'scoped memory for downsampling_block.6']
    #allocation16 [shape = 'u8[16384]{0}', space=vmem, size = 0x4000, scoped, tag = 'output window, operand 0']
    #allocation17 [shape = 'u8[1024]{0}', space=vmem, size = 0x400, scoped, tag = 'output window, operand 1']
    #allocation18 [shape = 's32[2]{0}', space=sflag, size = 0x8, scoped, tag = 'scoped memory for downsampling_block.6']
    #allocation19 [shape = 'u8[1024]{0}', space=vmem, size = 0x400, scoped, tag = 'output window, operand 2']
    %14 = vsyncpa [#allocation6], 0
    %s15 = scalar_lea.sflag [#allocation6], 1
    %16 = vsyncpa %s15, 0
    %17 = vsyncpa [#allocation9], 0
    %s18 = scalar_lea.sflag [#allocation9], 1
    %19 = vsyncpa %s18, 0
    %20 = vsyncpa [#allocation12], 0
    %21 = vsyncpa [#allocation15], 0
    %22 = vsyncpa [#allocation7], 0
    %s23 = scalar_lea.sflag [#allocation7], 1
    %24 = vsyncpa %s23, 0
    %25 = vsyncpa [#allocation18], 0
    %s26 = scalar_lea.sflag [#allocation18], 1
    %27 = vsyncpa %s26, 0
    loop: start=0, step=1, limit=10
    $region2: #{downsampling_block.6} parent=1 // loop_pre_header
      _
    $region3: #{downsampling_block.6} parent=1 // loop_header
      %s29 = sphi 0, %s33
      %p30 = scmp.ge.s32.totalorder %s29, 10
      %s36 = sphi 0, %s48
      %s37 = sphi 0, %s44
      %s38 = sphi 0, %s36
      %s39 = sphi 0, %s37
      %s40 = sphi 0, %s38
      %s41 = sphi 0, %s39
      %s53 = sphi 0, %s55
      %s56 = sphi 0, %s53
      %s57 = sphi 0, %s56
      %s73 = sphi 0, %s57
      %s83 = sphi 0, %s85
      %s86 = sphi 0, %s83
      %s87 = sphi 0, %s86
      %s103 = sphi 0, %s87
      %s113 = sphi 0, %s115
      %s116 = sphi 0, %s113
      %s117 = sphi 0, %s116
      %s133 = sphi 0, %s117
      %s137 = sphi 0, %s137
      %s139 = sphi 0, %s137
      %s140 = sphi 0, %s139
      %s154 = sphi 0, %s140
      %s158 = sphi 0, %s158
      %s160 = sphi 0, %s158
      %s161 = sphi 0, %s160
      %s175 = sphi 0, %s161
      %s179 = sphi 0, %s179
      %s181 = sphi 0, %s179
      %s182 = sphi 0, %s181
      %s196 = sphi 0, %s182
      %s204 = sphi 0, %s206
      %s207 = sphi 0, %s204
      %s208 = sphi 0, %s207
      %s224 = sphi 0, %s208
      %s230 = sphi 0, %s232
      %s233 = sphi 0, %s230
      %s234 = sphi 0, %s233
      %s250 = sphi 0, %s234
      %s256 = sphi 0, %s258
      %s259 = sphi 0, %s256
      %s260 = sphi 0, %s259
      %s276 = sphi 0, %s260
    $region4: #{downsampling_block.6} parent=1 // loop_header_branch
      %32 = sbr.rel (%p30) target = $region8
    $region5: #{downsampling_block.6} parent=1 // loop_body
      %s34 = ssub.s32 %s29, 1
      %s35 = ssub.s32 %s29, 2
      %s42 = sadd.s32 1, %s37
      %p43 = scmp.ge.s32.totalorder %s42, 4
      %s44 = scalar_select %p43, 0, %s42
      %s45 = sadd.s32 1, %s36
      %s46 = scalar_select %p43, %s45, %s36
      %p47 = scmp.ge.s32.totalorder %s46, 2
      %s48 = scalar_select %p47, 0, %s46
      %s49 = ssub.s32 %s36, %s48
      %s50 = ssub.s32 %s37, %s44
      %s51 = sor.u32 %s49, %s50
      %p52 = scmp.eq.s32.totalorder %s51, 0
      %s54 = sadd.s32 %s53, 1
      %s55 = scalar_select %p52, %s53, %s54
      %p58 = pneg %p52
      %p59 = scmp.eq.s32.totalorder %s29, 7
      %p60 = por %p58, %p59
      %p61 = scmp.ne.s32.totalorder %s53, %s56
      %p62 = scmp.eq.s32.totalorder %s29, 0
      %p63 = por %p61, %p62
      %p64 = scmp.ne.s32.totalorder %s53, %s56
      %p65 = scmp.eq.s32.totalorder %s34, 7
      %p66 = por %p64, %p65
      %p67 = scmp.ne.s32.totalorder %s56, %s57
      %p68 = scmp.eq.s32.totalorder %s34, 0
      %p69 = por %p67, %p68
      %p70 = scmp.ne.s32.totalorder %s56, %s57
      %p71 = scmp.eq.s32.totalorder %s35, 7
      %p72 = por %p70, %p71
      %p74 = scmp.ne.s32.totalorder %s57, %s73
      %p75 = scmp.eq.s32.totalorder %s35, 0
      %p76 = por %p74, %p75
      %s77 = sadd.s32 %s37, 1
      %s78 = sadd.s32 %s44, 1
      %s79 = ssub.s32 %s36, %s48
      %s80 = ssub.s32 %s77, %s78
      %s81 = sor.u32 %s79, %s80
      %p82 = scmp.eq.s32.totalorder %s81, 0
      %s84 = sadd.s32 %s83, 1
      %s85 = scalar_select %p82, %s83, %s84
      %p88 = pneg %p82
      %p89 = scmp.eq.s32.totalorder %s29, 7
      %p90 = por %p88, %p89
      %p91 = scmp.ne.s32.totalorder %s83, %s86
      %p92 = scmp.eq.s32.totalorder %s29, 0
      %p93 = por %p91, %p92
      %p94 = scmp.ne.s32.totalorder %s83, %s86
      %p95 = scmp.eq.s32.totalorder %s34, 7
      %p96 = por %p94, %p95
      %p97 = scmp.ne.s32.totalorder %s86, %s87
      %p98 = scmp.eq.s32.totalorder %s34, 0
      %p99 = por %p97, %p98
      %p100 = scmp.ne.s32.totalorder %s86, %s87
      %p101 = scmp.eq.s32.totalorder %s35, 7
      %p102 = por %p100, %p101
      %p104 = scmp.ne.s32.totalorder %s87, %s103
      %p105 = scmp.eq.s32.totalorder %s35, 0
      %p106 = por %p104, %p105
      %s107 = sadd.s32 %s37, 2
      %s108 = sadd.s32 %s44, 2
      %s109 = ssub.s32 %s36, %s48
      %s110 = ssub.s32 %s107, %s108
      %s111 = sor.u32 %s109, %s110
      %p112 = scmp.eq.s32.totalorder %s111, 0
      %s114 = sadd.s32 %s113, 1
      %s115 = scalar_select %p112, %s113, %s114
      %p118 = pneg %p112
      %p119 = scmp.eq.s32.totalorder %s29, 7
      %p120 = por %p118, %p119
      %p121 = scmp.ne.s32.totalorder %s113, %s116
      %p122 = scmp.eq.s32.totalorder %s29, 0
      %p123 = por %p121, %p122
      %p124 = scmp.ne.s32.totalorder %s113, %s116
      %p125 = scmp.eq.s32.totalorder %s34, 7
      %p126 = por %p124, %p125
      %p127 = scmp.ne.s32.totalorder %s116, %s117
      %p128 = scmp.eq.s32.totalorder %s34, 0
      %p129 = por %p127, %p128
      %p130 = scmp.ne.s32.totalorder %s116, %s117
      %p131 = scmp.eq.s32.totalorder %s35, 7
      %p132 = por %p130, %p131
      %p134 = scmp.ne.s32.totalorder %s117, %s133
      %p135 = scmp.eq.s32.totalorder %s35, 0
      %p136 = por %p134, %p135
      %s138 = sadd.s32 %s137, 1
      %p141 = scmp.eq.s32.totalorder %s29, 7
      %p142 = scmp.ne.s32.totalorder %s137, %s139
      %p143 = scmp.eq.s32.totalorder %s29, 0
      %p144 = por %p142, %p143
      %p145 = scmp.ne.s32.totalorder %s137, %s139
      %p146 = scmp.eq.s32.totalorder %s34, 7
      %p147 = por %p145, %p146
      %p148 = scmp.ne.s32.totalorder %s139, %s140
      %p149 = scmp.eq.s32.totalorder %s34, 0
      %p150 = por %p148, %p149
      %p151 = scmp.ne.s32.totalorder %s139, %s140
      %p152 = scmp.eq.s32.totalorder %s35, 7
      %p153 = por %p151, %p152
      %p155 = scmp.ne.s32.totalorder %s140, %s154
      %p156 = scmp.eq.s32.totalorder %s35, 0
      %p157 = por %p155, %p156
      %s159 = sadd.s32 %s158, 1
      %p162 = scmp.eq.s32.totalorder %s29, 7
      %p163 = scmp.ne.s32.totalorder %s158, %s160
      %p164 = scmp.eq.s32.totalorder %s29, 0
      %p165 = por %p163, %p164
      %p166 = scmp.ne.s32.totalorder %s158, %s160
      %p167 = scmp.eq.s32.totalorder %s34, 7
      %p168 = por %p166, %p167
      %p169 = scmp.ne.s32.totalorder %s160, %s161
      %p170 = scmp.eq.s32.totalorder %s34, 0
      %p171 = por %p169, %p170
      %p172 = scmp.ne.s32.totalorder %s160, %s161
      %p173 = scmp.eq.s32.totalorder %s35, 7
      %p174 = por %p172, %p173
      %p176 = scmp.ne.s32.totalorder %s161, %s175
      %p177 = scmp.eq.s32.totalorder %s35, 0
      %p178 = por %p176, %p177
      %s180 = sadd.s32 %s179, 1
      %p183 = scmp.eq.s32.totalorder %s29, 7
      %p184 = scmp.ne.s32.totalorder %s179, %s181
      %p185 = scmp.eq.s32.totalorder %s29, 0
      %p186 = por %p184, %p185
      %p187 = scmp.ne.s32.totalorder %s179, %s181
      %p188 = scmp.eq.s32.totalorder %s34, 7
      %p189 = por %p187, %p188
      %p190 = scmp.ne.s32.totalorder %s181, %s182
      %p191 = scmp.eq.s32.totalorder %s34, 0
      %p192 = por %p190, %p191
      %p193 = scmp.ne.s32.totalorder %s181, %s182
      %p194 = scmp.eq.s32.totalorder %s35, 7
      %p195 = por %p193, %p194
      %p197 = scmp.ne.s32.totalorder %s182, %s196
      %p198 = scmp.eq.s32.totalorder %s35, 0
      %p199 = por %p197, %p198
      %s200 = ssub.s32 %s36, %s48
      %s201 = ssub.s32 %s37, %s44
      %s202 = sor.u32 %s200, %s201
      %p203 = scmp.eq.s32.totalorder %s202, 0
      %s205 = sadd.s32 %s204, 1
      %s206 = scalar_select %p203, %s204, %s205
      %p209 = pneg %p203
      %p210 = scmp.eq.s32.totalorder %s29, 7
      %p211 = por %p209, %p210
      %p212 = scmp.ne.s32.totalorder %s204, %s207
      %p213 = scmp.eq.s32.totalorder %s29, 0
      %p214 = por %p212, %p213
      %p215 = scmp.ne.s32.totalorder %s204, %s207
      %p216 = scmp.eq.s32.totalorder %s34, 7
      %p217 = por %p215, %p216
      %p218 = scmp.ne.s32.totalorder %s207, %s208
      %p219 = scmp.eq.s32.totalorder %s34, 0
      %p220 = por %p218, %p219
      %p221 = scmp.ne.s32.totalorder %s207, %s208
      %p222 = scmp.eq.s32.totalorder %s35, 7
      %p223 = por %p221, %p222
      %p225 = scmp.ne.s32.totalorder %s208, %s224
      %p226 = scmp.eq.s32.totalorder %s35, 0
      %p227 = por %p225, %p226
      %s228 = ssub.s32 %s36, %s48
      %p229 = scmp.eq.s32.totalorder %s228, 0
      %s231 = sadd.s32 %s230, 1
      %s232 = scalar_select %p229, %s230, %s231
      %p235 = pneg %p229
      %p236 = scmp.eq.s32.totalorder %s29, 7
      %p237 = por %p235, %p236
      %p238 = scmp.ne.s32.totalorder %s230, %s233
      %p239 = scmp.eq.s32.totalorder %s29, 0
      %p240 = por %p238, %p239
      %p241 = scmp.ne.s32.totalorder %s230, %s233
      %p242 = scmp.eq.s32.totalorder %s34, 7
      %p243 = por %p241, %p242
      %p244 = scmp.ne.s32.totalorder %s233, %s234
      %p245 = scmp.eq.s32.totalorder %s34, 0
      %p246 = por %p244, %p245
      %p247 = scmp.ne.s32.totalorder %s233, %s234
      %p248 = scmp.eq.s32.totalorder %s35, 7
      %p249 = por %p247, %p248
      %p251 = scmp.ne.s32.totalorder %s234, %s250
      %p252 = scmp.eq.s32.totalorder %s35, 0
      %p253 = por %p251, %p252
      %s254 = ssub.s32 %s36, %s48
      %p255 = scmp.eq.s32.totalorder %s254, 0
      %s257 = sadd.s32 %s256, 1
      %s258 = scalar_select %p255, %s256, %s257
      %p261 = pneg %p255
      %p262 = scmp.eq.s32.totalorder %s29, 7
      %p263 = por %p261, %p262
      %p264 = scmp.ne.s32.totalorder %s256, %s259
      %p265 = scmp.eq.s32.totalorder %s29, 0
      %p266 = por %p264, %p265
      %p267 = scmp.ne.s32.totalorder %s256, %s259
      %p268 = scmp.eq.s32.totalorder %s34, 7
      %p269 = por %p267, %p268
      %p270 = scmp.ne.s32.totalorder %s259, %s260
      %p271 = scmp.eq.s32.totalorder %s34, 0
      %p272 = por %p270, %p271
      %p273 = scmp.ne.s32.totalorder %s259, %s260
      %p274 = scmp.eq.s32.totalorder %s35, 7
      %p275 = por %p273, %p274
      %p277 = scmp.ne.s32.totalorder %s260, %s276
      %p278 = scmp.eq.s32.totalorder %s35, 0
      %p279 = por %p277, %p278
      %p280 = scmp.le.s32.totalorder 1, %s29
      %p281 = scmp.lt.s32.totalorder %s29, 9
      %p282 = pnand %p280, %p281
      %p283 = pneg %p282
      // Predicated region
      $region9: #{downsampling_block.6} parent=5 // pred_check
        _
      $region10: #{downsampling_block.6} parent=5 // pred_check_branch
        %285 = sbr.rel (%p282) target = $region12
      $region11: #{downsampling_block.6} parent=5 // pred_region
        %s286 = ssub.s32 %s29, 1
        // Predicated region
        $region13: #{downsampling_block.6} parent=11 // pred_check
          %p287 = pneg %p150
        $region14: #{downsampling_block.6} parent=11 // pred_check_branch
          %289 = sbr.rel (%p287) target = $region16
        $region15: #{downsampling_block.6} parent=11 // pred_region
          %s291 = ssub.s32 1728, 1728
          %292 = vsyncadd [#allocation12], %s291
          %s293 = sshll.u32 [#allocation11], 4
          %s294 = int_to_ptr.vmem [resolvable:$true] %s293
          %299 = dma.hbm_to_vmem [thread:$0]  %s3, 1728, %s294, [#allocation12], 64, 64, 4
        $region16: #{downsampling_block.6} parent=11 // pred_fallthru
          _
        // Predicated region
        $region17: #{downsampling_block.6} parent=11 // pred_check
          %p300 = pneg %p171
        $region18: #{downsampling_block.6} parent=11 // pred_check_branch
          %302 = sbr.rel (%p300) target = $region20
        $region19: #{downsampling_block.6} parent=11 // pred_region
          %s304 = ssub.s32 16, 16
          %305 = vsyncadd [#allocation12], %s304
          %s307 = sshll.u32 [#allocation13], 4
          %s308 = int_to_ptr.vmem [resolvable:$true] %s307
          %310 = dma.hbm_to_vmem [thread:$0]  %s4, 16, %s308, [#allocation12]
        $region20: #{downsampling_block.6} parent=11 // pred_fallthru
          _
        // Predicated region
        $region21: #{downsampling_block.6} parent=11 // pred_check
          %p311 = pneg %p192
        $region22: #{downsampling_block.6} parent=11 // pred_check_branch
          %313 = sbr.rel (%p311) target = $region24
        $region23: #{downsampling_block.6} parent=11 // pred_region
          %s315 = ssub.s32 512, 512
          %316 = vsyncadd [#allocation15], %s315
          %s317 = sshll.u32 [#allocation14], 4
          %s318 = int_to_ptr.vmem [resolvable:$true] %s317
          %323 = dma.hbm_to_vmem [thread:$0]  %s5, 512, %s318, [#allocation15], 128, 128, 8
        $region24: #{downsampling_block.6} parent=11 // pred_fallthru
          _
      $region12: #{downsampling_block.6} parent=5 // pred_fallthru
        _
      %p324 = scmp.lt.s32.totalorder %s29, 8
      // Predicated region
      $region25: #{downsampling_block.6} parent=5 // pred_check
        %p325 = pneg %p324
      $region26: #{downsampling_block.6} parent=5 // pred_check_branch
        %327 = sbr.rel (%p325) target = $region28
      $region27: #{downsampling_block.6} parent=5 // pred_region
        // Predicated region
        $region29: #{downsampling_block.6} parent=27 // pred_check
          %p328 = pneg %p63
        $region30: #{downsampling_block.6} parent=27 // pred_check_branch
          %330 = sbr.rel (%p328) target = $region32
        $region31: #{downsampling_block.6} parent=27 // pred_region
          %s331 = sand.u32 %s53, 1
          %s332 = scalar_lea.sflag [#allocation6], %s331
          %s333 = sand.u32 %s53, 1
          %s334 = smul.addr %s333, 24
          %s335 = scalar_lea.vmem [#allocation5], %s334
          %s337 = ssub.s32 384, 384
          %338 = vsyncadd %s332, %s337
          %s339 = smul.addr %s37, 6
          %s340 = smul.addr %s36, 36
          %s341 = sadd.s32 %s339, %s340
          %s342 = smul.addr %s341, 64
          %s343 = scalar_lea.hbm %s0, %s342
          %s344 = sshll.u32 %s335, 4
          %s345 = int_to_ptr.vmem [resolvable:$true] %s344
          %350 = dma.hbm_to_vmem [thread:$0]  %s343, 384, %s345, %s332, 64, 64, 4
        $region32: #{downsampling_block.6} parent=27 // pred_fallthru
          _
        // Predicated region
        $region33: #{downsampling_block.6} parent=27 // pred_check
          %p351 = pneg %p93
        $region34: #{downsampling_block.6} parent=27 // pred_check_branch
          %353 = sbr.rel (%p351) target = $region36
        $region35: #{downsampling_block.6} parent=27 // pred_region
          %s354 = sand.u32 %s29, 1
          %s355 = scalar_lea.sflag [#allocation9], %s354
          %s356 = sand.u32 %s83, 1
          %s357 = smul.addr %s356, 24
          %s358 = scalar_lea.vmem [#allocation8], %s357
          %s359 = sadd.s32 %s37, 1
          %s361 = ssub.s32 384, 384
          %362 = vsyncadd %s355, %s361
          %s363 = smul.addr %s359, 6
          %s364 = smul.addr %s36, 36
          %s365 = sadd.s32 %s363, %s364
          %s366 = smul.addr %s365, 64
          %s367 = scalar_lea.hbm %s1, %s366
          %s368 = sshll.u32 %s358, 4
          %s369 = int_to_ptr.vmem [resolvable:$true] %s368
          %374 = dma.hbm_to_vmem [thread:$0]  %s367, 384, %s369, %s355, 64, 64, 4
        $region36: #{downsampling_block.6} parent=27 // pred_fallthru
          _
        // Predicated region
        $region37: #{downsampling_block.6} parent=27 // pred_check
          %p375 = pneg %p123
        $region38: #{downsampling_block.6} parent=27 // pred_check_branch
          %377 = sbr.rel (%p375) target = $region40
        $region39: #{downsampling_block.6} parent=27 // pred_region
          %s378 = sand.u32 %s29, 1
          %s379 = scalar_lea.sflag [#allocation9], %s378
          %s380 = sand.u32 %s113, 1
          %s381 = smul.addr %s380, 24
          %s382 = scalar_lea.vmem [#allocation10], %s381
          %s383 = sadd.s32 %s37, 2
          %s385 = ssub.s32 384, 384
          %386 = vsyncadd %s379, %s385
          %s387 = smul.addr %s383, 6
          %s388 = smul.addr %s36, 36
          %s389 = sadd.s32 %s387, %s388
          %s390 = smul.addr %s389, 64
          %s391 = scalar_lea.hbm %s2, %s390
          %s392 = sshll.u32 %s382, 4
          %s393 = int_to_ptr.vmem [resolvable:$true] %s392
          %398 = dma.hbm_to_vmem [thread:$0]  %s391, 384, %s393, %s379, 64, 64, 4
        $region40: #{downsampling_block.6} parent=27 // pred_fallthru
          _
      $region28: #{downsampling_block.6} parent=5 // pred_fallthru
        _
      %p399 = scmp.le.s32.totalorder 1, %s29
      %p400 = scmp.lt.s32.totalorder %s29, 9
      %p401 = pnand %p399, %p400
      %p402 = pneg %p401
      // Predicated region
      $region41: #{downsampling_block.6} parent=5 // pred_check
        _
      $region42: #{downsampling_block.6} parent=5 // pred_check_branch
        %404 = sbr.rel (%p401) target = $region44
      $region43: #{downsampling_block.6} parent=5 // pred_region
        %s405 = ssub.s32 %s29, 1
        %s406 = sand.u32 %s56, 1
        %s407 = scalar_lea.sflag [#allocation6], %s406
        %s408 = sand.u32 %s56, 1
        %s409 = smul.addr %s408, 24
        %s410 = scalar_lea.vmem [#allocation5], %s409
        // Predicated region
        $region45: #{downsampling_block.6} parent=43 // pred_check
          %p411 = pneg %p69
        $region46: #{downsampling_block.6} parent=43 // pred_check_branch
          %413 = sbr.rel (%p411) target = $region48
        $region47: #{downsampling_block.6} parent=43 // pred_region
          %414 = dma.done %s407, 384
        $region48: #{downsampling_block.6} parent=43 // pred_fallthru
          _
        %s415 = sand.u32 %s34, 1
        %s416 = scalar_lea.sflag [#allocation9], %s415
        %s417 = sand.u32 %s86, 1
        %s418 = smul.addr %s417, 24
        %s419 = scalar_lea.vmem [#allocation8], %s418
        // Predicated region
        $region49: #{downsampling_block.6} parent=43 // pred_check
          %p420 = pneg %p99
        $region50: #{downsampling_block.6} parent=43 // pred_check_branch
          %422 = sbr.rel (%p420) target = $region52
        $region51: #{downsampling_block.6} parent=43 // pred_region
          %423 = dma.done %s416, 384
        $region52: #{downsampling_block.6} parent=43 // pred_fallthru
          _
        %s424 = sand.u32 %s34, 1
        %s425 = scalar_lea.sflag [#allocation9], %s424
        %s426 = sand.u32 %s116, 1
        %s427 = smul.addr %s426, 24
        %s428 = scalar_lea.vmem [#allocation10], %s427
        // Predicated region
        $region53: #{downsampling_block.6} parent=43 // pred_check
          %p429 = pneg %p129
        $region54: #{downsampling_block.6} parent=43 // pred_check_branch
          %431 = sbr.rel (%p429) target = $region56
        $region55: #{downsampling_block.6} parent=43 // pred_region
          %432 = dma.done %s425, 384
        $region56: #{downsampling_block.6} parent=43 // pred_fallthru
          _
        // Predicated region
        $region57: #{downsampling_block.6} parent=43 // pred_check
          %p433 = pneg %p150
        $region58: #{downsampling_block.6} parent=43 // pred_check_branch
          %435 = sbr.rel (%p433) target = $region60
        $region59: #{downsampling_block.6} parent=43 // pred_region
          %436 = dma.done [#allocation12], 1728
        $region60: #{downsampling_block.6} parent=43 // pred_fallthru
          _
        // Predicated region
        $region61: #{downsampling_block.6} parent=43 // pred_check
          %p437 = pneg %p171
        $region62: #{downsampling_block.6} parent=43 // pred_check_branch
          %439 = sbr.rel (%p437) target = $region64
        $region63: #{downsampling_block.6} parent=43 // pred_region
          %440 = dma.done [#allocation12], 16
        $region64: #{downsampling_block.6} parent=43 // pred_fallthru
          _
        // Predicated region
        $region65: #{downsampling_block.6} parent=43 // pred_check
          %p441 = pneg %p192
        $region66: #{downsampling_block.6} parent=43 // pred_check_branch
          %443 = sbr.rel (%p441) target = $region68
        $region67: #{downsampling_block.6} parent=43 // pred_region
          %444 = dma.done [#allocation15], 512
        $region68: #{downsampling_block.6} parent=43 // pred_fallthru
          _
        %s445 = sand.u32 %s56, 1
        %s446 = scalar_lea.sflag [#allocation6], %s445
        %s447 = sand.u32 %s56, 1
        %s448 = smul.addr %s447, 24
        %s449 = scalar_lea.vmem [#allocation5], %s448
        %p450 = pneg %p69
        %p451 = pneg %p66
        %s452 = sand.u32 %s34, 1
        %s453 = scalar_lea.sflag [#allocation9], %s452
        %s454 = sand.u32 %s86, 1
        %s455 = smul.addr %s454, 24
        %s456 = scalar_lea.vmem [#allocation8], %s455
        %p457 = pneg %p99
        %p458 = pneg %p96
        %s459 = sand.u32 %s34, 1
        %s460 = scalar_lea.sflag [#allocation9], %s459
        %s461 = sand.u32 %s116, 1
        %s462 = smul.addr %s461, 24
        %s463 = scalar_lea.vmem [#allocation10], %s462
        %p464 = pneg %p129
        %p465 = pneg %p126
        %p466 = pneg %p150
        %p467 = pneg %p147
        %p468 = pneg %p171
        %p469 = pneg %p168
        %p470 = pneg %p192
        %p471 = pneg %p189
        %p472 = pneg %p220
        %p473 = pneg %p217
        %s474 = sand.u32 %s207, 1
        %s475 = scalar_lea.sflag [#allocation7], %s474
        %s476 = sand.u32 %s207, 1
        %s477 = smul.addr %s476, 16
        %s478 = scalar_lea.vmem [#allocation16], %s477
        %p479 = pneg %p246
        %p480 = pneg %p243
        %s481 = sand.u32 %s34, 1
        %s482 = scalar_lea.sflag [#allocation18], %s481
        %s483 = sand.u32 %s233, 1
        %s484 = scalar_lea.vmem [#allocation17], %s483
        %p485 = pneg %p272
        %p486 = pneg %p269
        %s487 = sand.u32 %s34, 1
        %s488 = scalar_lea.sflag [#allocation18], %s487
        %s489 = sand.u32 %s259, 1
        %s490 = scalar_lea.vmem [#allocation19], %s489
        %s491 = sadd.s32 %s39, 1
        %s492 = sadd.s32 %s39, 2
        %s493 = smul.u32 4, %s39
        %p495 = scmp.eq.s32.totalorder %s39, 0
        // Predicated region
        $region69: #{downsampling_block.6} parent=43 // pred_check
          %p496 = pneg %p495
        $region70: #{downsampling_block.6} parent=43 // pred_check_branch
          %498 = sbr.rel (%p496) target = $region72
        $region71: #{downsampling_block.6} parent=43 // pred_region
          %499 = vst [vmem:[#allocation3] sm:$0x1] 0.0
          %500 = vst [vmem:[#allocation4] sm:$0x1] 0.0
        $region72: #{downsampling_block.6} parent=43 // pred_fallthru
          _
        %501 = vst [vmem:[#allocation2] sm:$0xff] 0.0
        %502 = vst [vmem:[#allocation2 + $0x8] sm:$0xff] 0.0
        %503 = vst [vmem:[#allocation2 + $0x10] sm:$0xff] 0.0
        %504 = vst [vmem:[#allocation2 + $0x18] sm:$0xff] 0.0
        %v505 = vld [vmem:[%s410] sm:$0xf]
        %v506 = vld [vmem:[%s410 + $0x4] sm:$0xf]
        %v507 = vld [vmem:[%s410 + $0x8] sm:$0xf]
        %v508 = vld [vmem:[%s410 + $0xc] sm:$0xf]
        %v509 = vld [vmem:[#allocation2] sm:$0xff]
        %v510 = vld [vmem:[#allocation2 + $0x8] sm:$0xff]
        %v511 = vld [vmem:[#allocation2 + $0x10] sm:$0xff]
        %v512 = vld [vmem:[#allocation2 + $0x18] sm:$0xff]
        %v513 = vld [vmem:[#allocation11] sm:$0xf]
        %v518 = vunpack.c.l.b16 %v505
        %v519 = vunpack.c.l.b16 %v506
        %v520 = vunpack.c.l.b16 %v507
        %v521 = vunpack.c.l.b16 %v508
        %v522 = vpack.c.b16 %v519, %v518
        %v523 = vpack.c.b16 %v521, %v520
        %vm524 = vcmask 64512
        %v526 = vsel %vm524, %v522, 0
        %v529 = vsel %vm524, %v523, 0
        %vm531 = vcmask 1043456
        %v533 = vsel %vm531, %v513, 0
        %535 = vmatprep.subr.bf16.mxu0 0
        %536 = vmatpush1.bf16.msra.mxu0 %v533
        %537 = vmatprep.subr.bf16.mxu0 0
        %538 = vmatpush1.bf16.msra.mxu0 0
        %539 = vmatprep.subr.bf16.mxu0 0
        %540 = vmatpush1.bf16.msra.mxu0 0
        %541 = vmatprep.subr.bf16.mxu0 0
        %542 = vmatpush1.bf16.msra.mxu0 0
        %543 = vmatprep.subr.bf16.mxu0 0
        %544 = vmatpush1.bf16.msra.mxu0 0
        %545 = vmatprep.subr.bf16.mxu0 0
        %546 = vmatpush1.bf16.msra.mxu0 0
        %547 = vmatprep.subr.bf16.mxu0 0
        %548 = vmatpush1.bf16.msra.mxu0 0
        %549 = vmatprep.subr.bf16.mxu0 0
        %550 = vmatpush1.bf16.msra.mxu0 0
        %551 = vmatprep.subr.bf16.mxu0 0
        %552 = vmatpush1.bf16.msra.mxu0 0
        %553 = vmatprep.subr.bf16.mxu0 0
        %554 = vmatpush1.bf16.msra.mxu0 0
        %555 = vmatprep.subr.bf16.mxu0 0
        %556 = vmatpush1.bf16.msra.mxu0 0
        %557 = vmatprep.subr.bf16.mxu0 0
        %558 = vmatpush1.bf16.msra.mxu0 0
        %559 = vmatprep.subr.bf16.mxu0 0
        %560 = vmatpush1.bf16.msra.mxu0 0
        %561 = vmatprep.subr.bf16.mxu0 0
        %562 = vmatpush1.bf16.msra.mxu0 0
        %563 = vmatprep.subr.bf16.mxu0 0
        %564 = vmatpush1.bf16.msra.mxu0 0
        %565 = vmatprep.subr.bf16.mxu0 0
        %566 = vmatpush1.bf16.msra.mxu0 0
        %567 = vmatprep.mubr.bf16.mxu0 0
        %568 = vmatmul.mubr.bf16.gmra.mrb[0].mxu0 %v526
        %v569 = vpop.f32.mrb[0].mxu0
        %v570 = vadd.f32 0.0, %v569
        %v571 = vpop.f32.mrb[0].mxu0
        %v572 = vpop.f32.mrb[0].mxu0
        %v573 = vadd.f32 0.0, %v572
        %v574 = vpop.f32.mrb[0].mxu0
        %575 = vmatprep.mubr.bf16.mxu0 0
        %576 = vmatmul.mubr.bf16.gmra.mrb[0].mxu0 %v529
        %v577 = vpop.f32.mrb[0].mxu0
        %v578 = vadd.f32 0.0, %v577
        %v579 = vpop.f32.mrb[0].mxu0
        %v580 = vpop.f32.mrb[0].mxu0
        %v581 = vadd.f32 0.0, %v580
        %v582 = vpop.f32.mrb[0].mxu0
        %583 = vdwg.mxu0
        %v584 = vadd.f32 %v509, %v570
        %v585 = vadd.f32 %v510, %v573
        %v586 = vadd.f32 %v511, %v578
        %v587 = vadd.f32 %v512, %v581
        %588 = vst [vmem:[#allocation2] sm:$0xff] %v584
        %589 = vst [vmem:[#allocation2 + $0x8] sm:$0xff] %v585
        %590 = vst [vmem:[#allocation2 + $0x10] sm:$0xff] %v586
        %591 = vst [vmem:[#allocation2 + $0x18] sm:$0xff] %v587
        %v592 = vld [vmem:[%s410] sm:$0xf]
        %v593 = vld [vmem:[%s410 + $0x4] sm:$0xf]
        %v594 = vld [vmem:[%s410 + $0x8] sm:$0xf]
        %v595 = vld [vmem:[%s410 + $0xc] sm:$0xf]
        %v596 = vld [vmem:[%s410 + $0x10] sm:$0x1]
        %v597 = vld [vmem:[#allocation2] sm:$0xff]
        %v598 = vld [vmem:[#allocation2 + $0x8] sm:$0xff]
        %v599 = vld [vmem:[#allocation2 + $0x10] sm:$0xff]
        %v600 = vld [vmem:[#allocation2 + $0x18] sm:$0xff]
        %s601 = scalar_lea.vmem [#allocation11], 4
        %v602 = vld [vmem:[%s601] sm:$0xf]
        %v608 = vunpack.c.l.b16 %v592
        %v609 = vunpack.c.l.b16 %v593
        %v610 = vunpack.c.l.b16 %v594
        %v611 = vunpack.c.l.b16 %v595
        %v612 = vunpack.c.l.b16 %v596
        %v613 = vpack.c.b16 %v609, %v608
        %v614 = vpack.c.b16 %v611, %v610
        %v615 = vpack.c.b16 %v612, %v612
        %vm616 = vsmask.f32 7424
        %v618 = vshrl.u32 %v613, 16
        %v620 = vshll.u32 %v613, 16
        %v622 = vrot.slane %v620, 1
        %v623 = vor.u32 %v618, %v622
        %v625 = vshll.u32 %v614, 16
        %v627 = vrot.slane %v625, 1
        %v628 = vsel %vm616, %v623, %v627
        %v629 = vshrl.u32 %v614, 16
        %v631 = vor.u32 %v629, %v627
        %v633 = vshll.u32 %v615, 16
        %v635 = vrot.slane %v633, 1
        %v636 = vsel %vm616, %v631, %v635
        %v638 = vsel %vm524, %v628, 0
        %v641 = vsel %vm524, %v636, 0
        %v644 = vsel %vm531, %v602, 0
        %646 = vmatprep.subr.bf16.mxu0 0
        %647 = vmatpush1.bf16.msra.mxu0 %v644
        %648 = vmatprep.subr.bf16.mxu0 0
        %649 = vmatpush1.bf16.msra.mxu0 0
        %650 = vmatprep.subr.bf16.mxu0 0
        %651 = vmatpush1.bf16.msra.mxu0 0
        %652 = vmatprep.subr.bf16.mxu0 0
        %653 = vmatpush1.bf16.msra.mxu0 0
        %654 = vmatprep.subr.bf16.mxu0 0
        %655 = vmatpush1.bf16.msra.mxu0 0
        %656 = vmatprep.subr.bf16.mxu0 0
        %657 = vmatpush1.bf16.msra.mxu0 0
        %658 = vmatprep.subr.bf16.mxu0 0
        %659 = vmatpush1.bf16.msra.mxu0 0
        %660 = vmatprep.subr.bf16.mxu0 0
        %661 = vmatpush1.bf16.msra.mxu0 0
        %662 = vmatprep.subr.bf16.mxu0 0
        %663 = vmatpush1.bf16.msra.mxu0 0
        %664 = vmatprep.subr.bf16.mxu0 0
        %665 = vmatpush1.bf16.msra.mxu0 0
        %666 = vmatprep.subr.bf16.mxu0 0
        %667 = vmatpush1.bf16.msra.mxu0 0
        %668 = vmatprep.subr.bf16.mxu0 0
        %669 = vmatpush1.bf16.msra.mxu0 0
        %670 = vmatprep.subr.bf16.mxu0 0
        %671 = vmatpush1.bf16.msra.mxu0 0
        %672 = vmatprep.subr.bf16.mxu0 0
        %673 = vmatpush1.bf16.msra.mxu0 0
        %674 = vmatprep.subr.bf16.mxu0 0
        %675 = vmatpush1.bf16.msra.mxu0 0
        %676 = vmatprep.subr.bf16.mxu0 0
        %677 = vmatpush1.bf16.msra.mxu0 0
        %678 = vmatprep.mubr.bf16.mxu0 0
        %679 = vmatmul.mubr.bf16.gmra.mrb[0].mxu0 %v638
        %v680 = vpop.f32.mrb[0].mxu0
        %v681 = vadd.f32 0.0, %v680
        %v682 = vpop.f32.mrb[0].mxu0
        %v683 = vpop.f32.mrb[0].mxu0
        %v684 = vadd.f32 0.0, %v683
        %v685 = vpop.f32.mrb[0].mxu0
        %686 = vmatprep.mubr.bf16.mxu0 0
        %687 = vmatmul.mubr.bf16.gmra.mrb[0].mxu0 %v641
        %v688 = vpop.f32.mrb[0].mxu0
        %v689 = vadd.f32 0.0, %v688
        %v690 = vpop.f32.mrb[0].mxu0
        %v691 = vpop.f32.mrb[0].mxu0
        %v692 = vadd.f32 0.0, %v691
        %v693 = vpop.f32.mrb[0].mxu0
        %694 = vdwg.mxu0
        %v695 = vadd.f32 %v597, %v681
        %v696 = vadd.f32 %v598, %v684
        %v697 = vadd.f32 %v599, %v689
        %v698 = vadd.f32 %v600, %v692
        %699 = vst [vmem:[#allocation2] sm:$0xff] %v695
        %700 = vst [vmem:[#allocation2 + $0x8] sm:$0xff] %v696
        %701 = vst [vmem:[#allocation2 + $0x10] sm:$0xff] %v697
        %702 = vst [vmem:[#allocation2 + $0x18] sm:$0xff] %v698
        %v703 = vld [vmem:[%s410] sm:$0xe]
        %v704 = vld [vmem:[%s410 + $0x4] sm:$0xf]
        %v705 = vld [vmem:[%s410 + $0x8] sm:$0xf]
        %v706 = vld [vmem:[%s410 + $0xc] sm:$0xf]
        %v707 = vld [vmem:[%s410 + $0x10] sm:$0x1]
        %v708 = vld [vmem:[#allocation2] sm:$0xff]
        %v709 = vld [vmem:[#allocation2 + $0x8] sm:$0xff]
        %v710 = vld [vmem:[#allocation2 + $0x10] sm:$0xff]
        %v711 = vld [vmem:[#allocation2 + $0x18] sm:$0xff]
        %s712 = scalar_lea.vmem [#allocation11], 8
        %v713 = vld [vmem:[%s712] sm:$0xf]
        %v719 = vunpack.c.l.b16 %v703
        %v720 = vunpack.c.l.b16 %v704
        %v721 = vunpack.c.l.b16 %v705
        %v722 = vunpack.c.l.b16 %v706
        %v723 = vunpack.c.l.b16 %v707
        %v724 = vpack.c.b16 %v720, %v719
        %v725 = vpack.c.b16 %v722, %v721
        %v726 = vpack.c.b16 %v723, %v723
        %vm727 = vcmask 1046528
        %v728 = vrot.slane %v724, 1
        %v729 = vrot.slane %v725, 1
        %v730 = vsel %vm727, %v728, %v729
        %v731 = vrot.slane %v726, 1
        %v732 = vsel %vm727, %v729, %v731
        %v734 = vsel %vm524, %v730, 0
        %v737 = vsel %vm524, %v732, 0
        %v740 = vsel %vm531, %v713, 0
        %742 = vmatprep.subr.bf16.mxu0 0
        %743 = vmatpush1.bf16.msra.mxu0 %v740
        %744 = vmatprep.subr.bf16.mxu0 0
        %745 = vmatpush1.bf16.msra.mxu0 0
        %746 = vmatprep.subr.bf16.mxu0 0
        %747 = vmatpush1.bf16.msra.mxu0 0
        %748 = vmatprep.subr.bf16.mxu0 0
        %749 = vmatpush1.bf16.msra.mxu0 0
        %750 = vmatprep.subr.bf16.mxu0 0
        %751 = vmatpush1.bf16.msra.mxu0 0
        %752 = vmatprep.subr.bf16.mxu0 0
        %753 = vmatpush1.bf16.msra.mxu0 0
        %754 = vmatprep.subr.bf16.mxu0 0
        %755 = vmatpush1.bf16.msra.mxu0 0
        %756 = vmatprep.subr.bf16.mxu0 0
        %757 = vmatpush1.bf16.msra.mxu0 0
        %758 = vmatprep.subr.bf16.mxu0 0
        %759 = vmatpush1.bf16.msra.mxu0 0
        %760 = vmatprep.subr.bf16.mxu0 0
        %761 = vmatpush1.bf16.msra.mxu0 0
        %762 = vmatprep.subr.bf16.mxu0 0
        %763 = vmatpush1.bf16.msra.mxu0 0
        %764 = vmatprep.subr.bf16.mxu0 0
        %765 = vmatpush1.bf16.msra.mxu0 0
        %766 = vmatprep.subr.bf16.mxu0 0
        %767 = vmatpush1.bf16.msra.mxu0 0
        %768 = vmatprep.subr.bf16.mxu0 0
        %769 = vmatpush1.bf16.msra.mxu0 0
        %770 = vmatprep.subr.bf16.mxu0 0
        %771 = vmatpush1.bf16.msra.mxu0 0
        %772 = vmatprep.subr.bf16.mxu0 0
        %773 = vmatpush1.bf16.msra.mxu0 0
        %774 = vmatprep.mubr.bf16.mxu0 0
        %775 = vmatmul.mubr.bf16.gmra.mrb[0].mxu0 %v734
        %v776 = vpop.f32.mrb[0].mxu0
        %v777 = vadd.f32 0.0, %v776
        %v778 = vpop.f32.mrb[0].mxu0
        %v779 = vpop.f32.mrb[0].mxu0
        %v780 = vadd.f32 0.0, %v779
        %v781 = vpop.f32.mrb[0].mxu0
        %782 = vmatprep.mubr.bf16.mxu0 0
        %783 = vmatmul.mubr.bf16.gmra.mrb[0].mxu0 %v737
        %v784 = vpop.f32.mrb[0].mxu0
        %v785 = vadd.f32 0.0, %v784
        %v786 = vpop.f32.mrb[0].mxu0
        %v787 = vpop.f32.mrb[0].mxu0
        %v788 = vadd.f32 0.0, %v787
        %v789 = vpop.f32.mrb[0].mxu0
        %790 = vdwg.mxu0
        %v791 = vadd.f32 %v708, %v777
        %v792 = vadd.f32 %v709, %v780
        %v793 = vadd.f32 %v710, %v785
        %v794 = vadd.f32 %v711, %v788
        %795 = vst [vmem:[#allocation2] sm:$0xff] %v791
        %796 = vst [vmem:[#allocation2 + $0x8] sm:$0xff] %v792
        %797 = vst [vmem:[#allocation2 + $0x10] sm:$0xff] %v793
        %798 = vst [vmem:[#allocation2 + $0x18] sm:$0xff] %v794
        %v799 = vld [vmem:[%s410] sm:$0x8]
        %v800 = vld [vmem:[%s410 + $0x4] sm:$0xf]
        %v801 = vld [vmem:[%s410 + $0x8] sm:$0xf]
        %v802 = vld [vmem:[%s410 + $0xc] sm:$0xf]
        %v803 = vld [vmem:[%s410 + $0x10] sm:$0x7]
        %v804 = vld [vmem:[#allocation2] sm:$0xff]
        %v805 = vld [vmem:[#allocation2 + $0x8] sm:$0xff]
        %v806 = vld [vmem:[#allocation2 + $0x10] sm:$0xff]
        %v807 = vld [vmem:[#allocation2 + $0x18] sm:$0xff]
        %s808 = scalar_lea.vmem [#allocation11], 12
        %v809 = vld [vmem:[%s808] sm:$0xf]
        %v815 = vunpack.c.l.b16 %v799
        %v816 = vunpack.c.l.b16 %v800
        %v817 = vunpack.c.l.b16 %v801
        %v818 = vunpack.c.l.b16 %v802
        %v819 = vunpack.c.l.b16 %v803
        %v820 = vpack.c.b16 %v816, %v815
        %v821 = vpack.c.b16 %v818, %v817
        %v822 = vpack.c.b16 %v819, %v819
        %vm823 = vcmask 1044480
        %v824 = vrot.slane %v820, 3
        %v825 = vrot.slane %v821, 3
        %v826 = vsel %vm823, %v824, %v825
        %v827 = vrot.slane %v822, 3
        %v828 = vsel %vm823, %v825, %v827
        %v830 = vsel %vm524, %v826, 0
        %v833 = vsel %vm524, %v828, 0
        %v836 = vsel %vm531, %v809, 0
        %838 = vmatprep.subr.bf16.mxu0 0
        %839 = vmatpush1.bf16.msra.mxu0 %v836
        %840 = vmatprep.subr.bf16.mxu0 0
        %841 = vmatpush1.bf16.msra.mxu0 0
        %842 = vmatprep.subr.bf16.mxu0 0
        %843 = vmatpush1.bf16.msra.mxu0 0
        %844 = vmatprep.subr.bf16.mxu0 0
        %845 = vmatpush1.bf16.msra.mxu0 0
        %846 = vmatprep.subr.bf16.mxu0 0
        %847 = vmatpush1.bf16.msra.mxu0 0
        %848 = vmatprep.subr.bf16.mxu0 0
        %849 = vmatpush1.bf16.msra.mxu0 0
        %850 = vmatprep.subr.bf16.mxu0 0
        %851 = vmatpush1.bf16.msra.mxu0 0
        %852 = vmatprep.subr.bf16.mxu0 0
        %853 = vmatpush1.bf16.msra.mxu0 0
        %854 = vmatprep.subr.bf16.mxu0 0
        %855 = vmatpush1.bf16.msra.mxu0 0
        %856 = vmatprep.subr.bf16.mxu0 0
        %857 = vmatpush1.bf16.msra.mxu0 0
        %858 = vmatprep.subr.bf16.mxu0 0
        %859 = vmatpush1.bf16.msra.mxu0 0
        %860 = vmatprep.subr.bf16.mxu0 0
        %861 = vmatpush1.bf16.msra.mxu0 0
        %862 = vmatprep.subr.bf16.mxu0 0
        %863 = vmatpush1.bf16.msra.mxu0 0
        %864 = vmatprep.subr.bf16.mxu0 0
        %865 = vmatpush1.bf16.msra.mxu0 0
        %866 = vmatprep.subr.bf16.mxu0 0
        %867 = vmatpush1.bf16.msra.mxu0 0
        %868 = vmatprep.subr.bf16.mxu0 0
        %869 = vmatpush1.bf16.msra.mxu0 0
        %870 = vmatprep.mubr.bf16.mxu0 0
        %871 = vmatmul.mubr.bf16.gmra.mrb[0].mxu0 %v830
        %v872 = vpop.f32.mrb[0].mxu0
        %v873 = vadd.f32 0.0, %v872
        %v874 = vpop.f32.mrb[0].mxu0
        %v875 = vpop.f32.mrb[0].mxu0
        %v876 = vadd.f32 0.0, %v875
        %v877 = vpop.f32.mrb[0].mxu0
        %878 = vmatprep.mubr.bf16.mxu0 0
        %879 = vmatmul.mubr.bf16.gmra.mrb[0].mxu0 %v833
        %v880 = vpop.f32.mrb[0].mxu0
        %v881 = vadd.f32 0.0, %v880
        %v882 = vpop.f32.mrb[0].mxu0
        %v883 = vpop.f32.mrb[0].mxu0
        %v884 = vadd.f32 0.0, %v883
        %v885 = vpop.f32.mrb[0].mxu0
        %886 = vdwg.mxu0
        %v887 = vadd.f32 %v804, %v873
        %v888 = vadd.f32 %v805, %v876
        %v889 = vadd.f32 %v806, %v881
        %v890 = vadd.f32 %v807, %v884
        %891 = vst [vmem:[#allocation2] sm:$0xff] %v887
        %892 = vst [vmem:[#allocation2 + $0x8] sm:$0xff] %v888
        %893 = vst [vmem:[#allocation2 + $0x10] sm:$0xff] %v889
        %894 = vst [vmem:[#allocation2 + $0x18] sm:$0xff] %v890
        %v895 = vld [vmem:[%s410] sm:$0x8]
        %v896 = vld [vmem:[%s410 + $0x4] sm:$0xf]
        %v897 = vld [vmem:[%s410 + $0x8] sm:$0xf]
        %v898 = vld [vmem:[%s410 + $0xc] sm:$0xf]
        %v899 = vld [vmem:[%s410 + $0x10] sm:$0xf]
        %v900 = vld [vmem:[#allocation2] sm:$0xff]
        %v901 = vld [vmem:[#allocation2 + $0x8] sm:$0xff]
        %v902 = vld [vmem:[#allocation2 + $0x10] sm:$0xff]
        %v903 = vld [vmem:[#allocation2 + $0x18] sm:$0xff]
        %s904 = scalar_lea.vmem [#allocation11], 16
        %v905 = vld [vmem:[%s904] sm:$0xf]
        %v911 = vunpack.c.l.b16 %v895
        %v912 = vunpack.c.l.b16 %v896
        %v913 = vunpack.c.l.b16 %v897
        %v914 = vunpack.c.l.b16 %v898
        %v915 = vunpack.c.l.b16 %v899
        %v916 = vpack.c.b16 %v912, %v911
        %v917 = vpack.c.b16 %v914, %v913
        %v918 = vpack.c.b16 %v915, %v915
        %vm919 = vsmask.f32 4352
        %v921 = vshrl.u32 %v916, 16
        %v923 = vrot.slane %v921, 3
        %v924 = vshll.u32 %v916, 16
        %v926 = vrot.slane %v924, 4
        %v927 = vor.u32 %v923, %v926
        %v929 = vshrl.u32 %v917, 16
        %v931 = vrot.slane %v929, 3
        %v932 = vshll.u32 %v917, 16
        %v934 = vrot.slane %v932, 4
        %v935 = vor.u32 %v931, %v934
        %v936 = vsel %vm919, %v927, %v935
        %v938 = vshrl.u32 %v918, 16
        %v940 = vrot.slane %v938, 3
        %v941 = vshll.u32 %v918, 16
        %v943 = vrot.slane %v941, 4
        %v944 = vor.u32 %v940, %v943
        %v945 = vsel %vm919, %v935, %v944
        %v947 = vsel %vm524, %v936, 0
        %v950 = vsel %vm524, %v945, 0
        %v953 = vsel %vm531, %v905, 0
        %955 = vmatprep.subr.bf16.mxu0 0
        %956 = vmatpush1.bf16.msra.mxu0 %v953
        %957 = vmatprep.subr.bf16.mxu0 0
        %958 = vmatpush1.bf16.msra.mxu0 0
        %959 = vmatprep.subr.bf16.mxu0 0
        %960 = vmatpush1.bf16.msra.mxu0 0
        %961 = vmatprep.subr.bf16.mxu0 0
        %962 = vmatpush1.bf16.msra.mxu0 0
        %963 = vmatprep.subr.bf16.mxu0 0
        %964 = vmatpush1.bf16.msra.mxu0 0
        %965 = vmatprep.subr.bf16.mxu0 0
        %966 = vmatpush1.bf16.msra.mxu0 0
        %967 = vmatprep.subr.bf16.mxu0 0
        %968 = vmatpush1.bf16.msra.mxu0 0
        %969 = vmatprep.subr.bf16.mxu0 0
        %970 = vmatpush1.bf16.msra.mxu0 0
        %971 = vmatprep.subr.bf16.mxu0 0
        %972 = vmatpush1.bf16.msra.mxu0 0
        %973 = vmatprep.subr.bf16.mxu0 0
        %974 = vmatpush1.bf16.msra.mxu0 0
        %975 = vmatprep.subr.bf16.mxu0 0
        %976 = vmatpush1.bf16.msra.mxu0 0
        %977 = vmatprep.subr.bf16.mxu0 0
        %978 = vmatpush1.bf16.msra.mxu0 0
        %979 = vmatprep.subr.bf16.mxu0 0
        %980 = vmatpush1.bf16.msra.mxu0 0
        %981 = vmatprep.subr.bf16.mxu0 0
        %982 = vmatpush1.bf16.msra.mxu0 0
        %983 = vmatprep.subr.bf16.mxu0 0
        %984 = vmatpush1.bf16.msra.mxu0 0
        %985 = vmatprep.subr.bf16.mxu0 0
        %986 = vmatpush1.bf16.msra.mxu0 0
        %987 = vmatprep.mubr.bf16.mxu0 0
        %988 = vmatmul.mubr.bf16.gmra.mrb[0].mxu0 %v947
        %v989 = vpop.f32.mrb[0].mxu0
        %v990 = vadd.f32 0.0, %v989
        %v991 = vpop.f32.mrb[0].mxu0
        %v992 = vpop.f32.mrb[0].mxu0
        %v993 = vadd.f32 0.0, %v992
        %v994 = vpop.f32.mrb[0].mxu0
        %995 = vmatprep.mubr.bf16.mxu0 0
        %996 = vmatmul.mubr.bf16.gmra.mrb[0].mxu0 %v950
        %v997 = vpop.f32.mrb[0].mxu0
        %v998 = vadd.f32 0.0, %v997
        %v999 = vpop.f32.mrb[0].mxu0
        %v1000 = vpop.f32.mrb[0].mxu0
        %v1001 = vadd.f32 0.0, %v1000
        %v1002 = vpop.f32.mrb[0].mxu0
        %1003 = vdwg.mxu0
        %v1004 = vadd.f32 %v900, %v990
        %v1005 = vadd.f32 %v901, %v993
        %v1006 = vadd.f32 %v902, %v998
        %v1007 = vadd.f32 %v903, %v1001
        %1008 = vst [vmem:[#allocation2] sm:$0xff] %v1004
        %1009 = vst [vmem:[#allocation2 + $0x8] sm:$0xff] %v1005
        %1010 = vst [vmem:[#allocation2 + $0x10] sm:$0xff] %v1006
        %1011 = vst [vmem:[#allocation2 + $0x18] sm:$0xff] %v1007
        %v1012 = vld [vmem:[%s410 + $0x4] sm:$0xf]
        %v1013 = vld [vmem:[%s410 + $0x8] sm:$0xf]
        %v1014 = vld [vmem:[%s410 + $0xc] sm:$0xf]
        %v1015 = vld [vmem:[%s410 + $0x10] sm:$0xf]
        %v1016 = vld [vmem:[#allocation2] sm:$0xff]
        %v1017 = vld [vmem:[#allocation2 + $0x8] sm:$0xff]
        %v1018 = vld [vmem:[#allocation2 + $0x10] sm:$0xff]
        %v1019 = vld [vmem:[#allocation2 + $0x18] sm:$0xff]
        %s1020 = scalar_lea.vmem [#allocation11], 20
        %v1021 = vld [vmem:[%s1020] sm:$0xf]
        %v1026 = vunpack.c.l.b16 %v1012
        %v1027 = vunpack.c.l.b16 %v1013
        %v1028 = vunpack.c.l.b16 %v1014
        %v1029 = vunpack.c.l.b16 %v1015
        %v1030 = vpack.c.b16 %v1027, %v1026
        %v1031 = vpack.c.b16 %v1029, %v1028
        %v1033 = vsel %vm524, %v1030, 0
        %v1036 = vsel %vm524, %v1031, 0
        %v1039 = vsel %vm531, %v1021, 0
        %1041 = vmatprep.subr.bf16.mxu0 0
        %1042 = vmatpush1.bf16.msra.mxu0 %v1039
        %1043 = vmatprep.subr.bf16.mxu0 0
        %1044 = vmatpush1.bf16.msra.mxu0 0
        %1045 = vmatprep.subr.bf16.mxu0 0
        %1046 = vmatpush1.bf16.msra.mxu0 0
        %1047 = vmatprep.subr.bf16.mxu0 0
        %1048 = vmatpush1.bf16.msra.mxu0 0
        %1049 = vmatprep.subr.bf16.mxu0 0
        %1050 = vmatpush1.bf16.msra.mxu0 0
        %1051 = vmatprep.subr.bf16.mxu0 0
        %1052 = vmatpush1.bf16.msra.mxu0 0
        %1053 = vmatprep.subr.bf16.mxu0 0
        %1054 = vmatpush1.bf16.msra.mxu0 0
        %1055 = vmatprep.subr.bf16.mxu0 0
        %1056 = vmatpush1.bf16.msra.mxu0 0
        %1057 = vmatprep.subr.bf16.mxu0 0
        %1058 = vmatpush1.bf16.msra.mxu0 0
        %1059 = vmatprep.subr.bf16.mxu0 0
        %1060 = vmatpush1.bf16.msra.mxu0 0
        %1061 = vmatprep.subr.bf16.mxu0 0
        %1062 = vmatpush1.bf16.msra.mxu0 0
        %1063 = vmatprep.subr.bf16.mxu0 0
        %1064 = vmatpush1.bf16.msra.mxu0 0
        %1065 = vmatprep.subr.bf16.mxu0 0
        %1066 = vmatpush1.bf16.msra.mxu0 0
        %1067 = vmatprep.subr.bf16.mxu0 0
        %1068 = vmatpush1.bf16.msra.mxu0 0
        %1069 = vmatprep.subr.bf16.mxu0 0
        %1070 = vmatpush1.bf16.msra.mxu0 0
        %1071 = vmatprep.subr.bf16.mxu0 0
        %1072 = vmatpush1.bf16.msra.mxu0 0
        %1073 = vmatprep.mubr.bf16.mxu0 0
        %1074 = vmatmul.mubr.bf16.gmra.mrb[0].mxu0 %v1033
        %v1075 = vpop.f32.mrb[0].mxu0
        %v1076 = vadd.f32 0.0, %v1075
        %v1077 = vpop.f32.mrb[0].mxu0
        %v1078 = vpop.f32.mrb[0].mxu0
        %v1079 = vadd.f32 0.0, %v1078
        %v1080 = vpop.f32.mrb[0].mxu0
        %1081 = vmatprep.mubr.bf16.mxu0 0
        %1082 = vmatmul.mubr.bf16.gmra.mrb[0].mxu0 %v1036
        %v1083 = vpop.f32.mrb[0].mxu0
        %v1084 = vadd.f32 0.0, %v1083
        %v1085 = vpop.f32.mrb[0].mxu0
        %v1086 = vpop.f32.mrb[0].mxu0
        %v1087 = vadd.f32 0.0, %v1086
        %v1088 = vpop.f32.mrb[0].mxu0
        %1089 = vdwg.mxu0
        %v1090 = vadd.f32 %v1016, %v1076
        %v1091 = vadd.f32 %v1017, %v1079
        %v1092 = vadd.f32 %v1018, %v1084
        %v1093 = vadd.f32 %v1019, %v1087
        %1094 = vst [vmem:[#allocation2] sm:$0xff] %v1090
        %1095 = vst [vmem:[#allocation2 + $0x8] sm:$0xff] %v1091
        %1096 = vst [vmem:[#allocation2 + $0x10] sm:$0xff] %v1092
        %1097 = vst [vmem:[#allocation2 + $0x18] sm:$0xff] %v1093
        %v1098 = vld [vmem:[%s410 + $0x4] sm:$0xc]
        %v1099 = vld [vmem:[%s410 + $0x8] sm:$0xf]
        %v1100 = vld [vmem:[%s410 + $0xc] sm:$0xf]
        %v1101 = vld [vmem:[%s410 + $0x10] sm:$0xf]
        %v1102 = vld [vmem:[%s410 + $0x14] sm:$0x3]
        %v1103 = vld [vmem:[#allocation2] sm:$0xff]
        %v1104 = vld [vmem:[#allocation2 + $0x8] sm:$0xff]
        %v1105 = vld [vmem:[#allocation2 + $0x10] sm:$0xff]
        %v1106 = vld [vmem:[#allocation2 + $0x18] sm:$0xff]
        %s1107 = scalar_lea.vmem [#allocation11], 24
        %v1108 = vld [vmem:[%s1107] sm:$0xf]
        %v1114 = vunpack.c.l.b16 %v1098
        %v1115 = vunpack.c.l.b16 %v1099
        %v1116 = vunpack.c.l.b16 %v1100
        %v1117 = vunpack.c.l.b16 %v1101
        %v1118 = vunpack.c.l.b16 %v1102
        %v1119 = vpack.c.b16 %v1115, %v1114
        %v1120 = vpack.c.b16 %v1117, %v1116
        %v1121 = vpack.c.b16 %v1118, %v1118
        %vm1122 = vcmask 1045504
        %v1123 = vrot.slane %v1119, 2
        %v1124 = vrot.slane %v1120, 2
        %v1125 = vsel %vm1122, %v1123, %v1124
        %v1126 = vrot.slane %v1121, 2
        %v1127 = vsel %vm1122, %v1124, %v1126
        %v1129 = vsel %vm524, %v1125, 0
        %v1132 = vsel %vm524, %v1127, 0
        %v1135 = vsel %vm531, %v1108, 0
        %1137 = vmatprep.subr.bf16.mxu0 0
        %1138 = vmatpush1.bf16.msra.mxu0 %v1135
        %1139 = vmatprep.subr.bf16.mxu0 0
        %1140 = vmatpush1.bf16.msra.mxu0 0
        %1141 = vmatprep.subr.bf16.mxu0 0
        %1142 = vmatpush1.bf16.msra.mxu0 0
        %1143 = vmatprep.subr.bf16.mxu0 0
        %1144 = vmatpush1.bf16.msra.mxu0 0
        %1145 = vmatprep.subr.bf16.mxu0 0
        %1146 = vmatpush1.bf16.msra.mxu0 0
        %1147 = vmatprep.subr.bf16.mxu0 0
        %1148 = vmatpush1.bf16.msra.mxu0 0
        %1149 = vmatprep.subr.bf16.mxu0 0
        %1150 = vmatpush1.bf16.msra.mxu0 0
        %1151 = vmatprep.subr.bf16.mxu0 0
        %1152 = vmatpush1.bf16.msra.mxu0 0
        %1153 = vmatprep.subr.bf16.mxu0 0
        %1154 = vmatpush1.bf16.msra.mxu0 0
        %1155 = vmatprep.subr.bf16.mxu0 0
        %1156 = vmatpush1.bf16.msra.mxu0 0
        %1157 = vmatprep.subr.bf16.mxu0 0
        %1158 = vmatpush1.bf16.msra.mxu0 0
        %1159 = vmatprep.subr.bf16.mxu0 0
        %1160 = vmatpush1.bf16.msra.mxu0 0
        %1161 = vmatprep.subr.bf16.mxu0 0
        %1162 = vmatpush1.bf16.msra.mxu0 0
        %1163 = vmatprep.subr.bf16.mxu0 0
        %1164 = vmatpush1.bf16.msra.mxu0 0
        %1165 = vmatprep.subr.bf16.mxu0 0
        %1166 = vmatpush1.bf16.msra.mxu0 0
        %1167 = vmatprep.subr.bf16.mxu0 0
        %1168 = vmatpush1.bf16.msra.mxu0 0
        %1169 = vmatprep.mubr.bf16.mxu0 0
        %1170 = vmatmul.mubr.bf16.gmra.mrb[0].mxu0 %v1129
        %v1171 = vpop.f32.mrb[0].mxu0
        %v1172 = vadd.f32 0.0, %v1171
        %v1173 = vpop.f32.mrb[0].mxu0
        %v1174 = vpop.f32.mrb[0].mxu0
        %v1175 = vadd.f32 0.0, %v1174
        %v1176 = vpop.f32.mrb[0].mxu0
        %1177 = vmatprep.mubr.bf16.mxu0 0
        %1178 = vmatmul.mubr.bf16.gmra.mrb[0].mxu0 %v1132
        %v1179 = vpop.f32.mrb[0].mxu0
        %v1180 = vadd.f32 0.0, %v1179
        %v1181 = vpop.f32.mrb[0].mxu0
        %v1182 = vpop.f32.mrb[0].mxu0
        %v1183 = vadd.f32 0.0, %v1182
        %v1184 = vpop.f32.mrb[0].mxu0
        %1185 = vdwg.mxu0
        %v1186 = vadd.f32 %v1103, %v1172
        %v1187 = vadd.f32 %v1104, %v1175
        %v1188 = vadd.f32 %v1105, %v1180
        %v1189 = vadd.f32 %v1106, %v1183
        %1190 = vst [vmem:[#allocation2] sm:$0xff] %v1186
        %1191 = vst [vmem:[#allocation2 + $0x8] sm:$0xff] %v1187
        %1192 = vst [vmem:[#allocation2 + $0x10] sm:$0xff] %v1188
        %1193 = vst [vmem:[#allocation2 + $0x18] sm:$0xff] %v1189
        %v1194 = vld [vmem:[%s410 + $0x4] sm:$0xc]
        %v1195 = vld [vmem:[%s410 + $0x8] sm:$0xf]
        %v1196 = vld [vmem:[%s410 + $0xc] sm:$0xf]
        %v1197 = vld [vmem:[%s410 + $0x10] sm:$0xf]
        %v1198 = vld [vmem:[%s410 + $0x14] sm:$0x7]
        %v1199 = vld [vmem:[#allocation2] sm:$0xff]
        %v1200 = vld [vmem:[#allocation2 + $0x8] sm:$0xff]
        %v1201 = vld [vmem:[#allocation2 + $0x10] sm:$0xff]
        %v1202 = vld [vmem:[#allocation2 + $0x18] sm:$0xff]
        %s1203 = scalar_lea.vmem [#allocation11], 28
        %v1204 = vld [vmem:[%s1203] sm:$0xf]
        %v1210 = vunpack.c.l.b16 %v1194
        %v1211 = vunpack.c.l.b16 %v1195
        %v1212 = vunpack.c.l.b16 %v1196
        %v1213 = vunpack.c.l.b16 %v1197
        %v1214 = vunpack.c.l.b16 %v1198
        %v1215 = vpack.c.b16 %v1211, %v1210
        %v1216 = vpack.c.b16 %v1213, %v1212
        %v1217 = vpack.c.b16 %v1214, %v1214
        %vm1218 = vsmask.f32 5376
        %v1220 = vshrl.u32 %v1215, 16
        %v1222 = vrot.slane %v1220, 2
        %v1223 = vshll.u32 %v1215, 16
        %v1225 = vrot.slane %v1223, 3
        %v1226 = vor.u32 %v1222, %v1225
        %v1228 = vshrl.u32 %v1216, 16
        %v1230 = vrot.slane %v1228, 2
        %v1231 = vshll.u32 %v1216, 16
        %v1233 = vrot.slane %v1231, 3
        %v1234 = vor.u32 %v1230, %v1233
        %v1235 = vsel %vm1218, %v1226, %v1234
        %v1237 = vshrl.u32 %v1217, 16
        %v1239 = vrot.slane %v1237, 2
        %v1240 = vshll.u32 %v1217, 16
        %v1242 = vrot.slane %v1240, 3
        %v1243 = vor.u32 %v1239, %v1242
        %v1244 = vsel %vm1218, %v1234, %v1243
        %v1246 = vsel %vm524, %v1235, 0
        %v1249 = vsel %vm524, %v1244, 0
        %v1252 = vsel %vm531, %v1204, 0
        %1254 = vmatprep.subr.bf16.mxu0 0
        %1255 = vmatpush1.bf16.msra.mxu0 %v1252
        %1256 = vmatprep.subr.bf16.mxu0 0
        %1257 = vmatpush1.bf16.msra.mxu0 0
        %1258 = vmatprep.subr.bf16.mxu0 0
        %1259 = vmatpush1.bf16.msra.mxu0 0
        %1260 = vmatprep.subr.bf16.mxu0 0
        %1261 = vmatpush1.bf16.msra.mxu0 0
        %1262 = vmatprep.subr.bf16.mxu0 0
        %1263 = vmatpush1.bf16.msra.mxu0 0
        %1264 = vmatprep.subr.bf16.mxu0 0
        %1265 = vmatpush1.bf16.msra.mxu0 0
        %1266 = vmatprep.subr.bf16.mxu0 0
        %1267 = vmatpush1.bf16.msra.mxu0 0
        %1268 = vmatprep.subr.bf16.mxu0 0
        %1269 = vmatpush1.bf16.msra.mxu0 0
        %1270 = vmatprep.subr.bf16.mxu0 0
        %1271 = vmatpush1.bf16.msra.mxu0 0
        %1272 = vmatprep.subr.bf16.mxu0 0
        %1273 = vmatpush1.bf16.msra.mxu0 0
        %1274 = vmatprep.subr.bf16.mxu0 0
        %1275 = vmatpush1.bf16.msra.mxu0 0
        %1276 = vmatprep.subr.bf16.mxu0 0
        %1277 = vmatpush1.bf16.msra.mxu0 0
        %1278 = vmatprep.subr.bf16.mxu0 0
        %1279 = vmatpush1.bf16.msra.mxu0 0
        %1280 = vmatprep.subr.bf16.mxu0 0
        %1281 = vmatpush1.bf16.msra.mxu0 0
        %1282 = vmatprep.subr.bf16.mxu0 0
        %1283 = vmatpush1.bf16.msra.mxu0 0
        %1284 = vmatprep.subr.bf16.mxu0 0
        %1285 = vmatpush1.bf16.msra.mxu0 0
        %1286 = vmatprep.mubr.bf16.mxu0 0
        %1287 = vmatmul.mubr.bf16.gmra.mrb[0].mxu0 %v1246
        %v1288 = vpop.f32.mrb[0].mxu0
        %v1289 = vadd.f32 0.0, %v1288
        %v1290 = vpop.f32.mrb[0].mxu0
        %v1291 = vpop.f32.mrb[0].mxu0
        %v1292 = vadd.f32 0.0, %v1291
        %v1293 = vpop.f32.mrb[0].mxu0
        %1294 = vmatprep.mubr.bf16.mxu0 0
        %1295 = vmatmul.mubr.bf16.gmra.mrb[0].mxu0 %v1249
        %v1296 = vpop.f32.mrb[0].mxu0
        %v1297 = vadd.f32 0.0, %v1296
        %v1298 = vpop.f32.mrb[0].mxu0
        %v1299 = vpop.f32.mrb[0].mxu0
        %v1300 = vadd.f32 0.0, %v1299
        %v1301 = vpop.f32.mrb[0].mxu0
        %1302 = vdwg.mxu0
        %v1303 = vadd.f32 %v1199, %v1289
        %v1304 = vadd.f32 %v1200, %v1292
        %v1305 = vadd.f32 %v1201, %v1297
        %v1306 = vadd.f32 %v1202, %v1300
        %1307 = vst [vmem:[#allocation2] sm:$0xff] %v1303
        %1308 = vst [vmem:[#allocation2 + $0x8] sm:$0xff] %v1304
        %1309 = vst [vmem:[#allocation2 + $0x10] sm:$0xff] %v1305
        %1310 = vst [vmem:[#allocation2 + $0x18] sm:$0xff] %v1306
        %v1311 = vld [vmem:[%s410 + $0x4] sm:$0x8]
        %v1312 = vld [vmem:[%s410 + $0x8] sm:$0xf]
        %v1313 = vld [vmem:[%s410 + $0xc] sm:$0xf]
        %v1314 = vld [vmem:[%s410 + $0x10] sm:$0xf]
        %v1315 = vld [vmem:[%s410 + $0x14] sm:$0x7]
        %v1316 = vld [vmem:[#allocation2] sm:$0xff]
        %v1317 = vld [vmem:[#allocation2 + $0x8] sm:$0xff]
        %v1318 = vld [vmem:[#allocation2 + $0x10] sm:$0xff]
        %v1319 = vld [vmem:[#allocation2 + $0x18] sm:$0xff]
        %s1320 = scalar_lea.vmem [#allocation11], 32
        %v1321 = vld [vmem:[%s1320] sm:$0xf]
        %v1327 = vunpack.c.l.b16 %v1311
        %v1328 = vunpack.c.l.b16 %v1312
        %v1329 = vunpack.c.l.b16 %v1313
        %v1330 = vunpack.c.l.b16 %v1314
        %v1331 = vunpack.c.l.b16 %v1315
        %v1332 = vpack.c.b16 %v1328, %v1327
        %v1333 = vpack.c.b16 %v1330, %v1329
        %v1334 = vpack.c.b16 %v1331, %v1331
        %v1335 = vrot.slane %v1332, 3
        %v1336 = vrot.slane %v1333, 3
        %v1337 = vsel %vm823, %v1335, %v1336
        %v1338 = vrot.slane %v1334, 3
        %v1339 = vsel %vm823, %v1336, %v1338
        %v1341 = vsel %vm524, %v1337, 0
        %v1344 = vsel %vm524, %v1339, 0
        %v1347 = vsel %vm531, %v1321, 0
        %1349 = vmatprep.subr.bf16.mxu0 0
        %1350 = vmatpush1.bf16.msra.mxu0 %v1347
        %1351 = vmatprep.subr.bf16.mxu0 0
        %1352 = vmatpush1.bf16.msra.mxu0 0
        %1353 = vmatprep.subr.bf16.mxu0 0
        %1354 = vmatpush1.bf16.msra.mxu0 0
        %1355 = vmatprep.subr.bf16.mxu0 0
        %1356 = vmatpush1.bf16.msra.mxu0 0
        %1357 = vmatprep.subr.bf16.mxu0 0
        %1358 = vmatpush1.bf16.msra.mxu0 0
        %1359 = vmatprep.subr.bf16.mxu0 0
        %1360 = vmatpush1.bf16.msra.mxu0 0
        %1361 = vmatprep.subr.bf16.mxu0 0
        %1362 = vmatpush1.bf16.msra.mxu0 0
        %1363 = vmatprep.subr.bf16.mxu0 0
        %1364 = vmatpush1.bf16.msra.mxu0 0
        %1365 = vmatprep.subr.bf16.mxu0 0
        %1366 = vmatpush1.bf16.msra.mxu0 0
        %1367 = vmatprep.subr.bf16.mxu0 0
        %1368 = vmatpush1.bf16.msra.mxu0 0
        %1369 = vmatprep.subr.bf16.mxu0 0
        %1370 = vmatpush1.bf16.msra.mxu0 0
        %1371 = vmatprep.subr.bf16.mxu0 0
        %1372 = vmatpush1.bf16.msra.mxu0 0
        %1373 = vmatprep.subr.bf16.mxu0 0
        %1374 = vmatpush1.bf16.msra.mxu0 0
        %1375 = vmatprep.subr.bf16.mxu0 0
        %1376 = vmatpush1.bf16.msra.mxu0 0
        %1377 = vmatprep.subr.bf16.mxu0 0
        %1378 = vmatpush1.bf16.msra.mxu0 0
        %1379 = vmatprep.subr.bf16.mxu0 0
        %1380 = vmatpush1.bf16.msra.mxu0 0
        %1381 = vmatprep.mubr.bf16.mxu0 0
        %1382 = vmatmul.mubr.bf16.gmra.mrb[0].mxu0 %v1341
        %v1383 = vpop.f32.mrb[0].mxu0
        %v1384 = vadd.f32 0.0, %v1383
        %v1385 = vpop.f32.mrb[0].mxu0
        %v1386 = vpop.f32.mrb[0].mxu0
        %v1387 = vadd.f32 0.0, %v1386
        %v1388 = vpop.f32.mrb[0].mxu0
        %1389 = vmatprep.mubr.bf16.mxu0 0
        %1390 = vmatmul.mubr.bf16.gmra.mrb[0].mxu0 %v1344
        %v1391 = vpop.f32.mrb[0].mxu0
        %v1392 = vadd.f32 0.0, %v1391
        %v1393 = vpop.f32.mrb[0].mxu0
        %v1394 = vpop.f32.mrb[0].mxu0
        %v1395 = vadd.f32 0.0, %v1394
        %v1396 = vpop.f32.mrb[0].mxu0
        %1397 = vdwg.mxu0
        %v1398 = vadd.f32 %v1316, %v1384
        %v1399 = vadd.f32 %v1317, %v1387
        %v1400 = vadd.f32 %v1318, %v1392
        %v1401 = vadd.f32 %v1319, %v1395
        %1402 = vst [vmem:[#allocation2] sm:$0xff] %v1398
        %1403 = vst [vmem:[#allocation2 + $0x8] sm:$0xff] %v1399
        %1404 = vst [vmem:[#allocation2 + $0x10] sm:$0xff] %v1400
        %1405 = vst [vmem:[#allocation2 + $0x18] sm:$0xff] %v1401
        %v1406 = vld [vmem:[%s419] sm:$0xf]
        %v1407 = vld [vmem:[%s419 + $0x4] sm:$0xf]
        %v1408 = vld [vmem:[%s419 + $0x8] sm:$0xf]
        %v1409 = vld [vmem:[%s419 + $0xc] sm:$0xf]
        %v1410 = vld [vmem:[#allocation2] sm:$0xff]
        %v1411 = vld [vmem:[#allocation2 + $0x8] sm:$0xff]
        %v1412 = vld [vmem:[#allocation2 + $0x10] sm:$0xff]
        %v1413 = vld [vmem:[#allocation2 + $0x18] sm:$0xff]
        %s1414 = scalar_lea.vmem [#allocation11], 36
        %v1415 = vld [vmem:[%s1414] sm:$0xf]
        %v1420 = vunpack.c.l.b16 %v1406
        %v1421 = vunpack.c.l.b16 %v1407
        %v1422 = vunpack.c.l.b16 %v1408
        %v1423 = vunpack.c.l.b16 %v1409
        %v1424 = vpack.c.b16 %v1421, %v1420
        %v1425 = vpack.c.b16 %v1423, %v1422
        %v1427 = vsel %vm524, %v1424, 0
        %v1430 = vsel %vm524, %v1425, 0
        %v1433 = vsel %vm531, %v1415, 0
        %1435 = vmatprep.subr.bf16.mxu0 0
        %1436 = vmatpush1.bf16.msra.mxu0 %v1433
        %1437 = vmatprep.subr.bf16.mxu0 0
        %1438 = vmatpush1.bf16.msra.mxu0 0
        %1439 = vmatprep.subr.bf16.mxu0 0
        %1440 = vmatpush1.bf16.msra.mxu0 0
        %1441 = vmatprep.subr.bf16.mxu0 0
        %1442 = vmatpush1.bf16.msra.mxu0 0
        %1443 = vmatprep.subr.bf16.mxu0 0
        %1444 = vmatpush1.bf16.msra.mxu0 0
        %1445 = vmatprep.subr.bf16.mxu0 0
        %1446 = vmatpush1.bf16.msra.mxu0 0
        %1447 = vmatprep.subr.bf16.mxu0 0
        %1448 = vmatpush1.bf16.msra.mxu0 0
        %1449 = vmatprep.subr.bf16.mxu0 0
        %1450 = vmatpush1.bf16.msra.mxu0 0
        %1451 = vmatprep.subr.bf16.mxu0 0
        %1452 = vmatpush1.bf16.msra.mxu0 0
        %1453 = vmatprep.subr.bf16.mxu0 0
        %1454 = vmatpush1.bf16.msra.mxu0 0
        %1455 = vmatprep.subr.bf16.mxu0 0
        %1456 = vmatpush1.bf16.msra.mxu0 0
        %1457 = vmatprep.subr.bf16.mxu0 0
        %1458 = vmatpush1.bf16.msra.mxu0 0
        %1459 = vmatprep.subr.bf16.mxu0 0
        %1460 = vmatpush1.bf16.msra.mxu0 0
        %1461 = vmatprep.subr.bf16.mxu0 0
        %1462 = vmatpush1.bf16.msra.mxu0 0
        %1463 = vmatprep.subr.bf16.mxu0 0
        %1464 = vmatpush1.bf16.msra.mxu0 0
        %1465 = vmatprep.subr.bf16.mxu0 0
        %1466 = vmatpush1.bf16.msra.mxu0 0
        %1467 = vmatprep.mubr.bf16.mxu0 0
        %1468 = vmatmul.mubr.bf16.gmra.mrb[0].mxu0 %v1427
        %v1469 = vpop.f32.mrb[0].mxu0
        %v1470 = vadd.f32 0.0, %v1469
        %v1471 = vpop.f32.mrb[0].mxu0
        %v1472 = vpop.f32.mrb[0].mxu0
        %v1473 = vadd.f32 0.0, %v1472
        %v1474 = vpop.f32.mrb[0].mxu0
        %1475 = vmatprep.mubr.bf16.mxu0 0
        %1476 = vmatmul.mubr.bf16.gmra.mrb[0].mxu0 %v1430
        %v1477 = vpop.f32.mrb[0].mxu0
        %v1478 = vadd.f32 0.0, %v1477
        %v1479 = vpop.f32.mrb[0].mxu0
        %v1480 = vpop.f32.mrb[0].mxu0
        %v1481 = vadd.f32 0.0, %v1480
        %v1482 = vpop.f32.mrb[0].mxu0
        %1483 = vdwg.mxu0
        %v1484 = vadd.f32 %v1410, %v1470
        %v1485 = vadd.f32 %v1411, %v1473
        %v1486 = vadd.f32 %v1412, %v1478
        %v1487 = vadd.f32 %v1413, %v1481
        %1488 = vst [vmem:[#allocation2] sm:$0xff] %v1484
        %1489 = vst [vmem:[#allocation2 + $0x8] sm:$0xff] %v1485
        %1490 = vst [vmem:[#allocation2 + $0x10] sm:$0xff] %v1486
        %1491 = vst [vmem:[#allocation2 + $0x18] sm:$0xff] %v1487
        %v1492 = vld [vmem:[%s419] sm:$0xf]
        %v1493 = vld [vmem:[%s419 + $0x4] sm:$0xf]
        %v1494 = vld [vmem:[%s419 + $0x8] sm:$0xf]
        %v1495 = vld [vmem:[%s419 + $0xc] sm:$0xf]
        %v1496 = vld [vmem:[%s419 + $0x10] sm:$0x1]
        %v1497 = vld [vmem:[#allocation2] sm:$0xff]
        %v1498 = vld [vmem:[#allocation2 + $0x8] sm:$0xff]
        %v1499 = vld [vmem:[#allocation2 + $0x10] sm:$0xff]
        %v1500 = vld [vmem:[#allocation2 + $0x18] sm:$0xff]
        %s1501 = scalar_lea.vmem [#allocation11], 40
        %v1502 = vld [vmem:[%s1501] sm:$0xf]
        %v1508 = vunpack.c.l.b16 %v1492
        %v1509 = vunpack.c.l.b16 %v1493
        %v1510 = vunpack.c.l.b16 %v1494
        %v1511 = vunpack.c.l.b16 %v1495
        %v1512 = vunpack.c.l.b16 %v1496
        %v1513 = vpack.c.b16 %v1509, %v1508
        %v1514 = vpack.c.b16 %v1511, %v1510
        %v1515 = vpack.c.b16 %v1512, %v1512
        %v1517 = vshrl.u32 %v1513, 16
        %v1519 = vshll.u32 %v1513, 16
        %v1521 = vrot.slane %v1519, 1
        %v1522 = vor.u32 %v1517, %v1521
        %v1524 = vshll.u32 %v1514, 16
        %v1526 = vrot.slane %v1524, 1
        %v1527 = vsel %vm616, %v1522, %v1526
        %v1528 = vshrl.u32 %v1514, 16
        %v1530 = vor.u32 %v1528, %v1526
        %v1532 = vshll.u32 %v1515, 16
        %v1534 = vrot.slane %v1532, 1
        %v1535 = vsel %vm616, %v1530, %v1534
        %v1537 = vsel %vm524, %v1527, 0
        %v1540 = vsel %vm524, %v1535, 0
        %v1543 = vsel %vm531, %v1502, 0
        %1545 = vmatprep.subr.bf16.mxu0 0
        %1546 = vmatpush1.bf16.msra.mxu0 %v1543
        %1547 = vmatprep.subr.bf16.mxu0 0
        %1548 = vmatpush1.bf16.msra.mxu0 0
        %1549 = vmatprep.subr.bf16.mxu0 0
        %1550 = vmatpush1.bf16.msra.mxu0 0
        %1551 = vmatprep.subr.bf16.mxu0 0
        %1552 = vmatpush1.bf16.msra.mxu0 0
        %1553 = vmatprep.subr.bf16.mxu0 0
        %1554 = vmatpush1.bf16.msra.mxu0 0
        %1555 = vmatprep.subr.bf16.mxu0 0
        %1556 = vmatpush1.bf16.msra.mxu0 0
        %1557 = vmatprep.subr.bf16.mxu0 0
        %1558 = vmatpush1.bf16.msra.mxu0 0
        %1559 = vmatprep.subr.bf16.mxu0 0
        %1560 = vmatpush1.bf16.msra.mxu0 0
        %1561 = vmatprep.subr.bf16.mxu0 0
        %1562 = vmatpush1.bf16.msra.mxu0 0
        %1563 = vmatprep.subr.bf16.mxu0 0
        %1564 = vmatpush1.bf16.msra.mxu0 0
        %1565 = vmatprep.subr.bf16.mxu0 0
        %1566 = vmatpush1.bf16.msra.mxu0 0
        %1567 = vmatprep.subr.bf16.mxu0 0
        %1568 = vmatpush1.bf16.msra.mxu0 0
        %1569 = vmatprep.subr.bf16.mxu0 0
        %1570 = vmatpush1.bf16.msra.mxu0 0
        %1571 = vmatprep.subr.bf16.mxu0 0
        %1572 = vmatpush1.bf16.msra.mxu0 0
        %1573 = vmatprep.subr.bf16.mxu0 0
        %1574 = vmatpush1.bf16.msra.mxu0 0
        %1575 = vmatprep.subr.bf16.mxu0 0
        %1576 = vmatpush1.bf16.msra.mxu0 0
        %1577 = vmatprep.mubr.bf16.mxu0 0
        %1578 = vmatmul.mubr.bf16.gmra.mrb[0].mxu0 %v1537
        %v1579 = vpop.f32.mrb[0].mxu0
        %v1580 = vadd.f32 0.0, %v1579
        %v1581 = vpop.f32.mrb[0].mxu0
        %v1582 = vpop.f32.mrb[0].mxu0
        %v1583 = vadd.f32 0.0, %v1582
        %v1584 = vpop.f32.mrb[0].mxu0
        %1585 = vmatprep.mubr.bf16.mxu0 0
        %1586 = vmatmul.mubr.bf16.gmra.mrb[0].mxu0 %v1540
        %v1587 = vpop.f32.mrb[0].mxu0
        %v1588 = vadd.f32 0.0, %v1587
        %v1589 = vpop.f32.mrb[0].mxu0
        %v1590 = vpop.f32.mrb[0].mxu0
        %v1591 = vadd.f32 0.0, %v1590
        %v1592 = vpop.f32.mrb[0].mxu0
        %1593 = vdwg.mxu0
        %v1594 = vadd.f32 %v1497, %v1580
        %v1595 = vadd.f32 %v1498, %v1583
        %v1596 = vadd.f32 %v1499, %v1588
        %v1597 = vadd.f32 %v1500, %v1591
        %1598 = vst [vmem:[#allocation2] sm:$0xff] %v1594
        %1599 = vst [vmem:[#allocation2 + $0x8] sm:$0xff] %v1595
        %1600 = vst [vmem:[#allocation2 + $0x10] sm:$0xff] %v1596
        %1601 = vst [vmem:[#allocation2 + $0x18] sm:$0xff] %v1597
        %v1602 = vld [vmem:[%s419] sm:$0xe]
        %v1603 = vld [vmem:[%s419 + $0x4] sm:$0xf]
        %v1604 = vld [vmem:[%s419 + $0x8] sm:$0xf]
        %v1605 = vld [vmem:[%s419 + $0xc] sm:$0xf]
        %v1606 = vld [vmem:[%s419 + $0x10] sm:$0x1]
        %v1607 = vld [vmem:[#allocation2] sm:$0xff]
        %v1608 = vld [vmem:[#allocation2 + $0x8] sm:$0xff]
        %v1609 = vld [vmem:[#allocation2 + $0x10] sm:$0xff]
        %v1610 = vld [vmem:[#allocation2 + $0x18] sm:$0xff]
        %s1611 = scalar_lea.vmem [#allocation11], 44
        %v1612 = vld [vmem:[%s1611] sm:$0xf]
        %v1618 = vunpack.c.l.b16 %v1602
        %v1619 = vunpack.c.l.b16 %v1603
        %v1620 = vunpack.c.l.b16 %v1604
        %v1621 = vunpack.c.l.b16 %v1605
        %v1622 = vunpack.c.l.b16 %v1606
        %v1623 = vpack.c.b16 %v1619, %v1618
        %v1624 = vpack.c.b16 %v1621, %v1620
        %v1625 = vpack.c.b16 %v1622, %v1622
        %v1626 = vrot.slane %v1623, 1
        %v1627 = vrot.slane %v1624, 1
        %v1628 = vsel %vm727, %v1626, %v1627
        %v1629 = vrot.slane %v1625, 1
        %v1630 = vsel %vm727, %v1627, %v1629
        %v1632 = vsel %vm524, %v1628, 0
        %v1635 = vsel %vm524, %v1630, 0
        %v1638 = vsel %vm531, %v1612, 0
        %1640 = vmatprep.subr.bf16.mxu0 0
        %1641 = vmatpush1.bf16.msra.mxu0 %v1638
        %1642 = vmatprep.subr.bf16.mxu0 0
        %1643 = vmatpush1.bf16.msra.mxu0 0
        %1644 = vmatprep.subr.bf16.mxu0 0
        %1645 = vmatpush1.bf16.msra.mxu0 0
        %1646 = vmatprep.subr.bf16.mxu0 0
        %1647 = vmatpush1.bf16.msra.mxu0 0
        %1648 = vmatprep.subr.bf16.mxu0 0
        %1649 = vmatpush1.bf16.msra.mxu0 0
        %1650 = vmatprep.subr.bf16.mxu0 0
        %1651 = vmatpush1.bf16.msra.mxu0 0
        %1652 = vmatprep.subr.bf16.mxu0 0
        %1653 = vmatpush1.bf16.msra.mxu0 0
        %1654 = vmatprep.subr.bf16.mxu0 0
        %1655 = vmatpush1.bf16.msra.mxu0 0
        %1656 = vmatprep.subr.bf16.mxu0 0
        %1657 = vmatpush1.bf16.msra.mxu0 0
        %1658 = vmatprep.subr.bf16.mxu0 0
        %1659 = vmatpush1.bf16.msra.mxu0 0
        %1660 = vmatprep.subr.bf16.mxu0 0
        %1661 = vmatpush1.bf16.msra.mxu0 0
        %1662 = vmatprep.subr.bf16.mxu0 0
        %1663 = vmatpush1.bf16.msra.mxu0 0
        %1664 = vmatprep.subr.bf16.mxu0 0
        %1665 = vmatpush1.bf16.msra.mxu0 0
        %1666 = vmatprep.subr.bf16.mxu0 0
        %1667 = vmatpush1.bf16.msra.mxu0 0
        %1668 = vmatprep.subr.bf16.mxu0 0
        %1669 = vmatpush1.bf16.msra.mxu0 0
        %1670 = vmatprep.subr.bf16.mxu0 0
        %1671 = vmatpush1.bf16.msra.mxu0 0
        %1672 = vmatprep.mubr.bf16.mxu0 0
        %1673 = vmatmul.mubr.bf16.gmra.mrb[0].mxu0 %v1632
        %v1674 = vpop.f32.mrb[0].mxu0
        %v1675 = vadd.f32 0.0, %v1674
        %v1676 = vpop.f32.mrb[0].mxu0
        %v1677 = vpop.f32.mrb[0].mxu0
        %v1678 = vadd.f32 0.0, %v1677
        %v1679 = vpop.f32.mrb[0].mxu0
        %1680 = vmatprep.mubr.bf16.mxu0 0
        %1681 = vmatmul.mubr.bf16.gmra.mrb[0].mxu0 %v1635
        %v1682 = vpop.f32.mrb[0].mxu0
        %v1683 = vadd.f32 0.0, %v1682
        %v1684 = vpop.f32.mrb[0].mxu0
        %v1685 = vpop.f32.mrb[0].mxu0
        %v1686 = vadd.f32 0.0, %v1685
        %v1687 = vpop.f32.mrb[0].mxu0
        %1688 = vdwg.mxu0
        %v1689 = vadd.f32 %v1607, %v1675
        %v1690 = vadd.f32 %v1608, %v1678
        %v1691 = vadd.f32 %v1609, %v1683
        %v1692 = vadd.f32 %v1610, %v1686
        %1693 = vst [vmem:[#allocation2] sm:$0xff] %v1689
        %1694 = vst [vmem:[#allocation2 + $0x8] sm:$0xff] %v1690
        %1695 = vst [vmem:[#allocation2 + $0x10] sm:$0xff] %v1691
        %1696 = vst [vmem:[#allocation2 + $0x18] sm:$0xff] %v1692
        %v1697 = vld [vmem:[%s419] sm:$0x8]
        %v1698 = vld [vmem:[%s419 + $0x4] sm:$0xf]
        %v1699 = vld [vmem:[%s419 + $0x8] sm:$0xf]
        %v1700 = vld [vmem:[%s419 + $0xc] sm:$0xf]
        %v1701 = vld [vmem:[%s419 + $0x10] sm:$0x7]
        %v1702 = vld [vmem:[#allocation2] sm:$0xff]
        %v1703 = vld [vmem:[#allocation2 + $0x8] sm:$0xff]
        %v1704 = vld [vmem:[#allocation2 + $0x10] sm:$0xff]
        %v1705 = vld [vmem:[#allocation2 + $0x18] sm:$0xff]
        %s1706 = scalar_lea.vmem [#allocation11], 48
        %v1707 = vld [vmem:[%s1706] sm:$0xf]
        %v1713 = vunpack.c.l.b16 %v1697
        %v1714 = vunpack.c.l.b16 %v1698
        %v1715 = vunpack.c.l.b16 %v1699
        %v1716 = vunpack.c.l.b16 %v1700
        %v1717 = vunpack.c.l.b16 %v1701
        %v1718 = vpack.c.b16 %v1714, %v1713
        %v1719 = vpack.c.b16 %v1716, %v1715
        %v1720 = vpack.c.b16 %v1717, %v1717
        %v1721 = vrot.slane %v1718, 3
        %v1722 = vrot.slane %v1719, 3
        %v1723 = vsel %vm823, %v1721, %v1722
        %v1724 = vrot.slane %v1720, 3
        %v1725 = vsel %vm823, %v1722, %v1724
        %v1727 = vsel %vm524, %v1723, 0
        %v1730 = vsel %vm524, %v1725, 0
        %v1733 = vsel %vm531, %v1707, 0
        %1735 = vmatprep.subr.bf16.mxu0 0
        %1736 = vmatpush1.bf16.msra.mxu0 %v1733
        %1737 = vmatprep.subr.bf16.mxu0 0
        %1738 = vmatpush1.bf16.msra.mxu0 0
        %1739 = vmatprep.subr.bf16.mxu0 0
        %1740 = vmatpush1.bf16.msra.mxu0 0
        %1741 = vmatprep.subr.bf16.mxu0 0
        %1742 = vmatpush1.bf16.msra.mxu0 0
        %1743 = vmatprep.subr.bf16.mxu0 0
        %1744 = vmatpush1.bf16.msra.mxu0 0
        %1745 = vmatprep.subr.bf16.mxu0 0
        %1746 = vmatpush1.bf16.msra.mxu0 0
        %1747 = vmatprep.subr.bf16.mxu0 0
        %1748 = vmatpush1.bf16.msra.mxu0 0
        %1749 = vmatprep.subr.bf16.mxu0 0
        %1750 = vmatpush1.bf16.msra.mxu0 0
        %1751 = vmatprep.subr.bf16.mxu0 0
        %1752 = vmatpush1.bf16.msra.mxu0 0
        %1753 = vmatprep.subr.bf16.mxu0 0
        %1754 = vmatpush1.bf16.msra.mxu0 0
        %1755 = vmatprep.subr.bf16.mxu0 0
        %1756 = vmatpush1.bf16.msra.mxu0 0
        %1757 = vmatprep.subr.bf16.mxu0 0
        %1758 = vmatpush1.bf16.msra.mxu0 0
        %1759 = vmatprep.subr.bf16.mxu0 0
        %1760 = vmatpush1.bf16.msra.mxu0 0
        %1761 = vmatprep.subr.bf16.mxu0 0
        %1762 = vmatpush1.bf16.msra.mxu0 0
        %1763 = vmatprep.subr.bf16.mxu0 0
        %1764 = vmatpush1.bf16.msra.mxu0 0
        %1765 = vmatprep.subr.bf16.mxu0 0
        %1766 = vmatpush1.bf16.msra.mxu0 0
        %1767 = vmatprep.mubr.bf16.mxu0 0
        %1768 = vmatmul.mubr.bf16.gmra.mrb[0].mxu0 %v1727
        %v1769 = vpop.f32.mrb[0].mxu0
        %v1770 = vadd.f32 0.0, %v1769
        %v1771 = vpop.f32.mrb[0].mxu0
        %v1772 = vpop.f32.mrb[0].mxu0
        %v1773 = vadd.f32 0.0, %v1772
        %v1774 = vpop.f32.mrb[0].mxu0
        %1775 = vmatprep.mubr.bf16.mxu0 0
        %1776 = vmatmul.mubr.bf16.gmra.mrb[0].mxu0 %v1730
        %v1777 = vpop.f32.mrb[0].mxu0
        %v1778 = vadd.f32 0.0, %v1777
        %v1779 = vpop.f32.mrb[0].mxu0
        %v1780 = vpop.f32.mrb[0].mxu0
        %v1781 = vadd.f32 0.0, %v1780
        %v1782 = vpop.f32.mrb[0].mxu0
        %1783 = vdwg.mxu0
        %v1784 = vadd.f32 %v1702, %v1770
        %v1785 = vadd.f32 %v1703, %v1773
        %v1786 = vadd.f32 %v1704, %v1778
        %v1787 = vadd.f32 %v1705, %v1781
        %1788 = vst [vmem:[#allocation2] sm:$0xff] %v1784
        %1789 = vst [vmem:[#allocation2 + $0x8] sm:$0xff] %v1785
        %1790 = vst [vmem:[#allocation2 + $0x10] sm:$0xff] %v1786
        %1791 = vst [vmem:[#allocation2 + $0x18] sm:$0xff] %v1787
        %v1792 = vld [vmem:[%s419] sm:$0x8]
        %v1793 = vld [vmem:[%s419 + $0x4] sm:$0xf]
        %v1794 = vld [vmem:[%s419 + $0x8] sm:$0xf]
        %v1795 = vld [vmem:[%s419 + $0xc] sm:$0xf]
        %v1796 = vld [vmem:[%s419 + $0x10] sm:$0xf]
        %v1797 = vld [vmem:[#allocation2] sm:$0xff]
        %v1798 = vld [vmem:[#allocation2 + $0x8] sm:$0xff]
        %v1799 = vld [vmem:[#allocation2 + $0x10] sm:$0xff]
        %v1800 = vld [vmem:[#allocation2 + $0x18] sm:$0xff]
        %s1801 = scalar_lea.vmem [#allocation11], 52
        %v1802 = vld [vmem:[%s1801] sm:$0xf]
        %v1808 = vunpack.c.l.b16 %v1792
        %v1809 = vunpack.c.l.b16 %v1793
        %v1810 = vunpack.c.l.b16 %v1794
        %v1811 = vunpack.c.l.b16 %v1795
        %v1812 = vunpack.c.l.b16 %v1796
        %v1813 = vpack.c.b16 %v1809, %v1808
        %v1814 = vpack.c.b16 %v1811, %v1810
        %v1815 = vpack.c.b16 %v1812, %v1812
        %v1817 = vshrl.u32 %v1813, 16
        %v1819 = vrot.slane %v1817, 3
        %v1820 = vshll.u32 %v1813, 16
        %v1822 = vrot.slane %v1820, 4
        %v1823 = vor.u32 %v1819, %v1822
        %v1825 = vshrl.u32 %v1814, 16
        %v1827 = vrot.slane %v1825, 3
        %v1828 = vshll.u32 %v1814, 16
        %v1830 = vrot.slane %v1828, 4
        %v1831 = vor.u32 %v1827, %v1830
        %v1832 = vsel %vm919, %v1823, %v1831
        %v1834 = vshrl.u32 %v1815, 16
        %v1836 = vrot.slane %v1834, 3
        %v1837 = vshll.u32 %v1815, 16
        %v1839 = vrot.slane %v1837, 4
        %v1840 = vor.u32 %v1836, %v1839
        %v1841 = vsel %vm919, %v1831, %v1840
        %v1843 = vsel %vm524, %v1832, 0
        %v1846 = vsel %vm524, %v1841, 0
        %v1849 = vsel %vm531, %v1802, 0
        %1851 = vmatprep.subr.bf16.mxu0 0
        %1852 = vmatpush1.bf16.msra.mxu0 %v1849
        %1853 = vmatprep.subr.bf16.mxu0 0
        %1854 = vmatpush1.bf16.msra.mxu0 0
        %1855 = vmatprep.subr.bf16.mxu0 0
        %1856 = vmatpush1.bf16.msra.mxu0 0
        %1857 = vmatprep.subr.bf16.mxu0 0
        %1858 = vmatpush1.bf16.msra.mxu0 0
        %1859 = vmatprep.subr.bf16.mxu0 0
        %1860 = vmatpush1.bf16.msra.mxu0 0
        %1861 = vmatprep.subr.bf16.mxu0 0
        %1862 = vmatpush1.bf16.msra.mxu0 0
        %1863 = vmatprep.subr.bf16.mxu0 0
        %1864 = vmatpush1.bf16.msra.mxu0 0
        %1865 = vmatprep.subr.bf16.mxu0 0
        %1866 = vmatpush1.bf16.msra.mxu0 0
        %1867 = vmatprep.subr.bf16.mxu0 0
        %1868 = vmatpush1.bf16.msra.mxu0 0
        %1869 = vmatprep.subr.bf16.mxu0 0
        %1870 = vmatpush1.bf16.msra.mxu0 0
        %1871 = vmatprep.subr.bf16.mxu0 0
        %1872 = vmatpush1.bf16.msra.mxu0 0
        %1873 = vmatprep.subr.bf16.mxu0 0
        %1874 = vmatpush1.bf16.msra.mxu0 0
        %1875 = vmatprep.subr.bf16.mxu0 0
        %1876 = vmatpush1.bf16.msra.mxu0 0
        %1877 = vmatprep.subr.bf16.mxu0 0
        %1878 = vmatpush1.bf16.msra.mxu0 0
        %1879 = vmatprep.subr.bf16.mxu0 0
        %1880 = vmatpush1.bf16.msra.mxu0 0
        %1881 = vmatprep.subr.bf16.mxu0 0
        %1882 = vmatpush1.bf16.msra.mxu0 0
        %1883 = vmatprep.mubr.bf16.mxu0 0
        %1884 = vmatmul.mubr.bf16.gmra.mrb[0].mxu0 %v1843
        %v1885 = vpop.f32.mrb[0].mxu0
        %v1886 = vadd.f32 0.0, %v1885
        %v1887 = vpop.f32.mrb[0].mxu0
        %v1888 = vpop.f32.mrb[0].mxu0
        %v1889 = vadd.f32 0.0, %v1888
        %v1890 = vpop.f32.mrb[0].mxu0
        %1891 = vmatprep.mubr.bf16.mxu0 0
        %1892 = vmatmul.mubr.bf16.gmra.mrb[0].mxu0 %v1846
        %v1893 = vpop.f32.mrb[0].mxu0
        %v1894 = vadd.f32 0.0, %v1893
        %v1895 = vpop.f32.mrb[0].mxu0
        %v1896 = vpop.f32.mrb[0].mxu0
        %v1897 = vadd.f32 0.0, %v1896
        %v1898 = vpop.f32.mrb[0].mxu0
        %1899 = vdwg.mxu0
        %v1900 = vadd.f32 %v1797, %v1886
        %v1901 = vadd.f32 %v1798, %v1889
        %v1902 = vadd.f32 %v1799, %v1894
        %v1903 = vadd.f32 %v1800, %v1897
        %1904 = vst [vmem:[#allocation2] sm:$0xff] %v1900
        %1905 = vst [vmem:[#allocation2 + $0x8] sm:$0xff] %v1901
        %1906 = vst [vmem:[#allocation2 + $0x10] sm:$0xff] %v1902
        %1907 = vst [vmem:[#allocation2 + $0x18] sm:$0xff] %v1903
        %v1908 = vld [vmem:[%s419 + $0x4] sm:$0xf]
        %v1909 = vld [vmem:[%s419 + $0x8] sm:$0xf]
        %v1910 = vld [vmem:[%s419 + $0xc] sm:$0xf]
        %v1911 = vld [vmem:[%s419 + $0x10] sm:$0xf]
        %v1912 = vld [vmem:[#allocation2] sm:$0xff]
        %v1913 = vld [vmem:[#allocation2 + $0x8] sm:$0xff]
        %v1914 = vld [vmem:[#allocation2 + $0x10] sm:$0xff]
        %v1915 = vld [vmem:[#allocation2 + $0x18] sm:$0xff]
        %s1916 = scalar_lea.vmem [#allocation11], 56
        %v1917 = vld [vmem:[%s1916] sm:$0xf]
        %v1922 = vunpack.c.l.b16 %v1908
        %v1923 = vunpack.c.l.b16 %v1909
        %v1924 = vunpack.c.l.b16 %v1910
        %v1925 = vunpack.c.l.b16 %v1911
        %v1926 = vpack.c.b16 %v1923, %v1922
        %v1927 = vpack.c.b16 %v1925, %v1924
        %v1929 = vsel %vm524, %v1926, 0
        %v1932 = vsel %vm524, %v1927, 0
        %v1935 = vsel %vm531, %v1917, 0
        %1937 = vmatprep.subr.bf16.mxu0 0
        %1938 = vmatpush1.bf16.msra.mxu0 %v1935
        %1939 = vmatprep.subr.bf16.mxu0 0
        %1940 = vmatpush1.bf16.msra.mxu0 0
        %1941 = vmatprep.subr.bf16.mxu0 0
        %1942 = vmatpush1.bf16.msra.mxu0 0
        %1943 = vmatprep.subr.bf16.mxu0 0
        %1944 = vmatpush1.bf16.msra.mxu0 0
        %1945 = vmatprep.subr.bf16.mxu0 0
        %1946 = vmatpush1.bf16.msra.mxu0 0
        %1947 = vmatprep.subr.bf16.mxu0 0
        %1948 = vmatpush1.bf16.msra.mxu0 0
        %1949 = vmatprep.subr.bf16.mxu0 0
        %1950 = vmatpush1.bf16.msra.mxu0 0
        %1951 = vmatprep.subr.bf16.mxu0 0
        %1952 = vmatpush1.bf16.msra.mxu0 0
        %1953 = vmatprep.subr.bf16.mxu0 0
        %1954 = vmatpush1.bf16.msra.mxu0 0
        %1955 = vmatprep.subr.bf16.mxu0 0
        %1956 = vmatpush1.bf16.msra.mxu0 0
        %1957 = vmatprep.subr.bf16.mxu0 0
        %1958 = vmatpush1.bf16.msra.mxu0 0
        %1959 = vmatprep.subr.bf16.mxu0 0
        %1960 = vmatpush1.bf16.msra.mxu0 0
        %1961 = vmatprep.subr.bf16.mxu0 0
        %1962 = vmatpush1.bf16.msra.mxu0 0
        %1963 = vmatprep.subr.bf16.mxu0 0
        %1964 = vmatpush1.bf16.msra.mxu0 0
        %1965 = vmatprep.subr.bf16.mxu0 0
        %1966 = vmatpush1.bf16.msra.mxu0 0
        %1967 = vmatprep.subr.bf16.mxu0 0
        %1968 = vmatpush1.bf16.msra.mxu0 0
        %1969 = vmatprep.mubr.bf16.mxu0 0
        %1970 = vmatmul.mubr.bf16.gmra.mrb[0].mxu0 %v1929
        %v1971 = vpop.f32.mrb[0].mxu0
        %v1972 = vadd.f32 0.0, %v1971
        %v1973 = vpop.f32.mrb[0].mxu0
        %v1974 = vpop.f32.mrb[0].mxu0
        %v1975 = vadd.f32 0.0, %v1974
        %v1976 = vpop.f32.mrb[0].mxu0
        %1977 = vmatprep.mubr.bf16.mxu0 0
        %1978 = vmatmul.mubr.bf16.gmra.mrb[0].mxu0 %v1932
        %v1979 = vpop.f32.mrb[0].mxu0
        %v1980 = vadd.f32 0.0, %v1979
        %v1981 = vpop.f32.mrb[0].mxu0
        %v1982 = vpop.f32.mrb[0].mxu0
        %v1983 = vadd.f32 0.0, %v1982
        %v1984 = vpop.f32.mrb[0].mxu0
        %1985 = vdwg.mxu0
        %v1986 = vadd.f32 %v1912, %v1972
        %v1987 = vadd.f32 %v1913, %v1975
        %v1988 = vadd.f32 %v1914, %v1980
        %v1989 = vadd.f32 %v1915, %v1983
        %1990 = vst [vmem:[#allocation2] sm:$0xff] %v1986
        %1991 = vst [vmem:[#allocation2 + $0x8] sm:$0xff] %v1987
        %1992 = vst [vmem:[#allocation2 + $0x10] sm:$0xff] %v1988
        %1993 = vst [vmem:[#allocation2 + $0x18] sm:$0xff] %v1989
        %v1994 = vld [vmem:[%s419 + $0x4] sm:$0xc]
        %v1995 = vld [vmem:[%s419 + $0x8] sm:$0xf]
        %v1996 = vld [vmem:[%s419 + $0xc] sm:$0xf]
        %v1997 = vld [vmem:[%s419 + $0x10] sm:$0xf]
        %v1998 = vld [vmem:[%s419 + $0x14] sm:$0x3]
        %v1999 = vld [vmem:[#allocation2] sm:$0xff]
        %v2000 = vld [vmem:[#allocation2 + $0x8] sm:$0xff]
        %v2001 = vld [vmem:[#allocation2 + $0x10] sm:$0xff]
        %v2002 = vld [vmem:[#allocation2 + $0x18] sm:$0xff]
        %s2003 = scalar_lea.vmem [#allocation11], 60
        %v2004 = vld [vmem:[%s2003] sm:$0xf]
        %v2010 = vunpack.c.l.b16 %v1994
        %v2011 = vunpack.c.l.b16 %v1995
        %v2012 = vunpack.c.l.b16 %v1996
        %v2013 = vunpack.c.l.b16 %v1997
        %v2014 = vunpack.c.l.b16 %v1998
        %v2015 = vpack.c.b16 %v2011, %v2010
        %v2016 = vpack.c.b16 %v2013, %v2012
        %v2017 = vpack.c.b16 %v2014, %v2014
        %v2018 = vrot.slane %v2015, 2
        %v2019 = vrot.slane %v2016, 2
        %v2020 = vsel %vm1122, %v2018, %v2019
        %v2021 = vrot.slane %v2017, 2
        %v2022 = vsel %vm1122, %v2019, %v2021
        %v2024 = vsel %vm524, %v2020, 0
        %v2027 = vsel %vm524, %v2022, 0
        %v2030 = vsel %vm531, %v2004, 0
        %2032 = vmatprep.subr.bf16.mxu0 0
        %2033 = vmatpush1.bf16.msra.mxu0 %v2030
        %2034 = vmatprep.subr.bf16.mxu0 0
        %2035 = vmatpush1.bf16.msra.mxu0 0
        %2036 = vmatprep.subr.bf16.mxu0 0
        %2037 = vmatpush1.bf16.msra.mxu0 0
        %2038 = vmatprep.subr.bf16.mxu0 0
        %2039 = vmatpush1.bf16.msra.mxu0 0
        %2040 = vmatprep.subr.bf16.mxu0 0
        %2041 = vmatpush1.bf16.msra.mxu0 0
        %2042 = vmatprep.subr.bf16.mxu0 0
        %2043 = vmatpush1.bf16.msra.mxu0 0
        %2044 = vmatprep.subr.bf16.mxu0 0
        %2045 = vmatpush1.bf16.msra.mxu0 0
        %2046 = vmatprep.subr.bf16.mxu0 0
        %2047 = vmatpush1.bf16.msra.mxu0 0
        %2048 = vmatprep.subr.bf16.mxu0 0
        %2049 = vmatpush1.bf16.msra.mxu0 0
        %2050 = vmatprep.subr.bf16.mxu0 0
        %2051 = vmatpush1.bf16.msra.mxu0 0
        %2052 = vmatprep.subr.bf16.mxu0 0
        %2053 = vmatpush1.bf16.msra.mxu0 0
        %2054 = vmatprep.subr.bf16.mxu0 0
        %2055 = vmatpush1.bf16.msra.mxu0 0
        %2056 = vmatprep.subr.bf16.mxu0 0
        %2057 = vmatpush1.bf16.msra.mxu0 0
        %2058 = vmatprep.subr.bf16.mxu0 0
        %2059 = vmatpush1.bf16.msra.mxu0 0
        %2060 = vmatprep.subr.bf16.mxu0 0
        %2061 = vmatpush1.bf16.msra.mxu0 0
        %2062 = vmatprep.subr.bf16.mxu0 0
        %2063 = vmatpush1.bf16.msra.mxu0 0
        %2064 = vmatprep.mubr.bf16.mxu0 0
        %2065 = vmatmul.mubr.bf16.gmra.mrb[0].mxu0 %v2024
        %v2066 = vpop.f32.mrb[0].mxu0
        %v2067 = vadd.f32 0.0, %v2066
        %v2068 = vpop.f32.mrb[0].mxu0
        %v2069 = vpop.f32.mrb[0].mxu0
        %v2070 = vadd.f32 0.0, %v2069
        %v2071 = vpop.f32.mrb[0].mxu0
        %2072 = vmatprep.mubr.bf16.mxu0 0
        %2073 = vmatmul.mubr.bf16.gmra.mrb[0].mxu0 %v2027
        %v2074 = vpop.f32.mrb[0].mxu0
        %v2075 = vadd.f32 0.0, %v2074
        %v2076 = vpop.f32.mrb[0].mxu0
        %v2077 = vpop.f32.mrb[0].mxu0
        %v2078 = vadd.f32 0.0, %v2077
        %v2079 = vpop.f32.mrb[0].mxu0
        %2080 = vdwg.mxu0
        %v2081 = vadd.f32 %v1999, %v2067
        %v2082 = vadd.f32 %v2000, %v2070
        %v2083 = vadd.f32 %v2001, %v2075
        %v2084 = vadd.f32 %v2002, %v2078
        %2085 = vst [vmem:[#allocation2] sm:$0xff] %v2081
        %2086 = vst [vmem:[#allocation2 + $0x8] sm:$0xff] %v2082
        %2087 = vst [vmem:[#allocation2 + $0x10] sm:$0xff] %v2083
        %2088 = vst [vmem:[#allocation2 + $0x18] sm:$0xff] %v2084
        %v2089 = vld [vmem:[%s419 + $0x4] sm:$0xc]
        %v2090 = vld [vmem:[%s419 + $0x8] sm:$0xf]
        %v2091 = vld [vmem:[%s419 + $0xc] sm:$0xf]
        %v2092 = vld [vmem:[%s419 + $0x10] sm:$0xf]
        %v2093 = vld [vmem:[%s419 + $0x14] sm:$0x7]
        %v2094 = vld [vmem:[#allocation2] sm:$0xff]
        %v2095 = vld [vmem:[#allocation2 + $0x8] sm:$0xff]
        %v2096 = vld [vmem:[#allocation2 + $0x10] sm:$0xff]
        %v2097 = vld [vmem:[#allocation2 + $0x18] sm:$0xff]
        %s2098 = scalar_lea.vmem [#allocation11], 64
        %v2099 = vld [vmem:[%s2098] sm:$0xf]
        %v2105 = vunpack.c.l.b16 %v2089
        %v2106 = vunpack.c.l.b16 %v2090
        %v2107 = vunpack.c.l.b16 %v2091
        %v2108 = vunpack.c.l.b16 %v2092
        %v2109 = vunpack.c.l.b16 %v2093
        %v2110 = vpack.c.b16 %v2106, %v2105
        %v2111 = vpack.c.b16 %v2108, %v2107
        %v2112 = vpack.c.b16 %v2109, %v2109
        %v2114 = vshrl.u32 %v2110, 16
        %v2116 = vrot.slane %v2114, 2
        %v2117 = vshll.u32 %v2110, 16
        %v2119 = vrot.slane %v2117, 3
        %v2120 = vor.u32 %v2116, %v2119
        %v2122 = vshrl.u32 %v2111, 16
        %v2124 = vrot.slane %v2122, 2
        %v2125 = vshll.u32 %v2111, 16
        %v2127 = vrot.slane %v2125, 3
        %v2128 = vor.u32 %v2124, %v2127
        %v2129 = vsel %vm1218, %v2120, %v2128
        %v2131 = vshrl.u32 %v2112, 16
        %v2133 = vrot.slane %v2131, 2
        %v2134 = vshll.u32 %v2112, 16
        %v2136 = vrot.slane %v2134, 3
        %v2137 = vor.u32 %v2133, %v2136
        %v2138 = vsel %vm1218, %v2128, %v2137
        %v2140 = vsel %vm524, %v2129, 0
        %v2143 = vsel %vm524, %v2138, 0
        %v2146 = vsel %vm531, %v2099, 0
        %2148 = vmatprep.subr.bf16.mxu0 0
        %2149 = vmatpush1.bf16.msra.mxu0 %v2146
        %2150 = vmatprep.subr.bf16.mxu0 0
        %2151 = vmatpush1.bf16.msra.mxu0 0
        %2152 = vmatprep.subr.bf16.mxu0 0
        %2153 = vmatpush1.bf16.msra.mxu0 0
        %2154 = vmatprep.subr.bf16.mxu0 0
        %2155 = vmatpush1.bf16.msra.mxu0 0
        %2156 = vmatprep.subr.bf16.mxu0 0
        %2157 = vmatpush1.bf16.msra.mxu0 0
        %2158 = vmatprep.subr.bf16.mxu0 0
        %2159 = vmatpush1.bf16.msra.mxu0 0
        %2160 = vmatprep.subr.bf16.mxu0 0
        %2161 = vmatpush1.bf16.msra.mxu0 0
        %2162 = vmatprep.subr.bf16.mxu0 0
        %2163 = vmatpush1.bf16.msra.mxu0 0
        %2164 = vmatprep.subr.bf16.mxu0 0
        %2165 = vmatpush1.bf16.msra.mxu0 0
        %2166 = vmatprep.subr.bf16.mxu0 0
        %2167 = vmatpush1.bf16.msra.mxu0 0
        %2168 = vmatprep.subr.bf16.mxu0 0
        %2169 = vmatpush1.bf16.msra.mxu0 0
        %2170 = vmatprep.subr.bf16.mxu0 0
        %2171 = vmatpush1.bf16.msra.mxu0 0
        %2172 = vmatprep.subr.bf16.mxu0 0
        %2173 = vmatpush1.bf16.msra.mxu0 0
        %2174 = vmatprep.subr.bf16.mxu0 0
        %2175 = vmatpush1.bf16.msra.mxu0 0
        %2176 = vmatprep.subr.bf16.mxu0 0
        %2177 = vmatpush1.bf16.msra.mxu0 0
        %2178 = vmatprep.subr.bf16.mxu0 0
        %2179 = vmatpush1.bf16.msra.mxu0 0
        %2180 = vmatprep.mubr.bf16.mxu0 0
        %2181 = vmatmul.mubr.bf16.gmra.mrb[0].mxu0 %v2140
        %v2182 = vpop.f32.mrb[0].mxu0
        %v2183 = vadd.f32 0.0, %v2182
        %v2184 = vpop.f32.mrb[0].mxu0
        %v2185 = vpop.f32.mrb[0].mxu0
        %v2186 = vadd.f32 0.0, %v2185
        %v2187 = vpop.f32.mrb[0].mxu0
        %2188 = vmatprep.mubr.bf16.mxu0 0
        %2189 = vmatmul.mubr.bf16.gmra.mrb[0].mxu0 %v2143
        %v2190 = vpop.f32.mrb[0].mxu0
        %v2191 = vadd.f32 0.0, %v2190
        %v2192 = vpop.f32.mrb[0].mxu0
        %v2193 = vpop.f32.mrb[0].mxu0
        %v2194 = vadd.f32 0.0, %v2193
        %v2195 = vpop.f32.mrb[0].mxu0
        %2196 = vdwg.mxu0
        %v2197 = vadd.f32 %v2094, %v2183
        %v2198 = vadd.f32 %v2095, %v2186
        %v2199 = vadd.f32 %v2096, %v2191
        %v2200 = vadd.f32 %v2097, %v2194
        %2201 = vst [vmem:[#allocation2] sm:$0xff] %v2197
        %2202 = vst [vmem:[#allocation2 + $0x8] sm:$0xff] %v2198
        %2203 = vst [vmem:[#allocation2 + $0x10] sm:$0xff] %v2199
        %2204 = vst [vmem:[#allocation2 + $0x18] sm:$0xff] %v2200
        %v2205 = vld [vmem:[%s419 + $0x4] sm:$0x8]
        %v2206 = vld [vmem:[%s419 + $0x8] sm:$0xf]
        %v2207 = vld [vmem:[%s419 + $0xc] sm:$0xf]
        %v2208 = vld [vmem:[%s419 + $0x10] sm:$0xf]
        %v2209 = vld [vmem:[%s419 + $0x14] sm:$0x7]
        %v2210 = vld [vmem:[#allocation2] sm:$0xff]
        %v2211 = vld [vmem:[#allocation2 + $0x8] sm:$0xff]
        %v2212 = vld [vmem:[#allocation2 + $0x10] sm:$0xff]
        %v2213 = vld [vmem:[#allocation2 + $0x18] sm:$0xff]
        %s2214 = scalar_lea.vmem [#allocation11], 68
        %v2215 = vld [vmem:[%s2214] sm:$0xf]
        %v2221 = vunpack.c.l.b16 %v2205
        %v2222 = vunpack.c.l.b16 %v2206
        %v2223 = vunpack.c.l.b16 %v2207
        %v2224 = vunpack.c.l.b16 %v2208
        %v2225 = vunpack.c.l.b16 %v2209
        %v2226 = vpack.c.b16 %v2222, %v2221
        %v2227 = vpack.c.b16 %v2224, %v2223
        %v2228 = vpack.c.b16 %v2225, %v2225
        %v2229 = vrot.slane %v2226, 3
        %v2230 = vrot.slane %v2227, 3
        %v2231 = vsel %vm823, %v2229, %v2230
        %v2232 = vrot.slane %v2228, 3
        %v2233 = vsel %vm823, %v2230, %v2232
        %v2235 = vsel %vm524, %v2231, 0
        %v2238 = vsel %vm524, %v2233, 0
        %v2241 = vsel %vm531, %v2215, 0
        %2243 = vmatprep.subr.bf16.mxu0 0
        %2244 = vmatpush1.bf16.msra.mxu0 %v2241
        %2245 = vmatprep.subr.bf16.mxu0 0
        %2246 = vmatpush1.bf16.msra.mxu0 0
        %2247 = vmatprep.subr.bf16.mxu0 0
        %2248 = vmatpush1.bf16.msra.mxu0 0
        %2249 = vmatprep.subr.bf16.mxu0 0
        %2250 = vmatpush1.bf16.msra.mxu0 0
        %2251 = vmatprep.subr.bf16.mxu0 0
        %2252 = vmatpush1.bf16.msra.mxu0 0
        %2253 = vmatprep.subr.bf16.mxu0 0
        %2254 = vmatpush1.bf16.msra.mxu0 0
        %2255 = vmatprep.subr.bf16.mxu0 0
        %2256 = vmatpush1.bf16.msra.mxu0 0
        %2257 = vmatprep.subr.bf16.mxu0 0
        %2258 = vmatpush1.bf16.msra.mxu0 0
        %2259 = vmatprep.subr.bf16.mxu0 0
        %2260 = vmatpush1.bf16.msra.mxu0 0
        %2261 = vmatprep.subr.bf16.mxu0 0
        %2262 = vmatpush1.bf16.msra.mxu0 0
        %2263 = vmatprep.subr.bf16.mxu0 0
        %2264 = vmatpush1.bf16.msra.mxu0 0
        %2265 = vmatprep.subr.bf16.mxu0 0
        %2266 = vmatpush1.bf16.msra.mxu0 0
        %2267 = vmatprep.subr.bf16.mxu0 0
        %2268 = vmatpush1.bf16.msra.mxu0 0
        %2269 = vmatprep.subr.bf16.mxu0 0
        %2270 = vmatpush1.bf16.msra.mxu0 0
        %2271 = vmatprep.subr.bf16.mxu0 0
        %2272 = vmatpush1.bf16.msra.mxu0 0
        %2273 = vmatprep.subr.bf16.mxu0 0
        %2274 = vmatpush1.bf16.msra.mxu0 0
        %2275 = vmatprep.mubr.bf16.mxu0 0
        %2276 = vmatmul.mubr.bf16.gmra.mrb[0].mxu0 %v2235
        %v2277 = vpop.f32.mrb[0].mxu0
        %v2278 = vadd.f32 0.0, %v2277
        %v2279 = vpop.f32.mrb[0].mxu0
        %v2280 = vpop.f32.mrb[0].mxu0
        %v2281 = vadd.f32 0.0, %v2280
        %v2282 = vpop.f32.mrb[0].mxu0
        %2283 = vmatprep.mubr.bf16.mxu0 0
        %2284 = vmatmul.mubr.bf16.gmra.mrb[0].mxu0 %v2238
        %v2285 = vpop.f32.mrb[0].mxu0
        %v2286 = vadd.f32 0.0, %v2285
        %v2287 = vpop.f32.mrb[0].mxu0
        %v2288 = vpop.f32.mrb[0].mxu0
        %v2289 = vadd.f32 0.0, %v2288
        %v2290 = vpop.f32.mrb[0].mxu0
        %2291 = vdwg.mxu0
        %v2292 = vadd.f32 %v2210, %v2278
        %v2293 = vadd.f32 %v2211, %v2281
        %v2294 = vadd.f32 %v2212, %v2286
        %v2295 = vadd.f32 %v2213, %v2289
        %2296 = vst [vmem:[#allocation2] sm:$0xff] %v2292
        %2297 = vst [vmem:[#allocation2 + $0x8] sm:$0xff] %v2293
        %2298 = vst [vmem:[#allocation2 + $0x10] sm:$0xff] %v2294
        %2299 = vst [vmem:[#allocation2 + $0x18] sm:$0xff] %v2295
        %v2300 = vld [vmem:[%s428] sm:$0xf]
        %v2301 = vld [vmem:[%s428 + $0x4] sm:$0xf]
        %v2302 = vld [vmem:[%s428 + $0x8] sm:$0xf]
        %v2303 = vld [vmem:[%s428 + $0xc] sm:$0xf]
        %v2304 = vld [vmem:[#allocation2] sm:$0xff]
        %v2305 = vld [vmem:[#allocation2 + $0x8] sm:$0xff]
        %v2306 = vld [vmem:[#allocation2 + $0x10] sm:$0xff]
        %v2307 = vld [vmem:[#allocation2 + $0x18] sm:$0xff]
        %s2308 = scalar_lea.vmem [#allocation11], 72
        %v2309 = vld [vmem:[%s2308] sm:$0xf]
        %v2314 = vunpack.c.l.b16 %v2300
        %v2315 = vunpack.c.l.b16 %v2301
        %v2316 = vunpack.c.l.b16 %v2302
        %v2317 = vunpack.c.l.b16 %v2303
        %v2318 = vpack.c.b16 %v2315, %v2314
        %v2319 = vpack.c.b16 %v2317, %v2316
        %v2321 = vsel %vm524, %v2318, 0
        %v2324 = vsel %vm524, %v2319, 0
        %v2327 = vsel %vm531, %v2309, 0
        %2329 = vmatprep.subr.bf16.mxu0 0
        %2330 = vmatpush1.bf16.msra.mxu0 %v2327
        %2331 = vmatprep.subr.bf16.mxu0 0
        %2332 = vmatpush1.bf16.msra.mxu0 0
        %2333 = vmatprep.subr.bf16.mxu0 0
        %2334 = vmatpush1.bf16.msra.mxu0 0
        %2335 = vmatprep.subr.bf16.mxu0 0
        %2336 = vmatpush1.bf16.msra.mxu0 0
        %2337 = vmatprep.subr.bf16.mxu0 0
        %2338 = vmatpush1.bf16.msra.mxu0 0
        %2339 = vmatprep.subr.bf16.mxu0 0
        %2340 = vmatpush1.bf16.msra.mxu0 0
        %2341 = vmatprep.subr.bf16.mxu0 0
        %2342 = vmatpush1.bf16.msra.mxu0 0
        %2343 = vmatprep.subr.bf16.mxu0 0
        %2344 = vmatpush1.bf16.msra.mxu0 0
        %2345 = vmatprep.subr.bf16.mxu0 0
        %2346 = vmatpush1.bf16.msra.mxu0 0
        %2347 = vmatprep.subr.bf16.mxu0 0
        %2348 = vmatpush1.bf16.msra.mxu0 0
        %2349 = vmatprep.subr.bf16.mxu0 0
        %2350 = vmatpush1.bf16.msra.mxu0 0
        %2351 = vmatprep.subr.bf16.mxu0 0
        %2352 = vmatpush1.bf16.msra.mxu0 0
        %2353 = vmatprep.subr.bf16.mxu0 0
        %2354 = vmatpush1.bf16.msra.mxu0 0
        %2355 = vmatprep.subr.bf16.mxu0 0
        %2356 = vmatpush1.bf16.msra.mxu0 0
        %2357 = vmatprep.subr.bf16.mxu0 0
        %2358 = vmatpush1.bf16.msra.mxu0 0
        %2359 = vmatprep.subr.bf16.mxu0 0
        %2360 = vmatpush1.bf16.msra.mxu0 0
        %2361 = vmatprep.mubr.bf16.mxu0 0
        %2362 = vmatmul.mubr.bf16.gmra.mrb[0].mxu0 %v2321
        %v2363 = vpop.f32.mrb[0].mxu0
        %v2364 = vadd.f32 0.0, %v2363
        %v2365 = vpop.f32.mrb[0].mxu0
        %v2366 = vpop.f32.mrb[0].mxu0
        %v2367 = vadd.f32 0.0, %v2366
        %v2368 = vpop.f32.mrb[0].mxu0
        %2369 = vmatprep.mubr.bf16.mxu0 0
        %2370 = vmatmul.mubr.bf16.gmra.mrb[0].mxu0 %v2324
        %v2371 = vpop.f32.mrb[0].mxu0
        %v2372 = vadd.f32 0.0, %v2371
        %v2373 = vpop.f32.mrb[0].mxu0
        %v2374 = vpop.f32.mrb[0].mxu0
        %v2375 = vadd.f32 0.0, %v2374
        %v2376 = vpop.f32.mrb[0].mxu0
        %2377 = vdwg.mxu0
        %v2378 = vadd.f32 %v2304, %v2364
        %v2379 = vadd.f32 %v2305, %v2367
        %v2380 = vadd.f32 %v2306, %v2372
        %v2381 = vadd.f32 %v2307, %v2375
        %2382 = vst [vmem:[#allocation2] sm:$0xff] %v2378
        %2383 = vst [vmem:[#allocation2 + $0x8] sm:$0xff] %v2379
        %2384 = vst [vmem:[#allocation2 + $0x10] sm:$0xff] %v2380
        %2385 = vst [vmem:[#allocation2 + $0x18] sm:$0xff] %v2381
        %v2386 = vld [vmem:[%s428] sm:$0xf]
        %v2387 = vld [vmem:[%s428 + $0x4] sm:$0xf]
        %v2388 = vld [vmem:[%s428 + $0x8] sm:$0xf]
        %v2389 = vld [vmem:[%s428 + $0xc] sm:$0xf]
        %v2390 = vld [vmem:[%s428 + $0x10] sm:$0x1]
        %v2391 = vld [vmem:[#allocation2] sm:$0xff]
        %v2392 = vld [vmem:[#allocation2 + $0x8] sm:$0xff]
        %v2393 = vld [vmem:[#allocation2 + $0x10] sm:$0xff]
        %v2394 = vld [vmem:[#allocation2 + $0x18] sm:$0xff]
        %s2395 = scalar_lea.vmem [#allocation11], 76
        %v2396 = vld [vmem:[%s2395] sm:$0xf]
        %v2402 = vunpack.c.l.b16 %v2386
        %v2403 = vunpack.c.l.b16 %v2387
        %v2404 = vunpack.c.l.b16 %v2388
        %v2405 = vunpack.c.l.b16 %v2389
        %v2406 = vunpack.c.l.b16 %v2390
        %v2407 = vpack.c.b16 %v2403, %v2402
        %v2408 = vpack.c.b16 %v2405, %v2404
        %v2409 = vpack.c.b16 %v2406, %v2406
        %v2411 = vshrl.u32 %v2407, 16
        %v2413 = vshll.u32 %v2407, 16
        %v2415 = vrot.slane %v2413, 1
        %v2416 = vor.u32 %v2411, %v2415
        %v2418 = vshll.u32 %v2408, 16
        %v2420 = vrot.slane %v2418, 1
        %v2421 = vsel %vm616, %v2416, %v2420
        %v2422 = vshrl.u32 %v2408, 16
        %v2424 = vor.u32 %v2422, %v2420
        %v2426 = vshll.u32 %v2409, 16
        %v2428 = vrot.slane %v2426, 1
        %v2429 = vsel %vm616, %v2424, %v2428
        %v2431 = vsel %vm524, %v2421, 0
        %v2434 = vsel %vm524, %v2429, 0
        %v2437 = vsel %vm531, %v2396, 0
        %2439 = vmatprep.subr.bf16.mxu0 0
        %2440 = vmatpush1.bf16.msra.mxu0 %v2437
        %2441 = vmatprep.subr.bf16.mxu0 0
        %2442 = vmatpush1.bf16.msra.mxu0 0
        %2443 = vmatprep.subr.bf16.mxu0 0
        %2444 = vmatpush1.bf16.msra.mxu0 0
        %2445 = vmatprep.subr.bf16.mxu0 0
        %2446 = vmatpush1.bf16.msra.mxu0 0
        %2447 = vmatprep.subr.bf16.mxu0 0
        %2448 = vmatpush1.bf16.msra.mxu0 0
        %2449 = vmatprep.subr.bf16.mxu0 0
        %2450 = vmatpush1.bf16.msra.mxu0 0
        %2451 = vmatprep.subr.bf16.mxu0 0
        %2452 = vmatpush1.bf16.msra.mxu0 0
        %2453 = vmatprep.subr.bf16.mxu0 0
        %2454 = vmatpush1.bf16.msra.mxu0 0
        %2455 = vmatprep.subr.bf16.mxu0 0
        %2456 = vmatpush1.bf16.msra.mxu0 0
        %2457 = vmatprep.subr.bf16.mxu0 0
        %2458 = vmatpush1.bf16.msra.mxu0 0
        %2459 = vmatprep.subr.bf16.mxu0 0
        %2460 = vmatpush1.bf16.msra.mxu0 0
        %2461 = vmatprep.subr.bf16.mxu0 0
        %2462 = vmatpush1.bf16.msra.mxu0 0
        %2463 = vmatprep.subr.bf16.mxu0 0
        %2464 = vmatpush1.bf16.msra.mxu0 0
        %2465 = vmatprep.subr.bf16.mxu0 0
        %2466 = vmatpush1.bf16.msra.mxu0 0
        %2467 = vmatprep.subr.bf16.mxu0 0
        %2468 = vmatpush1.bf16.msra.mxu0 0
        %2469 = vmatprep.subr.bf16.mxu0 0
        %2470 = vmatpush1.bf16.msra.mxu0 0
        %2471 = vmatprep.mubr.bf16.mxu0 0
        %2472 = vmatmul.mubr.bf16.gmra.mrb[0].mxu0 %v2431
        %v2473 = vpop.f32.mrb[0].mxu0
        %v2474 = vadd.f32 0.0, %v2473
        %v2475 = vpop.f32.mrb[0].mxu0
        %v2476 = vpop.f32.mrb[0].mxu0
        %v2477 = vadd.f32 0.0, %v2476
        %v2478 = vpop.f32.mrb[0].mxu0
        %2479 = vmatprep.mubr.bf16.mxu0 0
        %2480 = vmatmul.mubr.bf16.gmra.mrb[0].mxu0 %v2434
        %v2481 = vpop.f32.mrb[0].mxu0
        %v2482 = vadd.f32 0.0, %v2481
        %v2483 = vpop.f32.mrb[0].mxu0
        %v2484 = vpop.f32.mrb[0].mxu0
        %v2485 = vadd.f32 0.0, %v2484
        %v2486 = vpop.f32.mrb[0].mxu0
        %2487 = vdwg.mxu0
        %v2488 = vadd.f32 %v2391, %v2474
        %v2489 = vadd.f32 %v2392, %v2477
        %v2490 = vadd.f32 %v2393, %v2482
        %v2491 = vadd.f32 %v2394, %v2485
        %2492 = vst [vmem:[#allocation2] sm:$0xff] %v2488
        %2493 = vst [vmem:[#allocation2 + $0x8] sm:$0xff] %v2489
        %2494 = vst [vmem:[#allocation2 + $0x10] sm:$0xff] %v2490
        %2495 = vst [vmem:[#allocation2 + $0x18] sm:$0xff] %v2491
        %v2496 = vld [vmem:[%s428] sm:$0xe]
        %v2497 = vld [vmem:[%s428 + $0x4] sm:$0xf]
        %v2498 = vld [vmem:[%s428 + $0x8] sm:$0xf]
        %v2499 = vld [vmem:[%s428 + $0xc] sm:$0xf]
        %v2500 = vld [vmem:[%s428 + $0x10] sm:$0x1]
        %v2501 = vld [vmem:[#allocation2] sm:$0xff]
        %v2502 = vld [vmem:[#allocation2 + $0x8] sm:$0xff]
        %v2503 = vld [vmem:[#allocation2 + $0x10] sm:$0xff]
        %v2504 = vld [vmem:[#allocation2 + $0x18] sm:$0xff]
        %s2505 = scalar_lea.vmem [#allocation11], 80
        %v2506 = vld [vmem:[%s2505] sm:$0xf]
        %v2512 = vunpack.c.l.b16 %v2496
        %v2513 = vunpack.c.l.b16 %v2497
        %v2514 = vunpack.c.l.b16 %v2498
        %v2515 = vunpack.c.l.b16 %v2499
        %v2516 = vunpack.c.l.b16 %v2500
        %v2517 = vpack.c.b16 %v2513, %v2512
        %v2518 = vpack.c.b16 %v2515, %v2514
        %v2519 = vpack.c.b16 %v2516, %v2516
        %v2520 = vrot.slane %v2517, 1
        %v2521 = vrot.slane %v2518, 1
        %v2522 = vsel %vm727, %v2520, %v2521
        %v2523 = vrot.slane %v2519, 1
        %v2524 = vsel %vm727, %v2521, %v2523
        %v2526 = vsel %vm524, %v2522, 0
        %v2529 = vsel %vm524, %v2524, 0
        %v2532 = vsel %vm531, %v2506, 0
        %2534 = vmatprep.subr.bf16.mxu0 0
        %2535 = vmatpush1.bf16.msra.mxu0 %v2532
        %2536 = vmatprep.subr.bf16.mxu0 0
        %2537 = vmatpush1.bf16.msra.mxu0 0
        %2538 = vmatprep.subr.bf16.mxu0 0
        %2539 = vmatpush1.bf16.msra.mxu0 0
        %2540 = vmatprep.subr.bf16.mxu0 0
        %2541 = vmatpush1.bf16.msra.mxu0 0
        %2542 = vmatprep.subr.bf16.mxu0 0
        %2543 = vmatpush1.bf16.msra.mxu0 0
        %2544 = vmatprep.subr.bf16.mxu0 0
        %2545 = vmatpush1.bf16.msra.mxu0 0
        %2546 = vmatprep.subr.bf16.mxu0 0
        %2547 = vmatpush1.bf16.msra.mxu0 0
        %2548 = vmatprep.subr.bf16.mxu0 0
        %2549 = vmatpush1.bf16.msra.mxu0 0
        %2550 = vmatprep.subr.bf16.mxu0 0
        %2551 = vmatpush1.bf16.msra.mxu0 0
        %2552 = vmatprep.subr.bf16.mxu0 0
        %2553 = vmatpush1.bf16.msra.mxu0 0
        %2554 = vmatprep.subr.bf16.mxu0 0
        %2555 = vmatpush1.bf16.msra.mxu0 0
        %2556 = vmatprep.subr.bf16.mxu0 0
        %2557 = vmatpush1.bf16.msra.mxu0 0
        %2558 = vmatprep.subr.bf16.mxu0 0
        %2559 = vmatpush1.bf16.msra.mxu0 0
        %2560 = vmatprep.subr.bf16.mxu0 0
        %2561 = vmatpush1.bf16.msra.mxu0 0
        %2562 = vmatprep.subr.bf16.mxu0 0
        %2563 = vmatpush1.bf16.msra.mxu0 0
        %2564 = vmatprep.subr.bf16.mxu0 0
        %2565 = vmatpush1.bf16.msra.mxu0 0
        %2566 = vmatprep.mubr.bf16.mxu0 0
        %2567 = vmatmul.mubr.bf16.gmra.mrb[0].mxu0 %v2526
        %v2568 = vpop.f32.mrb[0].mxu0
        %v2569 = vadd.f32 0.0, %v2568
        %v2570 = vpop.f32.mrb[0].mxu0
        %v2571 = vpop.f32.mrb[0].mxu0
        %v2572 = vadd.f32 0.0, %v2571
        %v2573 = vpop.f32.mrb[0].mxu0
        %2574 = vmatprep.mubr.bf16.mxu0 0
        %2575 = vmatmul.mubr.bf16.gmra.mrb[0].mxu0 %v2529
        %v2576 = vpop.f32.mrb[0].mxu0
        %v2577 = vadd.f32 0.0, %v2576
        %v2578 = vpop.f32.mrb[0].mxu0
        %v2579 = vpop.f32.mrb[0].mxu0
        %v2580 = vadd.f32 0.0, %v2579
        %v2581 = vpop.f32.mrb[0].mxu0
        %2582 = vdwg.mxu0
        %v2583 = vadd.f32 %v2501, %v2569
        %v2584 = vadd.f32 %v2502, %v2572
        %v2585 = vadd.f32 %v2503, %v2577
        %v2586 = vadd.f32 %v2504, %v2580
        %2587 = vst [vmem:[#allocation2] sm:$0xff] %v2583
        %2588 = vst [vmem:[#allocation2 + $0x8] sm:$0xff] %v2584
        %2589 = vst [vmem:[#allocation2 + $0x10] sm:$0xff] %v2585
        %2590 = vst [vmem:[#allocation2 + $0x18] sm:$0xff] %v2586
        %v2591 = vld [vmem:[%s428] sm:$0x8]
        %v2592 = vld [vmem:[%s428 + $0x4] sm:$0xf]
        %v2593 = vld [vmem:[%s428 + $0x8] sm:$0xf]
        %v2594 = vld [vmem:[%s428 + $0xc] sm:$0xf]
        %v2595 = vld [vmem:[%s428 + $0x10] sm:$0x7]
        %v2596 = vld [vmem:[#allocation2] sm:$0xff]
        %v2597 = vld [vmem:[#allocation2 + $0x8] sm:$0xff]
        %v2598 = vld [vmem:[#allocation2 + $0x10] sm:$0xff]
        %v2599 = vld [vmem:[#allocation2 + $0x18] sm:$0xff]
        %s2600 = scalar_lea.vmem [#allocation11], 84
        %v2601 = vld [vmem:[%s2600] sm:$0xf]
        %v2607 = vunpack.c.l.b16 %v2591
        %v2608 = vunpack.c.l.b16 %v2592
        %v2609 = vunpack.c.l.b16 %v2593
        %v2610 = vunpack.c.l.b16 %v2594
        %v2611 = vunpack.c.l.b16 %v2595
        %v2612 = vpack.c.b16 %v2608, %v2607
        %v2613 = vpack.c.b16 %v2610, %v2609
        %v2614 = vpack.c.b16 %v2611, %v2611
        %v2615 = vrot.slane %v2612, 3
        %v2616 = vrot.slane %v2613, 3
        %v2617 = vsel %vm823, %v2615, %v2616
        %v2618 = vrot.slane %v2614, 3
        %v2619 = vsel %vm823, %v2616, %v2618
        %v2621 = vsel %vm524, %v2617, 0
        %v2624 = vsel %vm524, %v2619, 0
        %v2627 = vsel %vm531, %v2601, 0
        %2629 = vmatprep.subr.bf16.mxu0 0
        %2630 = vmatpush1.bf16.msra.mxu0 %v2627
        %2631 = vmatprep.subr.bf16.mxu0 0
        %2632 = vmatpush1.bf16.msra.mxu0 0
        %2633 = vmatprep.subr.bf16.mxu0 0
        %2634 = vmatpush1.bf16.msra.mxu0 0
        %2635 = vmatprep.subr.bf16.mxu0 0
        %2636 = vmatpush1.bf16.msra.mxu0 0
        %2637 = vmatprep.subr.bf16.mxu0 0
        %2638 = vmatpush1.bf16.msra.mxu0 0
        %2639 = vmatprep.subr.bf16.mxu0 0
        %2640 = vmatpush1.bf16.msra.mxu0 0
        %2641 = vmatprep.subr.bf16.mxu0 0
        %2642 = vmatpush1.bf16.msra.mxu0 0
        %2643 = vmatprep.subr.bf16.mxu0 0
        %2644 = vmatpush1.bf16.msra.mxu0 0
        %2645 = vmatprep.subr.bf16.mxu0 0
        %2646 = vmatpush1.bf16.msra.mxu0 0
        %2647 = vmatprep.subr.bf16.mxu0 0
        %2648 = vmatpush1.bf16.msra.mxu0 0
        %2649 = vmatprep.subr.bf16.mxu0 0
        %2650 = vmatpush1.bf16.msra.mxu0 0
        %2651 = vmatprep.subr.bf16.mxu0 0
        %2652 = vmatpush1.bf16.msra.mxu0 0
        %2653 = vmatprep.subr.bf16.mxu0 0
        %2654 = vmatpush1.bf16.msra.mxu0 0
        %2655 = vmatprep.subr.bf16.mxu0 0
        %2656 = vmatpush1.bf16.msra.mxu0 0
        %2657 = vmatprep.subr.bf16.mxu0 0
        %2658 = vmatpush1.bf16.msra.mxu0 0
        %2659 = vmatprep.subr.bf16.mxu0 0
        %2660 = vmatpush1.bf16.msra.mxu0 0
        %2661 = vmatprep.mubr.bf16.mxu0 0
        %2662 = vmatmul.mubr.bf16.gmra.mrb[0].mxu0 %v2621
        %v2663 = vpop.f32.mrb[0].mxu0
        %v2664 = vadd.f32 0.0, %v2663
        %v2665 = vpop.f32.mrb[0].mxu0
        %v2666 = vpop.f32.mrb[0].mxu0
        %v2667 = vadd.f32 0.0, %v2666
        %v2668 = vpop.f32.mrb[0].mxu0
        %2669 = vmatprep.mubr.bf16.mxu0 0
        %2670 = vmatmul.mubr.bf16.gmra.mrb[0].mxu0 %v2624
        %v2671 = vpop.f32.mrb[0].mxu0
        %v2672 = vadd.f32 0.0, %v2671
        %v2673 = vpop.f32.mrb[0].mxu0
        %v2674 = vpop.f32.mrb[0].mxu0
        %v2675 = vadd.f32 0.0, %v2674
        %v2676 = vpop.f32.mrb[0].mxu0
        %2677 = vdwg.mxu0
        %v2678 = vadd.f32 %v2596, %v2664
        %v2679 = vadd.f32 %v2597, %v2667
        %v2680 = vadd.f32 %v2598, %v2672
        %v2681 = vadd.f32 %v2599, %v2675
        %2682 = vst [vmem:[#allocation2] sm:$0xff] %v2678
        %2683 = vst [vmem:[#allocation2 + $0x8] sm:$0xff] %v2679
        %2684 = vst [vmem:[#allocation2 + $0x10] sm:$0xff] %v2680
        %2685 = vst [vmem:[#allocation2 + $0x18] sm:$0xff] %v2681
        %v2686 = vld [vmem:[%s428] sm:$0x8]
        %v2687 = vld [vmem:[%s428 + $0x4] sm:$0xf]
        %v2688 = vld [vmem:[%s428 + $0x8] sm:$0xf]
        %v2689 = vld [vmem:[%s428 + $0xc] sm:$0xf]
        %v2690 = vld [vmem:[%s428 + $0x10] sm:$0xf]
        %v2691 = vld [vmem:[#allocation2] sm:$0xff]
        %v2692 = vld [vmem:[#allocation2 + $0x8] sm:$0xff]
        %v2693 = vld [vmem:[#allocation2 + $0x10] sm:$0xff]
        %v2694 = vld [vmem:[#allocation2 + $0x18] sm:$0xff]
        %s2695 = scalar_lea.vmem [#allocation11], 88
        %v2696 = vld [vmem:[%s2695] sm:$0xf]
        %v2702 = vunpack.c.l.b16 %v2686
        %v2703 = vunpack.c.l.b16 %v2687
        %v2704 = vunpack.c.l.b16 %v2688
        %v2705 = vunpack.c.l.b16 %v2689
        %v2706 = vunpack.c.l.b16 %v2690
        %v2707 = vpack.c.b16 %v2703, %v2702
        %v2708 = vpack.c.b16 %v2705, %v2704
        %v2709 = vpack.c.b16 %v2706, %v2706
        %v2711 = vshrl.u32 %v2707, 16
        %v2713 = vrot.slane %v2711, 3
        %v2714 = vshll.u32 %v2707, 16
        %v2716 = vrot.slane %v2714, 4
        %v2717 = vor.u32 %v2713, %v2716
        %v2719 = vshrl.u32 %v2708, 16
        %v2721 = vrot.slane %v2719, 3
        %v2722 = vshll.u32 %v2708, 16
        %v2724 = vrot.slane %v2722, 4
        %v2725 = vor.u32 %v2721, %v2724
        %v2726 = vsel %vm919, %v2717, %v2725
        %v2728 = vshrl.u32 %v2709, 16
        %v2730 = vrot.slane %v2728, 3
        %v2731 = vshll.u32 %v2709, 16
        %v2733 = vrot.slane %v2731, 4
        %v2734 = vor.u32 %v2730, %v2733
        %v2735 = vsel %vm919, %v2725, %v2734
        %v2737 = vsel %vm524, %v2726, 0
        %v2740 = vsel %vm524, %v2735, 0
        %v2743 = vsel %vm531, %v2696, 0
        %2745 = vmatprep.subr.bf16.mxu0 0
        %2746 = vmatpush1.bf16.msra.mxu0 %v2743
        %2747 = vmatprep.subr.bf16.mxu0 0
        %2748 = vmatpush1.bf16.msra.mxu0 0
        %2749 = vmatprep.subr.bf16.mxu0 0
        %2750 = vmatpush1.bf16.msra.mxu0 0
        %2751 = vmatprep.subr.bf16.mxu0 0
        %2752 = vmatpush1.bf16.msra.mxu0 0
        %2753 = vmatprep.subr.bf16.mxu0 0
        %2754 = vmatpush1.bf16.msra.mxu0 0
        %2755 = vmatprep.subr.bf16.mxu0 0
        %2756 = vmatpush1.bf16.msra.mxu0 0
        %2757 = vmatprep.subr.bf16.mxu0 0
        %2758 = vmatpush1.bf16.msra.mxu0 0
        %2759 = vmatprep.subr.bf16.mxu0 0
        %2760 = vmatpush1.bf16.msra.mxu0 0
        %2761 = vmatprep.subr.bf16.mxu0 0
        %2762 = vmatpush1.bf16.msra.mxu0 0
        %2763 = vmatprep.subr.bf16.mxu0 0
        %2764 = vmatpush1.bf16.msra.mxu0 0
        %2765 = vmatprep.subr.bf16.mxu0 0
        %2766 = vmatpush1.bf16.msra.mxu0 0
        %2767 = vmatprep.subr.bf16.mxu0 0
        %2768 = vmatpush1.bf16.msra.mxu0 0
        %2769 = vmatprep.subr.bf16.mxu0 0
        %2770 = vmatpush1.bf16.msra.mxu0 0
        %2771 = vmatprep.subr.bf16.mxu0 0
        %2772 = vmatpush1.bf16.msra.mxu0 0
        %2773 = vmatprep.subr.bf16.mxu0 0
        %2774 = vmatpush1.bf16.msra.mxu0 0
        %2775 = vmatprep.subr.bf16.mxu0 0
        %2776 = vmatpush1.bf16.msra.mxu0 0
        %2777 = vmatprep.mubr.bf16.mxu0 0
        %2778 = vmatmul.mubr.bf16.gmra.mrb[0].mxu0 %v2737
        %v2779 = vpop.f32.mrb[0].mxu0
        %v2780 = vadd.f32 0.0, %v2779
        %v2781 = vpop.f32.mrb[0].mxu0
        %v2782 = vpop.f32.mrb[0].mxu0
        %v2783 = vadd.f32 0.0, %v2782
        %v2784 = vpop.f32.mrb[0].mxu0
        %2785 = vmatprep.mubr.bf16.mxu0 0
        %2786 = vmatmul.mubr.bf16.gmra.mrb[0].mxu0 %v2740
        %v2787 = vpop.f32.mrb[0].mxu0
        %v2788 = vadd.f32 0.0, %v2787
        %v2789 = vpop.f32.mrb[0].mxu0
        %v2790 = vpop.f32.mrb[0].mxu0
        %v2791 = vadd.f32 0.0, %v2790
        %v2792 = vpop.f32.mrb[0].mxu0
        %2793 = vdwg.mxu0
        %v2794 = vadd.f32 %v2691, %v2780
        %v2795 = vadd.f32 %v2692, %v2783
        %v2796 = vadd.f32 %v2693, %v2788
        %v2797 = vadd.f32 %v2694, %v2791
        %2798 = vst [vmem:[#allocation2] sm:$0xff] %v2794
        %2799 = vst [vmem:[#allocation2 + $0x8] sm:$0xff] %v2795
        %2800 = vst [vmem:[#allocation2 + $0x10] sm:$0xff] %v2796
        %2801 = vst [vmem:[#allocation2 + $0x18] sm:$0xff] %v2797
        %v2802 = vld [vmem:[%s428 + $0x4] sm:$0xf]
        %v2803 = vld [vmem:[%s428 + $0x8] sm:$0xf]
        %v2804 = vld [vmem:[%s428 + $0xc] sm:$0xf]
        %v2805 = vld [vmem:[%s428 + $0x10] sm:$0xf]
        %v2806 = vld [vmem:[#allocation2] sm:$0xff]
        %v2807 = vld [vmem:[#allocation2 + $0x8] sm:$0xff]
        %v2808 = vld [vmem:[#allocation2 + $0x10] sm:$0xff]
        %v2809 = vld [vmem:[#allocation2 + $0x18] sm:$0xff]
        %s2810 = scalar_lea.vmem [#allocation11], 92
        %v2811 = vld [vmem:[%s2810] sm:$0xf]
        %v2816 = vunpack.c.l.b16 %v2802
        %v2817 = vunpack.c.l.b16 %v2803
        %v2818 = vunpack.c.l.b16 %v2804
        %v2819 = vunpack.c.l.b16 %v2805
        %v2820 = vpack.c.b16 %v2817, %v2816
        %v2821 = vpack.c.b16 %v2819, %v2818
        %v2823 = vsel %vm524, %v2820, 0
        %v2826 = vsel %vm524, %v2821, 0
        %v2829 = vsel %vm531, %v2811, 0
        %2831 = vmatprep.subr.bf16.mxu0 0
        %2832 = vmatpush1.bf16.msra.mxu0 %v2829
        %2833 = vmatprep.subr.bf16.mxu0 0
        %2834 = vmatpush1.bf16.msra.mxu0 0
        %2835 = vmatprep.subr.bf16.mxu0 0
        %2836 = vmatpush1.bf16.msra.mxu0 0
        %2837 = vmatprep.subr.bf16.mxu0 0
        %2838 = vmatpush1.bf16.msra.mxu0 0
        %2839 = vmatprep.subr.bf16.mxu0 0
        %2840 = vmatpush1.bf16.msra.mxu0 0
        %2841 = vmatprep.subr.bf16.mxu0 0
        %2842 = vmatpush1.bf16.msra.mxu0 0
        %2843 = vmatprep.subr.bf16.mxu0 0
        %2844 = vmatpush1.bf16.msra.mxu0 0
        %2845 = vmatprep.subr.bf16.mxu0 0
        %2846 = vmatpush1.bf16.msra.mxu0 0
        %2847 = vmatprep.subr.bf16.mxu0 0
        %2848 = vmatpush1.bf16.msra.mxu0 0
        %2849 = vmatprep.subr.bf16.mxu0 0
        %2850 = vmatpush1.bf16.msra.mxu0 0
        %2851 = vmatprep.subr.bf16.mxu0 0
        %2852 = vmatpush1.bf16.msra.mxu0 0
        %2853 = vmatprep.subr.bf16.mxu0 0
        %2854 = vmatpush1.bf16.msra.mxu0 0
        %2855 = vmatprep.subr.bf16.mxu0 0
        %2856 = vmatpush1.bf16.msra.mxu0 0
        %2857 = vmatprep.subr.bf16.mxu0 0
        %2858 = vmatpush1.bf16.msra.mxu0 0
        %2859 = vmatprep.subr.bf16.mxu0 0
        %2860 = vmatpush1.bf16.msra.mxu0 0
        %2861 = vmatprep.subr.bf16.mxu0 0
        %2862 = vmatpush1.bf16.msra.mxu0 0
        %2863 = vmatprep.mubr.bf16.mxu0 0
        %2864 = vmatmul.mubr.bf16.gmra.mrb[0].mxu0 %v2823
        %v2865 = vpop.f32.mrb[0].mxu0
        %v2866 = vadd.f32 0.0, %v2865
        %v2867 = vpop.f32.mrb[0].mxu0
        %v2868 = vpop.f32.mrb[0].mxu0
        %v2869 = vadd.f32 0.0, %v2868
        %v2870 = vpop.f32.mrb[0].mxu0
        %2871 = vmatprep.mubr.bf16.mxu0 0
        %2872 = vmatmul.mubr.bf16.gmra.mrb[0].mxu0 %v2826
        %v2873 = vpop.f32.mrb[0].mxu0
        %v2874 = vadd.f32 0.0, %v2873
        %v2875 = vpop.f32.mrb[0].mxu0
        %v2876 = vpop.f32.mrb[0].mxu0
        %v2877 = vadd.f32 0.0, %v2876
        %v2878 = vpop.f32.mrb[0].mxu0
        %2879 = vdwg.mxu0
        %v2880 = vadd.f32 %v2806, %v2866
        %v2881 = vadd.f32 %v2807, %v2869
        %v2882 = vadd.f32 %v2808, %v2874
        %v2883 = vadd.f32 %v2809, %v2877
        %2884 = vst [vmem:[#allocation2] sm:$0xff] %v2880
        %2885 = vst [vmem:[#allocation2 + $0x8] sm:$0xff] %v2881
        %2886 = vst [vmem:[#allocation2 + $0x10] sm:$0xff] %v2882
        %2887 = vst [vmem:[#allocation2 + $0x18] sm:$0xff] %v2883
        %v2888 = vld [vmem:[%s428 + $0x4] sm:$0xc]
        %v2889 = vld [vmem:[%s428 + $0x8] sm:$0xf]
        %v2890 = vld [vmem:[%s428 + $0xc] sm:$0xf]
        %v2891 = vld [vmem:[%s428 + $0x10] sm:$0xf]
        %v2892 = vld [vmem:[%s428 + $0x14] sm:$0x3]
        %v2893 = vld [vmem:[#allocation2] sm:$0xff]
        %v2894 = vld [vmem:[#allocation2 + $0x8] sm:$0xff]
        %v2895 = vld [vmem:[#allocation2 + $0x10] sm:$0xff]
        %v2896 = vld [vmem:[#allocation2 + $0x18] sm:$0xff]
        %s2897 = scalar_lea.vmem [#allocation11], 96
        %v2898 = vld [vmem:[%s2897] sm:$0xf]
        %v2904 = vunpack.c.l.b16 %v2888
        %v2905 = vunpack.c.l.b16 %v2889
        %v2906 = vunpack.c.l.b16 %v2890
        %v2907 = vunpack.c.l.b16 %v2891
        %v2908 = vunpack.c.l.b16 %v2892
        %v2909 = vpack.c.b16 %v2905, %v2904
        %v2910 = vpack.c.b16 %v2907, %v2906
        %v2911 = vpack.c.b16 %v2908, %v2908
        %v2912 = vrot.slane %v2909, 2
        %v2913 = vrot.slane %v2910, 2
        %v2914 = vsel %vm1122, %v2912, %v2913
        %v2915 = vrot.slane %v2911, 2
        %v2916 = vsel %vm1122, %v2913, %v2915
        %v2918 = vsel %vm524, %v2914, 0
        %v2921 = vsel %vm524, %v2916, 0
        %v2924 = vsel %vm531, %v2898, 0
        %2926 = vmatprep.subr.bf16.mxu0 0
        %2927 = vmatpush1.bf16.msra.mxu0 %v2924
        %2928 = vmatprep.subr.bf16.mxu0 0
        %2929 = vmatpush1.bf16.msra.mxu0 0
        %2930 = vmatprep.subr.bf16.mxu0 0
        %2931 = vmatpush1.bf16.msra.mxu0 0
        %2932 = vmatprep.subr.bf16.mxu0 0
        %2933 = vmatpush1.bf16.msra.mxu0 0
        %2934 = vmatprep.subr.bf16.mxu0 0
        %2935 = vmatpush1.bf16.msra.mxu0 0
        %2936 = vmatprep.subr.bf16.mxu0 0
        %2937 = vmatpush1.bf16.msra.mxu0 0
        %2938 = vmatprep.subr.bf16.mxu0 0
        %2939 = vmatpush1.bf16.msra.mxu0 0
        %2940 = vmatprep.subr.bf16.mxu0 0
        %2941 = vmatpush1.bf16.msra.mxu0 0
        %2942 = vmatprep.subr.bf16.mxu0 0
        %2943 = vmatpush1.bf16.msra.mxu0 0
        %2944 = vmatprep.subr.bf16.mxu0 0
        %2945 = vmatpush1.bf16.msra.mxu0 0
        %2946 = vmatprep.subr.bf16.mxu0 0
        %2947 = vmatpush1.bf16.msra.mxu0 0
        %2948 = vmatprep.subr.bf16.mxu0 0
        %2949 = vmatpush1.bf16.msra.mxu0 0
        %2950 = vmatprep.subr.bf16.mxu0 0
        %2951 = vmatpush1.bf16.msra.mxu0 0
        %2952 = vmatprep.subr.bf16.mxu0 0
        %2953 = vmatpush1.bf16.msra.mxu0 0
        %2954 = vmatprep.subr.bf16.mxu0 0
        %2955 = vmatpush1.bf16.msra.mxu0 0
        %2956 = vmatprep.subr.bf16.mxu0 0
        %2957 = vmatpush1.bf16.msra.mxu0 0
        %2958 = vmatprep.mubr.bf16.mxu0 0
        %2959 = vmatmul.mubr.bf16.gmra.mrb[0].mxu0 %v2918
        %v2960 = vpop.f32.mrb[0].mxu0
        %v2961 = vadd.f32 0.0, %v2960
        %v2962 = vpop.f32.mrb[0].mxu0
        %v2963 = vpop.f32.mrb[0].mxu0
        %v2964 = vadd.f32 0.0, %v2963
        %v2965 = vpop.f32.mrb[0].mxu0
        %2966 = vmatprep.mubr.bf16.mxu0 0
        %2967 = vmatmul.mubr.bf16.gmra.mrb[0].mxu0 %v2921
        %v2968 = vpop.f32.mrb[0].mxu0
        %v2969 = vadd.f32 0.0, %v2968
        %v2970 = vpop.f32.mrb[0].mxu0
        %v2971 = vpop.f32.mrb[0].mxu0
        %v2972 = vadd.f32 0.0, %v2971
        %v2973 = vpop.f32.mrb[0].mxu0
        %2974 = vdwg.mxu0
        %v2975 = vadd.f32 %v2893, %v2961
        %v2976 = vadd.f32 %v2894, %v2964
        %v2977 = vadd.f32 %v2895, %v2969
        %v2978 = vadd.f32 %v2896, %v2972
        %2979 = vst [vmem:[#allocation2] sm:$0xff] %v2975
        %2980 = vst [vmem:[#allocation2 + $0x8] sm:$0xff] %v2976
        %2981 = vst [vmem:[#allocation2 + $0x10] sm:$0xff] %v2977
        %2982 = vst [vmem:[#allocation2 + $0x18] sm:$0xff] %v2978
        %v2983 = vld [vmem:[%s428 + $0x4] sm:$0xc]
        %v2984 = vld [vmem:[%s428 + $0x8] sm:$0xf]
        %v2985 = vld [vmem:[%s428 + $0xc] sm:$0xf]
        %v2986 = vld [vmem:[%s428 + $0x10] sm:$0xf]
        %v2987 = vld [vmem:[%s428 + $0x14] sm:$0x7]
        %v2988 = vld [vmem:[#allocation2] sm:$0xff]
        %v2989 = vld [vmem:[#allocation2 + $0x8] sm:$0xff]
        %v2990 = vld [vmem:[#allocation2 + $0x10] sm:$0xff]
        %v2991 = vld [vmem:[#allocation2 + $0x18] sm:$0xff]
        %s2992 = scalar_lea.vmem [#allocation11], 100
        %v2993 = vld [vmem:[%s2992] sm:$0xf]
        %v2999 = vunpack.c.l.b16 %v2983
        %v3000 = vunpack.c.l.b16 %v2984
        %v3001 = vunpack.c.l.b16 %v2985
        %v3002 = vunpack.c.l.b16 %v2986
        %v3003 = vunpack.c.l.b16 %v2987
        %v3004 = vpack.c.b16 %v3000, %v2999
        %v3005 = vpack.c.b16 %v3002, %v3001
        %v3006 = vpack.c.b16 %v3003, %v3003
        %v3008 = vshrl.u32 %v3004, 16
        %v3010 = vrot.slane %v3008, 2
        %v3011 = vshll.u32 %v3004, 16
        %v3013 = vrot.slane %v3011, 3
        %v3014 = vor.u32 %v3010, %v3013
        %v3016 = vshrl.u32 %v3005, 16
        %v3018 = vrot.slane %v3016, 2
        %v3019 = vshll.u32 %v3005, 16
        %v3021 = vrot.slane %v3019, 3
        %v3022 = vor.u32 %v3018, %v3021
        %v3023 = vsel %vm1218, %v3014, %v3022
        %v3025 = vshrl.u32 %v3006, 16
        %v3027 = vrot.slane %v3025, 2
        %v3028 = vshll.u32 %v3006, 16
        %v3030 = vrot.slane %v3028, 3
        %v3031 = vor.u32 %v3027, %v3030
        %v3032 = vsel %vm1218, %v3022, %v3031
        %v3034 = vsel %vm524, %v3023, 0
        %v3037 = vsel %vm524, %v3032, 0
        %v3040 = vsel %vm531, %v2993, 0
        %3042 = vmatprep.subr.bf16.mxu0 0
        %3043 = vmatpush1.bf16.msra.mxu0 %v3040
        %3044 = vmatprep.subr.bf16.mxu0 0
        %3045 = vmatpush1.bf16.msra.mxu0 0
        %3046 = vmatprep.subr.bf16.mxu0 0
        %3047 = vmatpush1.bf16.msra.mxu0 0
        %3048 = vmatprep.subr.bf16.mxu0 0
        %3049 = vmatpush1.bf16.msra.mxu0 0
        %3050 = vmatprep.subr.bf16.mxu0 0
        %3051 = vmatpush1.bf16.msra.mxu0 0
        %3052 = vmatprep.subr.bf16.mxu0 0
        %3053 = vmatpush1.bf16.msra.mxu0 0
        %3054 = vmatprep.subr.bf16.mxu0 0
        %3055 = vmatpush1.bf16.msra.mxu0 0
        %3056 = vmatprep.subr.bf16.mxu0 0
        %3057 = vmatpush1.bf16.msra.mxu0 0
        %3058 = vmatprep.subr.bf16.mxu0 0
        %3059 = vmatpush1.bf16.msra.mxu0 0
        %3060 = vmatprep.subr.bf16.mxu0 0
        %3061 = vmatpush1.bf16.msra.mxu0 0
        %3062 = vmatprep.subr.bf16.mxu0 0
        %3063 = vmatpush1.bf16.msra.mxu0 0
        %3064 = vmatprep.subr.bf16.mxu0 0
        %3065 = vmatpush1.bf16.msra.mxu0 0
        %3066 = vmatprep.subr.bf16.mxu0 0
        %3067 = vmatpush1.bf16.msra.mxu0 0
        %3068 = vmatprep.subr.bf16.mxu0 0
        %3069 = vmatpush1.bf16.msra.mxu0 0
        %3070 = vmatprep.subr.bf16.mxu0 0
        %3071 = vmatpush1.bf16.msra.mxu0 0
        %3072 = vmatprep.subr.bf16.mxu0 0
        %3073 = vmatpush1.bf16.msra.mxu0 0
        %3074 = vmatprep.mubr.bf16.mxu0 0
        %3075 = vmatmul.mubr.bf16.gmra.mrb[0].mxu0 %v3034
        %v3076 = vpop.f32.mrb[0].mxu0
        %v3077 = vadd.f32 0.0, %v3076
        %v3078 = vpop.f32.mrb[0].mxu0
        %v3079 = vpop.f32.mrb[0].mxu0
        %v3080 = vadd.f32 0.0, %v3079
        %v3081 = vpop.f32.mrb[0].mxu0
        %3082 = vmatprep.mubr.bf16.mxu0 0
        %3083 = vmatmul.mubr.bf16.gmra.mrb[0].mxu0 %v3037
        %v3084 = vpop.f32.mrb[0].mxu0
        %v3085 = vadd.f32 0.0, %v3084
        %v3086 = vpop.f32.mrb[0].mxu0
        %v3087 = vpop.f32.mrb[0].mxu0
        %v3088 = vadd.f32 0.0, %v3087
        %v3089 = vpop.f32.mrb[0].mxu0
        %3090 = vdwg.mxu0
        %v3091 = vadd.f32 %v2988, %v3077
        %v3092 = vadd.f32 %v2989, %v3080
        %v3093 = vadd.f32 %v2990, %v3085
        %v3094 = vadd.f32 %v2991, %v3088
        %3095 = vst [vmem:[#allocation2] sm:$0xff] %v3091
        %3096 = vst [vmem:[#allocation2 + $0x8] sm:$0xff] %v3092
        %3097 = vst [vmem:[#allocation2 + $0x10] sm:$0xff] %v3093
        %3098 = vst [vmem:[#allocation2 + $0x18] sm:$0xff] %v3094
        %v3099 = vld [vmem:[%s428 + $0x4] sm:$0x8]
        %v3100 = vld [vmem:[%s428 + $0x8] sm:$0xf]
        %v3101 = vld [vmem:[%s428 + $0xc] sm:$0xf]
        %v3102 = vld [vmem:[%s428 + $0x10] sm:$0xf]
        %v3103 = vld [vmem:[%s428 + $0x14] sm:$0x7]
        %v3104 = vld [vmem:[#allocation2] sm:$0xff]
        %v3105 = vld [vmem:[#allocation2 + $0x8] sm:$0xff]
        %v3106 = vld [vmem:[#allocation2 + $0x10] sm:$0xff]
        %v3107 = vld [vmem:[#allocation2 + $0x18] sm:$0xff]
        %s3108 = scalar_lea.vmem [#allocation11], 104
        %v3109 = vld [vmem:[%s3108] sm:$0xf]
        %v3115 = vunpack.c.l.b16 %v3099
        %v3116 = vunpack.c.l.b16 %v3100
        %v3117 = vunpack.c.l.b16 %v3101
        %v3118 = vunpack.c.l.b16 %v3102
        %v3119 = vunpack.c.l.b16 %v3103
        %v3120 = vpack.c.b16 %v3116, %v3115
        %v3121 = vpack.c.b16 %v3118, %v3117
        %v3122 = vpack.c.b16 %v3119, %v3119
        %v3123 = vrot.slane %v3120, 3
        %v3124 = vrot.slane %v3121, 3
        %v3125 = vsel %vm823, %v3123, %v3124
        %v3126 = vrot.slane %v3122, 3
        %v3127 = vsel %vm823, %v3124, %v3126
        %v3129 = vsel %vm524, %v3125, 0
        %v3132 = vsel %vm524, %v3127, 0
        %v3135 = vsel %vm531, %v3109, 0
        %3137 = vmatprep.subr.bf16.mxu0 0
        %3138 = vmatpush1.bf16.msra.mxu0 %v3135
        %3139 = vmatprep.subr.bf16.mxu0 0
        %3140 = vmatpush1.bf16.msra.mxu0 0
        %3141 = vmatprep.subr.bf16.mxu0 0
        %3142 = vmatpush1.bf16.msra.mxu0 0
        %3143 = vmatprep.subr.bf16.mxu0 0
        %3144 = vmatpush1.bf16.msra.mxu0 0
        %3145 = vmatprep.subr.bf16.mxu0 0
        %3146 = vmatpush1.bf16.msra.mxu0 0
        %3147 = vmatprep.subr.bf16.mxu0 0
        %3148 = vmatpush1.bf16.msra.mxu0 0
        %3149 = vmatprep.subr.bf16.mxu0 0
        %3150 = vmatpush1.bf16.msra.mxu0 0
        %3151 = vmatprep.subr.bf16.mxu0 0
        %3152 = vmatpush1.bf16.msra.mxu0 0
        %3153 = vmatprep.subr.bf16.mxu0 0
        %3154 = vmatpush1.bf16.msra.mxu0 0
        %3155 = vmatprep.subr.bf16.mxu0 0
        %3156 = vmatpush1.bf16.msra.mxu0 0
        %3157 = vmatprep.subr.bf16.mxu0 0
        %3158 = vmatpush1.bf16.msra.mxu0 0
        %3159 = vmatprep.subr.bf16.mxu0 0
        %3160 = vmatpush1.bf16.msra.mxu0 0
        %3161 = vmatprep.subr.bf16.mxu0 0
        %3162 = vmatpush1.bf16.msra.mxu0 0
        %3163 = vmatprep.subr.bf16.mxu0 0
        %3164 = vmatpush1.bf16.msra.mxu0 0
        %3165 = vmatprep.subr.bf16.mxu0 0
        %3166 = vmatpush1.bf16.msra.mxu0 0
        %3167 = vmatprep.subr.bf16.mxu0 0
        %3168 = vmatpush1.bf16.msra.mxu0 0
        %3169 = vmatprep.mubr.bf16.mxu0 0
        %3170 = vmatmul.mubr.bf16.gmra.mrb[0].mxu0 %v3129
        %v3171 = vpop.f32.mrb[0].mxu0
        %v3172 = vadd.f32 0.0, %v3171
        %v3173 = vpop.f32.mrb[0].mxu0
        %v3174 = vpop.f32.mrb[0].mxu0
        %v3175 = vadd.f32 0.0, %v3174
        %v3176 = vpop.f32.mrb[0].mxu0
        %3177 = vmatprep.mubr.bf16.mxu0 0
        %3178 = vmatmul.mubr.bf16.gmra.mrb[0].mxu0 %v3132
        %v3179 = vpop.f32.mrb[0].mxu0
        %v3180 = vadd.f32 0.0, %v3179
        %v3181 = vpop.f32.mrb[0].mxu0
        %v3182 = vpop.f32.mrb[0].mxu0
        %v3183 = vadd.f32 0.0, %v3182
        %v3184 = vpop.f32.mrb[0].mxu0
        %3185 = vdwg.mxu0
        %v3186 = vadd.f32 %v3104, %v3172
        %v3187 = vadd.f32 %v3105, %v3175
        %v3188 = vadd.f32 %v3106, %v3180
        %v3189 = vadd.f32 %v3107, %v3183
        %3190 = vst [vmem:[#allocation2] sm:$0xff] %v3186
        %3191 = vst [vmem:[#allocation2 + $0x8] sm:$0xff] %v3187
        %3192 = vst [vmem:[#allocation2 + $0x10] sm:$0xff] %v3188
        %3193 = vst [vmem:[#allocation2 + $0x18] sm:$0xff] %v3189
        %v3194 = vld [vmem:[#allocation2] sm:$0xff]
        %v3195 = vld [vmem:[#allocation2 + $0x8] sm:$0xff]
        %v3196 = vld [vmem:[#allocation2 + $0x10] sm:$0xff]
        %v3197 = vld [vmem:[#allocation2 + $0x18] sm:$0xff]
        %v3198 = vld [vmem:[#allocation13] sm:$0x1]
        %v3200 = vlaneseq
        %v3201 = vshrl.u32 %v3200, 7
        %v3202 = vsub.s32 0, %v3201
        %v3203 = vrot.slane %v3198, %v3202
        %v3205 = vadd.f32 %v3194, %v3203
        %v3206 = vadd.f32 %v3195, %v3203
        %v3207 = vadd.f32 %v3196, %v3203
        %v3208 = vadd.f32 %v3197, %v3203
        %v3209 = vpack.c.bf16 %v3206, %v3205
        %v3210 = vpack.c.bf16 %v3208, %v3207
        %v3213 = vunpack.c.l.b16 %v3209
        %v3214 = vunpack.c.h.b16 %v3209
        %v3215 = vunpack.c.l.b16 %v3210
        %v3216 = vunpack.c.h.b16 %v3210
        %v3217 = vpack.c.b16 %v3213, %v3213
        %v3218 = vpack.c.b16 %v3214, %v3214
        %v3219 = vpack.c.b16 %v3215, %v3215
        %v3220 = vpack.c.b16 %v3216, %v3216
        %3225 = vst [vmem:[%s478] sm:$0xf] %v3217
        %3226 = vst [vmem:[%s478 + $0x4] sm:$0xf] %v3218
        %3227 = vst [vmem:[%s478 + $0x8] sm:$0xf] %v3219
        %3228 = vst [vmem:[%s478 + $0xc] sm:$0xf] %v3220
        %v3229 = vunpack.c.l.bf16 %v3209
        %v3230 = vunpack.c.h.bf16 %v3209
        %v3231 = vunpack.c.l.bf16 %v3210
        %v3232 = vunpack.c.h.bf16 %v3210
        %v3233 = vld [vmem:[#allocation14] sm:$0xff]
        %v3234 = vld [vmem:[#allocation14 + $0x8] sm:$0xff]
        %v3235 = vld [vmem:[#allocation14 + $0x10] sm:$0xff]
        %v3236 = vld [vmem:[#allocation14 + $0x18] sm:$0xff]
        %3238 = vset.pattern.permute.xlu0 0
        %3239 = vperm.xlu0 %3238, %v3233
        %v3240 = vpop.permute.xlu0 %3239
        %3243 = vset.pattern.permute.xlu0 0
        %3244 = vperm.xlu0 %3243, %v3234
        %v3245 = vpop.permute.xlu0 %3244
        %3248 = vset.pattern.permute.xlu0 0
        %3249 = vperm.xlu0 %3248, %v3235
        %v3250 = vpop.permute.xlu0 %3249
        %3253 = vset.pattern.permute.xlu0 0
        %3254 = vperm.xlu0 %3253, %v3236
        %v3255 = vpop.permute.xlu0 %3254
        %v3257 = vmul.f32 %v3229, %v3240
        %v3258 = vmul.f32 %v3230, %v3245
        %v3259 = vmul.f32 %v3231, %v3250
        %v3260 = vmul.f32 %v3232, %v3255
        %v3261 = vld [vmem:[#allocation3] sm:$0x1]
        %v3262 = vadd.f32 %v3257, %v3258
        %v3263 = vadd.f32 %v3262, %v3259
        %v3264 = vadd.f32 %v3263, %v3260
        %v3265 = vrot.slane %v3264, 4
        %v3266 = vadd.f32 %v3264, %v3265
        %v3267 = vrot.slane %v3266, 2
        %v3268 = vadd.f32 %v3266, %v3267
        %v3269 = vrot.slane %v3268, 1
        %v3270 = vadd.f32 %v3268, %v3269
        %v3271 = vadd.f32 %v3261, %v3270
        %3272 = vst [vmem:[#allocation3] sm:$0x1] %v3271
        %v3273 = vld [vmem:[#allocation4] sm:$0x1]
        %v3274 = vmul.f32 %v3257, %v3257
        %v3275 = vmul.f32 %v3258, %v3258
        %v3276 = vmul.f32 %v3259, %v3259
        %v3277 = vmul.f32 %v3260, %v3260
        %v3278 = vadd.f32 %v3274, %v3275
        %v3279 = vadd.f32 %v3278, %v3276
        %v3280 = vadd.f32 %v3279, %v3277
        %v3281 = vrot.slane %v3280, 4
        %v3282 = vadd.f32 %v3280, %v3281
        %v3283 = vrot.slane %v3282, 2
        %v3284 = vadd.f32 %v3282, %v3283
        %v3285 = vrot.slane %v3284, 1
        %v3286 = vadd.f32 %v3284, %v3285
        %v3287 = vadd.f32 %v3273, %v3286
        %3288 = vst [vmem:[#allocation4] sm:$0x1] %v3287
        %p3289 = scmp.eq.s32.totalorder %s39, 3
        // Predicated region
        $region73: #{downsampling_block.6} parent=43 // pred_check
          %p3290 = pneg %p3289
        $region74: #{downsampling_block.6} parent=43 // pred_check_branch
          %3292 = sbr.rel (%p3290) target = $region76
        $region75: #{downsampling_block.6} parent=43 // pred_region
          %v3293 = vld [vmem:[#allocation3] sm:$0x1]
          %v3294 = vmul.f32 %v3293, 0.015625
          %v3295 = vld [vmem:[#allocation4] sm:$0x1]
          %v3296 = vmul.f32 %v3295, 0.015625
          %v3297 = vmul.f32 %v3294, %v3294
          %v3298 = vsub.f32 %v3296, %v3297
          %v3299 = vmax.f32 %v3298, 0.0
          %3300 = vst [vmem:[%s484] sm:$0x1] %v3294
          %v3301 = vadd.f32 %v3299, 1e-05
          %v3302 = vrsqrt.pop %v3301
          %3303 = vst [vmem:[%s490] sm:$0x1] %v3302
        $region76: #{downsampling_block.6} parent=43 // pred_fallthru
          _
        %s3304 = sand.u32 %s207, 1
        %s3305 = scalar_lea.sflag [#allocation7], %s3304
        %s3306 = sand.u32 %s207, 1
        %s3307 = smul.addr %s3306, 16
        %s3308 = scalar_lea.vmem [#allocation16], %s3307
        %s3309 = sand.u32 %s34, 1
        %s3310 = scalar_lea.sflag [#allocation18], %s3309
        %s3311 = sand.u32 %s233, 1
        %s3312 = scalar_lea.vmem [#allocation17], %s3311
        %s3313 = sand.u32 %s34, 1
        %s3314 = scalar_lea.sflag [#allocation18], %s3313
        %s3315 = sand.u32 %s259, 1
        %s3316 = scalar_lea.vmem [#allocation19], %s3315
        // Predicated region
        $region77: #{downsampling_block.6} parent=43 // pred_check
          %p3317 = pneg %p217
        $region78: #{downsampling_block.6} parent=43 // pred_check_branch
          %3319 = sbr.rel (%p3317) target = $region80
        $region79: #{downsampling_block.6} parent=43 // pred_region
          %s3320 = smul.u32 4, %s39
          %s3322 = ssub.s32 256, 256
          %3323 = vsyncadd %s3305, %s3322
          %s3324 = smul.addr %s38, 16
          %s3325 = sadd.s32 %s3320, %s3324
          %s3326 = smul.addr %s3325, 64
          %s3327 = scalar_lea.hbm %s6, %s3326
          %s3328 = sshll.u32 %s3308, 4
          %s3329 = int_to_ptr.vmem [resolvable:$true] %s3328
          %3334 = dma.vmem_to_hbm [thread:$0]  %s3329, 256, %s3327, %s3305, 64, 64, 4
        $region80: #{downsampling_block.6} parent=43 // pred_fallthru
          _
        // Predicated region
        $region81: #{downsampling_block.6} parent=43 // pred_check
          %p3335 = pneg %p243
        $region82: #{downsampling_block.6} parent=43 // pred_check_branch
          %3337 = sbr.rel (%p3335) target = $region84
        $region83: #{downsampling_block.6} parent=43 // pred_region
          %s3339 = ssub.s32 16, 16
          %3340 = vsyncadd %s3310, %s3339
          %s3341 = smul.addr %s38, 16
          %s3342 = scalar_lea.hbm %s7, %s3341
          %s3344 = sshll.u32 %s3312, 4
          %s3345 = int_to_ptr.vmem [resolvable:$true] %s3344
          %3347 = dma.vmem_to_hbm [thread:$0]  %s3345, 16, %s3342, %s3310
        $region84: #{downsampling_block.6} parent=43 // pred_fallthru
          _
        // Predicated region
        $region85: #{downsampling_block.6} parent=43 // pred_check
          %p3348 = pneg %p269
        $region86: #{downsampling_block.6} parent=43 // pred_check_branch
          %3350 = sbr.rel (%p3348) target = $region88
        $region87: #{downsampling_block.6} parent=43 // pred_region
          %s3352 = ssub.s32 16, 16
          %3353 = vsyncadd %s3314, %s3352
          %s3354 = smul.addr %s38, 16
          %s3355 = scalar_lea.hbm %s8, %s3354
          %s3357 = sshll.u32 %s3316, 4
          %s3358 = int_to_ptr.vmem [resolvable:$true] %s3357
          %3360 = dma.vmem_to_hbm [thread:$0]  %s3358, 16, %s3355, %s3314
        $region88: #{downsampling_block.6} parent=43 // pred_fallthru
          _
      $region44: #{downsampling_block.6} parent=5 // pred_fallthru
        _
      %p3361 = scmp.le.s32.totalorder 2, %s29
      // Predicated region
      $region89: #{downsampling_block.6} parent=5 // pred_check
        %p3362 = pneg %p3361
      $region90: #{downsampling_block.6} parent=5 // pred_check_branch
        %3364 = sbr.rel (%p3362) target = $region92
      $region91: #{downsampling_block.6} parent=5 // pred_region
        %s3365 = ssub.s32 %s29, 2
        // Predicated region
        $region93: #{downsampling_block.6} parent=91 // pred_check
          %p3366 = pneg %p223
        $region94: #{downsampling_block.6} parent=91 // pred_check_branch
          %3368 = sbr.rel (%p3366) target = $region96
        $region95: #{downsampling_block.6} parent=91 // pred_region
          %s3369 = sand.u32 %s208, 1
          %s3370 = scalar_lea.sflag [#allocation7], %s3369
          %s3371 = sand.u32 %s208, 1
          %s3372 = smul.addr %s3371, 16
          %s3373 = scalar_lea.vmem [#allocation16], %s3372
          %3374 = dma.done %s3370, 256
        $region96: #{downsampling_block.6} parent=91 // pred_fallthru
          _
        // Predicated region
        $region97: #{downsampling_block.6} parent=91 // pred_check
          %p3375 = pneg %p249
        $region98: #{downsampling_block.6} parent=91 // pred_check_branch
          %3377 = sbr.rel (%p3375) target = $region100
        $region99: #{downsampling_block.6} parent=91 // pred_region
          %s3378 = sand.u32 %s35, 1
          %s3379 = scalar_lea.sflag [#allocation18], %s3378
          %s3380 = sand.u32 %s234, 1
          %s3381 = scalar_lea.vmem [#allocation17], %s3380
          %3382 = dma.done %s3379, 16
        $region100: #{downsampling_block.6} parent=91 // pred_fallthru
          _
        // Predicated region
        $region101: #{downsampling_block.6} parent=91 // pred_check
          %p3383 = pneg %p275
        $region102: #{downsampling_block.6} parent=91 // pred_check_branch
          %3385 = sbr.rel (%p3383) target = $region104
        $region103: #{downsampling_block.6} parent=91 // pred_region
          %s3386 = sand.u32 %s35, 1
          %s3387 = scalar_lea.sflag [#allocation18], %s3386
          %s3388 = sand.u32 %s260, 1
          %s3389 = scalar_lea.vmem [#allocation19], %s3388
          %3390 = dma.done %s3387, 16
        $region104: #{downsampling_block.6} parent=91 // pred_fallthru
          _
      $region92: #{downsampling_block.6} parent=5 // pred_fallthru
        _
    $region6: #{downsampling_block.6} parent=1 // loop_footer
      %s33 = sadd.s32 1, %s29
    $region7: #{downsampling_block.6} parent=1 // loop_footer_branch
      %28 = sbr.rel target = $region3
    $region8: #{downsampling_block.6} parent=1 // loop_exit
      _
    %3391 = vsyncpa [#allocation6], 1
    %s3392 = scalar_lea.sflag [#allocation6], 1
    %3393 = vsyncpa %s3392, 1
    %3394 = vsyncpa [#allocation9], 1
    %s3395 = scalar_lea.sflag [#allocation9], 1
    %3396 = vsyncpa %s3395, 1
    %3397 = vsyncpa [#allocation12], 1
    %3398 = vsyncpa [#allocation15], 1
    %3399 = vsyncpa [#allocation7], 1
    %s3400 = scalar_lea.sflag [#allocation7], 1
    %3401 = vsyncpa %s3400, 1
    %3402 = vsyncpa [#allocation18], 1
    %s3403 = scalar_lea.sflag [#allocation18], 1
    %3404 = vsyncpa %s3403, 1

</llo_original>
